<compile_context>
chip_gen: v7x
topology: tpu7x:2x2x1
jax: 0.10.0
libtpu: 0.0.40
codegen_flags: <defaults>
</compile_context>

<pallas_src>
import functools

import jax
import jax.numpy as jnp
from jax import lax
from jax.experimental import pallas as pl
from jax.experimental.pallas import tpu as pltpu

LANE = 128


def _round_up(x, m):
    return (x + m - 1) // m * m


def _pick_tm(M, cap=512):
    """Row tile: aim for exactly 2 M blocks (so both v7x TensorCores get work),
    multiple of 16 (bf16 sublane packing), capped to keep VMEM small."""
    Mp = _round_up(M, 16)
    if Mp <= 2 * cap:
        tm = max(16, _round_up((Mp + 1) // 2, 16))
    else:
        tm = cap
    return min(tm, Mp)


# --------------------------- Pallas kernels ---------------------------------

def _matmul_bias_kernel(x_ref, w_ref, b_ref, o_ref, *, relu):
    """One-shot y = x @ w + b (optional ReLU).  K fits in one block, so no
    accumulator scratch / init / finalize gates are needed."""
    acc = jnp.dot(x_ref[...], w_ref[...], preferred_element_type=jnp.float32)
    acc = acc + b_ref[...]
    if relu:
        acc = jnp.maximum(acc, 0.0)
    o_ref[...] = acc.astype(o_ref.dtype)


def _conv_pool_kernel(p_ref, w_ref, b_ref, conv_ref, pool_ref, *, ntaps, C):
    """Fused branch-2 stride-2 conv (im2col matmul + bias + ReLU) and branch-3
    3x3/2 max-pool (+ReLU).  Both consume the same taps, laid out tap-major
    along the lane axis of p_ref: (tm, ntaps*C)."""
    p = p_ref[...]
    acc = jnp.dot(p, w_ref[...], preferred_element_type=jnp.float32)
    conv_ref[...] = jnp.maximum(acc + b_ref[...], 0.0).astype(conv_ref.dtype)
    r = p[:, 0:C]
    for t in range(1, ntaps):
        r = jnp.maximum(r, p[:, t * C:(t + 1) * C])
    pool_ref[...] = jnp.maximum(r.astype(jnp.float32), 0.0).astype(pool_ref.dtype)


# ------------------------------ wrappers -------------------------------------

def _matmul_bias(x, w, b, *, relu, out_dtype=jnp.float32):
    """y = x @ w + b (+ReLU).  w: (K, Np) bf16 already lane-padded, b: (1, Np)
    f32.  Single K step; grid is (M blocks, N blocks) and both are parallel."""
    M, K = x.shape
    Kw, N = w.shape
    assert K == Kw and N % LANE == 0, (K, Kw, N)
    tm = _pick_tm(M)
    Mp = _round_up(M, tm)
    xp = jnp.pad(x, ((0, Mp - M), (0, 0))) if Mp != M else x
    tn = LANE

    out = pl.pallas_call(
        functools.partial(_matmul_bias_kernel, relu=relu),
        out_shape=jax.ShapeDtypeStruct((Mp, N), out_dtype),
        grid_spec=pltpu.PrefetchScalarGridSpec(
            num_scalar_prefetch=0,
            grid=(Mp // tm, N // tn),
            in_specs=[pl.BlockSpec((tm, K), lambda i, j: (i, 0)),
                      pl.BlockSpec((K, tn), lambda i, j: (0, j)),
                      pl.BlockSpec((1, tn), lambda i, j: (0, j))],
            out_specs=pl.BlockSpec((tm, tn), lambda i, j: (i, j)),
        ),
        compiler_params=pltpu.CompilerParams(
            dimension_semantics=("parallel", "parallel")),
    )(xp, w, b)
    return out[:M]


def _conv2d(x, w_mat, b, *, kh, kw, stride=1, padding=0, relu=False,
            out_dtype=jnp.float32):
    """NHWC conv via im2col + Pallas matmul.  w_mat: (kh*kw*Cin, Np) bf16."""
    if padding:
        x = jnp.pad(x, ((0, 0), (padding, padding), (padding, padding), (0, 0)))
    N, H, W, Cin = x.shape
    Hout = (H - kh) // stride + 1
    Wout = (W - kw) // stride + 1
    if kh == 1 and kw == 1 and stride == 1:
        patches = x.reshape(N * Hout * Wout, Cin)
    else:
        taps = [x[:, i:i + stride * Hout:stride, j:j + stride * Wout:stride, :]
                for i in range(kh) for j in range(kw)]
        patches = jnp.concatenate(taps, axis=-1).reshape(
            N * Hout * Wout, kh * kw * Cin)
    y = _matmul_bias(patches, w_mat, b, relu=relu, out_dtype=out_dtype)
    return y.reshape(N, Hout, Wout, w_mat.shape[1])


def _conv2_and_pool(x, w_mat, b):
    """Fused: 3x3 stride-2 conv (+bias,+ReLU) AND 3x3 stride-2 max-pool
    (+ReLU) on NHWC x — both use the exact same 9 stride-2 taps."""
    N, H, W, C = x.shape
    Hout = (H - 3) // 2 + 1
    Wout = (W - 3) // 2 + 1
    taps = [x[:, i:i + 2 * Hout:2, j:j + 2 * Wout:2, :]
            for i in range(3) for j in range(3)]
    patches = jnp.concatenate(taps, axis=-1).reshape(N * Hout * Wout, 9 * C)
    M = N * Hout * Wout
    tm = _pick_tm(M)
    Mp = _round_up(M, tm)
    if Mp != M:
        patches = jnp.pad(patches, ((0, Mp - M), (0, 0)))
    Nc = w_mat.shape[1]

    conv, pool = pl.pallas_call(
        functools.partial(_conv_pool_kernel, ntaps=9, C=C),
        out_shape=(jax.ShapeDtypeStruct((Mp, Nc), jnp.float32),
                   jax.ShapeDtypeStruct((Mp, C), jnp.float32)),
        grid_spec=pltpu.PrefetchScalarGridSpec(
            num_scalar_prefetch=0,
            grid=(Mp // tm,),
            in_specs=[pl.BlockSpec((tm, 9 * C), lambda i: (i, 0)),
                      pl.BlockSpec((9 * C, Nc), lambda i: (0, 0)),
                      pl.BlockSpec((1, Nc), lambda i: (0, 0))],
            out_specs=(pl.BlockSpec((tm, Nc), lambda i: (i, 0)),
                       pl.BlockSpec((tm, C), lambda i: (i, 0))),
        ),
        compiler_params=pltpu.CompilerParams(
            dimension_semantics=("parallel",)),
    )(patches, w_mat, b)
    return (conv[:M].reshape(N, Hout, Wout, Nc),
            pool[:M].reshape(N, Hout, Wout, C))


# ---------------------------- ReductionA --------------------------------------

def init_params(key, k, l, m, n):
    """Deterministic synthetic weights; layout HWIO, biases (Cout,). Float32."""
    ks = jax.random.split(key, 8)

    def w(kk, kh, kw, cin, cout):
        return (jax.random.normal(kk, (kh, kw, cin, cout), jnp.float32)
                / jnp.sqrt(float(kh * kw * cin)))

    def bias(kk, cout):
        return jax.random.normal(kk, (cout,), jnp.float32) * 0.01

    return dict(
        w1a=w(ks[0], 1, 1, 384, k), b1a=bias(ks[1], k),
        w1b=w(ks[2], 3, 3, k, l),   b1b=bias(ks[3], l),
        w1c=w(ks[4], 3, 3, l, m),   b1c=bias(ks[5], m),
        w2=w(ks[6], 3, 3, 384, n),  b2=bias(ks[7], n),
    )


def prepare_params(params):
    """One-time packing (outside jit): HWIO conv weights -> (K, Cout_pad) bf16
    matmul weights; Cin of the inner branch-1 convs is padded to 128 because
    branch-1 intermediates are kept lane-padded (their extra channels are
    exactly zero).  Biases stay f32, padded & reshaped to (1, Cout_pad)."""
    def pack(w, b, cin_pad=None):
        kh, kw, cin, cout = w.shape
        if cin_pad is not None and cin_pad > cin:
            w = jnp.pad(w, ((0, 0), (0, 0), (0, cin_pad - cin), (0, 0)))
            cin = cin_pad
        cout_p = _round_up(cout, LANE)
        w = jnp.pad(w, ((0, 0), (0, 0), (0, 0), (0, cout_p - cout)))
        w_mat = w.reshape(kh * kw * cin, cout_p).astype(jnp.bfloat16)
        b_p = jnp.pad(b, (0, cout_p - cout)).astype(jnp.float32).reshape(1, cout_p)
        return w_mat, b_p

    w1a, b1a = pack(params["w1a"], params["b1a"])               # Cin=384 aligned
    w1b, b1b = pack(params["w1b"], params["b1b"], cin_pad=LANE)  # Cin 32 -> 128
    w1c, b1c = pack(params["w1c"], params["b1c"], cin_pad=LANE)  # Cin 48 -> 128
    w2,  b2  = pack(params["w2"],  params["b2"])                # Cin=384 aligned
    return dict(w1a=w1a, b1a=b1a, w1b=w1b, b1b=b1b,
                w1c=w1c, b1c=b1c, w2=w2, b2=b2)


def reduction_a_forward(prepped, x_nchw, *, m, n):
    # NCHW in / NCHW out (matches PyTorch); NHWC + bf16 inside.
    x = jnp.transpose(x_nchw, (0, 2, 3, 1)).astype(jnp.bfloat16)
    # branch 1: 1x1 conv (padding=1) -> 3x3 conv -> 3x3 stride-2 conv (+ReLU).
    # Intermediates stay lane-padded to 128 channels (extra channels == 0).
    b1 = _conv2d(x, prepped["w1a"], prepped["b1a"], kh=1, kw=1, stride=1,
                 padding=1, out_dtype=jnp.bfloat16)
    b1 = _conv2d(b1, prepped["w1b"], prepped["b1b"], kh=3, kw=3,
                 out_dtype=jnp.bfloat16)
    b1 = _conv2d(b1, prepped["w1c"], prepped["b1c"], kh=3, kw=3, stride=2,
                 relu=True)[..., :m]
    # branch 2 + branch 3: fused stride-2 conv (+ReLU) and 3x3/2 max-pool
    # (+ReLU) — one tap extraction, one Pallas kernel.
    b2, b3 = _conv2_and_pool(x, prepped["w2"], prepped["b2"])
    b2 = b2[..., :n]
    out = jnp.concatenate([b1, b2, b3], axis=-1)  # ReLU already fused per branch
    return jnp.transpose(out, (0, 3, 1, 2))


def reduction_a_reference(params, x_nchw):
    """Pure-JAX f32 reference (lax conv / reduce_window)."""
    x = jnp.transpose(x_nchw, (0, 2, 3, 1))

    def conv(v, w, b, stride, pad):
        y = lax.conv_general_dilated(
            v, w, (stride, stride), [(pad, pad), (pad, pad)],
            dimension_numbers=("NHWC", "HWIO", "NHWC"),
            precision=lax.Precision.HIGHEST)
        return y + b

    b1 = conv(conv(conv(x, params["w1a"], params["b1a"], 1, 1),
                   params["w1b"], params["b1b"], 1, 0),
              params["w1c"], params["b1c"], 2, 0)
    b2 = conv(x, params["w2"], params["b2"], 2, 0)
    b3 = lax.reduce_window(x, -jnp.inf, lax.max,
                           (1, 3, 3, 1), (1, 2, 2, 1), "VALID")
    out = jax.nn.relu(jnp.concatenate([b1, b2, b3], axis=-1))
    return jnp.transpose(out, (0, 3, 1, 2))


if __name__ == "__main__":
    key = jax.random.PRNGKey(0)
    k_, l_, m_, n_ = 32, 48, 64, 96
    kp, kx = jax.random.split(key)
    params = init_params(kp, k_, l_, m_, n_)
    x = jax.random.normal(kx, (2, 384, 16, 16), jnp.float32)  # NCHW

    prepped = prepare_params(params)                 # one-time pack/pad/bf16
    fwd = jax.jit(reduction_a_forward, static_argnames=("m", "n"))
    out = fwd(prepped, x, m=m_, n=n_)
    out = jax.block_until_ready(out)

    ref = reduction_a_reference(params, x)
    assert out.shape == (2, m_ + n_ + 384, 7, 7), out.shape
    max_err = float(jnp.max(jnp.abs(out - ref)))
    # bf16 matmul inputs / intermediates with f32 MXU accumulation -> 2e-2 tol.
    assert jnp.allclose(out, ref, rtol=2e-2, atol=2e-2), max_err
    print("KERNEL_OK")
</pallas_src>

<mosaic_0001>
module attributes {stable_mosaic.version = 11 : i64} {
  func.func @_matmul_bias_kernel(%arg0: i32, %arg1: i32, %arg2: memref<336x384xbf16, #tpu.memory_space<vmem>>, %arg3: memref<384x128xbf16, #tpu.memory_space<vmem>>, %arg4: memref<1x128xf32, #tpu.memory_space<vmem>>, %arg5: memref<336x128xbf16, #tpu.memory_space<vmem>>) attributes {dimension_semantics = [#tpu.dimension_semantics<parallel>, #tpu.dimension_semantics<parallel>], iteration_bounds = array<i64: 2, 1>, scalar_prefetch = 0 : i64, scratch_operands = 0 : i64, tpu.core_type = #tpu.core_type<tc>, window_params = [{transform_indices = @transform_0, window_bounds = array<i64: 336, 384>}, {transform_indices = @transform_1, window_bounds = array<i64: 384, 128>}, {transform_indices = @transform_2, window_bounds = array<i64: 1, 128>}, {transform_indices = @transform_3, window_bounds = array<i64: 336, 128>}]} {
    %c0 = arith.constant 0 : index
    %c0_0 = arith.constant 0 : index
    %0 = vector.load %arg2[%c0, %c0_0] : memref<336x384xbf16, #tpu.memory_space<vmem>>, vector<336x384xbf16>
    %c0_1 = arith.constant 0 : index
    %c0_2 = arith.constant 0 : index
    %1 = vector.load %arg3[%c0_1, %c0_2] : memref<384x128xbf16, #tpu.memory_space<vmem>>, vector<384x128xbf16>
    %cst = arith.constant dense<0.000000e+00> : vector<336x128xf32>
    %2 = tpu.matmul %0, %1, %cst {dimension_numbers = #tpu.dot_dimension_numbers<[1], [0], [0], [1], [0, 0, 1, 1], [], []>} : vector<336x384xbf16>, vector<384x128xbf16>, vector<336x128xf32> -> vector<336x128xf32>
    %c0_3 = arith.constant 0 : index
    %c0_4 = arith.constant 0 : index
    %3 = vector.load %arg4[%c0_3, %c0_4] : memref<1x128xf32, #tpu.memory_space<vmem>>, vector<1x128xf32>
    %4 = vector.broadcast %3 : vector<1x128xf32> to vector<336x128xf32>
    %5 = arith.addf %2, %4 : vector<336x128xf32>
    %6 = arith.truncf %5 : vector<336x128xf32> to vector<336x128xbf16>
    %c0_5 = arith.constant 0 : index
    %c0_6 = arith.constant 0 : index
    %7 = vector.load %arg5[%c0_5, %c0_6] : memref<336x128xbf16, #tpu.memory_space<vmem>>, vector<336x128xbf16>
    tpu.vector_store %arg5[%c0_5, %c0_6], %6 {strides = array<i32>} : memref<336x128xbf16, #tpu.memory_space<vmem>>, vector<336x128xbf16>,
    return
  }
  func.func @transform_0(%arg0: i32, %arg1: i32) -> (i32, i32) {
    %c0_i32 = arith.constant 0 : i32
    %c0_i32_0 = arith.constant 0 : i32
    return %arg0, %c0_i32 : i32, i32
  }
  func.func @transform_1(%arg0: i32, %arg1: i32) -> (i32, i32) {
    %c0_i32 = arith.constant 0 : i32
    %c0_i32_0 = arith.constant 0 : i32
    return %c0_i32, %arg1 : i32, i32
  }
  func.func @transform_2(%arg0: i32, %arg1: i32) -> (i32, i32) {
    %c0_i32 = arith.constant 0 : i32
    %c0_i32_0 = arith.constant 0 : i32
    return %c0_i32, %arg1 : i32, i32
  }
  func.func @transform_3(%arg0: i32, %arg1: i32) -> (i32, i32) {
    %c0_i32 = arith.constant 0 : i32
    return %arg0, %arg1 : i32, i32
  }
}

module attributes {stable_mosaic.version = 11 : i64} {
  func.func @_conv_pool_kernel(%arg0: i32, %arg1: memref<64x3456xbf16, #tpu.memory_space<vmem>>, %arg2: memref<3456x128xbf16, #tpu.memory_space<vmem>>, %arg3: memref<1x128xf32, #tpu.memory_space<vmem>>, %arg4: memref<64x128xf32, #tpu.memory_space<vmem>>, %arg5: memref<64x384xf32, #tpu.memory_space<vmem>>) attributes {dimension_semantics = [#tpu.dimension_semantics<parallel>], iteration_bounds = array<i64: 2>, scalar_prefetch = 0 : i64, scratch_operands = 0 : i64, tpu.core_type = #tpu.core_type<tc>, window_params = [{transform_indices = @transform_0, window_bounds = array<i64: 64, 3456>}, {pipeline_mode = #tpu.pipeline_mode<synchronous>, transform_indices = @transform_1, window_bounds = array<i64: 3456, 128>}, {pipeline_mode = #tpu.pipeline_mode<synchronous>, transform_indices = @transform_2, window_bounds = array<i64: 1, 128>}, {transform_indices = @transform_3, window_bounds = array<i64: 64, 128>}, {transform_indices = @transform_4, window_bounds = array<i64: 64, 384>}]} {
    %c0 = arith.constant 0 : index
    %c0_0 = arith.constant 0 : index
    %0 = vector.load %arg1[%c0, %c0_0] : memref<64x3456xbf16, #tpu.memory_space<vmem>>, vector<64x3456xbf16>
    %c0_1 = arith.constant 0 : index
    %c0_2 = arith.constant 0 : index
    %1 = vector.load %arg2[%c0_1, %c0_2] : memref<3456x128xbf16, #tpu.memory_space<vmem>>, vector<3456x128xbf16>
    %cst = arith.constant dense<0.000000e+00> : vector<64x128xf32>
    %2 = tpu.matmul %0, %1, %cst {dimension_numbers = #tpu.dot_dimension_numbers<[1], [0], [0], [1], [0, 0, 1, 1], [], []>} : vector<64x3456xbf16>, vector<3456x128xbf16>, vector<64x128xf32> -> vector<64x128xf32>
    %c0_3 = arith.constant 0 : index
    %c0_4 = arith.constant 0 : index
    %3 = vector.load %arg3[%c0_3, %c0_4] : memref<1x128xf32, #tpu.memory_space<vmem>>, vector<1x128xf32>
    %4 = vector.broadcast %3 : vector<1x128xf32> to vector<64x128xf32>
    %5 = arith.addf %2, %4 : vector<64x128xf32>
    %cst_5 = arith.constant 0.000000e+00 : f32
    %6 = vector.broadcast %cst_5 : f32 to vector<64x128xf32>
    %7 = arith.maximumf %5, %6 : vector<64x128xf32>
    %c0_6 = arith.constant 0 : index
    %c0_7 = arith.constant 0 : index
    %8 = vector.load %arg4[%c0_6, %c0_7] : memref<64x128xf32, #tpu.memory_space<vmem>>, vector<64x128xf32>
    tpu.vector_store %arg4[%c0_6, %c0_7], %7 {strides = array<i32>} : memref<64x128xf32, #tpu.memory_space<vmem>>, vector<64x128xf32>,
    %9 = vector.extract_strided_slice %0 {offsets = [0, 0], sizes = [64, 384], strides = [1, 1]} : vector<64x3456xbf16> to vector<64x384xbf16>
    %10 = vector.extract_strided_slice %0 {offsets = [0, 384], sizes = [64, 384], strides = [1, 1]} : vector<64x3456xbf16> to vector<64x384xbf16>
    %11 = arith.maximumf %9, %10 : vector<64x384xbf16>
    %12 = vector.extract_strided_slice %0 {offsets = [0, 768], sizes = [64, 384], strides = [1, 1]} : vector<64x3456xbf16> to vector<64x384xbf16>
    %13 = arith.maximumf %11, %12 : vector<64x384xbf16>
    %14 = vector.extract_strided_slice %0 {offsets = [0, 1152], sizes = [64, 384], strides = [1, 1]} : vector<64x3456xbf16> to vector<64x384xbf16>
    %15 = arith.maximumf %13, %14 : vector<64x384xbf16>
    %16 = vector.extract_strided_slice %0 {offsets = [0, 1536], sizes = [64, 384], strides = [1, 1]} : vector<64x3456xbf16> to vector<64x384xbf16>
    %17 = arith.maximumf %15, %16 : vector<64x384xbf16>
    %18 = vector.extract_strided_slice %0 {offsets = [0, 1920], sizes = [64, 384], strides = [1, 1]} : vector<64x3456xbf16> to vector<64x384xbf16>
    %19 = arith.maximumf %17, %18 : vector<64x384xbf16>
    %20 = vector.extract_strided_slice %0 {offsets = [0, 2304], sizes = [64, 384], strides = [1, 1]} : vector<64x3456xbf16> to vector<64x384xbf16>
    %21 = arith.maximumf %19, %20 : vector<64x384xbf16>
    %22 = vector.extract_strided_slice %0 {offsets = [0, 2688], sizes = [64, 384], strides = [1, 1]} : vector<64x3456xbf16> to vector<64x384xbf16>
    %23 = arith.maximumf %21, %22 : vector<64x384xbf16>
    %24 = vector.extract_strided_slice %0 {offsets = [0, 3072], sizes = [64, 384], strides = [1, 1]} : vector<64x3456xbf16> to vector<64x384xbf16>
    %25 = arith.maximumf %23, %24 : vector<64x384xbf16>
    %26 = arith.extf %25 : vector<64x384xbf16> to vector<64x384xf32>
    %cst_8 = arith.constant 0.000000e+00 : f32
    %27 = vector.broadcast %cst_8 : f32 to vector<64x384xf32>
    %28 = arith.maximumf %26, %27 : vector<64x384xf32>
    %c0_9 = arith.constant 0 : index
    %c0_10 = arith.constant 0 : index
    %29 = vector.load %arg5[%c0_9, %c0_10] : memref<64x384xf32, #tpu.memory_space<vmem>>, vector<64x384xf32>
    tpu.vector_store %arg5[%c0_9, %c0_10], %28 {strides = array<i32>} : memref<64x384xf32, #tpu.memory_space<vmem>>, vector<64x384xf32>,
    return
  }
  func.func @transform_0(%arg0: i32) -> (i32, i32) {
    %c0_i32 = arith.constant 0 : i32
    %c0_i32_0 = arith.constant 0 : i32
    return %arg0, %c0_i32 : i32, i32
  }
  func.func @transform_1(%arg0: i32) -> (i32, i32) {
    %c0_i32 = arith.constant 0 : i32
    %c0_i32_0 = arith.constant 0 : i32
    %c0_i32_1 = arith.constant 0 : i32
    return %c0_i32, %c0_i32_0 : i32, i32
  }
  func.func @transform_2(%arg0: i32) -> (i32, i32) {
    %c0_i32 = arith.constant 0 : i32
    %c0_i32_0 = arith.constant 0 : i32
    %c0_i32_1 = arith.constant 0 : i32
    return %c0_i32, %c0_i32_0 : i32, i32
  }
  func.func @transform_3(%arg0: i32) -> (i32, i32) {
    %c0_i32 = arith.constant 0 : i32
    %c0_i32_0 = arith.constant 0 : i32
    return %arg0, %c0_i32 : i32, i32
  }
  func.func @transform_4(%arg0: i32) -> (i32, i32) {
    %c0_i32 = arith.constant 0 : i32
    %c0_i32_0 = arith.constant 0 : i32
    return %arg0, %c0_i32 : i32, i32
  }
}

module attributes {stable_mosaic.version = 11 : i64} {
  func.func @_matmul_bias_kernel(%arg0: i32, %arg1: i32, %arg2: memref<256x1152xbf16, #tpu.memory_space<vmem>>, %arg3: memref<1152x128xbf16, #tpu.memory_space<vmem>>, %arg4: memref<1x128xf32, #tpu.memory_space<vmem>>, %arg5: memref<256x128xbf16, #tpu.memory_space<vmem>>) attributes {dimension_semantics = [#tpu.dimension_semantics<parallel>, #tpu.dimension_semantics<parallel>], iteration_bounds = array<i64: 2, 1>, scalar_prefetch = 0 : i64, scratch_operands = 0 : i64, tpu.core_type = #tpu.core_type<tc>, window_params = [{transform_indices = @transform_0, window_bounds = array<i64: 256, 1152>}, {transform_indices = @transform_1, window_bounds = array<i64: 1152, 128>}, {transform_indices = @transform_2, window_bounds = array<i64: 1, 128>}, {transform_indices = @transform_3, window_bounds = array<i64: 256, 128>}]} {
    %c0 = arith.constant 0 : index
    %c0_0 = arith.constant 0 : index
    %0 = vector.load %arg2[%c0, %c0_0] : memref<256x1152xbf16, #tpu.memory_space<vmem>>, vector<256x1152xbf16>
    %c0_1 = arith.constant 0 : index
    %c0_2 = arith.constant 0 : index
    %1 = vector.load %arg3[%c0_1, %c0_2] : memref<1152x128xbf16, #tpu.memory_space<vmem>>, vector<1152x128xbf16>
    %cst = arith.constant dense<0.000000e+00> : vector<256x128xf32>
    %2 = tpu.matmul %0, %1, %cst {dimension_numbers = #tpu.dot_dimension_numbers<[1], [0], [0], [1], [0, 0, 1, 1], [], []>} : vector<256x1152xbf16>, vector<1152x128xbf16>, vector<256x128xf32> -> vector<256x128xf32>
    %c0_3 = arith.constant 0 : index
    %c0_4 = arith.constant 0 : index
    %3 = vector.load %arg4[%c0_3, %c0_4] : memref<1x128xf32, #tpu.memory_space<vmem>>, vector<1x128xf32>
    %4 = vector.broadcast %3 : vector<1x128xf32> to vector<256x128xf32>
    %5 = arith.addf %2, %4 : vector<256x128xf32>
    %6 = arith.truncf %5 : vector<256x128xf32> to vector<256x128xbf16>
    %c0_5 = arith.constant 0 : index
    %c0_6 = arith.constant 0 : index
    %7 = vector.load %arg5[%c0_5, %c0_6] : memref<256x128xbf16, #tpu.memory_space<vmem>>, vector<256x128xbf16>
    tpu.vector_store %arg5[%c0_5, %c0_6], %6 {strides = array<i32>} : memref<256x128xbf16, #tpu.memory_space<vmem>>, vector<256x128xbf16>,
    return
  }
  func.func @transform_0(%arg0: i32, %arg1: i32) -> (i32, i32) {
    %c0_i32 = arith.constant 0 : i32
    %c0_i32_0 = arith.constant 0 : i32
    return %arg0, %c0_i32 : i32, i32
  }
  func.func @transform_1(%arg0: i32, %arg1: i32) -> (i32, i32) {
    %c0_i32 = arith.constant 0 : i32
    %c0_i32_0 = arith.constant 0 : i32
    return %c0_i32, %arg1 : i32, i32
  }
  func.func @transform_2(%arg0: i32, %arg1: i32) -> (i32, i32) {
    %c0_i32 = arith.constant 0 : i32
    %c0_i32_0 = arith.constant 0 : i32
    return %c0_i32, %arg1 : i32, i32
  }
  func.func @transform_3(%arg0: i32, %arg1: i32) -> (i32, i32) {
    %c0_i32 = arith.constant 0 : i32
    return %arg0, %arg1 : i32, i32
  }
}

module attributes {stable_mosaic.version = 11 : i64} {
  func.func @_matmul_bias_kernel(%arg0: i32, %arg1: i32, %arg2: memref<64x1152xbf16, #tpu.memory_space<vmem>>, %arg3: memref<1152x128xbf16, #tpu.memory_space<vmem>>, %arg4: memref<1x128xf32, #tpu.memory_space<vmem>>, %arg5: memref<64x128xf32, #tpu.memory_space<vmem>>) attributes {dimension_semantics = [#tpu.dimension_semantics<parallel>, #tpu.dimension_semantics<parallel>], iteration_bounds = array<i64: 2, 1>, scalar_prefetch = 0 : i64, scratch_operands = 0 : i64, tpu.core_type = #tpu.core_type<tc>, window_params = [{transform_indices = @transform_0, window_bounds = array<i64: 64, 1152>}, {transform_indices = @transform_1, window_bounds = array<i64: 1152, 128>}, {transform_indices = @transform_2, window_bounds = array<i64: 1, 128>}, {transform_indices = @transform_3, window_bounds = array<i64: 64, 128>}]} {
    %c0 = arith.constant 0 : index
    %c0_0 = arith.constant 0 : index
    %0 = vector.load %arg2[%c0, %c0_0] : memref<64x1152xbf16, #tpu.memory_space<vmem>>, vector<64x1152xbf16>
    %c0_1 = arith.constant 0 : index
    %c0_2 = arith.constant 0 : index
    %1 = vector.load %arg3[%c0_1, %c0_2] : memref<1152x128xbf16, #tpu.memory_space<vmem>>, vector<1152x128xbf16>
    %cst = arith.constant dense<0.000000e+00> : vector<64x128xf32>
    %2 = tpu.matmul %0, %1, %cst {dimension_numbers = #tpu.dot_dimension_numbers<[1], [0], [0], [1], [0, 0, 1, 1], [], []>} : vector<64x1152xbf16>, vector<1152x128xbf16>, vector<64x128xf32> -> vector<64x128xf32>
    %c0_3 = arith.constant 0 : index
    %c0_4 = arith.constant 0 : index
    %3 = vector.load %arg4[%c0_3, %c0_4] : memref<1x128xf32, #tpu.memory_space<vmem>>, vector<1x128xf32>
    %4 = vector.broadcast %3 : vector<1x128xf32> to vector<64x128xf32>
    %5 = arith.addf %2, %4 : vector<64x128xf32>
    %cst_5 = arith.constant 0.000000e+00 : f32
    %6 = vector.broadcast %cst_5 : f32 to vector<64x128xf32>
    %7 = arith.maximumf %5, %6 : vector<64x128xf32>
    %c0_6 = arith.constant 0 : index
    %c0_7 = arith.constant 0 : index
    %8 = vector.load %arg5[%c0_6, %c0_7] : memref<64x128xf32, #tpu.memory_space<vmem>>, vector<64x128xf32>
    tpu.vector_store %arg5[%c0_6, %c0_7], %7 {strides = array<i32>} : memref<64x128xf32, #tpu.memory_space<vmem>>, vector<64x128xf32>,
    return
  }
  func.func @transform_0(%arg0: i32, %arg1: i32) -> (i32, i32) {
    %c0_i32 = arith.constant 0 : i32
    %c0_i32_0 = arith.constant 0 : i32
    return %arg0, %c0_i32 : i32, i32
  }
  func.func @transform_1(%arg0: i32, %arg1: i32) -> (i32, i32) {
    %c0_i32 = arith.constant 0 : i32
    %c0_i32_0 = arith.constant 0 : i32
    return %c0_i32, %arg1 : i32, i32
  }
  func.func @transform_2(%arg0: i32, %arg1: i32) -> (i32, i32) {
    %c0_i32 = arith.constant 0 : i32
    %c0_i32_0 = arith.constant 0 : i32
    return %c0_i32, %arg1 : i32, i32
  }
  func.func @transform_3(%arg0: i32, %arg1: i32) -> (i32, i32) {
    %c0_i32 = arith.constant 0 : i32
    return %arg0, %arg1 : i32, i32
  }
}

</mosaic_0001>

<llo_original>
// kernel: reduction_a_forward.4
$region0: #{reduction_a_forward.4}
  #allocation0 [shape = 'u32[]', space=smem, size = 0x4, offset = 0x4, fixed_abs, tag = 'smem constant byte address 0x4 - core index']
  #allocation1 [shape = 'u32[144,128]{1,0:T(1,128)}', space=vmem, size = 0x12000, scoped, tag = 'internal scratch']
  %s0 = inlined_call_operand.vmem [shape: bf16[672,384], index: 0, kind: input, shape index: {}]
  %s1 = inlined_call_operand.vmem [shape: bf16[384,128], index: 1, kind: input, shape index: {}]
  %s2 = inlined_call_operand.vmem [shape: f32[1,128], index: 2, kind: input, shape index: {}]
  %s3 = inlined_call_operand.vmem [shape: bf16[672,128], index: 3, kind: output, shape index: {}]
  %s4 = sld [smem:[#allocation0]]
  $region45: #{reduction_a_forward.4} parent=0
    _
  %s6 = ssub.s32 1, %s4
  %s7 = scalar_select 0, %s6, %s4
  loop: start=0, step=1, limit=4
  $region2: #{reduction_a_forward.4} parent=0 // loop_pre_header
    _
  $region3: #{reduction_a_forward.4} parent=0 // loop_header
    %s9 = sphi 0, %s13
    %p10 = scmp.ge.s32.totalorder %s9, 4
    %s16 = sphi 0, %s28
    %s17 = sphi 0, %s24
    %s18 = sphi 0, %s16
    %s19 = sphi 0, %s17
    %s20 = sphi 0, %s18
    %s21 = sphi 0, %s19
    %s31 = sphi 0, %s33
    %s34 = sphi 0, %s31
    %s35 = sphi 0, %s34
    %s51 = sphi 0, %s35
    %s57 = sphi 0, %s59
    %s60 = sphi 0, %s57
    %s61 = sphi 0, %s60
    %s77 = sphi 0, %s61
    %s83 = sphi 0, %s85
    %s86 = sphi 0, %s83
    %s87 = sphi 0, %s86
    %s103 = sphi 0, %s87
    %s111 = sphi 0, %s113
    %s114 = sphi 0, %s111
    %s115 = sphi 0, %s114
    %s131 = sphi 0, %s115
  $region4: #{reduction_a_forward.4} parent=0 // loop_header_branch
    %12 = sbr.rel (%p10) target = $region8
  $region5: #{reduction_a_forward.4} parent=0 // loop_body
    %s14 = ssub.s32 %s9, 1
    %s15 = ssub.s32 %s9, 2
    %s22 = sadd.s32 1, %s17
    %p23 = scmp.ge.s32.totalorder %s22, 1
    %s24 = scalar_select %p23, 0, %s22
    %s25 = sadd.s32 1, %s16
    %s26 = scalar_select %p23, %s25, %s16
    %p27 = scmp.ge.s32.totalorder %s26, 2
    %s28 = scalar_select %p27, 0, %s26
    %s29 = ssub.s32 %s16, %s28
    %p30 = scmp.eq.s32.totalorder %s29, 0
    %s32 = sadd.s32 %s31, 1
    %s33 = scalar_select %p30, %s31, %s32
    %p36 = pneg %p30
    %p37 = scmp.eq.s32.totalorder %s9, 1
    %p38 = por %p36, %p37
    %p39 = scmp.ne.s32.totalorder %s31, %s34
    %p40 = scmp.eq.s32.totalorder %s9, 0
    %p41 = por %p39, %p40
    %p42 = scmp.ne.s32.totalorder %s31, %s34
    %p43 = scmp.eq.s32.totalorder %s14, 1
    %p44 = por %p42, %p43
    %p45 = scmp.ne.s32.totalorder %s34, %s35
    %p46 = scmp.eq.s32.totalorder %s14, 0
    %p47 = por %p45, %p46
    %p48 = scmp.ne.s32.totalorder %s34, %s35
    %p49 = scmp.eq.s32.totalorder %s15, 1
    %p50 = por %p48, %p49
    %p52 = scmp.ne.s32.totalorder %s35, %s51
    %p53 = scmp.eq.s32.totalorder %s15, 0
    %p54 = por %p52, %p53
    %s55 = ssub.s32 %s17, %s24
    %p56 = scmp.eq.s32.totalorder %s55, 0
    %s58 = sadd.s32 %s57, 1
    %s59 = scalar_select %p56, %s57, %s58
    %p62 = pneg %p56
    %p63 = scmp.eq.s32.totalorder %s9, 1
    %p64 = por %p62, %p63
    %p65 = scmp.ne.s32.totalorder %s57, %s60
    %p66 = scmp.eq.s32.totalorder %s9, 0
    %p67 = por %p65, %p66
    %p68 = scmp.ne.s32.totalorder %s57, %s60
    %p69 = scmp.eq.s32.totalorder %s14, 1
    %p70 = por %p68, %p69
    %p71 = scmp.ne.s32.totalorder %s60, %s61
    %p72 = scmp.eq.s32.totalorder %s14, 0
    %p73 = por %p71, %p72
    %p74 = scmp.ne.s32.totalorder %s60, %s61
    %p75 = scmp.eq.s32.totalorder %s15, 1
    %p76 = por %p74, %p75
    %p78 = scmp.ne.s32.totalorder %s61, %s77
    %p79 = scmp.eq.s32.totalorder %s15, 0
    %p80 = por %p78, %p79
    %s81 = ssub.s32 %s17, %s24
    %p82 = scmp.eq.s32.totalorder %s81, 0
    %s84 = sadd.s32 %s83, 1
    %s85 = scalar_select %p82, %s83, %s84
    %p88 = pneg %p82
    %p89 = scmp.eq.s32.totalorder %s9, 1
    %p90 = por %p88, %p89
    %p91 = scmp.ne.s32.totalorder %s83, %s86
    %p92 = scmp.eq.s32.totalorder %s9, 0
    %p93 = por %p91, %p92
    %p94 = scmp.ne.s32.totalorder %s83, %s86
    %p95 = scmp.eq.s32.totalorder %s14, 1
    %p96 = por %p94, %p95
    %p97 = scmp.ne.s32.totalorder %s86, %s87
    %p98 = scmp.eq.s32.totalorder %s14, 0
    %p99 = por %p97, %p98
    %p100 = scmp.ne.s32.totalorder %s86, %s87
    %p101 = scmp.eq.s32.totalorder %s15, 1
    %p102 = por %p100, %p101
    %p104 = scmp.ne.s32.totalorder %s87, %s103
    %p105 = scmp.eq.s32.totalorder %s15, 0
    %p106 = por %p104, %p105
    %s107 = ssub.s32 %s16, %s28
    %s108 = ssub.s32 %s17, %s24
    %s109 = sor.u32 %s107, %s108
    %p110 = scmp.eq.s32.totalorder %s109, 0
    %s112 = sadd.s32 %s111, 1
    %s113 = scalar_select %p110, %s111, %s112
    %p116 = pneg %p110
    %p117 = scmp.eq.s32.totalorder %s9, 1
    %p118 = por %p116, %p117
    %p119 = scmp.ne.s32.totalorder %s111, %s114
    %p120 = scmp.eq.s32.totalorder %s9, 0
    %p121 = por %p119, %p120
    %p122 = scmp.ne.s32.totalorder %s111, %s114
    %p123 = scmp.eq.s32.totalorder %s14, 1
    %p124 = por %p122, %p123
    %p125 = scmp.ne.s32.totalorder %s114, %s115
    %p126 = scmp.eq.s32.totalorder %s14, 0
    %p127 = por %p125, %p126
    %p128 = scmp.ne.s32.totalorder %s114, %s115
    %p129 = scmp.eq.s32.totalorder %s15, 1
    %p130 = por %p128, %p129
    %p132 = scmp.ne.s32.totalorder %s115, %s131
    %p133 = scmp.eq.s32.totalorder %s15, 0
    %p134 = por %p132, %p133
    %p135 = scmp.le.s32.totalorder 1, %s9
    %p136 = scmp.lt.s32.totalorder %s9, 3
    %p137 = pnand %p135, %p136
    %p138 = pneg %p137
    // Predicated region
    $region9: #{reduction_a_forward.4} parent=5 // pred_check
      _
    $region10: #{reduction_a_forward.4} parent=5 // pred_check_branch
      %140 = sbr.rel (%p137) target = $region12
    $region11: #{reduction_a_forward.4} parent=5 // pred_region
      %s141 = ssub.s32 %s9, 1
      // Predicated region
      $region13: #{reduction_a_forward.4} parent=11 // pred_check
        %p142 = pneg %p73
      $region14: #{reduction_a_forward.4} parent=11 // pred_check_branch
        %144 = sbr.rel (%p142) target = $region16
      $region15: #{reduction_a_forward.4} parent=11 // pred_region
        %p145 = scmp.lt.s32.totalorder %s19, 0
        %s146 = scalar_select %p145, %s19, 0
        %s147 = smul.addr %s146, 4
        %s148 = scalar_lea.vmem %s1, %s147
      $region16: #{reduction_a_forward.4} parent=11 // pred_fallthru
        _
      // Predicated region
      $region17: #{reduction_a_forward.4} parent=11 // pred_check
        %p149 = pneg %p99
      $region18: #{reduction_a_forward.4} parent=11 // pred_check_branch
        %151 = sbr.rel (%p149) target = $region20
      $region19: #{reduction_a_forward.4} parent=11 // pred_region
        %p152 = scmp.lt.s32.totalorder %s19, 0
        %s153 = scalar_select %p152, %s19, 0
        %s154 = scalar_lea.vmem %s2, %s153
      $region20: #{reduction_a_forward.4} parent=11 // pred_fallthru
        _
    $region12: #{reduction_a_forward.4} parent=5 // pred_fallthru
      _
    %p155 = scmp.lt.s32.totalorder %s9, 2
    // Predicated region
    $region21: #{reduction_a_forward.4} parent=5 // pred_check
      %p156 = pneg %p155
    $region22: #{reduction_a_forward.4} parent=5 // pred_check_branch
      %158 = sbr.rel (%p156) target = $region24
    $region23: #{reduction_a_forward.4} parent=5 // pred_region
      // Predicated region
      $region25: #{reduction_a_forward.4} parent=23 // pred_check
        %p159 = pneg %p41
      $region26: #{reduction_a_forward.4} parent=23 // pred_check_branch
        %161 = sbr.rel (%p159) target = $region28
      $region27: #{reduction_a_forward.4} parent=23 // pred_region
        %s162 = smul.u32 42, %s16
        %p163 = scmp.lt.s32.totalorder %s162, 83
        %s164 = scalar_select %p163, %s162, 83
        %s165 = smul.addr %s164, 3
        %s166 = smul.addr %s165, 4
        %s167 = scalar_lea.vmem %s0, %s166
        %s168 = smul.u32 42, %s16
      $region28: #{reduction_a_forward.4} parent=23 // pred_fallthru
        _
    $region24: #{reduction_a_forward.4} parent=5 // pred_fallthru
      _
    %p169 = scmp.le.s32.totalorder 1, %s9
    %p170 = scmp.lt.s32.totalorder %s9, 3
    %p171 = pnand %p169, %p170
    %p172 = pneg %p171
    // Predicated region
    $region29: #{reduction_a_forward.4} parent=5 // pred_check
      _
    $region30: #{reduction_a_forward.4} parent=5 // pred_check_branch
      %174 = sbr.rel (%p171) target = $region32
    $region31: #{reduction_a_forward.4} parent=5 // pred_region
      %s175 = ssub.s32 %s9, 1
      %s176 = smul.u32 42, %s18
      %p177 = scmp.lt.s32.totalorder %s176, 83
      %s178 = scalar_select %p177, %s176, 83
      %s179 = smul.addr %s178, 3
      %s180 = smul.addr %s179, 4
      %s181 = scalar_lea.vmem %s0, %s180
      %p182 = pneg %p47
      %p183 = pneg %p44
      %p184 = scmp.lt.s32.totalorder %s19, 0
      %s185 = scalar_select %p184, %s19, 0
      %s186 = smul.addr %s185, 4
      %s187 = scalar_lea.vmem %s1, %s186
      %p188 = pneg %p73
      %p189 = pneg %p70
      %p190 = scmp.lt.s32.totalorder %s19, 0
      %s191 = scalar_select %p190, %s19, 0
      %s192 = scalar_lea.vmem %s2, %s191
      %p193 = pneg %p99
      %p194 = pneg %p96
      %p195 = pneg %p127
      %p196 = pneg %p124
      %s197 = smul.u32 42, %s18
      %p198 = scmp.lt.s32.totalorder %s197, 83
      %s199 = scalar_select %p198, %s197, 83
      %p200 = scmp.lt.s32.totalorder %s19, 0
      %s201 = scalar_select %p200, %s19, 0
      %s202 = sadd.s32 %s201, %s199
      %s203 = smul.addr %s202, 4
      %s204 = scalar_lea.vmem %s3, %s203
      %s205 = smul.u32 42, %s18
      %p206 = scmp.lt.s32.totalorder %s205, 83
      %s207 = scalar_select %p206, %s205, 83
      %s208 = smul.addr %s207, 3
      %s209 = smul.addr %s208, 4
      %s210 = scalar_lea.vmem %s0, %s209
      %s211 = smul.u32 42, %s18
      %p212 = scmp.lt.s32.totalorder %s19, 0
      %s213 = scalar_select %p212, %s19, 0
      %s214 = smul.addr %s213, 4
      %s215 = scalar_lea.vmem %s1, %s214
      %p216 = scmp.lt.s32.totalorder %s19, 0
      %s217 = scalar_select %p216, %s19, 0
      %s218 = scalar_lea.vmem %s2, %s217
      %s219 = smul.u32 42, %s18
      %p220 = scmp.lt.s32.totalorder %s219, 83
      %s221 = scalar_select %p220, %s219, 83
      %p222 = scmp.lt.s32.totalorder %s19, 0
      %s223 = scalar_select %p222, %s19, 0
      %s224 = sadd.s32 %s223, %s221
      %s225 = smul.addr %s224, 4
      %s226 = scalar_lea.vmem %s3, %s225
      %s227 = smul.u32 42, %s18
      %v229 = vld [vmem:[%s210] sm:$0xff]
      %v230 = vld [vmem:[%s210 + $0x8] sm:$0xf]
      %v231 = vld [vmem:[%s210 + $0xc] sm:$0xff]
      %v232 = vld [vmem:[%s210 + $0x14] sm:$0xf]
      %v233 = vld [vmem:[%s210 + $0x18] sm:$0xff]
      %v234 = vld [vmem:[%s210 + $0x20] sm:$0xf]
      %v235 = vld [vmem:[%s210 + $0x24] sm:$0xff]
      %v236 = vld [vmem:[%s210 + $0x2c] sm:$0xf]
      %v237 = vld [vmem:[%s210 + $0x30] sm:$0xff]
      %v238 = vld [vmem:[%s210 + $0x38] sm:$0xf]
      %v239 = vld [vmem:[%s210 + $0x3c] sm:$0xff]
      %v240 = vld [vmem:[%s210 + $0x44] sm:$0xf]
      %v241 = vld [vmem:[%s210 + $0x48] sm:$0xff]
      %v242 = vld [vmem:[%s210 + $0x50] sm:$0xf]
      %v243 = vld [vmem:[%s210 + $0x54] sm:$0xff]
      %v244 = vld [vmem:[%s210 + $0x5c] sm:$0xf]
      %v245 = vld [vmem:[%s210 + $0x60] sm:$0xff]
      %v246 = vld [vmem:[%s210 + $0x68] sm:$0xf]
      %v247 = vld [vmem:[%s210 + $0x6c] sm:$0xff]
      %v248 = vld [vmem:[%s210 + $0x74] sm:$0xf]
      %v249 = vld [vmem:[%s210 + $0x78] sm:$0xff]
      %v250 = vld [vmem:[%s210 + $0x80] sm:$0xf]
      %v251 = vld [vmem:[%s210 + $0x84] sm:$0xff]
      %v252 = vld [vmem:[%s210 + $0x8c] sm:$0xf]
      %v253 = vld [vmem:[%s210 + $0x90] sm:$0xff]
      %v254 = vld [vmem:[%s210 + $0x98] sm:$0xf]
      %v255 = vld [vmem:[%s210 + $0x9c] sm:$0xff]
      %v256 = vld [vmem:[%s210 + $0xa4] sm:$0xf]
      %v257 = vld [vmem:[%s210 + $0xa8] sm:$0xff]
      %v258 = vld [vmem:[%s210 + $0xb0] sm:$0xf]
      %v259 = vld [vmem:[%s210 + $0xb4] sm:$0xff]
      %v260 = vld [vmem:[%s210 + $0xbc] sm:$0xf]
      %v261 = vld [vmem:[%s210 + $0xc0] sm:$0xff]
      %v262 = vld [vmem:[%s210 + $0xc8] sm:$0xf]
      %v263 = vld [vmem:[%s210 + $0xcc] sm:$0xff]
      %v264 = vld [vmem:[%s210 + $0xd4] sm:$0xf]
      %v265 = vld [vmem:[%s210 + $0xd8] sm:$0xff]
      %v266 = vld [vmem:[%s210 + $0xe0] sm:$0xf]
      %v267 = vld [vmem:[%s210 + $0xe4] sm:$0xff]
      %v268 = vld [vmem:[%s210 + $0xec] sm:$0xf]
      %v269 = vld [vmem:[%s210 + $0xf0] sm:$0xff]
      %v270 = vld [vmem:[%s210 + $0xf8] sm:$0xf]
      %v271 = vld [vmem:[%s210 + $0xfc] sm:$0xff]
      %v272 = vld [vmem:[%s210 + $0x104] sm:$0xf]
      %v273 = vld [vmem:[%s210 + $0x108] sm:$0xff]
      %v274 = vld [vmem:[%s210 + $0x110] sm:$0xf]
      %v275 = vld [vmem:[%s210 + $0x114] sm:$0xff]
      %v276 = vld [vmem:[%s210 + $0x11c] sm:$0xf]
      %v277 = vld [vmem:[%s210 + $0x120] sm:$0xff]
      %v278 = vld [vmem:[%s210 + $0x128] sm:$0xf]
      %v279 = vld [vmem:[%s210 + $0x12c] sm:$0xff]
      %v280 = vld [vmem:[%s210 + $0x134] sm:$0xf]
      %v281 = vld [vmem:[%s210 + $0x138] sm:$0xff]
      %v282 = vld [vmem:[%s210 + $0x140] sm:$0xf]
      %v283 = vld [vmem:[%s210 + $0x144] sm:$0xff]
      %v284 = vld [vmem:[%s210 + $0x14c] sm:$0xf]
      %v285 = vld [vmem:[%s210 + $0x150] sm:$0xff]
      %v286 = vld [vmem:[%s210 + $0x158] sm:$0xf]
      %v287 = vld [vmem:[%s210 + $0x15c] sm:$0xff]
      %v288 = vld [vmem:[%s210 + $0x164] sm:$0xf]
      %v289 = vld [vmem:[%s210 + $0x168] sm:$0xff]
      %v290 = vld [vmem:[%s210 + $0x170] sm:$0xf]
      %v291 = vld [vmem:[%s210 + $0x174] sm:$0xff]
      %v292 = vld [vmem:[%s210 + $0x17c] sm:$0xf]
      %v293 = vld [vmem:[%s210 + $0x180] sm:$0xff]
      %v294 = vld [vmem:[%s210 + $0x188] sm:$0xf]
      %v295 = vld [vmem:[%s210 + $0x18c] sm:$0xff]
      %v296 = vld [vmem:[%s210 + $0x194] sm:$0xf]
      %v297 = vld [vmem:[%s210 + $0x198] sm:$0xff]
      %v298 = vld [vmem:[%s210 + $0x1a0] sm:$0xf]
      %v299 = vld [vmem:[%s210 + $0x1a4] sm:$0xff]
      %v300 = vld [vmem:[%s210 + $0x1ac] sm:$0xf]
      %v301 = vld [vmem:[%s210 + $0x1b0] sm:$0xff]
      %v302 = vld [vmem:[%s210 + $0x1b8] sm:$0xf]
      %v303 = vld [vmem:[%s210 + $0x1bc] sm:$0xff]
      %v304 = vld [vmem:[%s210 + $0x1c4] sm:$0xf]
      %v305 = vld [vmem:[%s210 + $0x1c8] sm:$0xff]
      %v306 = vld [vmem:[%s210 + $0x1d0] sm:$0xf]
      %v307 = vld [vmem:[%s210 + $0x1d4] sm:$0xff]
      %v308 = vld [vmem:[%s210 + $0x1dc] sm:$0xf]
      %v309 = vld [vmem:[%s210 + $0x1e0] sm:$0xff]
      %v310 = vld [vmem:[%s210 + $0x1e8] sm:$0xf]
      %v311 = vld [vmem:[%s210 + $0x1ec] sm:$0xff]
      %v312 = vld [vmem:[%s210 + $0x1f4] sm:$0xf]
      %v313 = vld [vmem:[%s215] sm:$0xf]
      %v314 = vld [vmem:[%s215 + $0x4] sm:$0xf]
      %v315 = vld [vmem:[%s215 + $0x8] sm:$0xf]
      %v316 = vld [vmem:[%s215 + $0xc] sm:$0xf]
      %v317 = vld [vmem:[%s215 + $0x10] sm:$0xf]
      %v318 = vld [vmem:[%s215 + $0x14] sm:$0xf]
      %v319 = vld [vmem:[%s215 + $0x18] sm:$0xf]
      %v320 = vld [vmem:[%s215 + $0x1c] sm:$0xf]
      %v321 = vld [vmem:[%s215 + $0x20] sm:$0xf]
      %v322 = vld [vmem:[%s215 + $0x24] sm:$0xf]
      %v323 = vld [vmem:[%s215 + $0x28] sm:$0xf]
      %v324 = vld [vmem:[%s215 + $0x2c] sm:$0xf]
      %v325 = vld [vmem:[%s215 + $0x30] sm:$0xf]
      %v326 = vld [vmem:[%s215 + $0x34] sm:$0xf]
      %v327 = vld [vmem:[%s215 + $0x38] sm:$0xf]
      %v328 = vld [vmem:[%s215 + $0x3c] sm:$0xf]
      %v329 = vld [vmem:[%s215 + $0x40] sm:$0xf]
      %v330 = vld [vmem:[%s215 + $0x44] sm:$0xf]
      %v331 = vld [vmem:[%s215 + $0x48] sm:$0xf]
      %v332 = vld [vmem:[%s215 + $0x4c] sm:$0xf]
      %v333 = vld [vmem:[%s215 + $0x50] sm:$0xf]
      %v334 = vld [vmem:[%s215 + $0x54] sm:$0xf]
      %v335 = vld [vmem:[%s215 + $0x58] sm:$0xf]
      %v336 = vld [vmem:[%s215 + $0x5c] sm:$0xf]
      %v337 = vld [vmem:[%s215 + $0x60] sm:$0xf]
      %v338 = vld [vmem:[%s215 + $0x64] sm:$0xf]
      %v339 = vld [vmem:[%s215 + $0x68] sm:$0xf]
      %v340 = vld [vmem:[%s215 + $0x6c] sm:$0xf]
      %v341 = vld [vmem:[%s215 + $0x70] sm:$0xf]
      %v342 = vld [vmem:[%s215 + $0x74] sm:$0xf]
      %v343 = vld [vmem:[%s215 + $0x78] sm:$0xf]
      %v344 = vld [vmem:[%s215 + $0x7c] sm:$0xf]
      %v345 = vld [vmem:[%s215 + $0x80] sm:$0xf]
      %v346 = vld [vmem:[%s215 + $0x84] sm:$0xf]
      %v347 = vld [vmem:[%s215 + $0x88] sm:$0xf]
      %v348 = vld [vmem:[%s215 + $0x8c] sm:$0xf]
      %v349 = vld [vmem:[%s215 + $0x90] sm:$0xf]
      %v350 = vld [vmem:[%s215 + $0x94] sm:$0xf]
      %v351 = vld [vmem:[%s215 + $0x98] sm:$0xf]
      %v352 = vld [vmem:[%s215 + $0x9c] sm:$0xf]
      %v353 = vld [vmem:[%s215 + $0xa0] sm:$0xf]
      %v354 = vld [vmem:[%s215 + $0xa4] sm:$0xf]
      %v355 = vld [vmem:[%s215 + $0xa8] sm:$0xf]
      %v356 = vld [vmem:[%s215 + $0xac] sm:$0xf]
      %v357 = vld [vmem:[%s215 + $0xb0] sm:$0xf]
      %v358 = vld [vmem:[%s215 + $0xb4] sm:$0xf]
      %v359 = vld [vmem:[%s215 + $0xb8] sm:$0xf]
      %v360 = vld [vmem:[%s215 + $0xbc] sm:$0xf]
      %v361 = vld [vmem:[%s218] sm:$0x1]
      %v363 = vlaneseq
      %v364 = vshrl.u32 %v363, 7
      %v365 = vsub.s32 0, %v364
      %v366 = vrot.slane %v361, %v365
      %v452 = vunpack.c.l.b16 %v229
      %v453 = vunpack.c.h.b16 %v229
      %v454 = vunpack.c.l.b16 %v230
      %v455 = vunpack.c.l.b16 %v231
      %v456 = vunpack.c.h.b16 %v231
      %v457 = vunpack.c.l.b16 %v232
      %v458 = vunpack.c.l.b16 %v233
      %v459 = vunpack.c.h.b16 %v233
      %v460 = vunpack.c.l.b16 %v234
      %v461 = vunpack.c.l.b16 %v235
      %v462 = vunpack.c.h.b16 %v235
      %v463 = vunpack.c.l.b16 %v236
      %v464 = vunpack.c.l.b16 %v237
      %v465 = vunpack.c.h.b16 %v237
      %v466 = vunpack.c.l.b16 %v238
      %v467 = vunpack.c.l.b16 %v239
      %v468 = vunpack.c.h.b16 %v239
      %v469 = vunpack.c.l.b16 %v240
      %v470 = vunpack.c.l.b16 %v241
      %v471 = vunpack.c.h.b16 %v241
      %v472 = vunpack.c.l.b16 %v242
      %v473 = vunpack.c.l.b16 %v243
      %v474 = vunpack.c.h.b16 %v243
      %v475 = vunpack.c.l.b16 %v244
      %v476 = vunpack.c.l.b16 %v245
      %v477 = vunpack.c.h.b16 %v245
      %v478 = vunpack.c.l.b16 %v246
      %v479 = vunpack.c.l.b16 %v247
      %v480 = vunpack.c.h.b16 %v247
      %v481 = vunpack.c.l.b16 %v248
      %v482 = vunpack.c.l.b16 %v249
      %v483 = vunpack.c.h.b16 %v249
      %v484 = vunpack.c.l.b16 %v250
      %v485 = vunpack.c.l.b16 %v251
      %v486 = vunpack.c.h.b16 %v251
      %v487 = vunpack.c.l.b16 %v252
      %v488 = vunpack.c.l.b16 %v253
      %v489 = vunpack.c.h.b16 %v253
      %v490 = vunpack.c.l.b16 %v254
      %v491 = vunpack.c.l.b16 %v255
      %v492 = vunpack.c.h.b16 %v255
      %v493 = vunpack.c.l.b16 %v256
      %v494 = vunpack.c.l.b16 %v257
      %v495 = vunpack.c.h.b16 %v257
      %v496 = vunpack.c.l.b16 %v258
      %v497 = vunpack.c.l.b16 %v259
      %v498 = vunpack.c.h.b16 %v259
      %v499 = vunpack.c.l.b16 %v260
      %v500 = vunpack.c.l.b16 %v261
      %v501 = vunpack.c.h.b16 %v261
      %v502 = vunpack.c.l.b16 %v262
      %v503 = vunpack.c.l.b16 %v263
      %v504 = vunpack.c.h.b16 %v263
      %v505 = vunpack.c.l.b16 %v264
      %v506 = vunpack.c.l.b16 %v265
      %v507 = vunpack.c.h.b16 %v265
      %v508 = vunpack.c.l.b16 %v266
      %v509 = vunpack.c.l.b16 %v267
      %v510 = vunpack.c.h.b16 %v267
      %v511 = vunpack.c.l.b16 %v268
      %v512 = vunpack.c.l.b16 %v269
      %v513 = vunpack.c.h.b16 %v269
      %v514 = vunpack.c.l.b16 %v270
      %v515 = vunpack.c.l.b16 %v271
      %v516 = vunpack.c.h.b16 %v271
      %v517 = vunpack.c.l.b16 %v272
      %v518 = vunpack.c.l.b16 %v273
      %v519 = vunpack.c.h.b16 %v273
      %v520 = vunpack.c.l.b16 %v274
      %v521 = vunpack.c.l.b16 %v275
      %v522 = vunpack.c.h.b16 %v275
      %v523 = vunpack.c.l.b16 %v276
      %v524 = vunpack.c.l.b16 %v277
      %v525 = vunpack.c.h.b16 %v277
      %v526 = vunpack.c.l.b16 %v278
      %v527 = vunpack.c.l.b16 %v279
      %v528 = vunpack.c.h.b16 %v279
      %v529 = vunpack.c.l.b16 %v280
      %v530 = vunpack.c.l.b16 %v281
      %v531 = vunpack.c.h.b16 %v281
      %v532 = vunpack.c.l.b16 %v282
      %v533 = vunpack.c.l.b16 %v283
      %v534 = vunpack.c.h.b16 %v283
      %v535 = vunpack.c.l.b16 %v284
      %v536 = vunpack.c.l.b16 %v285
      %v537 = vunpack.c.h.b16 %v285
      %v538 = vunpack.c.l.b16 %v286
      %v539 = vunpack.c.l.b16 %v287
      %v540 = vunpack.c.h.b16 %v287
      %v541 = vunpack.c.l.b16 %v288
      %v542 = vunpack.c.l.b16 %v289
      %v543 = vunpack.c.h.b16 %v289
      %v544 = vunpack.c.l.b16 %v290
      %v545 = vunpack.c.l.b16 %v291
      %v546 = vunpack.c.h.b16 %v291
      %v547 = vunpack.c.l.b16 %v292
      %v548 = vunpack.c.l.b16 %v293
      %v549 = vunpack.c.h.b16 %v293
      %v550 = vunpack.c.l.b16 %v294
      %v551 = vunpack.c.l.b16 %v295
      %v552 = vunpack.c.h.b16 %v295
      %v553 = vunpack.c.l.b16 %v296
      %v554 = vunpack.c.l.b16 %v297
      %v555 = vunpack.c.h.b16 %v297
      %v556 = vunpack.c.l.b16 %v298
      %v557 = vunpack.c.l.b16 %v299
      %v558 = vunpack.c.h.b16 %v299
      %v559 = vunpack.c.l.b16 %v300
      %v560 = vunpack.c.l.b16 %v301
      %v561 = vunpack.c.h.b16 %v301
      %v562 = vunpack.c.l.b16 %v302
      %v563 = vunpack.c.l.b16 %v303
      %v564 = vunpack.c.h.b16 %v303
      %v565 = vunpack.c.l.b16 %v304
      %v566 = vunpack.c.l.b16 %v305
      %v567 = vunpack.c.h.b16 %v305
      %v568 = vunpack.c.l.b16 %v306
      %v569 = vunpack.c.l.b16 %v307
      %v570 = vunpack.c.h.b16 %v307
      %v571 = vunpack.c.l.b16 %v308
      %v572 = vunpack.c.l.b16 %v309
      %v573 = vunpack.c.h.b16 %v309
      %v574 = vunpack.c.l.b16 %v310
      %v575 = vunpack.c.l.b16 %v311
      %v576 = vunpack.c.h.b16 %v311
      %v577 = vunpack.c.l.b16 %v312
      %v578 = vpack.c.b16 %v455, %v452
      %v579 = vpack.c.b16 %v456, %v453
      %v580 = vpack.c.b16 %v457, %v454
      %v581 = vpack.c.b16 %v461, %v458
      %v582 = vpack.c.b16 %v462, %v459
      %v583 = vpack.c.b16 %v463, %v460
      %v584 = vpack.c.b16 %v467, %v464
      %v585 = vpack.c.b16 %v468, %v465
      %v586 = vpack.c.b16 %v469, %v466
      %v587 = vpack.c.b16 %v473, %v470
      %v588 = vpack.c.b16 %v474, %v471
      %v589 = vpack.c.b16 %v475, %v472
      %v590 = vpack.c.b16 %v479, %v476
      %v591 = vpack.c.b16 %v480, %v477
      %v592 = vpack.c.b16 %v481, %v478
      %v593 = vpack.c.b16 %v485, %v482
      %v594 = vpack.c.b16 %v486, %v483
      %v595 = vpack.c.b16 %v487, %v484
      %v596 = vpack.c.b16 %v491, %v488
      %v597 = vpack.c.b16 %v492, %v489
      %v598 = vpack.c.b16 %v493, %v490
      %v599 = vpack.c.b16 %v497, %v494
      %v600 = vpack.c.b16 %v498, %v495
      %v601 = vpack.c.b16 %v499, %v496
      %v602 = vpack.c.b16 %v503, %v500
      %v603 = vpack.c.b16 %v504, %v501
      %v604 = vpack.c.b16 %v505, %v502
      %v605 = vpack.c.b16 %v509, %v506
      %v606 = vpack.c.b16 %v510, %v507
      %v607 = vpack.c.b16 %v511, %v508
      %v608 = vpack.c.b16 %v515, %v512
      %v609 = vpack.c.b16 %v516, %v513
      %v610 = vpack.c.b16 %v517, %v514
      %v611 = vpack.c.b16 %v521, %v518
      %v612 = vpack.c.b16 %v522, %v519
      %v613 = vpack.c.b16 %v523, %v520
      %v614 = vpack.c.b16 %v527, %v524
      %v615 = vpack.c.b16 %v528, %v525
      %v616 = vpack.c.b16 %v529, %v526
      %v617 = vpack.c.b16 %v533, %v530
      %v618 = vpack.c.b16 %v534, %v531
      %v619 = vpack.c.b16 %v535, %v532
      %v620 = vpack.c.b16 %v539, %v536
      %v621 = vpack.c.b16 %v540, %v537
      %v622 = vpack.c.b16 %v541, %v538
      %v623 = vpack.c.b16 %v545, %v542
      %v624 = vpack.c.b16 %v546, %v543
      %v625 = vpack.c.b16 %v547, %v544
      %v626 = vpack.c.b16 %v551, %v548
      %v627 = vpack.c.b16 %v552, %v549
      %v628 = vpack.c.b16 %v553, %v550
      %v629 = vpack.c.b16 %v557, %v554
      %v630 = vpack.c.b16 %v558, %v555
      %v631 = vpack.c.b16 %v559, %v556
      %v632 = vpack.c.b16 %v563, %v560
      %v633 = vpack.c.b16 %v564, %v561
      %v634 = vpack.c.b16 %v565, %v562
      %v635 = vpack.c.b16 %v569, %v566
      %v636 = vpack.c.b16 %v570, %v567
      %v637 = vpack.c.b16 %v571, %v568
      %v638 = vpack.c.b16 %v575, %v572
      %v639 = vpack.c.b16 %v576, %v573
      %v640 = vpack.c.b16 %v577, %v574
      %v752 = vunpack.c.l.b16 %v313
      %v753 = vunpack.c.l.b16 %v314
      %v754 = vunpack.c.l.b16 %v315
      %v755 = vunpack.c.l.b16 %v316
      %v756 = vunpack.c.l.b16 %v317
      %v757 = vunpack.c.l.b16 %v318
      %v758 = vunpack.c.l.b16 %v319
      %v759 = vunpack.c.l.b16 %v320
      %v760 = vunpack.c.l.b16 %v321
      %v761 = vunpack.c.l.b16 %v322
      %v762 = vunpack.c.l.b16 %v323
      %v763 = vunpack.c.l.b16 %v324
      %v764 = vunpack.c.l.b16 %v325
      %v765 = vunpack.c.l.b16 %v326
      %v766 = vunpack.c.l.b16 %v327
      %v767 = vunpack.c.l.b16 %v328
      %v768 = vunpack.c.l.b16 %v329
      %v769 = vunpack.c.l.b16 %v330
      %v770 = vunpack.c.l.b16 %v331
      %v771 = vunpack.c.l.b16 %v332
      %v772 = vunpack.c.l.b16 %v333
      %v773 = vunpack.c.l.b16 %v334
      %v774 = vunpack.c.l.b16 %v335
      %v775 = vunpack.c.l.b16 %v336
      %v776 = vunpack.c.l.b16 %v337
      %v777 = vunpack.c.l.b16 %v338
      %v778 = vunpack.c.l.b16 %v339
      %v779 = vunpack.c.l.b16 %v340
      %v780 = vunpack.c.l.b16 %v341
      %v781 = vunpack.c.l.b16 %v342
      %v782 = vunpack.c.l.b16 %v343
      %v783 = vunpack.c.l.b16 %v344
      %v784 = vunpack.c.l.b16 %v345
      %v785 = vunpack.c.l.b16 %v346
      %v786 = vunpack.c.l.b16 %v347
      %v787 = vunpack.c.l.b16 %v348
      %v788 = vunpack.c.l.b16 %v349
      %v789 = vunpack.c.l.b16 %v350
      %v790 = vunpack.c.l.b16 %v351
      %v791 = vunpack.c.l.b16 %v352
      %v792 = vunpack.c.l.b16 %v353
      %v793 = vunpack.c.l.b16 %v354
      %v794 = vunpack.c.l.b16 %v355
      %v795 = vunpack.c.l.b16 %v356
      %v796 = vunpack.c.l.b16 %v357
      %v797 = vunpack.c.l.b16 %v358
      %v798 = vunpack.c.l.b16 %v359
      %v799 = vunpack.c.l.b16 %v360
      %v800 = vpack.c.b16 %v753, %v752
      %v801 = vpack.c.b16 %v755, %v754
      %v802 = vpack.c.b16 %v757, %v756
      %v803 = vpack.c.b16 %v759, %v758
      %v804 = vpack.c.b16 %v761, %v760
      %v805 = vpack.c.b16 %v763, %v762
      %v806 = vpack.c.b16 %v765, %v764
      %v807 = vpack.c.b16 %v767, %v766
      %v808 = vpack.c.b16 %v769, %v768
      %v809 = vpack.c.b16 %v771, %v770
      %v810 = vpack.c.b16 %v773, %v772
      %v811 = vpack.c.b16 %v775, %v774
      %v812 = vpack.c.b16 %v777, %v776
      %v813 = vpack.c.b16 %v779, %v778
      %v814 = vpack.c.b16 %v781, %v780
      %v815 = vpack.c.b16 %v783, %v782
      %v816 = vpack.c.b16 %v785, %v784
      %v817 = vpack.c.b16 %v787, %v786
      %v818 = vpack.c.b16 %v789, %v788
      %v819 = vpack.c.b16 %v791, %v790
      %v820 = vpack.c.b16 %v793, %v792
      %v821 = vpack.c.b16 %v795, %v794
      %v822 = vpack.c.b16 %v797, %v796
      %v823 = vpack.c.b16 %v799, %v798
      %848 = vmatprep.subr.bf16.mxu0 0
      %849 = vmatpush1.bf16.msra.mxu0 %v800
      %850 = vmatprep.subr.bf16.mxu0 0
      %851 = vmatpush1.bf16.msra.mxu0 %v801
      %852 = vmatprep.subr.bf16.mxu0 0
      %853 = vmatpush1.bf16.msra.mxu0 %v802
      %854 = vmatprep.subr.bf16.mxu0 0
      %855 = vmatpush1.bf16.msra.mxu0 %v803
      %856 = vmatprep.subr.bf16.mxu0 0
      %857 = vmatpush1.bf16.msra.mxu0 %v804
      %858 = vmatprep.subr.bf16.mxu0 0
      %859 = vmatpush1.bf16.msra.mxu0 %v805
      %860 = vmatprep.subr.bf16.mxu0 0
      %861 = vmatpush1.bf16.msra.mxu0 %v806
      %862 = vmatprep.subr.bf16.mxu0 0
      %863 = vmatpush1.bf16.msra.mxu0 %v807
      %864 = vmatprep.subr.bf16.mxu0 0
      %865 = vmatpush1.bf16.msra.mxu0 %v808
      %866 = vmatprep.subr.bf16.mxu0 0
      %867 = vmatpush1.bf16.msra.mxu0 %v809
      %868 = vmatprep.subr.bf16.mxu0 0
      %869 = vmatpush1.bf16.msra.mxu0 %v810
      %870 = vmatprep.subr.bf16.mxu0 0
      %871 = vmatpush1.bf16.msra.mxu0 %v811
      %872 = vmatprep.subr.bf16.mxu0 0
      %873 = vmatpush1.bf16.msra.mxu0 %v812
      %874 = vmatprep.subr.bf16.mxu0 0
      %875 = vmatpush1.bf16.msra.mxu0 %v813
      %876 = vmatprep.subr.bf16.mxu0 0
      %877 = vmatpush1.bf16.msra.mxu0 %v814
      %878 = vmatprep.subr.bf16.mxu0 0
      %879 = vmatpush1.bf16.msra.mxu0 %v815
      %880 = vmatprep.mubr.bf16.mxu0 %v579
      %881 = vmatmul.mubr.bf16.gmra.mrb[0].mxu0 %v578
      %v882 = vpop.f32.mrb[0].mxu0
      %v883 = vadd.f32 %v366, %v882
      %v884 = vpop.f32.mrb[0].mxu0
      %v885 = vpop.f32.mrb[0].mxu0
      %v886 = vadd.f32 %v366, %v885
      %v887 = vpop.f32.mrb[0].mxu0
      %888 = vmatprep.mubr.bf16.mxu0 %v582
      %889 = vmatmul.mubr.bf16.gmra.mrb[0].mxu0 %v581
      %v890 = vpop.f32.mrb[0].mxu0
      %v891 = vadd.f32 %v366, %v890
      %v892 = vpop.f32.mrb[0].mxu0
      %v893 = vpop.f32.mrb[0].mxu0
      %v894 = vadd.f32 %v366, %v893
      %v895 = vpop.f32.mrb[0].mxu0
      %896 = vmatprep.mubr.bf16.mxu0 %v585
      %897 = vmatmul.mubr.bf16.gmra.mrb[0].mxu0 %v584
      %v898 = vpop.f32.mrb[0].mxu0
      %v899 = vadd.f32 %v366, %v898
      %v900 = vpop.f32.mrb[0].mxu0
      %v901 = vpop.f32.mrb[0].mxu0
      %v902 = vadd.f32 %v366, %v901
      %v903 = vpop.f32.mrb[0].mxu0
      %904 = vmatprep.mubr.bf16.mxu0 %v588
      %905 = vmatmul.mubr.bf16.gmra.mrb[0].mxu0 %v587
      %v906 = vpop.f32.mrb[0].mxu0
      %v907 = vadd.f32 %v366, %v906
      %v908 = vpop.f32.mrb[0].mxu0
      %v909 = vpop.f32.mrb[0].mxu0
      %v910 = vadd.f32 %v366, %v909
      %v911 = vpop.f32.mrb[0].mxu0
      %912 = vmatprep.mubr.bf16.mxu0 %v591
      %913 = vmatmul.mubr.bf16.gmra.mrb[0].mxu0 %v590
      %v914 = vpop.f32.mrb[0].mxu0
      %v915 = vadd.f32 %v366, %v914
      %v916 = vpop.f32.mrb[0].mxu0
      %v917 = vpop.f32.mrb[0].mxu0
      %v918 = vadd.f32 %v366, %v917
      %v919 = vpop.f32.mrb[0].mxu0
      %920 = vmatprep.mubr.bf16.mxu0 %v594
      %921 = vmatmul.mubr.bf16.gmra.mrb[0].mxu0 %v593
      %v922 = vpop.f32.mrb[0].mxu0
      %v923 = vadd.f32 %v366, %v922
      %v924 = vpop.f32.mrb[0].mxu0
      %v925 = vpop.f32.mrb[0].mxu0
      %v926 = vadd.f32 %v366, %v925
      %v927 = vpop.f32.mrb[0].mxu0
      %928 = vmatprep.mubr.bf16.mxu0 %v597
      %929 = vmatmul.mubr.bf16.gmra.mrb[0].mxu0 %v596
      %v930 = vpop.f32.mrb[0].mxu0
      %v931 = vadd.f32 %v366, %v930
      %v932 = vpop.f32.mrb[0].mxu0
      %v933 = vpop.f32.mrb[0].mxu0
      %v934 = vadd.f32 %v366, %v933
      %v935 = vpop.f32.mrb[0].mxu0
      %936 = vmatprep.mubr.bf16.mxu0 %v600
      %937 = vmatmul.mubr.bf16.gmra.mrb[0].mxu0 %v599
      %v938 = vpop.f32.mrb[0].mxu0
      %v939 = vadd.f32 %v366, %v938
      %v940 = vpop.f32.mrb[0].mxu0
      %v941 = vpop.f32.mrb[0].mxu0
      %v942 = vadd.f32 %v366, %v941
      %v943 = vpop.f32.mrb[0].mxu0
      %944 = vmatprep.mubr.bf16.mxu0 %v603
      %945 = vmatmul.mubr.bf16.gmra.mrb[0].mxu0 %v602
      %v946 = vpop.f32.mrb[0].mxu0
      %v947 = vadd.f32 %v366, %v946
      %v948 = vpop.f32.mrb[0].mxu0
      %v949 = vpop.f32.mrb[0].mxu0
      %v950 = vadd.f32 %v366, %v949
      %v951 = vpop.f32.mrb[0].mxu0
      %952 = vmatprep.mubr.bf16.mxu0 %v606
      %953 = vmatmul.mubr.bf16.gmra.mrb[0].mxu0 %v605
      %v954 = vpop.f32.mrb[0].mxu0
      %v955 = vadd.f32 %v366, %v954
      %v956 = vpop.f32.mrb[0].mxu0
      %v957 = vpop.f32.mrb[0].mxu0
      %v958 = vadd.f32 %v366, %v957
      %v959 = vpop.f32.mrb[0].mxu0
      %960 = vmatprep.mubr.bf16.mxu0 %v609
      %961 = vmatmul.mubr.bf16.gmra.mrb[0].mxu0 %v608
      %v962 = vpop.f32.mrb[0].mxu0
      %v963 = vadd.f32 %v366, %v962
      %v964 = vpop.f32.mrb[0].mxu0
      %v965 = vpop.f32.mrb[0].mxu0
      %v966 = vadd.f32 %v366, %v965
      %v967 = vpop.f32.mrb[0].mxu0
      %968 = vmatprep.mubr.bf16.mxu0 %v612
      %969 = vmatmul.mubr.bf16.gmra.mrb[0].mxu0 %v611
      %v970 = vpop.f32.mrb[0].mxu0
      %v971 = vadd.f32 %v366, %v970
      %v972 = vpop.f32.mrb[0].mxu0
      %v973 = vpop.f32.mrb[0].mxu0
      %v974 = vadd.f32 %v366, %v973
      %v975 = vpop.f32.mrb[0].mxu0
      %976 = vmatprep.mubr.bf16.mxu0 %v615
      %977 = vmatmul.mubr.bf16.gmra.mrb[0].mxu0 %v614
      %v978 = vpop.f32.mrb[0].mxu0
      %v979 = vadd.f32 %v366, %v978
      %v980 = vpop.f32.mrb[0].mxu0
      %v981 = vpop.f32.mrb[0].mxu0
      %v982 = vadd.f32 %v366, %v981
      %v983 = vpop.f32.mrb[0].mxu0
      %984 = vmatprep.mubr.bf16.mxu0 %v618
      %985 = vmatmul.mubr.bf16.gmra.mrb[0].mxu0 %v617
      %v986 = vpop.f32.mrb[0].mxu0
      %v987 = vadd.f32 %v366, %v986
      %v988 = vpop.f32.mrb[0].mxu0
      %v989 = vpop.f32.mrb[0].mxu0
      %v990 = vadd.f32 %v366, %v989
      %v991 = vpop.f32.mrb[0].mxu0
      %992 = vmatprep.mubr.bf16.mxu0 %v621
      %993 = vmatmul.mubr.bf16.gmra.mrb[0].mxu0 %v620
      %v994 = vpop.f32.mrb[0].mxu0
      %v995 = vadd.f32 %v366, %v994
      %v996 = vpop.f32.mrb[0].mxu0
      %v997 = vpop.f32.mrb[0].mxu0
      %v998 = vadd.f32 %v366, %v997
      %v999 = vpop.f32.mrb[0].mxu0
      %1000 = vmatprep.mubr.bf16.mxu0 %v624
      %1001 = vmatmul.mubr.bf16.gmra.mrb[0].mxu0 %v623
      %v1002 = vpop.f32.mrb[0].mxu0
      %v1003 = vadd.f32 %v366, %v1002
      %v1004 = vpop.f32.mrb[0].mxu0
      %v1005 = vpop.f32.mrb[0].mxu0
      %v1006 = vadd.f32 %v366, %v1005
      %v1007 = vpop.f32.mrb[0].mxu0
      %1008 = vmatprep.mubr.bf16.mxu0 %v627
      %1009 = vmatmul.mubr.bf16.gmra.mrb[0].mxu0 %v626
      %v1010 = vpop.f32.mrb[0].mxu0
      %v1011 = vadd.f32 %v366, %v1010
      %v1012 = vpop.f32.mrb[0].mxu0
      %v1013 = vpop.f32.mrb[0].mxu0
      %v1014 = vadd.f32 %v366, %v1013
      %v1015 = vpop.f32.mrb[0].mxu0
      %1016 = vmatprep.mubr.bf16.mxu0 %v630
      %1017 = vmatmul.mubr.bf16.gmra.mrb[0].mxu0 %v629
      %v1018 = vpop.f32.mrb[0].mxu0
      %v1019 = vadd.f32 %v366, %v1018
      %v1020 = vpop.f32.mrb[0].mxu0
      %v1021 = vpop.f32.mrb[0].mxu0
      %v1022 = vadd.f32 %v366, %v1021
      %v1023 = vpop.f32.mrb[0].mxu0
      %1024 = vmatprep.mubr.bf16.mxu0 %v633
      %1025 = vmatmul.mubr.bf16.gmra.mrb[0].mxu0 %v632
      %v1026 = vpop.f32.mrb[0].mxu0
      %v1027 = vadd.f32 %v366, %v1026
      %v1028 = vpop.f32.mrb[0].mxu0
      %v1029 = vpop.f32.mrb[0].mxu0
      %v1030 = vadd.f32 %v366, %v1029
      %v1031 = vpop.f32.mrb[0].mxu0
      %1032 = vmatprep.mubr.bf16.mxu0 %v636
      %1033 = vmatmul.mubr.bf16.gmra.mrb[0].mxu0 %v635
      %v1034 = vpop.f32.mrb[0].mxu0
      %v1035 = vadd.f32 %v366, %v1034
      %v1036 = vpop.f32.mrb[0].mxu0
      %v1037 = vpop.f32.mrb[0].mxu0
      %v1038 = vadd.f32 %v366, %v1037
      %v1039 = vpop.f32.mrb[0].mxu0
      %1040 = vmatprep.mubr.bf16.mxu0 %v639
      %1041 = vmatmul.mubr.bf16.gmra.mrb[0].mxu0 %v638
      %v1042 = vpop.f32.mrb[0].mxu0
      %v1043 = vadd.f32 %v366, %v1042
      %v1044 = vpop.f32.mrb[0].mxu0
      %v1045 = vpop.f32.mrb[0].mxu0
      %v1046 = vadd.f32 %v366, %v1045
      %v1047 = vpop.f32.mrb[0].mxu0
      %1048 = vdwg.mxu0
      %1049 = vmatprep.subr.bf16.mxu0 0
      %1050 = vmatpush1.bf16.msra.mxu0 %v816
      %1051 = vmatprep.subr.bf16.mxu0 0
      %1052 = vmatpush1.bf16.msra.mxu0 %v817
      %1053 = vmatprep.subr.bf16.mxu0 0
      %1054 = vmatpush1.bf16.msra.mxu0 %v818
      %1055 = vmatprep.subr.bf16.mxu0 0
      %1056 = vmatpush1.bf16.msra.mxu0 %v819
      %1057 = vmatprep.subr.bf16.mxu0 0
      %1058 = vmatpush1.bf16.msra.mxu0 %v820
      %1059 = vmatprep.subr.bf16.mxu0 0
      %1060 = vmatpush1.bf16.msra.mxu0 %v821
      %1061 = vmatprep.subr.bf16.mxu0 0
      %1062 = vmatpush1.bf16.msra.mxu0 %v822
      %1063 = vmatprep.subr.bf16.mxu0 0
      %1064 = vmatpush1.bf16.msra.mxu0 %v823
      %1065 = vmatprep.subr.bf16.mxu0 0
      %1066 = vmatpush1.bf16.msra.mxu0 0
      %1067 = vmatprep.subr.bf16.mxu0 0
      %1068 = vmatpush1.bf16.msra.mxu0 0
      %1069 = vmatprep.subr.bf16.mxu0 0
      %1070 = vmatpush1.bf16.msra.mxu0 0
      %1071 = vmatprep.subr.bf16.mxu0 0
      %1072 = vmatpush1.bf16.msra.mxu0 0
      %1073 = vmatprep.subr.bf16.mxu0 0
      %1074 = vmatpush1.bf16.msra.mxu0 0
      %1075 = vmatprep.subr.bf16.mxu0 0
      %1076 = vmatpush1.bf16.msra.mxu0 0
      %1077 = vmatprep.subr.bf16.mxu0 0
      %1078 = vmatpush1.bf16.msra.mxu0 0
      %1079 = vmatprep.subr.bf16.mxu0 0
      %1080 = vmatpush1.bf16.msra.mxu0 0
      %1081 = vmatprep.mubr.bf16.mxu0 0
      %1082 = vmatmul.mubr.bf16.gmra.mrb[0].mxu0 %v580
      %v1083 = vpop.f32.mrb[0].mxu0
      %v1084 = vadd.f32 %v883, %v1083
      %v1085 = vpop.f32.mrb[0].mxu0
      %v1086 = vpop.f32.mrb[0].mxu0
      %v1087 = vadd.f32 %v886, %v1086
      %v1088 = vpop.f32.mrb[0].mxu0
      %1089 = vmatprep.mubr.bf16.mxu0 0
      %1090 = vmatmul.mubr.bf16.gmra.mrb[0].mxu0 %v583
      %v1091 = vpop.f32.mrb[0].mxu0
      %v1092 = vadd.f32 %v891, %v1091
      %v1093 = vpop.f32.mrb[0].mxu0
      %v1094 = vpop.f32.mrb[0].mxu0
      %v1095 = vadd.f32 %v894, %v1094
      %v1096 = vpop.f32.mrb[0].mxu0
      %1097 = vmatprep.mubr.bf16.mxu0 0
      %1098 = vmatmul.mubr.bf16.gmra.mrb[0].mxu0 %v586
      %v1099 = vpop.f32.mrb[0].mxu0
      %v1100 = vadd.f32 %v899, %v1099
      %v1101 = vpop.f32.mrb[0].mxu0
      %v1102 = vpop.f32.mrb[0].mxu0
      %v1103 = vadd.f32 %v902, %v1102
      %v1104 = vpop.f32.mrb[0].mxu0
      %1105 = vmatprep.mubr.bf16.mxu0 0
      %1106 = vmatmul.mubr.bf16.gmra.mrb[0].mxu0 %v589
      %v1107 = vpop.f32.mrb[0].mxu0
      %v1108 = vadd.f32 %v907, %v1107
      %v1109 = vpop.f32.mrb[0].mxu0
      %v1110 = vpop.f32.mrb[0].mxu0
      %v1111 = vadd.f32 %v910, %v1110
      %v1112 = vpop.f32.mrb[0].mxu0
      %1113 = vmatprep.mubr.bf16.mxu0 0
      %1114 = vmatmul.mubr.bf16.gmra.mrb[0].mxu0 %v592
      %v1115 = vpop.f32.mrb[0].mxu0
      %v1116 = vadd.f32 %v915, %v1115
      %v1117 = vpop.f32.mrb[0].mxu0
      %v1118 = vpop.f32.mrb[0].mxu0
      %v1119 = vadd.f32 %v918, %v1118
      %v1120 = vpop.f32.mrb[0].mxu0
      %1121 = vmatprep.mubr.bf16.mxu0 0
      %1122 = vmatmul.mubr.bf16.gmra.mrb[0].mxu0 %v595
      %v1123 = vpop.f32.mrb[0].mxu0
      %v1124 = vadd.f32 %v923, %v1123
      %v1125 = vpop.f32.mrb[0].mxu0
      %v1126 = vpop.f32.mrb[0].mxu0
      %v1127 = vadd.f32 %v926, %v1126
      %v1128 = vpop.f32.mrb[0].mxu0
      %1129 = vmatprep.mubr.bf16.mxu0 0
      %1130 = vmatmul.mubr.bf16.gmra.mrb[0].mxu0 %v598
      %v1131 = vpop.f32.mrb[0].mxu0
      %v1132 = vadd.f32 %v931, %v1131
      %v1133 = vpop.f32.mrb[0].mxu0
      %v1134 = vpop.f32.mrb[0].mxu0
      %v1135 = vadd.f32 %v934, %v1134
      %v1136 = vpop.f32.mrb[0].mxu0
      %1137 = vmatprep.mubr.bf16.mxu0 0
      %1138 = vmatmul.mubr.bf16.gmra.mrb[0].mxu0 %v601
      %v1139 = vpop.f32.mrb[0].mxu0
      %v1140 = vadd.f32 %v939, %v1139
      %v1141 = vpop.f32.mrb[0].mxu0
      %v1142 = vpop.f32.mrb[0].mxu0
      %v1143 = vadd.f32 %v942, %v1142
      %v1144 = vpop.f32.mrb[0].mxu0
      %1145 = vmatprep.mubr.bf16.mxu0 0
      %1146 = vmatmul.mubr.bf16.gmra.mrb[0].mxu0 %v604
      %v1147 = vpop.f32.mrb[0].mxu0
      %v1148 = vadd.f32 %v947, %v1147
      %v1149 = vpop.f32.mrb[0].mxu0
      %v1150 = vpop.f32.mrb[0].mxu0
      %v1151 = vadd.f32 %v950, %v1150
      %v1152 = vpop.f32.mrb[0].mxu0
      %1153 = vmatprep.mubr.bf16.mxu0 0
      %1154 = vmatmul.mubr.bf16.gmra.mrb[0].mxu0 %v607
      %v1155 = vpop.f32.mrb[0].mxu0
      %v1156 = vadd.f32 %v955, %v1155
      %v1157 = vpop.f32.mrb[0].mxu0
      %v1158 = vpop.f32.mrb[0].mxu0
      %v1159 = vadd.f32 %v958, %v1158
      %v1160 = vpop.f32.mrb[0].mxu0
      %1161 = vmatprep.mubr.bf16.mxu0 0
      %1162 = vmatmul.mubr.bf16.gmra.mrb[0].mxu0 %v610
      %v1163 = vpop.f32.mrb[0].mxu0
      %v1164 = vadd.f32 %v963, %v1163
      %v1165 = vpop.f32.mrb[0].mxu0
      %v1166 = vpop.f32.mrb[0].mxu0
      %v1167 = vadd.f32 %v966, %v1166
      %v1168 = vpop.f32.mrb[0].mxu0
      %1169 = vmatprep.mubr.bf16.mxu0 0
      %1170 = vmatmul.mubr.bf16.gmra.mrb[0].mxu0 %v613
      %v1171 = vpop.f32.mrb[0].mxu0
      %v1172 = vadd.f32 %v971, %v1171
      %v1173 = vpop.f32.mrb[0].mxu0
      %v1174 = vpop.f32.mrb[0].mxu0
      %v1175 = vadd.f32 %v974, %v1174
      %v1176 = vpop.f32.mrb[0].mxu0
      %1177 = vmatprep.mubr.bf16.mxu0 0
      %1178 = vmatmul.mubr.bf16.gmra.mrb[0].mxu0 %v616
      %v1179 = vpop.f32.mrb[0].mxu0
      %v1180 = vadd.f32 %v979, %v1179
      %v1181 = vpop.f32.mrb[0].mxu0
      %v1182 = vpop.f32.mrb[0].mxu0
      %v1183 = vadd.f32 %v982, %v1182
      %v1184 = vpop.f32.mrb[0].mxu0
      %1185 = vmatprep.mubr.bf16.mxu0 0
      %1186 = vmatmul.mubr.bf16.gmra.mrb[0].mxu0 %v619
      %v1187 = vpop.f32.mrb[0].mxu0
      %v1188 = vadd.f32 %v987, %v1187
      %v1189 = vpop.f32.mrb[0].mxu0
      %v1190 = vpop.f32.mrb[0].mxu0
      %v1191 = vadd.f32 %v990, %v1190
      %v1192 = vpop.f32.mrb[0].mxu0
      %1193 = vmatprep.mubr.bf16.mxu0 0
      %1194 = vmatmul.mubr.bf16.gmra.mrb[0].mxu0 %v622
      %v1195 = vpop.f32.mrb[0].mxu0
      %v1196 = vadd.f32 %v995, %v1195
      %v1197 = vpop.f32.mrb[0].mxu0
      %v1198 = vpop.f32.mrb[0].mxu0
      %v1199 = vadd.f32 %v998, %v1198
      %v1200 = vpop.f32.mrb[0].mxu0
      %1201 = vmatprep.mubr.bf16.mxu0 0
      %1202 = vmatmul.mubr.bf16.gmra.mrb[0].mxu0 %v625
      %v1203 = vpop.f32.mrb[0].mxu0
      %v1204 = vadd.f32 %v1003, %v1203
      %v1205 = vpop.f32.mrb[0].mxu0
      %v1206 = vpop.f32.mrb[0].mxu0
      %v1207 = vadd.f32 %v1006, %v1206
      %v1208 = vpop.f32.mrb[0].mxu0
      %1209 = vmatprep.mubr.bf16.mxu0 0
      %1210 = vmatmul.mubr.bf16.gmra.mrb[0].mxu0 %v628
      %v1211 = vpop.f32.mrb[0].mxu0
      %v1212 = vadd.f32 %v1011, %v1211
      %v1213 = vpop.f32.mrb[0].mxu0
      %v1214 = vpop.f32.mrb[0].mxu0
      %v1215 = vadd.f32 %v1014, %v1214
      %v1216 = vpop.f32.mrb[0].mxu0
      %1217 = vmatprep.mubr.bf16.mxu0 0
      %1218 = vmatmul.mubr.bf16.gmra.mrb[0].mxu0 %v631
      %v1219 = vpop.f32.mrb[0].mxu0
      %v1220 = vadd.f32 %v1019, %v1219
      %v1221 = vpop.f32.mrb[0].mxu0
      %v1222 = vpop.f32.mrb[0].mxu0
      %v1223 = vadd.f32 %v1022, %v1222
      %v1224 = vpop.f32.mrb[0].mxu0
      %1225 = vmatprep.mubr.bf16.mxu0 0
      %1226 = vmatmul.mubr.bf16.gmra.mrb[0].mxu0 %v634
      %v1227 = vpop.f32.mrb[0].mxu0
      %v1228 = vadd.f32 %v1027, %v1227
      %v1229 = vpop.f32.mrb[0].mxu0
      %v1230 = vpop.f32.mrb[0].mxu0
      %v1231 = vadd.f32 %v1030, %v1230
      %v1232 = vpop.f32.mrb[0].mxu0
      %1233 = vmatprep.mubr.bf16.mxu0 0
      %1234 = vmatmul.mubr.bf16.gmra.mrb[0].mxu0 %v637
      %v1235 = vpop.f32.mrb[0].mxu0
      %v1236 = vadd.f32 %v1035, %v1235
      %v1237 = vpop.f32.mrb[0].mxu0
      %v1238 = vpop.f32.mrb[0].mxu0
      %v1239 = vadd.f32 %v1038, %v1238
      %v1240 = vpop.f32.mrb[0].mxu0
      %1241 = vmatprep.mubr.bf16.mxu0 0
      %1242 = vmatmul.mubr.bf16.gmra.mrb[0].mxu0 %v640
      %v1243 = vpop.f32.mrb[0].mxu0
      %v1244 = vadd.f32 %v1043, %v1243
      %v1245 = vpop.f32.mrb[0].mxu0
      %v1246 = vpop.f32.mrb[0].mxu0
      %v1247 = vadd.f32 %v1046, %v1246
      %v1248 = vpop.f32.mrb[0].mxu0
      %1249 = vdwg.mxu0
      %v1250 = vpack.c.bf16 %v1087, %v1084
      %v1251 = vpack.c.bf16 %v1095, %v1092
      %v1252 = vpack.c.bf16 %v1103, %v1100
      %v1253 = vpack.c.bf16 %v1111, %v1108
      %v1254 = vpack.c.bf16 %v1119, %v1116
      %v1255 = vpack.c.bf16 %v1127, %v1124
      %v1256 = vpack.c.bf16 %v1135, %v1132
      %v1257 = vpack.c.bf16 %v1143, %v1140
      %v1258 = vpack.c.bf16 %v1151, %v1148
      %v1259 = vpack.c.bf16 %v1159, %v1156
      %v1260 = vpack.c.bf16 %v1167, %v1164
      %v1261 = vpack.c.bf16 %v1175, %v1172
      %v1262 = vpack.c.bf16 %v1183, %v1180
      %v1263 = vpack.c.bf16 %v1191, %v1188
      %v1264 = vpack.c.bf16 %v1199, %v1196
      %v1265 = vpack.c.bf16 %v1207, %v1204
      %v1266 = vpack.c.bf16 %v1215, %v1212
      %v1267 = vpack.c.bf16 %v1223, %v1220
      %v1268 = vpack.c.bf16 %v1231, %v1228
      %v1269 = vpack.c.bf16 %v1239, %v1236
      %v1270 = vpack.c.bf16 %v1247, %v1244
      %v1292 = vunpack.c.l.b16 %v1250
      %v1293 = vunpack.c.h.b16 %v1250
      %v1294 = vunpack.c.l.b16 %v1251
      %v1295 = vunpack.c.h.b16 %v1251
      %v1296 = vunpack.c.l.b16 %v1252
      %v1297 = vunpack.c.h.b16 %v1252
      %v1298 = vunpack.c.l.b16 %v1253
      %v1299 = vunpack.c.h.b16 %v1253
      %v1300 = vunpack.c.l.b16 %v1254
      %v1301 = vunpack.c.h.b16 %v1254
      %v1302 = vunpack.c.l.b16 %v1255
      %v1303 = vunpack.c.h.b16 %v1255
      %v1304 = vunpack.c.l.b16 %v1256
      %v1305 = vunpack.c.h.b16 %v1256
      %v1306 = vunpack.c.l.b16 %v1257
      %v1307 = vunpack.c.h.b16 %v1257
      %v1308 = vunpack.c.l.b16 %v1258
      %v1309 = vunpack.c.h.b16 %v1258
      %v1310 = vunpack.c.l.b16 %v1259
      %v1311 = vunpack.c.h.b16 %v1259
      %v1312 = vunpack.c.l.b16 %v1260
      %v1313 = vunpack.c.h.b16 %v1260
      %v1314 = vunpack.c.l.b16 %v1261
      %v1315 = vunpack.c.h.b16 %v1261
      %v1316 = vunpack.c.l.b16 %v1262
      %v1317 = vunpack.c.h.b16 %v1262
      %v1318 = vunpack.c.l.b16 %v1263
      %v1319 = vunpack.c.h.b16 %v1263
      %v1320 = vunpack.c.l.b16 %v1264
      %v1321 = vunpack.c.h.b16 %v1264
      %v1322 = vunpack.c.l.b16 %v1265
      %v1323 = vunpack.c.h.b16 %v1265
      %v1324 = vunpack.c.l.b16 %v1266
      %v1325 = vunpack.c.h.b16 %v1266
      %v1326 = vunpack.c.l.b16 %v1267
      %v1327 = vunpack.c.h.b16 %v1267
      %v1328 = vunpack.c.l.b16 %v1268
      %v1329 = vunpack.c.h.b16 %v1268
      %v1330 = vunpack.c.l.b16 %v1269
      %v1331 = vunpack.c.h.b16 %v1269
      %v1332 = vunpack.c.l.b16 %v1270
      %v1333 = vunpack.c.h.b16 %v1270
      %v1334 = vpack.c.b16 %v1292, %v1292
      %v1335 = vpack.c.b16 %v1293, %v1293
      %v1336 = vpack.c.b16 %v1294, %v1294
      %v1337 = vpack.c.b16 %v1295, %v1295
      %v1338 = vpack.c.b16 %v1296, %v1296
      %v1339 = vpack.c.b16 %v1297, %v1297
      %v1340 = vpack.c.b16 %v1298, %v1298
      %v1341 = vpack.c.b16 %v1299, %v1299
      %v1342 = vpack.c.b16 %v1300, %v1300
      %v1343 = vpack.c.b16 %v1301, %v1301
      %v1344 = vpack.c.b16 %v1302, %v1302
      %v1345 = vpack.c.b16 %v1303, %v1303
      %v1346 = vpack.c.b16 %v1304, %v1304
      %v1347 = vpack.c.b16 %v1305, %v1305
      %v1348 = vpack.c.b16 %v1306, %v1306
      %v1349 = vpack.c.b16 %v1307, %v1307
      %v1350 = vpack.c.b16 %v1308, %v1308
      %v1351 = vpack.c.b16 %v1309, %v1309
      %v1352 = vpack.c.b16 %v1310, %v1310
      %v1353 = vpack.c.b16 %v1311, %v1311
      %v1354 = vpack.c.b16 %v1312, %v1312
      %v1355 = vpack.c.b16 %v1313, %v1313
      %v1356 = vpack.c.b16 %v1314, %v1314
      %v1357 = vpack.c.b16 %v1315, %v1315
      %v1358 = vpack.c.b16 %v1316, %v1316
      %v1359 = vpack.c.b16 %v1317, %v1317
      %v1360 = vpack.c.b16 %v1318, %v1318
      %v1361 = vpack.c.b16 %v1319, %v1319
      %v1362 = vpack.c.b16 %v1320, %v1320
      %v1363 = vpack.c.b16 %v1321, %v1321
      %v1364 = vpack.c.b16 %v1322, %v1322
      %v1365 = vpack.c.b16 %v1323, %v1323
      %v1366 = vpack.c.b16 %v1324, %v1324
      %v1367 = vpack.c.b16 %v1325, %v1325
      %v1368 = vpack.c.b16 %v1326, %v1326
      %v1369 = vpack.c.b16 %v1327, %v1327
      %v1370 = vpack.c.b16 %v1328, %v1328
      %v1371 = vpack.c.b16 %v1329, %v1329
      %v1372 = vpack.c.b16 %v1330, %v1330
      %v1373 = vpack.c.b16 %v1331, %v1331
      %v1374 = vpack.c.b16 %v1332, %v1332
      %v1375 = vpack.c.b16 %v1333, %v1333
      %1418 = vst [vmem:[%s226] sm:$0xf] %v1334
      %1419 = vst [vmem:[%s226 + $0x4] sm:$0xf] %v1335
      %1420 = vst [vmem:[%s226 + $0x8] sm:$0xf] %v1336
      %1421 = vst [vmem:[%s226 + $0xc] sm:$0xf] %v1337
      %1422 = vst [vmem:[%s226 + $0x10] sm:$0xf] %v1338
      %1423 = vst [vmem:[%s226 + $0x14] sm:$0xf] %v1339
      %1424 = vst [vmem:[%s226 + $0x18] sm:$0xf] %v1340
      %1425 = vst [vmem:[%s226 + $0x1c] sm:$0xf] %v1341
      %1426 = vst [vmem:[%s226 + $0x20] sm:$0xf] %v1342
      %1427 = vst [vmem:[%s226 + $0x24] sm:$0xf] %v1343
      %1428 = vst [vmem:[%s226 + $0x28] sm:$0xf] %v1344
      %1429 = vst [vmem:[%s226 + $0x2c] sm:$0xf] %v1345
      %1430 = vst [vmem:[%s226 + $0x30] sm:$0xf] %v1346
      %1431 = vst [vmem:[%s226 + $0x34] sm:$0xf] %v1347
      %1432 = vst [vmem:[%s226 + $0x38] sm:$0xf] %v1348
      %1433 = vst [vmem:[%s226 + $0x3c] sm:$0xf] %v1349
      %1434 = vst [vmem:[%s226 + $0x40] sm:$0xf] %v1350
      %1435 = vst [vmem:[%s226 + $0x44] sm:$0xf] %v1351
      %1436 = vst [vmem:[%s226 + $0x48] sm:$0xf] %v1352
      %1437 = vst [vmem:[%s226 + $0x4c] sm:$0xf] %v1353
      %1438 = vst [vmem:[%s226 + $0x50] sm:$0xf] %v1354
      %1439 = vst [vmem:[%s226 + $0x54] sm:$0xf] %v1355
      %1440 = vst [vmem:[%s226 + $0x58] sm:$0xf] %v1356
      %1441 = vst [vmem:[%s226 + $0x5c] sm:$0xf] %v1357
      %1442 = vst [vmem:[%s226 + $0x60] sm:$0xf] %v1358
      %1443 = vst [vmem:[%s226 + $0x64] sm:$0xf] %v1359
      %1444 = vst [vmem:[%s226 + $0x68] sm:$0xf] %v1360
      %1445 = vst [vmem:[%s226 + $0x6c] sm:$0xf] %v1361
      %1446 = vst [vmem:[%s226 + $0x70] sm:$0xf] %v1362
      %1447 = vst [vmem:[%s226 + $0x74] sm:$0xf] %v1363
      %1448 = vst [vmem:[%s226 + $0x78] sm:$0xf] %v1364
      %1449 = vst [vmem:[%s226 + $0x7c] sm:$0xf] %v1365
      %1450 = vst [vmem:[%s226 + $0x80] sm:$0xf] %v1366
      %1451 = vst [vmem:[%s226 + $0x84] sm:$0xf] %v1367
      %1452 = vst [vmem:[%s226 + $0x88] sm:$0xf] %v1368
      %1453 = vst [vmem:[%s226 + $0x8c] sm:$0xf] %v1369
      %1454 = vst [vmem:[%s226 + $0x90] sm:$0xf] %v1370
      %1455 = vst [vmem:[%s226 + $0x94] sm:$0xf] %v1371
      %1456 = vst [vmem:[%s226 + $0x98] sm:$0xf] %v1372
      %1457 = vst [vmem:[%s226 + $0x9c] sm:$0xf] %v1373
      %1458 = vst [vmem:[%s226 + $0xa0] sm:$0xf] %v1374
      %1459 = vst [vmem:[%s226 + $0xa4] sm:$0xf] %v1375
      %s1460 = smul.u32 42, %s18
      %p1461 = scmp.lt.s32.totalorder %s1460, 83
      %s1462 = scalar_select %p1461, %s1460, 83
      %p1463 = scmp.lt.s32.totalorder %s19, 0
      %s1464 = scalar_select %p1463, %s19, 0
      %s1465 = sadd.s32 %s1464, %s1462
      %s1466 = smul.addr %s1465, 4
      %s1467 = scalar_lea.vmem %s3, %s1466
      // Predicated region
      $region33: #{reduction_a_forward.4} parent=31 // pred_check
        %p1468 = pneg %p124
      $region34: #{reduction_a_forward.4} parent=31 // pred_check_branch
        %1470 = sbr.rel (%p1468) target = $region36
      $region35: #{reduction_a_forward.4} parent=31 // pred_region
        %s1471 = smul.u32 42, %s18
      $region36: #{reduction_a_forward.4} parent=31 // pred_fallthru
        _
    $region32: #{reduction_a_forward.4} parent=5 // pred_fallthru
      _
    %p1472 = scmp.le.s32.totalorder 2, %s9
    // Predicated region
    $region37: #{reduction_a_forward.4} parent=5 // pred_check
      %p1473 = pneg %p1472
    $region38: #{reduction_a_forward.4} parent=5 // pred_check_branch
      %1475 = sbr.rel (%p1473) target = $region40
    $region39: #{reduction_a_forward.4} parent=5 // pred_region
      %s1476 = ssub.s32 %s9, 2
      // Predicated region
      $region41: #{reduction_a_forward.4} parent=39 // pred_check
        %p1477 = pneg %p130
      $region42: #{reduction_a_forward.4} parent=39 // pred_check_branch
        %1479 = sbr.rel (%p1477) target = $region44
      $region43: #{reduction_a_forward.4} parent=39 // pred_region
        %s1480 = smul.u32 42, %s20
        %p1481 = scmp.lt.s32.totalorder %s1480, 83
        %s1482 = scalar_select %p1481, %s1480, 83
        %p1483 = scmp.lt.s32.totalorder %s21, 0
        %s1484 = scalar_select %p1483, %s21, 0
        %s1485 = sadd.s32 %s1484, %s1482
        %s1486 = smul.addr %s1485, 4
        %s1487 = scalar_lea.vmem %s3, %s1486
      $region44: #{reduction_a_forward.4} parent=39 // pred_fallthru
        _
    $region40: #{reduction_a_forward.4} parent=5 // pred_fallthru
      _
  $region6: #{reduction_a_forward.4} parent=0 // loop_footer
    %s13 = sadd.s32 1, %s9
  $region7: #{reduction_a_forward.4} parent=0 // loop_footer_branch
    %8 = sbr.rel target = $region3
  $region8: #{reduction_a_forward.4} parent=0 // loop_exit
    _

// kernel: reduction_a_forward.7
$region0: #{reduction_a_forward.7}
  #allocation0 [shape = 'u32[]', space=smem, size = 0x4, offset = 0x4, fixed_abs, tag = 'smem constant byte address 0x4 - core index']
  #allocation1 [shape = 'u32[144,128]{1,0:T(1,128)}', space=vmem, size = 0x12000, scoped, tag = 'internal scratch']
  %s0 = inlined_call_operand.vmem [shape: bf16[128,3456], index: 0, kind: input, shape index: {}]
  %s1 = inlined_call_operand.vmem [shape: bf16[3456,128], index: 1, kind: input, shape index: {}]
  %s2 = inlined_call_operand.vmem [shape: f32[1,128], index: 2, kind: input, shape index: {}]
  %s3 = inlined_call_operand.vmem [shape: f32[128,128], index: 3, kind: output, shape index: {0}]
  %s4 = inlined_call_operand.vmem [shape: f32[128,384], index: 4, kind: output, shape index: {1}]
  %5 = xla_tuple %s3, %s4
  %s6 = sld [smem:[#allocation0]]
  $region53: #{reduction_a_forward.7} parent=0
    _
  %s8 = ssub.s32 1, %s6
  %s9 = scalar_select 0, %s8, %s6
  loop: start=0, step=1, limit=4
  $region2: #{reduction_a_forward.7} parent=0 // loop_pre_header
    _
  $region3: #{reduction_a_forward.7} parent=0 // loop_header
    %s11 = sphi 0, %s15
    %p12 = scmp.ge.s32.totalorder %s11, 4
    %s21 = sphi 0, %s23
    %s24 = sphi 0, %s21
    %s25 = sphi 0, %s24
    %s41 = sphi 0, %s25
    %s45 = sphi 0, %s45
    %s47 = sphi 0, %s45
    %s48 = sphi 0, %s47
    %s62 = sphi 0, %s48
    %s66 = sphi 0, %s66
    %s68 = sphi 0, %s66
    %s69 = sphi 0, %s68
    %s83 = sphi 0, %s69
    %s89 = sphi 0, %s91
    %s92 = sphi 0, %s89
    %s93 = sphi 0, %s92
    %s109 = sphi 0, %s93
    %s115 = sphi 0, %s117
    %s118 = sphi 0, %s115
    %s119 = sphi 0, %s118
    %s135 = sphi 0, %s119
  $region4: #{reduction_a_forward.7} parent=0 // loop_header_branch
    %14 = sbr.rel (%p12) target = $region8
  $region5: #{reduction_a_forward.7} parent=0 // loop_body
    %s16 = ssub.s32 %s11, 1
    %s17 = ssub.s32 %s11, 2
    %s18 = sadd.s32 %s11, 1
    %s19 = ssub.s32 %s11, %s18
    %p20 = scmp.eq.s32.totalorder %s19, 0
    %s22 = sadd.s32 %s21, 1
    %s23 = scalar_select %p20, %s21, %s22
    %p26 = pneg %p20
    %p27 = scmp.eq.s32.totalorder %s11, 1
    %p28 = por %p26, %p27
    %p29 = scmp.ne.s32.totalorder %s21, %s24
    %p30 = scmp.eq.s32.totalorder %s11, 0
    %p31 = por %p29, %p30
    %p32 = scmp.ne.s32.totalorder %s21, %s24
    %p33 = scmp.eq.s32.totalorder %s16, 1
    %p34 = por %p32, %p33
    %p35 = scmp.ne.s32.totalorder %s24, %s25
    %p36 = scmp.eq.s32.totalorder %s16, 0
    %p37 = por %p35, %p36
    %p38 = scmp.ne.s32.totalorder %s24, %s25
    %p39 = scmp.eq.s32.totalorder %s17, 1
    %p40 = por %p38, %p39
    %p42 = scmp.ne.s32.totalorder %s25, %s41
    %p43 = scmp.eq.s32.totalorder %s17, 0
    %p44 = por %p42, %p43
    %s46 = sadd.s32 %s45, 1
    %p49 = scmp.eq.s32.totalorder %s11, 1
    %p50 = scmp.ne.s32.totalorder %s45, %s47
    %p51 = scmp.eq.s32.totalorder %s11, 0
    %p52 = por %p50, %p51
    %p53 = scmp.ne.s32.totalorder %s45, %s47
    %p54 = scmp.eq.s32.totalorder %s16, 1
    %p55 = por %p53, %p54
    %p56 = scmp.ne.s32.totalorder %s47, %s48
    %p57 = scmp.eq.s32.totalorder %s16, 0
    %p58 = por %p56, %p57
    %p59 = scmp.ne.s32.totalorder %s47, %s48
    %p60 = scmp.eq.s32.totalorder %s17, 1
    %p61 = por %p59, %p60
    %p63 = scmp.ne.s32.totalorder %s48, %s62
    %p64 = scmp.eq.s32.totalorder %s17, 0
    %p65 = por %p63, %p64
    %s67 = sadd.s32 %s66, 1
    %p70 = scmp.eq.s32.totalorder %s11, 1
    %p71 = scmp.ne.s32.totalorder %s66, %s68
    %p72 = scmp.eq.s32.totalorder %s11, 0
    %p73 = por %p71, %p72
    %p74 = scmp.ne.s32.totalorder %s66, %s68
    %p75 = scmp.eq.s32.totalorder %s16, 1
    %p76 = por %p74, %p75
    %p77 = scmp.ne.s32.totalorder %s68, %s69
    %p78 = scmp.eq.s32.totalorder %s16, 0
    %p79 = por %p77, %p78
    %p80 = scmp.ne.s32.totalorder %s68, %s69
    %p81 = scmp.eq.s32.totalorder %s17, 1
    %p82 = por %p80, %p81
    %p84 = scmp.ne.s32.totalorder %s69, %s83
    %p85 = scmp.eq.s32.totalorder %s17, 0
    %p86 = por %p84, %p85
    %s87 = ssub.s32 %s11, %s18
    %p88 = scmp.eq.s32.totalorder %s87, 0
    %s90 = sadd.s32 %s89, 1
    %s91 = scalar_select %p88, %s89, %s90
    %p94 = pneg %p88
    %p95 = scmp.eq.s32.totalorder %s11, 1
    %p96 = por %p94, %p95
    %p97 = scmp.ne.s32.totalorder %s89, %s92
    %p98 = scmp.eq.s32.totalorder %s11, 0
    %p99 = por %p97, %p98
    %p100 = scmp.ne.s32.totalorder %s89, %s92
    %p101 = scmp.eq.s32.totalorder %s16, 1
    %p102 = por %p100, %p101
    %p103 = scmp.ne.s32.totalorder %s92, %s93
    %p104 = scmp.eq.s32.totalorder %s16, 0
    %p105 = por %p103, %p104
    %p106 = scmp.ne.s32.totalorder %s92, %s93
    %p107 = scmp.eq.s32.totalorder %s17, 1
    %p108 = por %p106, %p107
    %p110 = scmp.ne.s32.totalorder %s93, %s109
    %p111 = scmp.eq.s32.totalorder %s17, 0
    %p112 = por %p110, %p111
    %s113 = ssub.s32 %s11, %s18
    %p114 = scmp.eq.s32.totalorder %s113, 0
    %s116 = sadd.s32 %s115, 1
    %s117 = scalar_select %p114, %s115, %s116
    %p120 = pneg %p114
    %p121 = scmp.eq.s32.totalorder %s11, 1
    %p122 = por %p120, %p121
    %p123 = scmp.ne.s32.totalorder %s115, %s118
    %p124 = scmp.eq.s32.totalorder %s11, 0
    %p125 = por %p123, %p124
    %p126 = scmp.ne.s32.totalorder %s115, %s118
    %p127 = scmp.eq.s32.totalorder %s16, 1
    %p128 = por %p126, %p127
    %p129 = scmp.ne.s32.totalorder %s118, %s119
    %p130 = scmp.eq.s32.totalorder %s16, 0
    %p131 = por %p129, %p130
    %p132 = scmp.ne.s32.totalorder %s118, %s119
    %p133 = scmp.eq.s32.totalorder %s17, 1
    %p134 = por %p132, %p133
    %p136 = scmp.ne.s32.totalorder %s119, %s135
    %p137 = scmp.eq.s32.totalorder %s17, 0
    %p138 = por %p136, %p137
    %p139 = scmp.le.s32.totalorder 1, %s11
    %p140 = scmp.lt.s32.totalorder %s11, 3
    %p141 = pnand %p139, %p140
    %p142 = pneg %p141
    // Predicated region
    $region9: #{reduction_a_forward.7} parent=5 // pred_check
      _
    $region10: #{reduction_a_forward.7} parent=5 // pred_check_branch
      %144 = sbr.rel (%p141) target = $region12
    $region11: #{reduction_a_forward.7} parent=5 // pred_region
      %s145 = ssub.s32 %s11, 1
      // Predicated region
      $region13: #{reduction_a_forward.7} parent=11 // pred_check
        %p146 = pneg %p58
      $region14: #{reduction_a_forward.7} parent=11 // pred_check_branch
        %148 = sbr.rel (%p146) target = $region16
      $region15: #{reduction_a_forward.7} parent=11 // pred_region
        _
      $region16: #{reduction_a_forward.7} parent=11 // pred_fallthru
        _
      // Predicated region
      $region17: #{reduction_a_forward.7} parent=11 // pred_check
        %p149 = pneg %p79
      $region18: #{reduction_a_forward.7} parent=11 // pred_check_branch
        %151 = sbr.rel (%p149) target = $region20
      $region19: #{reduction_a_forward.7} parent=11 // pred_region
        _
      $region20: #{reduction_a_forward.7} parent=11 // pred_fallthru
        _
    $region12: #{reduction_a_forward.7} parent=5 // pred_fallthru
      _
    %p152 = scmp.lt.s32.totalorder %s11, 2
    // Predicated region
    $region21: #{reduction_a_forward.7} parent=5 // pred_check
      %p153 = pneg %p152
    $region22: #{reduction_a_forward.7} parent=5 // pred_check_branch
      %155 = sbr.rel (%p153) target = $region24
    $region23: #{reduction_a_forward.7} parent=5 // pred_region
      // Predicated region
      $region25: #{reduction_a_forward.7} parent=23 // pred_check
        %p156 = pneg %p31
      $region26: #{reduction_a_forward.7} parent=23 // pred_check_branch
        %158 = sbr.rel (%p156) target = $region28
      $region27: #{reduction_a_forward.7} parent=23 // pred_region
        %s159 = smul.u32 8, %s11
        %p160 = scmp.lt.s32.totalorder %s159, 15
        %s161 = scalar_select %p160, %s159, 15
        %s162 = smul.addr %s161, 27
        %s163 = smul.addr %s162, 4
        %s164 = scalar_lea.vmem %s0, %s163
        %s165 = smul.u32 8, %s11
      $region28: #{reduction_a_forward.7} parent=23 // pred_fallthru
        _
    $region24: #{reduction_a_forward.7} parent=5 // pred_fallthru
      _
    %p166 = scmp.le.s32.totalorder 1, %s11
    %p167 = scmp.lt.s32.totalorder %s11, 3
    %p168 = pnand %p166, %p167
    %p169 = pneg %p168
    // Predicated region
    $region29: #{reduction_a_forward.7} parent=5 // pred_check
      _
    $region30: #{reduction_a_forward.7} parent=5 // pred_check_branch
      %171 = sbr.rel (%p168) target = $region32
    $region31: #{reduction_a_forward.7} parent=5 // pred_region
      %s172 = ssub.s32 %s11, 1
      %s173 = smul.u32 8, %s16
      %p174 = scmp.lt.s32.totalorder %s173, 15
      %s175 = scalar_select %p174, %s173, 15
      %s176 = smul.addr %s175, 27
      %s177 = smul.addr %s176, 4
      %s178 = scalar_lea.vmem %s0, %s177
      %p179 = pneg %p37
      %p180 = pneg %p34
      %p181 = pneg %p58
      %p182 = pneg %p55
      %p183 = pneg %p79
      %p184 = pneg %p76
      %p185 = pneg %p105
      %p186 = pneg %p102
      %s187 = smul.u32 8, %s16
      %p188 = scmp.lt.s32.totalorder %s187, 15
      %s189 = scalar_select %p188, %s187, 15
      %s190 = smul.addr %s189, 8
      %s191 = scalar_lea.vmem %s3, %s190
      %p192 = pneg %p131
      %p193 = pneg %p128
      %s194 = smul.u32 8, %s16
      %p195 = scmp.lt.s32.totalorder %s194, 15
      %s196 = scalar_select %p195, %s194, 15
      %s197 = smul.addr %s196, 3
      %s198 = smul.addr %s197, 8
      %s199 = scalar_lea.vmem %s4, %s198
      %s200 = smul.u32 8, %s16
      %p201 = scmp.lt.s32.totalorder %s200, 15
      %s202 = scalar_select %p201, %s200, 15
      %s203 = smul.addr %s202, 27
      %s204 = smul.addr %s203, 4
      %s205 = scalar_lea.vmem %s0, %s204
      %s206 = smul.u32 8, %s16
      %s207 = smul.u32 8, %s16
      %p208 = scmp.lt.s32.totalorder %s207, 15
      %s209 = scalar_select %p208, %s207, 15
      %s210 = smul.addr %s209, 8
      %s211 = scalar_lea.vmem %s3, %s210
      %s212 = smul.u32 8, %s16
      %s213 = smul.u32 8, %s16
      %p214 = scmp.lt.s32.totalorder %s213, 15
      %s215 = scalar_select %p214, %s213, 15
      %s216 = smul.addr %s215, 3
      %s217 = smul.addr %s216, 8
      %s218 = scalar_lea.vmem %s4, %s217
      %s219 = smul.u32 8, %s16
      %v221 = vld [vmem:[%s205] sm:$0xff]
      %v222 = vld [vmem:[%s205 + $0x8] sm:$0xff]
      %v223 = vld [vmem:[%s205 + $0x10] sm:$0xff]
      %v224 = vld [vmem:[%s205 + $0x18] sm:$0xff]
      %v225 = vld [vmem:[%s205 + $0x20] sm:$0xff]
      %v226 = vld [vmem:[%s205 + $0x28] sm:$0xff]
      %v227 = vld [vmem:[%s205 + $0x30] sm:$0xff]
      %v228 = vld [vmem:[%s205 + $0x38] sm:$0xff]
      %v229 = vld [vmem:[%s205 + $0x40] sm:$0xff]
      %v230 = vld [vmem:[%s205 + $0x48] sm:$0xff]
      %v231 = vld [vmem:[%s205 + $0x50] sm:$0xff]
      %v232 = vld [vmem:[%s205 + $0x58] sm:$0xff]
      %v233 = vld [vmem:[%s205 + $0x60] sm:$0xff]
      %v234 = vld [vmem:[%s205 + $0x68] sm:$0xf]
      %v235 = vld [vmem:[%s205 + $0x6c] sm:$0xff]
      %v236 = vld [vmem:[%s205 + $0x74] sm:$0xff]
      %v237 = vld [vmem:[%s205 + $0x7c] sm:$0xff]
      %v238 = vld [vmem:[%s205 + $0x84] sm:$0xff]
      %v239 = vld [vmem:[%s205 + $0x8c] sm:$0xff]
      %v240 = vld [vmem:[%s205 + $0x94] sm:$0xff]
      %v241 = vld [vmem:[%s205 + $0x9c] sm:$0xff]
      %v242 = vld [vmem:[%s205 + $0xa4] sm:$0xff]
      %v243 = vld [vmem:[%s205 + $0xac] sm:$0xff]
      %v244 = vld [vmem:[%s205 + $0xb4] sm:$0xff]
      %v245 = vld [vmem:[%s205 + $0xbc] sm:$0xff]
      %v246 = vld [vmem:[%s205 + $0xc4] sm:$0xff]
      %v247 = vld [vmem:[%s205 + $0xcc] sm:$0xff]
      %v248 = vld [vmem:[%s205 + $0xd4] sm:$0xf]
      %v249 = vld [vmem:[%s205 + $0xd8] sm:$0xff]
      %v250 = vld [vmem:[%s205 + $0xe0] sm:$0xff]
      %v251 = vld [vmem:[%s205 + $0xe8] sm:$0xff]
      %v252 = vld [vmem:[%s205 + $0xf0] sm:$0xff]
      %v253 = vld [vmem:[%s205 + $0xf8] sm:$0xff]
      %v254 = vld [vmem:[%s205 + $0x100] sm:$0xff]
      %v255 = vld [vmem:[%s205 + $0x108] sm:$0xff]
      %v256 = vld [vmem:[%s205 + $0x110] sm:$0xff]
      %v257 = vld [vmem:[%s205 + $0x118] sm:$0xff]
      %v258 = vld [vmem:[%s205 + $0x120] sm:$0xff]
      %v259 = vld [vmem:[%s205 + $0x128] sm:$0xff]
      %v260 = vld [vmem:[%s205 + $0x130] sm:$0xff]
      %v261 = vld [vmem:[%s205 + $0x138] sm:$0xff]
      %v262 = vld [vmem:[%s205 + $0x140] sm:$0xf]
      %v263 = vld [vmem:[%s205 + $0x144] sm:$0xff]
      %v264 = vld [vmem:[%s205 + $0x14c] sm:$0xff]
      %v265 = vld [vmem:[%s205 + $0x154] sm:$0xff]
      %v266 = vld [vmem:[%s205 + $0x15c] sm:$0xff]
      %v267 = vld [vmem:[%s205 + $0x164] sm:$0xff]
      %v268 = vld [vmem:[%s205 + $0x16c] sm:$0xff]
      %v269 = vld [vmem:[%s205 + $0x174] sm:$0xff]
      %v270 = vld [vmem:[%s205 + $0x17c] sm:$0xff]
      %v271 = vld [vmem:[%s205 + $0x184] sm:$0xff]
      %v272 = vld [vmem:[%s205 + $0x18c] sm:$0xff]
      %v273 = vld [vmem:[%s205 + $0x194] sm:$0xff]
      %v274 = vld [vmem:[%s205 + $0x19c] sm:$0xff]
      %v275 = vld [vmem:[%s205 + $0x1a4] sm:$0xff]
      %v276 = vld [vmem:[%s205 + $0x1ac] sm:$0xf]
      %v277 = vld [vmem:[%s205 + $0x1b0] sm:$0xff]
      %v278 = vld [vmem:[%s205 + $0x1b8] sm:$0xff]
      %v279 = vld [vmem:[%s205 + $0x1c0] sm:$0xff]
      %v280 = vld [vmem:[%s205 + $0x1c8] sm:$0xff]
      %v281 = vld [vmem:[%s205 + $0x1d0] sm:$0xff]
      %v282 = vld [vmem:[%s205 + $0x1d8] sm:$0xff]
      %v283 = vld [vmem:[%s205 + $0x1e0] sm:$0xff]
      %v284 = vld [vmem:[%s205 + $0x1e8] sm:$0xff]
      %v285 = vld [vmem:[%s205 + $0x1f0] sm:$0xff]
      %v286 = vld [vmem:[%s205 + $0x1f8] sm:$0xff]
      %v287 = vld [vmem:[%s205 + $0x200] sm:$0xff]
      %v288 = vld [vmem:[%s205 + $0x208] sm:$0xff]
      %v289 = vld [vmem:[%s205 + $0x210] sm:$0xff]
      %v290 = vld [vmem:[%s205 + $0x218] sm:$0xf]
      %v291 = vld [vmem:[%s205 + $0x21c] sm:$0xff]
      %v292 = vld [vmem:[%s205 + $0x224] sm:$0xff]
      %v293 = vld [vmem:[%s205 + $0x22c] sm:$0xff]
      %v294 = vld [vmem:[%s205 + $0x234] sm:$0xff]
      %v295 = vld [vmem:[%s205 + $0x23c] sm:$0xff]
      %v296 = vld [vmem:[%s205 + $0x244] sm:$0xff]
      %v297 = vld [vmem:[%s205 + $0x24c] sm:$0xff]
      %v298 = vld [vmem:[%s205 + $0x254] sm:$0xff]
      %v299 = vld [vmem:[%s205 + $0x25c] sm:$0xff]
      %v300 = vld [vmem:[%s205 + $0x264] sm:$0xff]
      %v301 = vld [vmem:[%s205 + $0x26c] sm:$0xff]
      %v302 = vld [vmem:[%s205 + $0x274] sm:$0xff]
      %v303 = vld [vmem:[%s205 + $0x27c] sm:$0xff]
      %v304 = vld [vmem:[%s205 + $0x284] sm:$0xf]
      %v305 = vld [vmem:[%s205 + $0x288] sm:$0xff]
      %v306 = vld [vmem:[%s205 + $0x290] sm:$0xff]
      %v307 = vld [vmem:[%s205 + $0x298] sm:$0xff]
      %v308 = vld [vmem:[%s205 + $0x2a0] sm:$0xff]
      %v309 = vld [vmem:[%s205 + $0x2a8] sm:$0xff]
      %v310 = vld [vmem:[%s205 + $0x2b0] sm:$0xff]
      %v311 = vld [vmem:[%s205 + $0x2b8] sm:$0xff]
      %v312 = vld [vmem:[%s205 + $0x2c0] sm:$0xff]
      %v313 = vld [vmem:[%s205 + $0x2c8] sm:$0xff]
      %v314 = vld [vmem:[%s205 + $0x2d0] sm:$0xff]
      %v315 = vld [vmem:[%s205 + $0x2d8] sm:$0xff]
      %v316 = vld [vmem:[%s205 + $0x2e0] sm:$0xff]
      %v317 = vld [vmem:[%s205 + $0x2e8] sm:$0xff]
      %v318 = vld [vmem:[%s205 + $0x2f0] sm:$0xf]
      %v319 = vld [vmem:[%s205 + $0x2f4] sm:$0xff]
      %v320 = vld [vmem:[%s205 + $0x2fc] sm:$0xff]
      %v321 = vld [vmem:[%s205 + $0x304] sm:$0xff]
      %v322 = vld [vmem:[%s205 + $0x30c] sm:$0xff]
      %v323 = vld [vmem:[%s205 + $0x314] sm:$0xff]
      %v324 = vld [vmem:[%s205 + $0x31c] sm:$0xff]
      %v325 = vld [vmem:[%s205 + $0x324] sm:$0xff]
      %v326 = vld [vmem:[%s205 + $0x32c] sm:$0xff]
      %v327 = vld [vmem:[%s205 + $0x334] sm:$0xff]
      %v328 = vld [vmem:[%s205 + $0x33c] sm:$0xff]
      %v329 = vld [vmem:[%s205 + $0x344] sm:$0xff]
      %v330 = vld [vmem:[%s205 + $0x34c] sm:$0xff]
      %v331 = vld [vmem:[%s205 + $0x354] sm:$0xff]
      %v332 = vld [vmem:[%s205 + $0x35c] sm:$0xf]
      %v333 = vld [vmem:[%s1] sm:$0xf]
      %v334 = vld [vmem:[%s1 + $0x4] sm:$0xf]
      %v335 = vld [vmem:[%s1 + $0x8] sm:$0xf]
      %v336 = vld [vmem:[%s1 + $0xc] sm:$0xf]
      %v337 = vld [vmem:[%s1 + $0x10] sm:$0xf]
      %v338 = vld [vmem:[%s1 + $0x14] sm:$0xf]
      %v339 = vld [vmem:[%s1 + $0x18] sm:$0xf]
      %v340 = vld [vmem:[%s1 + $0x1c] sm:$0xf]
      %v341 = vld [vmem:[%s1 + $0x20] sm:$0xf]
      %v342 = vld [vmem:[%s1 + $0x24] sm:$0xf]
      %v343 = vld [vmem:[%s1 + $0x28] sm:$0xf]
      %v344 = vld [vmem:[%s1 + $0x2c] sm:$0xf]
      %v345 = vld [vmem:[%s1 + $0x30] sm:$0xf]
      %v346 = vld [vmem:[%s1 + $0x34] sm:$0xf]
      %v347 = vld [vmem:[%s1 + $0x38] sm:$0xf]
      %v348 = vld [vmem:[%s1 + $0x3c] sm:$0xf]
      %v349 = vld [vmem:[%s1 + $0x40] sm:$0xf]
      %v350 = vld [vmem:[%s1 + $0x44] sm:$0xf]
      %v351 = vld [vmem:[%s1 + $0x48] sm:$0xf]
      %v352 = vld [vmem:[%s1 + $0x4c] sm:$0xf]
      %v353 = vld [vmem:[%s1 + $0x50] sm:$0xf]
      %v354 = vld [vmem:[%s1 + $0x54] sm:$0xf]
      %v355 = vld [vmem:[%s1 + $0x58] sm:$0xf]
      %v356 = vld [vmem:[%s1 + $0x5c] sm:$0xf]
      %v357 = vld [vmem:[%s1 + $0x60] sm:$0xf]
      %v358 = vld [vmem:[%s1 + $0x64] sm:$0xf]
      %v359 = vld [vmem:[%s1 + $0x68] sm:$0xf]
      %v360 = vld [vmem:[%s1 + $0x6c] sm:$0xf]
      %v361 = vld [vmem:[%s1 + $0x70] sm:$0xf]
      %v362 = vld [vmem:[%s1 + $0x74] sm:$0xf]
      %v363 = vld [vmem:[%s1 + $0x78] sm:$0xf]
      %v364 = vld [vmem:[%s1 + $0x7c] sm:$0xf]
      %v365 = vld [vmem:[%s1 + $0x80] sm:$0xf]
      %v366 = vld [vmem:[%s1 + $0x84] sm:$0xf]
      %v367 = vld [vmem:[%s1 + $0x88] sm:$0xf]
      %v368 = vld [vmem:[%s1 + $0x8c] sm:$0xf]
      %v369 = vld [vmem:[%s1 + $0x90] sm:$0xf]
      %v370 = vld [vmem:[%s1 + $0x94] sm:$0xf]
      %v371 = vld [vmem:[%s1 + $0x98] sm:$0xf]
      %v372 = vld [vmem:[%s1 + $0x9c] sm:$0xf]
      %v373 = vld [vmem:[%s1 + $0xa0] sm:$0xf]
      %v374 = vld [vmem:[%s1 + $0xa4] sm:$0xf]
      %v375 = vld [vmem:[%s1 + $0xa8] sm:$0xf]
      %v376 = vld [vmem:[%s1 + $0xac] sm:$0xf]
      %v377 = vld [vmem:[%s1 + $0xb0] sm:$0xf]
      %v378 = vld [vmem:[%s1 + $0xb4] sm:$0xf]
      %v379 = vld [vmem:[%s1 + $0xb8] sm:$0xf]
      %v380 = vld [vmem:[%s1 + $0xbc] sm:$0xf]
      %v381 = vld [vmem:[%s1 + $0xc0] sm:$0xf]
      %v382 = vld [vmem:[%s1 + $0xc4] sm:$0xf]
      %v383 = vld [vmem:[%s1 + $0xc8] sm:$0xf]
      %v384 = vld [vmem:[%s1 + $0xcc] sm:$0xf]
      %v385 = vld [vmem:[%s1 + $0xd0] sm:$0xf]
      %v386 = vld [vmem:[%s1 + $0xd4] sm:$0xf]
      %v387 = vld [vmem:[%s1 + $0xd8] sm:$0xf]
      %v388 = vld [vmem:[%s1 + $0xdc] sm:$0xf]
      %v389 = vld [vmem:[%s1 + $0xe0] sm:$0xf]
      %v390 = vld [vmem:[%s1 + $0xe4] sm:$0xf]
      %v391 = vld [vmem:[%s1 + $0xe8] sm:$0xf]
      %v392 = vld [vmem:[%s1 + $0xec] sm:$0xf]
      %v393 = vld [vmem:[%s1 + $0xf0] sm:$0xf]
      %v394 = vld [vmem:[%s1 + $0xf4] sm:$0xf]
      %v395 = vld [vmem:[%s1 + $0xf8] sm:$0xf]
      %v396 = vld [vmem:[%s1 + $0xfc] sm:$0xf]
      %v397 = vld [vmem:[%s1 + $0x100] sm:$0xf]
      %v398 = vld [vmem:[%s1 + $0x104] sm:$0xf]
      %v399 = vld [vmem:[%s1 + $0x108] sm:$0xf]
      %v400 = vld [vmem:[%s1 + $0x10c] sm:$0xf]
      %v401 = vld [vmem:[%s1 + $0x110] sm:$0xf]
      %v402 = vld [vmem:[%s1 + $0x114] sm:$0xf]
      %v403 = vld [vmem:[%s1 + $0x118] sm:$0xf]
      %v404 = vld [vmem:[%s1 + $0x11c] sm:$0xf]
      %v405 = vld [vmem:[%s1 + $0x120] sm:$0xf]
      %v406 = vld [vmem:[%s1 + $0x124] sm:$0xf]
      %v407 = vld [vmem:[%s1 + $0x128] sm:$0xf]
      %v408 = vld [vmem:[%s1 + $0x12c] sm:$0xf]
      %v409 = vld [vmem:[%s1 + $0x130] sm:$0xf]
      %v410 = vld [vmem:[%s1 + $0x134] sm:$0xf]
      %v411 = vld [vmem:[%s1 + $0x138] sm:$0xf]
      %v412 = vld [vmem:[%s1 + $0x13c] sm:$0xf]
      %v413 = vld [vmem:[%s1 + $0x140] sm:$0xf]
      %v414 = vld [vmem:[%s1 + $0x144] sm:$0xf]
      %v415 = vld [vmem:[%s1 + $0x148] sm:$0xf]
      %v416 = vld [vmem:[%s1 + $0x14c] sm:$0xf]
      %v417 = vld [vmem:[%s1 + $0x150] sm:$0xf]
      %v418 = vld [vmem:[%s1 + $0x154] sm:$0xf]
      %v419 = vld [vmem:[%s1 + $0x158] sm:$0xf]
      %v420 = vld [vmem:[%s1 + $0x15c] sm:$0xf]
      %v421 = vld [vmem:[%s1 + $0x160] sm:$0xf]
      %v422 = vld [vmem:[%s1 + $0x164] sm:$0xf]
      %v423 = vld [vmem:[%s1 + $0x168] sm:$0xf]
      %v424 = vld [vmem:[%s1 + $0x16c] sm:$0xf]
      %v425 = vld [vmem:[%s1 + $0x170] sm:$0xf]
      %v426 = vld [vmem:[%s1 + $0x174] sm:$0xf]
      %v427 = vld [vmem:[%s1 + $0x178] sm:$0xf]
      %v428 = vld [vmem:[%s1 + $0x17c] sm:$0xf]
      %v429 = vld [vmem:[%s1 + $0x180] sm:$0xf]
      %v430 = vld [vmem:[%s1 + $0x184] sm:$0xf]
      %v431 = vld [vmem:[%s1 + $0x188] sm:$0xf]
      %v432 = vld [vmem:[%s1 + $0x18c] sm:$0xf]
      %v433 = vld [vmem:[%s1 + $0x190] sm:$0xf]
      %v434 = vld [vmem:[%s1 + $0x194] sm:$0xf]
      %v435 = vld [vmem:[%s1 + $0x198] sm:$0xf]
      %v436 = vld [vmem:[%s1 + $0x19c] sm:$0xf]
      %v437 = vld [vmem:[%s1 + $0x1a0] sm:$0xf]
      %v438 = vld [vmem:[%s1 + $0x1a4] sm:$0xf]
      %v439 = vld [vmem:[%s1 + $0x1a8] sm:$0xf]
      %v440 = vld [vmem:[%s1 + $0x1ac] sm:$0xf]
      %v441 = vld [vmem:[%s1 + $0x1b0] sm:$0xf]
      %v442 = vld [vmem:[%s1 + $0x1b4] sm:$0xf]
      %v443 = vld [vmem:[%s1 + $0x1b8] sm:$0xf]
      %v444 = vld [vmem:[%s1 + $0x1bc] sm:$0xf]
      %v445 = vld [vmem:[%s1 + $0x1c0] sm:$0xf]
      %v446 = vld [vmem:[%s1 + $0x1c4] sm:$0xf]
      %v447 = vld [vmem:[%s1 + $0x1c8] sm:$0xf]
      %v448 = vld [vmem:[%s1 + $0x1cc] sm:$0xf]
      %v449 = vld [vmem:[%s1 + $0x1d0] sm:$0xf]
      %v450 = vld [vmem:[%s1 + $0x1d4] sm:$0xf]
      %v451 = vld [vmem:[%s1 + $0x1d8] sm:$0xf]
      %v452 = vld [vmem:[%s1 + $0x1dc] sm:$0xf]
      %v453 = vld [vmem:[%s1 + $0x1e0] sm:$0xf]
      %v454 = vld [vmem:[%s1 + $0x1e4] sm:$0xf]
      %v455 = vld [vmem:[%s1 + $0x1e8] sm:$0xf]
      %v456 = vld [vmem:[%s1 + $0x1ec] sm:$0xf]
      %v457 = vld [vmem:[%s1 + $0x1f0] sm:$0xf]
      %v458 = vld [vmem:[%s1 + $0x1f4] sm:$0xf]
      %v459 = vld [vmem:[%s1 + $0x1f8] sm:$0xf]
      %v460 = vld [vmem:[%s1 + $0x1fc] sm:$0xf]
      %v461 = vld [vmem:[%s1 + $0x200] sm:$0xf]
      %v462 = vld [vmem:[%s1 + $0x204] sm:$0xf]
      %v463 = vld [vmem:[%s1 + $0x208] sm:$0xf]
      %v464 = vld [vmem:[%s1 + $0x20c] sm:$0xf]
      %v465 = vld [vmem:[%s1 + $0x210] sm:$0xf]
      %v466 = vld [vmem:[%s1 + $0x214] sm:$0xf]
      %v467 = vld [vmem:[%s1 + $0x218] sm:$0xf]
      %v468 = vld [vmem:[%s1 + $0x21c] sm:$0xf]
      %v469 = vld [vmem:[%s1 + $0x220] sm:$0xf]
      %v470 = vld [vmem:[%s1 + $0x224] sm:$0xf]
      %v471 = vld [vmem:[%s1 + $0x228] sm:$0xf]
      %v472 = vld [vmem:[%s1 + $0x22c] sm:$0xf]
      %v473 = vld [vmem:[%s1 + $0x230] sm:$0xf]
      %v474 = vld [vmem:[%s1 + $0x234] sm:$0xf]
      %v475 = vld [vmem:[%s1 + $0x238] sm:$0xf]
      %v476 = vld [vmem:[%s1 + $0x23c] sm:$0xf]
      %v477 = vld [vmem:[%s1 + $0x240] sm:$0xf]
      %v478 = vld [vmem:[%s1 + $0x244] sm:$0xf]
      %v479 = vld [vmem:[%s1 + $0x248] sm:$0xf]
      %v480 = vld [vmem:[%s1 + $0x24c] sm:$0xf]
      %v481 = vld [vmem:[%s1 + $0x250] sm:$0xf]
      %v482 = vld [vmem:[%s1 + $0x254] sm:$0xf]
      %v483 = vld [vmem:[%s1 + $0x258] sm:$0xf]
      %v484 = vld [vmem:[%s1 + $0x25c] sm:$0xf]
      %v485 = vld [vmem:[%s1 + $0x260] sm:$0xf]
      %v486 = vld [vmem:[%s1 + $0x264] sm:$0xf]
      %v487 = vld [vmem:[%s1 + $0x268] sm:$0xf]
      %v488 = vld [vmem:[%s1 + $0x26c] sm:$0xf]
      %v489 = vld [vmem:[%s1 + $0x270] sm:$0xf]
      %v490 = vld [vmem:[%s1 + $0x274] sm:$0xf]
      %v491 = vld [vmem:[%s1 + $0x278] sm:$0xf]
      %v492 = vld [vmem:[%s1 + $0x27c] sm:$0xf]
      %v493 = vld [vmem:[%s1 + $0x280] sm:$0xf]
      %v494 = vld [vmem:[%s1 + $0x284] sm:$0xf]
      %v495 = vld [vmem:[%s1 + $0x288] sm:$0xf]
      %v496 = vld [vmem:[%s1 + $0x28c] sm:$0xf]
      %v497 = vld [vmem:[%s1 + $0x290] sm:$0xf]
      %v498 = vld [vmem:[%s1 + $0x294] sm:$0xf]
      %v499 = vld [vmem:[%s1 + $0x298] sm:$0xf]
      %v500 = vld [vmem:[%s1 + $0x29c] sm:$0xf]
      %v501 = vld [vmem:[%s1 + $0x2a0] sm:$0xf]
      %v502 = vld [vmem:[%s1 + $0x2a4] sm:$0xf]
      %v503 = vld [vmem:[%s1 + $0x2a8] sm:$0xf]
      %v504 = vld [vmem:[%s1 + $0x2ac] sm:$0xf]
      %v505 = vld [vmem:[%s1 + $0x2b0] sm:$0xf]
      %v506 = vld [vmem:[%s1 + $0x2b4] sm:$0xf]
      %v507 = vld [vmem:[%s1 + $0x2b8] sm:$0xf]
      %v508 = vld [vmem:[%s1 + $0x2bc] sm:$0xf]
      %v509 = vld [vmem:[%s1 + $0x2c0] sm:$0xf]
      %v510 = vld [vmem:[%s1 + $0x2c4] sm:$0xf]
      %v511 = vld [vmem:[%s1 + $0x2c8] sm:$0xf]
      %v512 = vld [vmem:[%s1 + $0x2cc] sm:$0xf]
      %v513 = vld [vmem:[%s1 + $0x2d0] sm:$0xf]
      %v514 = vld [vmem:[%s1 + $0x2d4] sm:$0xf]
      %v515 = vld [vmem:[%s1 + $0x2d8] sm:$0xf]
      %v516 = vld [vmem:[%s1 + $0x2dc] sm:$0xf]
      %v517 = vld [vmem:[%s1 + $0x2e0] sm:$0xf]
      %v518 = vld [vmem:[%s1 + $0x2e4] sm:$0xf]
      %v519 = vld [vmem:[%s1 + $0x2e8] sm:$0xf]
      %v520 = vld [vmem:[%s1 + $0x2ec] sm:$0xf]
      %v521 = vld [vmem:[%s1 + $0x2f0] sm:$0xf]
      %v522 = vld [vmem:[%s1 + $0x2f4] sm:$0xf]
      %v523 = vld [vmem:[%s1 + $0x2f8] sm:$0xf]
      %v524 = vld [vmem:[%s1 + $0x2fc] sm:$0xf]
      %v525 = vld [vmem:[%s1 + $0x300] sm:$0xf]
      %v526 = vld [vmem:[%s1 + $0x304] sm:$0xf]
      %v527 = vld [vmem:[%s1 + $0x308] sm:$0xf]
      %v528 = vld [vmem:[%s1 + $0x30c] sm:$0xf]
      %v529 = vld [vmem:[%s1 + $0x310] sm:$0xf]
      %v530 = vld [vmem:[%s1 + $0x314] sm:$0xf]
      %v531 = vld [vmem:[%s1 + $0x318] sm:$0xf]
      %v532 = vld [vmem:[%s1 + $0x31c] sm:$0xf]
      %v533 = vld [vmem:[%s1 + $0x320] sm:$0xf]
      %v534 = vld [vmem:[%s1 + $0x324] sm:$0xf]
      %v535 = vld [vmem:[%s1 + $0x328] sm:$0xf]
      %v536 = vld [vmem:[%s1 + $0x32c] sm:$0xf]
      %v537 = vld [vmem:[%s1 + $0x330] sm:$0xf]
      %v538 = vld [vmem:[%s1 + $0x334] sm:$0xf]
      %v539 = vld [vmem:[%s1 + $0x338] sm:$0xf]
      %v540 = vld [vmem:[%s1 + $0x33c] sm:$0xf]
      %v541 = vld [vmem:[%s1 + $0x340] sm:$0xf]
      %v542 = vld [vmem:[%s1 + $0x344] sm:$0xf]
      %v543 = vld [vmem:[%s1 + $0x348] sm:$0xf]
      %v544 = vld [vmem:[%s1 + $0x34c] sm:$0xf]
      %v545 = vld [vmem:[%s1 + $0x350] sm:$0xf]
      %v546 = vld [vmem:[%s1 + $0x354] sm:$0xf]
      %v547 = vld [vmem:[%s1 + $0x358] sm:$0xf]
      %v548 = vld [vmem:[%s1 + $0x35c] sm:$0xf]
      %v549 = vld [vmem:[%s1 + $0x360] sm:$0xf]
      %v550 = vld [vmem:[%s1 + $0x364] sm:$0xf]
      %v551 = vld [vmem:[%s1 + $0x368] sm:$0xf]
      %v552 = vld [vmem:[%s1 + $0x36c] sm:$0xf]
      %v553 = vld [vmem:[%s1 + $0x370] sm:$0xf]
      %v554 = vld [vmem:[%s1 + $0x374] sm:$0xf]
      %v555 = vld [vmem:[%s1 + $0x378] sm:$0xf]
      %v556 = vld [vmem:[%s1 + $0x37c] sm:$0xf]
      %v557 = vld [vmem:[%s1 + $0x380] sm:$0xf]
      %v558 = vld [vmem:[%s1 + $0x384] sm:$0xf]
      %v559 = vld [vmem:[%s1 + $0x388] sm:$0xf]
      %v560 = vld [vmem:[%s1 + $0x38c] sm:$0xf]
      %v561 = vld [vmem:[%s1 + $0x390] sm:$0xf]
      %v562 = vld [vmem:[%s1 + $0x394] sm:$0xf]
      %v563 = vld [vmem:[%s1 + $0x398] sm:$0xf]
      %v564 = vld [vmem:[%s1 + $0x39c] sm:$0xf]
      %v565 = vld [vmem:[%s1 + $0x3a0] sm:$0xf]
      %v566 = vld [vmem:[%s1 + $0x3a4] sm:$0xf]
      %v567 = vld [vmem:[%s1 + $0x3a8] sm:$0xf]
      %v568 = vld [vmem:[%s1 + $0x3ac] sm:$0xf]
      %v569 = vld [vmem:[%s1 + $0x3b0] sm:$0xf]
      %v570 = vld [vmem:[%s1 + $0x3b4] sm:$0xf]
      %v571 = vld [vmem:[%s1 + $0x3b8] sm:$0xf]
      %v572 = vld [vmem:[%s1 + $0x3bc] sm:$0xf]
      %v573 = vld [vmem:[%s1 + $0x3c0] sm:$0xf]
      %v574 = vld [vmem:[%s1 + $0x3c4] sm:$0xf]
      %v575 = vld [vmem:[%s1 + $0x3c8] sm:$0xf]
      %v576 = vld [vmem:[%s1 + $0x3cc] sm:$0xf]
      %v577 = vld [vmem:[%s1 + $0x3d0] sm:$0xf]
      %v578 = vld [vmem:[%s1 + $0x3d4] sm:$0xf]
      %v579 = vld [vmem:[%s1 + $0x3d8] sm:$0xf]
      %v580 = vld [vmem:[%s1 + $0x3dc] sm:$0xf]
      %v581 = vld [vmem:[%s1 + $0x3e0] sm:$0xf]
      %v582 = vld [vmem:[%s1 + $0x3e4] sm:$0xf]
      %v583 = vld [vmem:[%s1 + $0x3e8] sm:$0xf]
      %v584 = vld [vmem:[%s1 + $0x3ec] sm:$0xf]
      %v585 = vld [vmem:[%s1 + $0x3f0] sm:$0xf]
      %v586 = vld [vmem:[%s1 + $0x3f4] sm:$0xf]
      %v587 = vld [vmem:[%s1 + $0x3f8] sm:$0xf]
      %v588 = vld [vmem:[%s1 + $0x3fc] sm:$0xf]
      %v589 = vld [vmem:[%s1 + $0x400] sm:$0xf]
      %v590 = vld [vmem:[%s1 + $0x404] sm:$0xf]
      %v591 = vld [vmem:[%s1 + $0x408] sm:$0xf]
      %v592 = vld [vmem:[%s1 + $0x40c] sm:$0xf]
      %v593 = vld [vmem:[%s1 + $0x410] sm:$0xf]
      %v594 = vld [vmem:[%s1 + $0x414] sm:$0xf]
      %v595 = vld [vmem:[%s1 + $0x418] sm:$0xf]
      %v596 = vld [vmem:[%s1 + $0x41c] sm:$0xf]
      %v597 = vld [vmem:[%s1 + $0x420] sm:$0xf]
      %v598 = vld [vmem:[%s1 + $0x424] sm:$0xf]
      %v599 = vld [vmem:[%s1 + $0x428] sm:$0xf]
      %v600 = vld [vmem:[%s1 + $0x42c] sm:$0xf]
      %v601 = vld [vmem:[%s1 + $0x430] sm:$0xf]
      %v602 = vld [vmem:[%s1 + $0x434] sm:$0xf]
      %v603 = vld [vmem:[%s1 + $0x438] sm:$0xf]
      %v604 = vld [vmem:[%s1 + $0x43c] sm:$0xf]
      %v605 = vld [vmem:[%s1 + $0x440] sm:$0xf]
      %v606 = vld [vmem:[%s1 + $0x444] sm:$0xf]
      %v607 = vld [vmem:[%s1 + $0x448] sm:$0xf]
      %v608 = vld [vmem:[%s1 + $0x44c] sm:$0xf]
      %v609 = vld [vmem:[%s1 + $0x450] sm:$0xf]
      %v610 = vld [vmem:[%s1 + $0x454] sm:$0xf]
      %v611 = vld [vmem:[%s1 + $0x458] sm:$0xf]
      %v612 = vld [vmem:[%s1 + $0x45c] sm:$0xf]
      %v613 = vld [vmem:[%s1 + $0x460] sm:$0xf]
      %v614 = vld [vmem:[%s1 + $0x464] sm:$0xf]
      %v615 = vld [vmem:[%s1 + $0x468] sm:$0xf]
      %v616 = vld [vmem:[%s1 + $0x46c] sm:$0xf]
      %v617 = vld [vmem:[%s1 + $0x470] sm:$0xf]
      %v618 = vld [vmem:[%s1 + $0x474] sm:$0xf]
      %v619 = vld [vmem:[%s1 + $0x478] sm:$0xf]
      %v620 = vld [vmem:[%s1 + $0x47c] sm:$0xf]
      %v621 = vld [vmem:[%s1 + $0x480] sm:$0xf]
      %v622 = vld [vmem:[%s1 + $0x484] sm:$0xf]
      %v623 = vld [vmem:[%s1 + $0x488] sm:$0xf]
      %v624 = vld [vmem:[%s1 + $0x48c] sm:$0xf]
      %v625 = vld [vmem:[%s1 + $0x490] sm:$0xf]
      %v626 = vld [vmem:[%s1 + $0x494] sm:$0xf]
      %v627 = vld [vmem:[%s1 + $0x498] sm:$0xf]
      %v628 = vld [vmem:[%s1 + $0x49c] sm:$0xf]
      %v629 = vld [vmem:[%s1 + $0x4a0] sm:$0xf]
      %v630 = vld [vmem:[%s1 + $0x4a4] sm:$0xf]
      %v631 = vld [vmem:[%s1 + $0x4a8] sm:$0xf]
      %v632 = vld [vmem:[%s1 + $0x4ac] sm:$0xf]
      %v633 = vld [vmem:[%s1 + $0x4b0] sm:$0xf]
      %v634 = vld [vmem:[%s1 + $0x4b4] sm:$0xf]
      %v635 = vld [vmem:[%s1 + $0x4b8] sm:$0xf]
      %v636 = vld [vmem:[%s1 + $0x4bc] sm:$0xf]
      %v637 = vld [vmem:[%s1 + $0x4c0] sm:$0xf]
      %v638 = vld [vmem:[%s1 + $0x4c4] sm:$0xf]
      %v639 = vld [vmem:[%s1 + $0x4c8] sm:$0xf]
      %v640 = vld [vmem:[%s1 + $0x4cc] sm:$0xf]
      %v641 = vld [vmem:[%s1 + $0x4d0] sm:$0xf]
      %v642 = vld [vmem:[%s1 + $0x4d4] sm:$0xf]
      %v643 = vld [vmem:[%s1 + $0x4d8] sm:$0xf]
      %v644 = vld [vmem:[%s1 + $0x4dc] sm:$0xf]
      %v645 = vld [vmem:[%s1 + $0x4e0] sm:$0xf]
      %v646 = vld [vmem:[%s1 + $0x4e4] sm:$0xf]
      %v647 = vld [vmem:[%s1 + $0x4e8] sm:$0xf]
      %v648 = vld [vmem:[%s1 + $0x4ec] sm:$0xf]
      %v649 = vld [vmem:[%s1 + $0x4f0] sm:$0xf]
      %v650 = vld [vmem:[%s1 + $0x4f4] sm:$0xf]
      %v651 = vld [vmem:[%s1 + $0x4f8] sm:$0xf]
      %v652 = vld [vmem:[%s1 + $0x4fc] sm:$0xf]
      %v653 = vld [vmem:[%s1 + $0x500] sm:$0xf]
      %v654 = vld [vmem:[%s1 + $0x504] sm:$0xf]
      %v655 = vld [vmem:[%s1 + $0x508] sm:$0xf]
      %v656 = vld [vmem:[%s1 + $0x50c] sm:$0xf]
      %v657 = vld [vmem:[%s1 + $0x510] sm:$0xf]
      %v658 = vld [vmem:[%s1 + $0x514] sm:$0xf]
      %v659 = vld [vmem:[%s1 + $0x518] sm:$0xf]
      %v660 = vld [vmem:[%s1 + $0x51c] sm:$0xf]
      %v661 = vld [vmem:[%s1 + $0x520] sm:$0xf]
      %v662 = vld [vmem:[%s1 + $0x524] sm:$0xf]
      %v663 = vld [vmem:[%s1 + $0x528] sm:$0xf]
      %v664 = vld [vmem:[%s1 + $0x52c] sm:$0xf]
      %v665 = vld [vmem:[%s1 + $0x530] sm:$0xf]
      %v666 = vld [vmem:[%s1 + $0x534] sm:$0xf]
      %v667 = vld [vmem:[%s1 + $0x538] sm:$0xf]
      %v668 = vld [vmem:[%s1 + $0x53c] sm:$0xf]
      %v669 = vld [vmem:[%s1 + $0x540] sm:$0xf]
      %v670 = vld [vmem:[%s1 + $0x544] sm:$0xf]
      %v671 = vld [vmem:[%s1 + $0x548] sm:$0xf]
      %v672 = vld [vmem:[%s1 + $0x54c] sm:$0xf]
      %v673 = vld [vmem:[%s1 + $0x550] sm:$0xf]
      %v674 = vld [vmem:[%s1 + $0x554] sm:$0xf]
      %v675 = vld [vmem:[%s1 + $0x558] sm:$0xf]
      %v676 = vld [vmem:[%s1 + $0x55c] sm:$0xf]
      %v677 = vld [vmem:[%s1 + $0x560] sm:$0xf]
      %v678 = vld [vmem:[%s1 + $0x564] sm:$0xf]
      %v679 = vld [vmem:[%s1 + $0x568] sm:$0xf]
      %v680 = vld [vmem:[%s1 + $0x56c] sm:$0xf]
      %v681 = vld [vmem:[%s1 + $0x570] sm:$0xf]
      %v682 = vld [vmem:[%s1 + $0x574] sm:$0xf]
      %v683 = vld [vmem:[%s1 + $0x578] sm:$0xf]
      %v684 = vld [vmem:[%s1 + $0x57c] sm:$0xf]
      %v685 = vld [vmem:[%s1 + $0x580] sm:$0xf]
      %v686 = vld [vmem:[%s1 + $0x584] sm:$0xf]
      %v687 = vld [vmem:[%s1 + $0x588] sm:$0xf]
      %v688 = vld [vmem:[%s1 + $0x58c] sm:$0xf]
      %v689 = vld [vmem:[%s1 + $0x590] sm:$0xf]
      %v690 = vld [vmem:[%s1 + $0x594] sm:$0xf]
      %v691 = vld [vmem:[%s1 + $0x598] sm:$0xf]
      %v692 = vld [vmem:[%s1 + $0x59c] sm:$0xf]
      %v693 = vld [vmem:[%s1 + $0x5a0] sm:$0xf]
      %v694 = vld [vmem:[%s1 + $0x5a4] sm:$0xf]
      %v695 = vld [vmem:[%s1 + $0x5a8] sm:$0xf]
      %v696 = vld [vmem:[%s1 + $0x5ac] sm:$0xf]
      %v697 = vld [vmem:[%s1 + $0x5b0] sm:$0xf]
      %v698 = vld [vmem:[%s1 + $0x5b4] sm:$0xf]
      %v699 = vld [vmem:[%s1 + $0x5b8] sm:$0xf]
      %v700 = vld [vmem:[%s1 + $0x5bc] sm:$0xf]
      %v701 = vld [vmem:[%s1 + $0x5c0] sm:$0xf]
      %v702 = vld [vmem:[%s1 + $0x5c4] sm:$0xf]
      %v703 = vld [vmem:[%s1 + $0x5c8] sm:$0xf]
      %v704 = vld [vmem:[%s1 + $0x5cc] sm:$0xf]
      %v705 = vld [vmem:[%s1 + $0x5d0] sm:$0xf]
      %v706 = vld [vmem:[%s1 + $0x5d4] sm:$0xf]
      %v707 = vld [vmem:[%s1 + $0x5d8] sm:$0xf]
      %v708 = vld [vmem:[%s1 + $0x5dc] sm:$0xf]
      %v709 = vld [vmem:[%s1 + $0x5e0] sm:$0xf]
      %v710 = vld [vmem:[%s1 + $0x5e4] sm:$0xf]
      %v711 = vld [vmem:[%s1 + $0x5e8] sm:$0xf]
      %v712 = vld [vmem:[%s1 + $0x5ec] sm:$0xf]
      %v713 = vld [vmem:[%s1 + $0x5f0] sm:$0xf]
      %v714 = vld [vmem:[%s1 + $0x5f4] sm:$0xf]
      %v715 = vld [vmem:[%s1 + $0x5f8] sm:$0xf]
      %v716 = vld [vmem:[%s1 + $0x5fc] sm:$0xf]
      %v717 = vld [vmem:[%s1 + $0x600] sm:$0xf]
      %v718 = vld [vmem:[%s1 + $0x604] sm:$0xf]
      %v719 = vld [vmem:[%s1 + $0x608] sm:$0xf]
      %v720 = vld [vmem:[%s1 + $0x60c] sm:$0xf]
      %v721 = vld [vmem:[%s1 + $0x610] sm:$0xf]
      %v722 = vld [vmem:[%s1 + $0x614] sm:$0xf]
      %v723 = vld [vmem:[%s1 + $0x618] sm:$0xf]
      %v724 = vld [vmem:[%s1 + $0x61c] sm:$0xf]
      %v725 = vld [vmem:[%s1 + $0x620] sm:$0xf]
      %v726 = vld [vmem:[%s1 + $0x624] sm:$0xf]
      %v727 = vld [vmem:[%s1 + $0x628] sm:$0xf]
      %v728 = vld [vmem:[%s1 + $0x62c] sm:$0xf]
      %v729 = vld [vmem:[%s1 + $0x630] sm:$0xf]
      %v730 = vld [vmem:[%s1 + $0x634] sm:$0xf]
      %v731 = vld [vmem:[%s1 + $0x638] sm:$0xf]
      %v732 = vld [vmem:[%s1 + $0x63c] sm:$0xf]
      %v733 = vld [vmem:[%s1 + $0x640] sm:$0xf]
      %v734 = vld [vmem:[%s1 + $0x644] sm:$0xf]
      %v735 = vld [vmem:[%s1 + $0x648] sm:$0xf]
      %v736 = vld [vmem:[%s1 + $0x64c] sm:$0xf]
      %v737 = vld [vmem:[%s1 + $0x650] sm:$0xf]
      %v738 = vld [vmem:[%s1 + $0x654] sm:$0xf]
      %v739 = vld [vmem:[%s1 + $0x658] sm:$0xf]
      %v740 = vld [vmem:[%s1 + $0x65c] sm:$0xf]
      %v741 = vld [vmem:[%s1 + $0x660] sm:$0xf]
      %v742 = vld [vmem:[%s1 + $0x664] sm:$0xf]
      %v743 = vld [vmem:[%s1 + $0x668] sm:$0xf]
      %v744 = vld [vmem:[%s1 + $0x66c] sm:$0xf]
      %v745 = vld [vmem:[%s1 + $0x670] sm:$0xf]
      %v746 = vld [vmem:[%s1 + $0x674] sm:$0xf]
      %v747 = vld [vmem:[%s1 + $0x678] sm:$0xf]
      %v748 = vld [vmem:[%s1 + $0x67c] sm:$0xf]
      %v749 = vld [vmem:[%s1 + $0x680] sm:$0xf]
      %v750 = vld [vmem:[%s1 + $0x684] sm:$0xf]
      %v751 = vld [vmem:[%s1 + $0x688] sm:$0xf]
      %v752 = vld [vmem:[%s1 + $0x68c] sm:$0xf]
      %v753 = vld [vmem:[%s1 + $0x690] sm:$0xf]
      %v754 = vld [vmem:[%s1 + $0x694] sm:$0xf]
      %v755 = vld [vmem:[%s1 + $0x698] sm:$0xf]
      %v756 = vld [vmem:[%s1 + $0x69c] sm:$0xf]
      %v757 = vld [vmem:[%s1 + $0x6a0] sm:$0xf]
      %v758 = vld [vmem:[%s1 + $0x6a4] sm:$0xf]
      %v759 = vld [vmem:[%s1 + $0x6a8] sm:$0xf]
      %v760 = vld [vmem:[%s1 + $0x6ac] sm:$0xf]
      %v761 = vld [vmem:[%s1 + $0x6b0] sm:$0xf]
      %v762 = vld [vmem:[%s1 + $0x6b4] sm:$0xf]
      %v763 = vld [vmem:[%s1 + $0x6b8] sm:$0xf]
      %v764 = vld [vmem:[%s1 + $0x6bc] sm:$0xf]
      %v765 = vld [vmem:[%s2] sm:$0x1]
      %v767 = vlaneseq
      %v768 = vshrl.u32 %v767, 7
      %v769 = vsub.s32 0, %v768
      %v770 = vrot.slane %v765, %v769
      %v884 = vunpack.c.l.b16 %v221
      %v885 = vunpack.c.h.b16 %v221
      %v886 = vunpack.c.l.b16 %v222
      %v887 = vunpack.c.h.b16 %v222
      %v888 = vunpack.c.l.b16 %v223
      %v889 = vunpack.c.h.b16 %v223
      %v890 = vunpack.c.l.b16 %v224
      %v891 = vunpack.c.h.b16 %v224
      %v892 = vunpack.c.l.b16 %v225
      %v893 = vunpack.c.h.b16 %v225
      %v894 = vunpack.c.l.b16 %v226
      %v895 = vunpack.c.h.b16 %v226
      %v896 = vunpack.c.l.b16 %v227
      %v897 = vunpack.c.h.b16 %v227
      %v898 = vunpack.c.l.b16 %v228
      %v899 = vunpack.c.h.b16 %v228
      %v900 = vunpack.c.l.b16 %v229
      %v901 = vunpack.c.h.b16 %v229
      %v902 = vunpack.c.l.b16 %v230
      %v903 = vunpack.c.h.b16 %v230
      %v904 = vunpack.c.l.b16 %v231
      %v905 = vunpack.c.h.b16 %v231
      %v906 = vunpack.c.l.b16 %v232
      %v907 = vunpack.c.h.b16 %v232
      %v908 = vunpack.c.l.b16 %v233
      %v909 = vunpack.c.h.b16 %v233
      %v910 = vunpack.c.l.b16 %v234
      %v911 = vunpack.c.l.b16 %v235
      %v912 = vunpack.c.h.b16 %v235
      %v913 = vunpack.c.l.b16 %v236
      %v914 = vunpack.c.h.b16 %v236
      %v915 = vunpack.c.l.b16 %v237
      %v916 = vunpack.c.h.b16 %v237
      %v917 = vunpack.c.l.b16 %v238
      %v918 = vunpack.c.h.b16 %v238
      %v919 = vunpack.c.l.b16 %v239
      %v920 = vunpack.c.h.b16 %v239
      %v921 = vunpack.c.l.b16 %v240
      %v922 = vunpack.c.h.b16 %v240
      %v923 = vunpack.c.l.b16 %v241
      %v924 = vunpack.c.h.b16 %v241
      %v925 = vunpack.c.l.b16 %v242
      %v926 = vunpack.c.h.b16 %v242
      %v927 = vunpack.c.l.b16 %v243
      %v928 = vunpack.c.h.b16 %v243
      %v929 = vunpack.c.l.b16 %v244
      %v930 = vunpack.c.h.b16 %v244
      %v931 = vunpack.c.l.b16 %v245
      %v932 = vunpack.c.h.b16 %v245
      %v933 = vunpack.c.l.b16 %v246
      %v934 = vunpack.c.h.b16 %v246
      %v935 = vunpack.c.l.b16 %v247
      %v936 = vunpack.c.h.b16 %v247
      %v937 = vunpack.c.l.b16 %v248
      %v938 = vunpack.c.l.b16 %v249
      %v939 = vunpack.c.h.b16 %v249
      %v940 = vunpack.c.l.b16 %v250
      %v941 = vunpack.c.h.b16 %v250
      %v942 = vunpack.c.l.b16 %v251
      %v943 = vunpack.c.h.b16 %v251
      %v944 = vunpack.c.l.b16 %v252
      %v945 = vunpack.c.h.b16 %v252
      %v946 = vunpack.c.l.b16 %v253
      %v947 = vunpack.c.h.b16 %v253
      %v948 = vunpack.c.l.b16 %v254
      %v949 = vunpack.c.h.b16 %v254
      %v950 = vunpack.c.l.b16 %v255
      %v951 = vunpack.c.h.b16 %v255
      %v952 = vunpack.c.l.b16 %v256
      %v953 = vunpack.c.h.b16 %v256
      %v954 = vunpack.c.l.b16 %v257
      %v955 = vunpack.c.h.b16 %v257
      %v956 = vunpack.c.l.b16 %v258
      %v957 = vunpack.c.h.b16 %v258
      %v958 = vunpack.c.l.b16 %v259
      %v959 = vunpack.c.h.b16 %v259
      %v960 = vunpack.c.l.b16 %v260
      %v961 = vunpack.c.h.b16 %v260
      %v962 = vunpack.c.l.b16 %v261
      %v963 = vunpack.c.h.b16 %v261
      %v964 = vunpack.c.l.b16 %v262
      %v965 = vunpack.c.l.b16 %v263
      %v966 = vunpack.c.h.b16 %v263
      %v967 = vunpack.c.l.b16 %v264
      %v968 = vunpack.c.h.b16 %v264
      %v969 = vunpack.c.l.b16 %v265
      %v970 = vunpack.c.h.b16 %v265
      %v971 = vunpack.c.l.b16 %v266
      %v972 = vunpack.c.h.b16 %v266
      %v973 = vunpack.c.l.b16 %v267
      %v974 = vunpack.c.h.b16 %v267
      %v975 = vunpack.c.l.b16 %v268
      %v976 = vunpack.c.h.b16 %v268
      %v977 = vunpack.c.l.b16 %v269
      %v978 = vunpack.c.h.b16 %v269
      %v979 = vunpack.c.l.b16 %v270
      %v980 = vunpack.c.h.b16 %v270
      %v981 = vunpack.c.l.b16 %v271
      %v982 = vunpack.c.h.b16 %v271
      %v983 = vunpack.c.l.b16 %v272
      %v984 = vunpack.c.h.b16 %v272
      %v985 = vunpack.c.l.b16 %v273
      %v986 = vunpack.c.h.b16 %v273
      %v987 = vunpack.c.l.b16 %v274
      %v988 = vunpack.c.h.b16 %v274
      %v989 = vunpack.c.l.b16 %v275
      %v990 = vunpack.c.h.b16 %v275
      %v991 = vunpack.c.l.b16 %v276
      %v992 = vunpack.c.l.b16 %v277
      %v993 = vunpack.c.h.b16 %v277
      %v994 = vunpack.c.l.b16 %v278
      %v995 = vunpack.c.h.b16 %v278
      %v996 = vunpack.c.l.b16 %v279
      %v997 = vunpack.c.h.b16 %v279
      %v998 = vunpack.c.l.b16 %v280
      %v999 = vunpack.c.h.b16 %v280
      %v1000 = vunpack.c.l.b16 %v281
      %v1001 = vunpack.c.h.b16 %v281
      %v1002 = vunpack.c.l.b16 %v282
      %v1003 = vunpack.c.h.b16 %v282
      %v1004 = vunpack.c.l.b16 %v283
      %v1005 = vunpack.c.h.b16 %v283
      %v1006 = vunpack.c.l.b16 %v284
      %v1007 = vunpack.c.h.b16 %v284
      %v1008 = vunpack.c.l.b16 %v285
      %v1009 = vunpack.c.h.b16 %v285
      %v1010 = vunpack.c.l.b16 %v286
      %v1011 = vunpack.c.h.b16 %v286
      %v1012 = vunpack.c.l.b16 %v287
      %v1013 = vunpack.c.h.b16 %v287
      %v1014 = vunpack.c.l.b16 %v288
      %v1015 = vunpack.c.h.b16 %v288
      %v1016 = vunpack.c.l.b16 %v289
      %v1017 = vunpack.c.h.b16 %v289
      %v1018 = vunpack.c.l.b16 %v290
      %v1019 = vunpack.c.l.b16 %v291
      %v1020 = vunpack.c.h.b16 %v291
      %v1021 = vunpack.c.l.b16 %v292
      %v1022 = vunpack.c.h.b16 %v292
      %v1023 = vunpack.c.l.b16 %v293
      %v1024 = vunpack.c.h.b16 %v293
      %v1025 = vunpack.c.l.b16 %v294
      %v1026 = vunpack.c.h.b16 %v294
      %v1027 = vunpack.c.l.b16 %v295
      %v1028 = vunpack.c.h.b16 %v295
      %v1029 = vunpack.c.l.b16 %v296
      %v1030 = vunpack.c.h.b16 %v296
      %v1031 = vunpack.c.l.b16 %v297
      %v1032 = vunpack.c.h.b16 %v297
      %v1033 = vunpack.c.l.b16 %v298
      %v1034 = vunpack.c.h.b16 %v298
      %v1035 = vunpack.c.l.b16 %v299
      %v1036 = vunpack.c.h.b16 %v299
      %v1037 = vunpack.c.l.b16 %v300
      %v1038 = vunpack.c.h.b16 %v300
      %v1039 = vunpack.c.l.b16 %v301
      %v1040 = vunpack.c.h.b16 %v301
      %v1041 = vunpack.c.l.b16 %v302
      %v1042 = vunpack.c.h.b16 %v302
      %v1043 = vunpack.c.l.b16 %v303
      %v1044 = vunpack.c.h.b16 %v303
      %v1045 = vunpack.c.l.b16 %v304
      %v1046 = vunpack.c.l.b16 %v305
      %v1047 = vunpack.c.h.b16 %v305
      %v1048 = vunpack.c.l.b16 %v306
      %v1049 = vunpack.c.h.b16 %v306
      %v1050 = vunpack.c.l.b16 %v307
      %v1051 = vunpack.c.h.b16 %v307
      %v1052 = vunpack.c.l.b16 %v308
      %v1053 = vunpack.c.h.b16 %v308
      %v1054 = vunpack.c.l.b16 %v309
      %v1055 = vunpack.c.h.b16 %v309
      %v1056 = vunpack.c.l.b16 %v310
      %v1057 = vunpack.c.h.b16 %v310
      %v1058 = vunpack.c.l.b16 %v311
      %v1059 = vunpack.c.h.b16 %v311
      %v1060 = vunpack.c.l.b16 %v312
      %v1061 = vunpack.c.h.b16 %v312
      %v1062 = vunpack.c.l.b16 %v313
      %v1063 = vunpack.c.h.b16 %v313
      %v1064 = vunpack.c.l.b16 %v314
      %v1065 = vunpack.c.h.b16 %v314
      %v1066 = vunpack.c.l.b16 %v315
      %v1067 = vunpack.c.h.b16 %v315
      %v1068 = vunpack.c.l.b16 %v316
      %v1069 = vunpack.c.h.b16 %v316
      %v1070 = vunpack.c.l.b16 %v317
      %v1071 = vunpack.c.h.b16 %v317
      %v1072 = vunpack.c.l.b16 %v318
      %v1073 = vunpack.c.l.b16 %v319
      %v1074 = vunpack.c.h.b16 %v319
      %v1075 = vunpack.c.l.b16 %v320
      %v1076 = vunpack.c.h.b16 %v320
      %v1077 = vunpack.c.l.b16 %v321
      %v1078 = vunpack.c.h.b16 %v321
      %v1079 = vunpack.c.l.b16 %v322
      %v1080 = vunpack.c.h.b16 %v322
      %v1081 = vunpack.c.l.b16 %v323
      %v1082 = vunpack.c.h.b16 %v323
      %v1083 = vunpack.c.l.b16 %v324
      %v1084 = vunpack.c.h.b16 %v324
      %v1085 = vunpack.c.l.b16 %v325
      %v1086 = vunpack.c.h.b16 %v325
      %v1087 = vunpack.c.l.b16 %v326
      %v1088 = vunpack.c.h.b16 %v326
      %v1089 = vunpack.c.l.b16 %v327
      %v1090 = vunpack.c.h.b16 %v327
      %v1091 = vunpack.c.l.b16 %v328
      %v1092 = vunpack.c.h.b16 %v328
      %v1093 = vunpack.c.l.b16 %v329
      %v1094 = vunpack.c.h.b16 %v329
      %v1095 = vunpack.c.l.b16 %v330
      %v1096 = vunpack.c.h.b16 %v330
      %v1097 = vunpack.c.l.b16 %v331
      %v1098 = vunpack.c.h.b16 %v331
      %v1099 = vunpack.c.l.b16 %v332
      %v1100 = vpack.c.b16 %v911, %v884
      %v1101 = vpack.c.b16 %v912, %v885
      %v1102 = vpack.c.b16 %v913, %v886
      %v1103 = vpack.c.b16 %v914, %v887
      %v1104 = vpack.c.b16 %v915, %v888
      %v1105 = vpack.c.b16 %v916, %v889
      %v1106 = vpack.c.b16 %v917, %v890
      %v1107 = vpack.c.b16 %v918, %v891
      %v1108 = vpack.c.b16 %v919, %v892
      %v1109 = vpack.c.b16 %v920, %v893
      %v1110 = vpack.c.b16 %v921, %v894
      %v1111 = vpack.c.b16 %v922, %v895
      %v1112 = vpack.c.b16 %v923, %v896
      %v1113 = vpack.c.b16 %v924, %v897
      %v1114 = vpack.c.b16 %v925, %v898
      %v1115 = vpack.c.b16 %v926, %v899
      %v1116 = vpack.c.b16 %v927, %v900
      %v1117 = vpack.c.b16 %v928, %v901
      %v1118 = vpack.c.b16 %v929, %v902
      %v1119 = vpack.c.b16 %v930, %v903
      %v1120 = vpack.c.b16 %v931, %v904
      %v1121 = vpack.c.b16 %v932, %v905
      %v1122 = vpack.c.b16 %v933, %v906
      %v1123 = vpack.c.b16 %v934, %v907
      %v1124 = vpack.c.b16 %v935, %v908
      %v1125 = vpack.c.b16 %v936, %v909
      %v1126 = vpack.c.b16 %v937, %v910
      %v1127 = vpack.c.b16 %v965, %v938
      %v1128 = vpack.c.b16 %v966, %v939
      %v1129 = vpack.c.b16 %v967, %v940
      %v1130 = vpack.c.b16 %v968, %v941
      %v1131 = vpack.c.b16 %v969, %v942
      %v1132 = vpack.c.b16 %v970, %v943
      %v1133 = vpack.c.b16 %v971, %v944
      %v1134 = vpack.c.b16 %v972, %v945
      %v1135 = vpack.c.b16 %v973, %v946
      %v1136 = vpack.c.b16 %v974, %v947
      %v1137 = vpack.c.b16 %v975, %v948
      %v1138 = vpack.c.b16 %v976, %v949
      %v1139 = vpack.c.b16 %v977, %v950
      %v1140 = vpack.c.b16 %v978, %v951
      %v1141 = vpack.c.b16 %v979, %v952
      %v1142 = vpack.c.b16 %v980, %v953
      %v1143 = vpack.c.b16 %v981, %v954
      %v1144 = vpack.c.b16 %v982, %v955
      %v1145 = vpack.c.b16 %v983, %v956
      %v1146 = vpack.c.b16 %v984, %v957
      %v1147 = vpack.c.b16 %v985, %v958
      %v1148 = vpack.c.b16 %v986, %v959
      %v1149 = vpack.c.b16 %v987, %v960
      %v1150 = vpack.c.b16 %v988, %v961
      %v1151 = vpack.c.b16 %v989, %v962
      %v1152 = vpack.c.b16 %v990, %v963
      %v1153 = vpack.c.b16 %v991, %v964
      %v1154 = vpack.c.b16 %v1019, %v992
      %v1155 = vpack.c.b16 %v1020, %v993
      %v1156 = vpack.c.b16 %v1021, %v994
      %v1157 = vpack.c.b16 %v1022, %v995
      %v1158 = vpack.c.b16 %v1023, %v996
      %v1159 = vpack.c.b16 %v1024, %v997
      %v1160 = vpack.c.b16 %v1025, %v998
      %v1161 = vpack.c.b16 %v1026, %v999
      %v1162 = vpack.c.b16 %v1027, %v1000
      %v1163 = vpack.c.b16 %v1028, %v1001
      %v1164 = vpack.c.b16 %v1029, %v1002
      %v1165 = vpack.c.b16 %v1030, %v1003
      %v1166 = vpack.c.b16 %v1031, %v1004
      %v1167 = vpack.c.b16 %v1032, %v1005
      %v1168 = vpack.c.b16 %v1033, %v1006
      %v1169 = vpack.c.b16 %v1034, %v1007
      %v1170 = vpack.c.b16 %v1035, %v1008
      %v1171 = vpack.c.b16 %v1036, %v1009
      %v1172 = vpack.c.b16 %v1037, %v1010
      %v1173 = vpack.c.b16 %v1038, %v1011
      %v1174 = vpack.c.b16 %v1039, %v1012
      %v1175 = vpack.c.b16 %v1040, %v1013
      %v1176 = vpack.c.b16 %v1041, %v1014
      %v1177 = vpack.c.b16 %v1042, %v1015
      %v1178 = vpack.c.b16 %v1043, %v1016
      %v1179 = vpack.c.b16 %v1044, %v1017
      %v1180 = vpack.c.b16 %v1045, %v1018
      %v1181 = vpack.c.b16 %v1073, %v1046
      %v1182 = vpack.c.b16 %v1074, %v1047
      %v1183 = vpack.c.b16 %v1075, %v1048
      %v1184 = vpack.c.b16 %v1076, %v1049
      %v1185 = vpack.c.b16 %v1077, %v1050
      %v1186 = vpack.c.b16 %v1078, %v1051
      %v1187 = vpack.c.b16 %v1079, %v1052
      %v1188 = vpack.c.b16 %v1080, %v1053
      %v1189 = vpack.c.b16 %v1081, %v1054
      %v1190 = vpack.c.b16 %v1082, %v1055
      %v1191 = vpack.c.b16 %v1083, %v1056
      %v1192 = vpack.c.b16 %v1084, %v1057
      %v1193 = vpack.c.b16 %v1085, %v1058
      %v1194 = vpack.c.b16 %v1086, %v1059
      %v1195 = vpack.c.b16 %v1087, %v1060
      %v1196 = vpack.c.b16 %v1088, %v1061
      %v1197 = vpack.c.b16 %v1089, %v1062
      %v1198 = vpack.c.b16 %v1090, %v1063
      %v1199 = vpack.c.b16 %v1091, %v1064
      %v1200 = vpack.c.b16 %v1092, %v1065
      %v1201 = vpack.c.b16 %v1093, %v1066
      %v1202 = vpack.c.b16 %v1094, %v1067
      %v1203 = vpack.c.b16 %v1095, %v1068
      %v1204 = vpack.c.b16 %v1096, %v1069
      %v1205 = vpack.c.b16 %v1097, %v1070
      %v1206 = vpack.c.b16 %v1098, %v1071
      %v1207 = vpack.c.b16 %v1099, %v1072
      %v1748 = vunpack.c.l.b16 %v333
      %v1749 = vunpack.c.l.b16 %v334
      %v1750 = vunpack.c.l.b16 %v335
      %v1751 = vunpack.c.l.b16 %v336
      %v1752 = vunpack.c.l.b16 %v337
      %v1753 = vunpack.c.l.b16 %v338
      %v1754 = vunpack.c.l.b16 %v339
      %v1755 = vunpack.c.l.b16 %v340
      %v1756 = vunpack.c.l.b16 %v341
      %v1757 = vunpack.c.l.b16 %v342
      %v1758 = vunpack.c.l.b16 %v343
      %v1759 = vunpack.c.l.b16 %v344
      %v1760 = vunpack.c.l.b16 %v345
      %v1761 = vunpack.c.l.b16 %v346
      %v1762 = vunpack.c.l.b16 %v347
      %v1763 = vunpack.c.l.b16 %v348
      %v1764 = vunpack.c.l.b16 %v349
      %v1765 = vunpack.c.l.b16 %v350
      %v1766 = vunpack.c.l.b16 %v351
      %v1767 = vunpack.c.l.b16 %v352
      %v1768 = vunpack.c.l.b16 %v353
      %v1769 = vunpack.c.l.b16 %v354
      %v1770 = vunpack.c.l.b16 %v355
      %v1771 = vunpack.c.l.b16 %v356
      %v1772 = vunpack.c.l.b16 %v357
      %v1773 = vunpack.c.l.b16 %v358
      %v1774 = vunpack.c.l.b16 %v359
      %v1775 = vunpack.c.l.b16 %v360
      %v1776 = vunpack.c.l.b16 %v361
      %v1777 = vunpack.c.l.b16 %v362
      %v1778 = vunpack.c.l.b16 %v363
      %v1779 = vunpack.c.l.b16 %v364
      %v1780 = vunpack.c.l.b16 %v365
      %v1781 = vunpack.c.l.b16 %v366
      %v1782 = vunpack.c.l.b16 %v367
      %v1783 = vunpack.c.l.b16 %v368
      %v1784 = vunpack.c.l.b16 %v369
      %v1785 = vunpack.c.l.b16 %v370
      %v1786 = vunpack.c.l.b16 %v371
      %v1787 = vunpack.c.l.b16 %v372
      %v1788 = vunpack.c.l.b16 %v373
      %v1789 = vunpack.c.l.b16 %v374
      %v1790 = vunpack.c.l.b16 %v375
      %v1791 = vunpack.c.l.b16 %v376
      %v1792 = vunpack.c.l.b16 %v377
      %v1793 = vunpack.c.l.b16 %v378
      %v1794 = vunpack.c.l.b16 %v379
      %v1795 = vunpack.c.l.b16 %v380
      %v1796 = vunpack.c.l.b16 %v381
      %v1797 = vunpack.c.l.b16 %v382
      %v1798 = vunpack.c.l.b16 %v383
      %v1799 = vunpack.c.l.b16 %v384
      %v1800 = vunpack.c.l.b16 %v385
      %v1801 = vunpack.c.l.b16 %v386
      %v1802 = vunpack.c.l.b16 %v387
      %v1803 = vunpack.c.l.b16 %v388
      %v1804 = vunpack.c.l.b16 %v389
      %v1805 = vunpack.c.l.b16 %v390
      %v1806 = vunpack.c.l.b16 %v391
      %v1807 = vunpack.c.l.b16 %v392
      %v1808 = vunpack.c.l.b16 %v393
      %v1809 = vunpack.c.l.b16 %v394
      %v1810 = vunpack.c.l.b16 %v395
      %v1811 = vunpack.c.l.b16 %v396
      %v1812 = vunpack.c.l.b16 %v397
      %v1813 = vunpack.c.l.b16 %v398
      %v1814 = vunpack.c.l.b16 %v399
      %v1815 = vunpack.c.l.b16 %v400
      %v1816 = vunpack.c.l.b16 %v401
      %v1817 = vunpack.c.l.b16 %v402
      %v1818 = vunpack.c.l.b16 %v403
      %v1819 = vunpack.c.l.b16 %v404
      %v1820 = vunpack.c.l.b16 %v405
      %v1821 = vunpack.c.l.b16 %v406
      %v1822 = vunpack.c.l.b16 %v407
      %v1823 = vunpack.c.l.b16 %v408
      %v1824 = vunpack.c.l.b16 %v409
      %v1825 = vunpack.c.l.b16 %v410
      %v1826 = vunpack.c.l.b16 %v411
      %v1827 = vunpack.c.l.b16 %v412
      %v1828 = vunpack.c.l.b16 %v413
      %v1829 = vunpack.c.l.b16 %v414
      %v1830 = vunpack.c.l.b16 %v415
      %v1831 = vunpack.c.l.b16 %v416
      %v1832 = vunpack.c.l.b16 %v417
      %v1833 = vunpack.c.l.b16 %v418
      %v1834 = vunpack.c.l.b16 %v419
      %v1835 = vunpack.c.l.b16 %v420
      %v1836 = vunpack.c.l.b16 %v421
      %v1837 = vunpack.c.l.b16 %v422
      %v1838 = vunpack.c.l.b16 %v423
      %v1839 = vunpack.c.l.b16 %v424
      %v1840 = vunpack.c.l.b16 %v425
      %v1841 = vunpack.c.l.b16 %v426
      %v1842 = vunpack.c.l.b16 %v427
      %v1843 = vunpack.c.l.b16 %v428
      %v1844 = vunpack.c.l.b16 %v429
      %v1845 = vunpack.c.l.b16 %v430
      %v1846 = vunpack.c.l.b16 %v431
      %v1847 = vunpack.c.l.b16 %v432
      %v1848 = vunpack.c.l.b16 %v433
      %v1849 = vunpack.c.l.b16 %v434
      %v1850 = vunpack.c.l.b16 %v435
      %v1851 = vunpack.c.l.b16 %v436
      %v1852 = vunpack.c.l.b16 %v437
      %v1853 = vunpack.c.l.b16 %v438
      %v1854 = vunpack.c.l.b16 %v439
      %v1855 = vunpack.c.l.b16 %v440
      %v1856 = vunpack.c.l.b16 %v441
      %v1857 = vunpack.c.l.b16 %v442
      %v1858 = vunpack.c.l.b16 %v443
      %v1859 = vunpack.c.l.b16 %v444
      %v1860 = vunpack.c.l.b16 %v445
      %v1861 = vunpack.c.l.b16 %v446
      %v1862 = vunpack.c.l.b16 %v447
      %v1863 = vunpack.c.l.b16 %v448
      %v1864 = vunpack.c.l.b16 %v449
      %v1865 = vunpack.c.l.b16 %v450
      %v1866 = vunpack.c.l.b16 %v451
      %v1867 = vunpack.c.l.b16 %v452
      %v1868 = vunpack.c.l.b16 %v453
      %v1869 = vunpack.c.l.b16 %v454
      %v1870 = vunpack.c.l.b16 %v455
      %v1871 = vunpack.c.l.b16 %v456
      %v1872 = vunpack.c.l.b16 %v457
      %v1873 = vunpack.c.l.b16 %v458
      %v1874 = vunpack.c.l.b16 %v459
      %v1875 = vunpack.c.l.b16 %v460
      %v1876 = vunpack.c.l.b16 %v461
      %v1877 = vunpack.c.l.b16 %v462
      %v1878 = vunpack.c.l.b16 %v463
      %v1879 = vunpack.c.l.b16 %v464
      %v1880 = vunpack.c.l.b16 %v465
      %v1881 = vunpack.c.l.b16 %v466
      %v1882 = vunpack.c.l.b16 %v467
      %v1883 = vunpack.c.l.b16 %v468
      %v1884 = vunpack.c.l.b16 %v469
      %v1885 = vunpack.c.l.b16 %v470
      %v1886 = vunpack.c.l.b16 %v471
      %v1887 = vunpack.c.l.b16 %v472
      %v1888 = vunpack.c.l.b16 %v473
      %v1889 = vunpack.c.l.b16 %v474
      %v1890 = vunpack.c.l.b16 %v475
      %v1891 = vunpack.c.l.b16 %v476
      %v1892 = vunpack.c.l.b16 %v477
      %v1893 = vunpack.c.l.b16 %v478
      %v1894 = vunpack.c.l.b16 %v479
      %v1895 = vunpack.c.l.b16 %v480
      %v1896 = vunpack.c.l.b16 %v481
      %v1897 = vunpack.c.l.b16 %v482
      %v1898 = vunpack.c.l.b16 %v483
      %v1899 = vunpack.c.l.b16 %v484
      %v1900 = vunpack.c.l.b16 %v485
      %v1901 = vunpack.c.l.b16 %v486
      %v1902 = vunpack.c.l.b16 %v487
      %v1903 = vunpack.c.l.b16 %v488
      %v1904 = vunpack.c.l.b16 %v489
      %v1905 = vunpack.c.l.b16 %v490
      %v1906 = vunpack.c.l.b16 %v491
      %v1907 = vunpack.c.l.b16 %v492
      %v1908 = vunpack.c.l.b16 %v493
      %v1909 = vunpack.c.l.b16 %v494
      %v1910 = vunpack.c.l.b16 %v495
      %v1911 = vunpack.c.l.b16 %v496
      %v1912 = vunpack.c.l.b16 %v497
      %v1913 = vunpack.c.l.b16 %v498
      %v1914 = vunpack.c.l.b16 %v499
      %v1915 = vunpack.c.l.b16 %v500
      %v1916 = vunpack.c.l.b16 %v501
      %v1917 = vunpack.c.l.b16 %v502
      %v1918 = vunpack.c.l.b16 %v503
      %v1919 = vunpack.c.l.b16 %v504
      %v1920 = vunpack.c.l.b16 %v505
      %v1921 = vunpack.c.l.b16 %v506
      %v1922 = vunpack.c.l.b16 %v507
      %v1923 = vunpack.c.l.b16 %v508
      %v1924 = vunpack.c.l.b16 %v509
      %v1925 = vunpack.c.l.b16 %v510
      %v1926 = vunpack.c.l.b16 %v511
      %v1927 = vunpack.c.l.b16 %v512
      %v1928 = vunpack.c.l.b16 %v513
      %v1929 = vunpack.c.l.b16 %v514
      %v1930 = vunpack.c.l.b16 %v515
      %v1931 = vunpack.c.l.b16 %v516
      %v1932 = vunpack.c.l.b16 %v517
      %v1933 = vunpack.c.l.b16 %v518
      %v1934 = vunpack.c.l.b16 %v519
      %v1935 = vunpack.c.l.b16 %v520
      %v1936 = vunpack.c.l.b16 %v521
      %v1937 = vunpack.c.l.b16 %v522
      %v1938 = vunpack.c.l.b16 %v523
      %v1939 = vunpack.c.l.b16 %v524
      %v1940 = vunpack.c.l.b16 %v525
      %v1941 = vunpack.c.l.b16 %v526
      %v1942 = vunpack.c.l.b16 %v527
      %v1943 = vunpack.c.l.b16 %v528
      %v1944 = vunpack.c.l.b16 %v529
      %v1945 = vunpack.c.l.b16 %v530
      %v1946 = vunpack.c.l.b16 %v531
      %v1947 = vunpack.c.l.b16 %v532
      %v1948 = vunpack.c.l.b16 %v533
      %v1949 = vunpack.c.l.b16 %v534
      %v1950 = vunpack.c.l.b16 %v535
      %v1951 = vunpack.c.l.b16 %v536
      %v1952 = vunpack.c.l.b16 %v537
      %v1953 = vunpack.c.l.b16 %v538
      %v1954 = vunpack.c.l.b16 %v539
      %v1955 = vunpack.c.l.b16 %v540
      %v1956 = vunpack.c.l.b16 %v541
      %v1957 = vunpack.c.l.b16 %v542
      %v1958 = vunpack.c.l.b16 %v543
      %v1959 = vunpack.c.l.b16 %v544
      %v1960 = vunpack.c.l.b16 %v545
      %v1961 = vunpack.c.l.b16 %v546
      %v1962 = vunpack.c.l.b16 %v547
      %v1963 = vunpack.c.l.b16 %v548
      %v1964 = vunpack.c.l.b16 %v549
      %v1965 = vunpack.c.l.b16 %v550
      %v1966 = vunpack.c.l.b16 %v551
      %v1967 = vunpack.c.l.b16 %v552
      %v1968 = vunpack.c.l.b16 %v553
      %v1969 = vunpack.c.l.b16 %v554
      %v1970 = vunpack.c.l.b16 %v555
      %v1971 = vunpack.c.l.b16 %v556
      %v1972 = vunpack.c.l.b16 %v557
      %v1973 = vunpack.c.l.b16 %v558
      %v1974 = vunpack.c.l.b16 %v559
      %v1975 = vunpack.c.l.b16 %v560
      %v1976 = vunpack.c.l.b16 %v561
      %v1977 = vunpack.c.l.b16 %v562
      %v1978 = vunpack.c.l.b16 %v563
      %v1979 = vunpack.c.l.b16 %v564
      %v1980 = vunpack.c.l.b16 %v565
      %v1981 = vunpack.c.l.b16 %v566
      %v1982 = vunpack.c.l.b16 %v567
      %v1983 = vunpack.c.l.b16 %v568
      %v1984 = vunpack.c.l.b16 %v569
      %v1985 = vunpack.c.l.b16 %v570
      %v1986 = vunpack.c.l.b16 %v571
      %v1987 = vunpack.c.l.b16 %v572
      %v1988 = vunpack.c.l.b16 %v573
      %v1989 = vunpack.c.l.b16 %v574
      %v1990 = vunpack.c.l.b16 %v575
      %v1991 = vunpack.c.l.b16 %v576
      %v1992 = vunpack.c.l.b16 %v577
      %v1993 = vunpack.c.l.b16 %v578
      %v1994 = vunpack.c.l.b16 %v579
      %v1995 = vunpack.c.l.b16 %v580
      %v1996 = vunpack.c.l.b16 %v581
      %v1997 = vunpack.c.l.b16 %v582
      %v1998 = vunpack.c.l.b16 %v583
      %v1999 = vunpack.c.l.b16 %v584
      %v2000 = vunpack.c.l.b16 %v585
      %v2001 = vunpack.c.l.b16 %v586
      %v2002 = vunpack.c.l.b16 %v587
      %v2003 = vunpack.c.l.b16 %v588
      %v2004 = vunpack.c.l.b16 %v589
      %v2005 = vunpack.c.l.b16 %v590
      %v2006 = vunpack.c.l.b16 %v591
      %v2007 = vunpack.c.l.b16 %v592
      %v2008 = vunpack.c.l.b16 %v593
      %v2009 = vunpack.c.l.b16 %v594
      %v2010 = vunpack.c.l.b16 %v595
      %v2011 = vunpack.c.l.b16 %v596
      %v2012 = vunpack.c.l.b16 %v597
      %v2013 = vunpack.c.l.b16 %v598
      %v2014 = vunpack.c.l.b16 %v599
      %v2015 = vunpack.c.l.b16 %v600
      %v2016 = vunpack.c.l.b16 %v601
      %v2017 = vunpack.c.l.b16 %v602
      %v2018 = vunpack.c.l.b16 %v603
      %v2019 = vunpack.c.l.b16 %v604
      %v2020 = vunpack.c.l.b16 %v605
      %v2021 = vunpack.c.l.b16 %v606
      %v2022 = vunpack.c.l.b16 %v607
      %v2023 = vunpack.c.l.b16 %v608
      %v2024 = vunpack.c.l.b16 %v609
      %v2025 = vunpack.c.l.b16 %v610
      %v2026 = vunpack.c.l.b16 %v611
      %v2027 = vunpack.c.l.b16 %v612
      %v2028 = vunpack.c.l.b16 %v613
      %v2029 = vunpack.c.l.b16 %v614
      %v2030 = vunpack.c.l.b16 %v615
      %v2031 = vunpack.c.l.b16 %v616
      %v2032 = vunpack.c.l.b16 %v617
      %v2033 = vunpack.c.l.b16 %v618
      %v2034 = vunpack.c.l.b16 %v619
      %v2035 = vunpack.c.l.b16 %v620
      %v2036 = vunpack.c.l.b16 %v621
      %v2037 = vunpack.c.l.b16 %v622
      %v2038 = vunpack.c.l.b16 %v623
      %v2039 = vunpack.c.l.b16 %v624
      %v2040 = vunpack.c.l.b16 %v625
      %v2041 = vunpack.c.l.b16 %v626
      %v2042 = vunpack.c.l.b16 %v627
      %v2043 = vunpack.c.l.b16 %v628
      %v2044 = vunpack.c.l.b16 %v629
      %v2045 = vunpack.c.l.b16 %v630
      %v2046 = vunpack.c.l.b16 %v631
      %v2047 = vunpack.c.l.b16 %v632
      %v2048 = vunpack.c.l.b16 %v633
      %v2049 = vunpack.c.l.b16 %v634
      %v2050 = vunpack.c.l.b16 %v635
      %v2051 = vunpack.c.l.b16 %v636
      %v2052 = vunpack.c.l.b16 %v637
      %v2053 = vunpack.c.l.b16 %v638
      %v2054 = vunpack.c.l.b16 %v639
      %v2055 = vunpack.c.l.b16 %v640
      %v2056 = vunpack.c.l.b16 %v641
      %v2057 = vunpack.c.l.b16 %v642
      %v2058 = vunpack.c.l.b16 %v643
      %v2059 = vunpack.c.l.b16 %v644
      %v2060 = vunpack.c.l.b16 %v645
      %v2061 = vunpack.c.l.b16 %v646
      %v2062 = vunpack.c.l.b16 %v647
      %v2063 = vunpack.c.l.b16 %v648
      %v2064 = vunpack.c.l.b16 %v649
      %v2065 = vunpack.c.l.b16 %v650
      %v2066 = vunpack.c.l.b16 %v651
      %v2067 = vunpack.c.l.b16 %v652
      %v2068 = vunpack.c.l.b16 %v653
      %v2069 = vunpack.c.l.b16 %v654
      %v2070 = vunpack.c.l.b16 %v655
      %v2071 = vunpack.c.l.b16 %v656
      %v2072 = vunpack.c.l.b16 %v657
      %v2073 = vunpack.c.l.b16 %v658
      %v2074 = vunpack.c.l.b16 %v659
      %v2075 = vunpack.c.l.b16 %v660
      %v2076 = vunpack.c.l.b16 %v661
      %v2077 = vunpack.c.l.b16 %v662
      %v2078 = vunpack.c.l.b16 %v663
      %v2079 = vunpack.c.l.b16 %v664
      %v2080 = vunpack.c.l.b16 %v665
      %v2081 = vunpack.c.l.b16 %v666
      %v2082 = vunpack.c.l.b16 %v667
      %v2083 = vunpack.c.l.b16 %v668
      %v2084 = vunpack.c.l.b16 %v669
      %v2085 = vunpack.c.l.b16 %v670
      %v2086 = vunpack.c.l.b16 %v671
      %v2087 = vunpack.c.l.b16 %v672
      %v2088 = vunpack.c.l.b16 %v673
      %v2089 = vunpack.c.l.b16 %v674
      %v2090 = vunpack.c.l.b16 %v675
      %v2091 = vunpack.c.l.b16 %v676
      %v2092 = vunpack.c.l.b16 %v677
      %v2093 = vunpack.c.l.b16 %v678
      %v2094 = vunpack.c.l.b16 %v679
      %v2095 = vunpack.c.l.b16 %v680
      %v2096 = vunpack.c.l.b16 %v681
      %v2097 = vunpack.c.l.b16 %v682
      %v2098 = vunpack.c.l.b16 %v683
      %v2099 = vunpack.c.l.b16 %v684
      %v2100 = vunpack.c.l.b16 %v685
      %v2101 = vunpack.c.l.b16 %v686
      %v2102 = vunpack.c.l.b16 %v687
      %v2103 = vunpack.c.l.b16 %v688
      %v2104 = vunpack.c.l.b16 %v689
      %v2105 = vunpack.c.l.b16 %v690
      %v2106 = vunpack.c.l.b16 %v691
      %v2107 = vunpack.c.l.b16 %v692
      %v2108 = vunpack.c.l.b16 %v693
      %v2109 = vunpack.c.l.b16 %v694
      %v2110 = vunpack.c.l.b16 %v695
      %v2111 = vunpack.c.l.b16 %v696
      %v2112 = vunpack.c.l.b16 %v697
      %v2113 = vunpack.c.l.b16 %v698
      %v2114 = vunpack.c.l.b16 %v699
      %v2115 = vunpack.c.l.b16 %v700
      %v2116 = vunpack.c.l.b16 %v701
      %v2117 = vunpack.c.l.b16 %v702
      %v2118 = vunpack.c.l.b16 %v703
      %v2119 = vunpack.c.l.b16 %v704
      %v2120 = vunpack.c.l.b16 %v705
      %v2121 = vunpack.c.l.b16 %v706
      %v2122 = vunpack.c.l.b16 %v707
      %v2123 = vunpack.c.l.b16 %v708
      %v2124 = vunpack.c.l.b16 %v709
      %v2125 = vunpack.c.l.b16 %v710
      %v2126 = vunpack.c.l.b16 %v711
      %v2127 = vunpack.c.l.b16 %v712
      %v2128 = vunpack.c.l.b16 %v713
      %v2129 = vunpack.c.l.b16 %v714
      %v2130 = vunpack.c.l.b16 %v715
      %v2131 = vunpack.c.l.b16 %v716
      %v2132 = vunpack.c.l.b16 %v717
      %v2133 = vunpack.c.l.b16 %v718
      %v2134 = vunpack.c.l.b16 %v719
      %v2135 = vunpack.c.l.b16 %v720
      %v2136 = vunpack.c.l.b16 %v721
      %v2137 = vunpack.c.l.b16 %v722
      %v2138 = vunpack.c.l.b16 %v723
      %v2139 = vunpack.c.l.b16 %v724
      %v2140 = vunpack.c.l.b16 %v725
      %v2141 = vunpack.c.l.b16 %v726
      %v2142 = vunpack.c.l.b16 %v727
      %v2143 = vunpack.c.l.b16 %v728
      %v2144 = vunpack.c.l.b16 %v729
      %v2145 = vunpack.c.l.b16 %v730
      %v2146 = vunpack.c.l.b16 %v731
      %v2147 = vunpack.c.l.b16 %v732
      %v2148 = vunpack.c.l.b16 %v733
      %v2149 = vunpack.c.l.b16 %v734
      %v2150 = vunpack.c.l.b16 %v735
      %v2151 = vunpack.c.l.b16 %v736
      %v2152 = vunpack.c.l.b16 %v737
      %v2153 = vunpack.c.l.b16 %v738
      %v2154 = vunpack.c.l.b16 %v739
      %v2155 = vunpack.c.l.b16 %v740
      %v2156 = vunpack.c.l.b16 %v741
      %v2157 = vunpack.c.l.b16 %v742
      %v2158 = vunpack.c.l.b16 %v743
      %v2159 = vunpack.c.l.b16 %v744
      %v2160 = vunpack.c.l.b16 %v745
      %v2161 = vunpack.c.l.b16 %v746
      %v2162 = vunpack.c.l.b16 %v747
      %v2163 = vunpack.c.l.b16 %v748
      %v2164 = vunpack.c.l.b16 %v749
      %v2165 = vunpack.c.l.b16 %v750
      %v2166 = vunpack.c.l.b16 %v751
      %v2167 = vunpack.c.l.b16 %v752
      %v2168 = vunpack.c.l.b16 %v753
      %v2169 = vunpack.c.l.b16 %v754
      %v2170 = vunpack.c.l.b16 %v755
      %v2171 = vunpack.c.l.b16 %v756
      %v2172 = vunpack.c.l.b16 %v757
      %v2173 = vunpack.c.l.b16 %v758
      %v2174 = vunpack.c.l.b16 %v759
      %v2175 = vunpack.c.l.b16 %v760
      %v2176 = vunpack.c.l.b16 %v761
      %v2177 = vunpack.c.l.b16 %v762
      %v2178 = vunpack.c.l.b16 %v763
      %v2179 = vunpack.c.l.b16 %v764
      %v2180 = vpack.c.b16 %v1749, %v1748
      %v2181 = vpack.c.b16 %v1751, %v1750
      %v2182 = vpack.c.b16 %v1753, %v1752
      %v2183 = vpack.c.b16 %v1755, %v1754
      %v2184 = vpack.c.b16 %v1757, %v1756
      %v2185 = vpack.c.b16 %v1759, %v1758
      %v2186 = vpack.c.b16 %v1761, %v1760
      %v2187 = vpack.c.b16 %v1763, %v1762
      %v2188 = vpack.c.b16 %v1765, %v1764
      %v2189 = vpack.c.b16 %v1767, %v1766
      %v2190 = vpack.c.b16 %v1769, %v1768
      %v2191 = vpack.c.b16 %v1771, %v1770
      %v2192 = vpack.c.b16 %v1773, %v1772
      %v2193 = vpack.c.b16 %v1775, %v1774
      %v2194 = vpack.c.b16 %v1777, %v1776
      %v2195 = vpack.c.b16 %v1779, %v1778
      %v2196 = vpack.c.b16 %v1781, %v1780
      %v2197 = vpack.c.b16 %v1783, %v1782
      %v2198 = vpack.c.b16 %v1785, %v1784
      %v2199 = vpack.c.b16 %v1787, %v1786
      %v2200 = vpack.c.b16 %v1789, %v1788
      %v2201 = vpack.c.b16 %v1791, %v1790
      %v2202 = vpack.c.b16 %v1793, %v1792
      %v2203 = vpack.c.b16 %v1795, %v1794
      %v2204 = vpack.c.b16 %v1797, %v1796
      %v2205 = vpack.c.b16 %v1799, %v1798
      %v2206 = vpack.c.b16 %v1801, %v1800
      %v2207 = vpack.c.b16 %v1803, %v1802
      %v2208 = vpack.c.b16 %v1805, %v1804
      %v2209 = vpack.c.b16 %v1807, %v1806
      %v2210 = vpack.c.b16 %v1809, %v1808
      %v2211 = vpack.c.b16 %v1811, %v1810
      %v2212 = vpack.c.b16 %v1813, %v1812
      %v2213 = vpack.c.b16 %v1815, %v1814
      %v2214 = vpack.c.b16 %v1817, %v1816
      %v2215 = vpack.c.b16 %v1819, %v1818
      %v2216 = vpack.c.b16 %v1821, %v1820
      %v2217 = vpack.c.b16 %v1823, %v1822
      %v2218 = vpack.c.b16 %v1825, %v1824
      %v2219 = vpack.c.b16 %v1827, %v1826
      %v2220 = vpack.c.b16 %v1829, %v1828
      %v2221 = vpack.c.b16 %v1831, %v1830
      %v2222 = vpack.c.b16 %v1833, %v1832
      %v2223 = vpack.c.b16 %v1835, %v1834
      %v2224 = vpack.c.b16 %v1837, %v1836
      %v2225 = vpack.c.b16 %v1839, %v1838
      %v2226 = vpack.c.b16 %v1841, %v1840
      %v2227 = vpack.c.b16 %v1843, %v1842
      %v2228 = vpack.c.b16 %v1845, %v1844
      %v2229 = vpack.c.b16 %v1847, %v1846
      %v2230 = vpack.c.b16 %v1849, %v1848
      %v2231 = vpack.c.b16 %v1851, %v1850
      %v2232 = vpack.c.b16 %v1853, %v1852
      %v2233 = vpack.c.b16 %v1855, %v1854
      %v2234 = vpack.c.b16 %v1857, %v1856
      %v2235 = vpack.c.b16 %v1859, %v1858
      %v2236 = vpack.c.b16 %v1861, %v1860
      %v2237 = vpack.c.b16 %v1863, %v1862
      %v2238 = vpack.c.b16 %v1865, %v1864
      %v2239 = vpack.c.b16 %v1867, %v1866
      %v2240 = vpack.c.b16 %v1869, %v1868
      %v2241 = vpack.c.b16 %v1871, %v1870
      %v2242 = vpack.c.b16 %v1873, %v1872
      %v2243 = vpack.c.b16 %v1875, %v1874
      %v2244 = vpack.c.b16 %v1877, %v1876
      %v2245 = vpack.c.b16 %v1879, %v1878
      %v2246 = vpack.c.b16 %v1881, %v1880
      %v2247 = vpack.c.b16 %v1883, %v1882
      %v2248 = vpack.c.b16 %v1885, %v1884
      %v2249 = vpack.c.b16 %v1887, %v1886
      %v2250 = vpack.c.b16 %v1889, %v1888
      %v2251 = vpack.c.b16 %v1891, %v1890
      %v2252 = vpack.c.b16 %v1893, %v1892
      %v2253 = vpack.c.b16 %v1895, %v1894
      %v2254 = vpack.c.b16 %v1897, %v1896
      %v2255 = vpack.c.b16 %v1899, %v1898
      %v2256 = vpack.c.b16 %v1901, %v1900
      %v2257 = vpack.c.b16 %v1903, %v1902
      %v2258 = vpack.c.b16 %v1905, %v1904
      %v2259 = vpack.c.b16 %v1907, %v1906
      %v2260 = vpack.c.b16 %v1909, %v1908
      %v2261 = vpack.c.b16 %v1911, %v1910
      %v2262 = vpack.c.b16 %v1913, %v1912
      %v2263 = vpack.c.b16 %v1915, %v1914
      %v2264 = vpack.c.b16 %v1917, %v1916
      %v2265 = vpack.c.b16 %v1919, %v1918
      %v2266 = vpack.c.b16 %v1921, %v1920
      %v2267 = vpack.c.b16 %v1923, %v1922
      %v2268 = vpack.c.b16 %v1925, %v1924
      %v2269 = vpack.c.b16 %v1927, %v1926
      %v2270 = vpack.c.b16 %v1929, %v1928
      %v2271 = vpack.c.b16 %v1931, %v1930
      %v2272 = vpack.c.b16 %v1933, %v1932
      %v2273 = vpack.c.b16 %v1935, %v1934
      %v2274 = vpack.c.b16 %v1937, %v1936
      %v2275 = vpack.c.b16 %v1939, %v1938
      %v2276 = vpack.c.b16 %v1941, %v1940
      %v2277 = vpack.c.b16 %v1943, %v1942
      %v2278 = vpack.c.b16 %v1945, %v1944
      %v2279 = vpack.c.b16 %v1947, %v1946
      %v2280 = vpack.c.b16 %v1949, %v1948
      %v2281 = vpack.c.b16 %v1951, %v1950
      %v2282 = vpack.c.b16 %v1953, %v1952
      %v2283 = vpack.c.b16 %v1955, %v1954
      %v2284 = vpack.c.b16 %v1957, %v1956
      %v2285 = vpack.c.b16 %v1959, %v1958
      %v2286 = vpack.c.b16 %v1961, %v1960
      %v2287 = vpack.c.b16 %v1963, %v1962
      %v2288 = vpack.c.b16 %v1965, %v1964
      %v2289 = vpack.c.b16 %v1967, %v1966
      %v2290 = vpack.c.b16 %v1969, %v1968
      %v2291 = vpack.c.b16 %v1971, %v1970
      %v2292 = vpack.c.b16 %v1973, %v1972
      %v2293 = vpack.c.b16 %v1975, %v1974
      %v2294 = vpack.c.b16 %v1977, %v1976
      %v2295 = vpack.c.b16 %v1979, %v1978
      %v2296 = vpack.c.b16 %v1981, %v1980
      %v2297 = vpack.c.b16 %v1983, %v1982
      %v2298 = vpack.c.b16 %v1985, %v1984
      %v2299 = vpack.c.b16 %v1987, %v1986
      %v2300 = vpack.c.b16 %v1989, %v1988
      %v2301 = vpack.c.b16 %v1991, %v1990
      %v2302 = vpack.c.b16 %v1993, %v1992
      %v2303 = vpack.c.b16 %v1995, %v1994
      %v2304 = vpack.c.b16 %v1997, %v1996
      %v2305 = vpack.c.b16 %v1999, %v1998
      %v2306 = vpack.c.b16 %v2001, %v2000
      %v2307 = vpack.c.b16 %v2003, %v2002
      %v2308 = vpack.c.b16 %v2005, %v2004
      %v2309 = vpack.c.b16 %v2007, %v2006
      %v2310 = vpack.c.b16 %v2009, %v2008
      %v2311 = vpack.c.b16 %v2011, %v2010
      %v2312 = vpack.c.b16 %v2013, %v2012
      %v2313 = vpack.c.b16 %v2015, %v2014
      %v2314 = vpack.c.b16 %v2017, %v2016
      %v2315 = vpack.c.b16 %v2019, %v2018
      %v2316 = vpack.c.b16 %v2021, %v2020
      %v2317 = vpack.c.b16 %v2023, %v2022
      %v2318 = vpack.c.b16 %v2025, %v2024
      %v2319 = vpack.c.b16 %v2027, %v2026
      %v2320 = vpack.c.b16 %v2029, %v2028
      %v2321 = vpack.c.b16 %v2031, %v2030
      %v2322 = vpack.c.b16 %v2033, %v2032
      %v2323 = vpack.c.b16 %v2035, %v2034
      %v2324 = vpack.c.b16 %v2037, %v2036
      %v2325 = vpack.c.b16 %v2039, %v2038
      %v2326 = vpack.c.b16 %v2041, %v2040
      %v2327 = vpack.c.b16 %v2043, %v2042
      %v2328 = vpack.c.b16 %v2045, %v2044
      %v2329 = vpack.c.b16 %v2047, %v2046
      %v2330 = vpack.c.b16 %v2049, %v2048
      %v2331 = vpack.c.b16 %v2051, %v2050
      %v2332 = vpack.c.b16 %v2053, %v2052
      %v2333 = vpack.c.b16 %v2055, %v2054
      %v2334 = vpack.c.b16 %v2057, %v2056
      %v2335 = vpack.c.b16 %v2059, %v2058
      %v2336 = vpack.c.b16 %v2061, %v2060
      %v2337 = vpack.c.b16 %v2063, %v2062
      %v2338 = vpack.c.b16 %v2065, %v2064
      %v2339 = vpack.c.b16 %v2067, %v2066
      %v2340 = vpack.c.b16 %v2069, %v2068
      %v2341 = vpack.c.b16 %v2071, %v2070
      %v2342 = vpack.c.b16 %v2073, %v2072
      %v2343 = vpack.c.b16 %v2075, %v2074
      %v2344 = vpack.c.b16 %v2077, %v2076
      %v2345 = vpack.c.b16 %v2079, %v2078
      %v2346 = vpack.c.b16 %v2081, %v2080
      %v2347 = vpack.c.b16 %v2083, %v2082
      %v2348 = vpack.c.b16 %v2085, %v2084
      %v2349 = vpack.c.b16 %v2087, %v2086
      %v2350 = vpack.c.b16 %v2089, %v2088
      %v2351 = vpack.c.b16 %v2091, %v2090
      %v2352 = vpack.c.b16 %v2093, %v2092
      %v2353 = vpack.c.b16 %v2095, %v2094
      %v2354 = vpack.c.b16 %v2097, %v2096
      %v2355 = vpack.c.b16 %v2099, %v2098
      %v2356 = vpack.c.b16 %v2101, %v2100
      %v2357 = vpack.c.b16 %v2103, %v2102
      %v2358 = vpack.c.b16 %v2105, %v2104
      %v2359 = vpack.c.b16 %v2107, %v2106
      %v2360 = vpack.c.b16 %v2109, %v2108
      %v2361 = vpack.c.b16 %v2111, %v2110
      %v2362 = vpack.c.b16 %v2113, %v2112
      %v2363 = vpack.c.b16 %v2115, %v2114
      %v2364 = vpack.c.b16 %v2117, %v2116
      %v2365 = vpack.c.b16 %v2119, %v2118
      %v2366 = vpack.c.b16 %v2121, %v2120
      %v2367 = vpack.c.b16 %v2123, %v2122
      %v2368 = vpack.c.b16 %v2125, %v2124
      %v2369 = vpack.c.b16 %v2127, %v2126
      %v2370 = vpack.c.b16 %v2129, %v2128
      %v2371 = vpack.c.b16 %v2131, %v2130
      %v2372 = vpack.c.b16 %v2133, %v2132
      %v2373 = vpack.c.b16 %v2135, %v2134
      %v2374 = vpack.c.b16 %v2137, %v2136
      %v2375 = vpack.c.b16 %v2139, %v2138
      %v2376 = vpack.c.b16 %v2141, %v2140
      %v2377 = vpack.c.b16 %v2143, %v2142
      %v2378 = vpack.c.b16 %v2145, %v2144
      %v2379 = vpack.c.b16 %v2147, %v2146
      %v2380 = vpack.c.b16 %v2149, %v2148
      %v2381 = vpack.c.b16 %v2151, %v2150
      %v2382 = vpack.c.b16 %v2153, %v2152
      %v2383 = vpack.c.b16 %v2155, %v2154
      %v2384 = vpack.c.b16 %v2157, %v2156
      %v2385 = vpack.c.b16 %v2159, %v2158
      %v2386 = vpack.c.b16 %v2161, %v2160
      %v2387 = vpack.c.b16 %v2163, %v2162
      %v2388 = vpack.c.b16 %v2165, %v2164
      %v2389 = vpack.c.b16 %v2167, %v2166
      %v2390 = vpack.c.b16 %v2169, %v2168
      %v2391 = vpack.c.b16 %v2171, %v2170
      %v2392 = vpack.c.b16 %v2173, %v2172
      %v2393 = vpack.c.b16 %v2175, %v2174
      %v2394 = vpack.c.b16 %v2177, %v2176
      %v2395 = vpack.c.b16 %v2179, %v2178
      %2612 = vmatprep.subr.bf16.mxu0 0
      %2613 = vmatpush1.bf16.msra.mxu0 %v2180
      %2614 = vmatprep.subr.bf16.mxu0 0
      %2615 = vmatpush1.bf16.msra.mxu0 %v2181
      %2616 = vmatprep.subr.bf16.mxu0 0
      %2617 = vmatpush1.bf16.msra.mxu0 %v2182
      %2618 = vmatprep.subr.bf16.mxu0 0
      %2619 = vmatpush1.bf16.msra.mxu0 %v2183
      %2620 = vmatprep.subr.bf16.mxu0 0
      %2621 = vmatpush1.bf16.msra.mxu0 %v2184
      %2622 = vmatprep.subr.bf16.mxu0 0
      %2623 = vmatpush1.bf16.msra.mxu0 %v2185
      %2624 = vmatprep.subr.bf16.mxu0 0
      %2625 = vmatpush1.bf16.msra.mxu0 %v2186
      %2626 = vmatprep.subr.bf16.mxu0 0
      %2627 = vmatpush1.bf16.msra.mxu0 %v2187
      %2628 = vmatprep.subr.bf16.mxu0 0
      %2629 = vmatpush1.bf16.msra.mxu0 %v2188
      %2630 = vmatprep.subr.bf16.mxu0 0
      %2631 = vmatpush1.bf16.msra.mxu0 %v2189
      %2632 = vmatprep.subr.bf16.mxu0 0
      %2633 = vmatpush1.bf16.msra.mxu0 %v2190
      %2634 = vmatprep.subr.bf16.mxu0 0
      %2635 = vmatpush1.bf16.msra.mxu0 %v2191
      %2636 = vmatprep.subr.bf16.mxu0 0
      %2637 = vmatpush1.bf16.msra.mxu0 %v2192
      %2638 = vmatprep.subr.bf16.mxu0 0
      %2639 = vmatpush1.bf16.msra.mxu0 %v2193
      %2640 = vmatprep.subr.bf16.mxu0 0
      %2641 = vmatpush1.bf16.msra.mxu0 %v2194
      %2642 = vmatprep.subr.bf16.mxu0 0
      %2643 = vmatpush1.bf16.msra.mxu0 %v2195
      %2644 = vmatprep.mubr.bf16.mxu0 %v1101
      %2645 = vmatmul.mubr.bf16.gmra.mrb[0].mxu0 %v1100
      %v2646 = vpop.f32.mrb[0].mxu0
      %v2647 = vadd.f32 %v770, %v2646
      %v2648 = vpop.f32.mrb[0].mxu0
      %v2649 = vpop.f32.mrb[0].mxu0
      %v2650 = vadd.f32 %v770, %v2649
      %v2651 = vpop.f32.mrb[0].mxu0
      %2652 = vmatprep.mubr.bf16.mxu0 %v1128
      %2653 = vmatmul.mubr.bf16.gmra.mrb[0].mxu0 %v1127
      %v2654 = vpop.f32.mrb[0].mxu0
      %v2655 = vadd.f32 %v770, %v2654
      %v2656 = vpop.f32.mrb[0].mxu0
      %v2657 = vpop.f32.mrb[0].mxu0
      %v2658 = vadd.f32 %v770, %v2657
      %v2659 = vpop.f32.mrb[0].mxu0
      %2660 = vmatprep.mubr.bf16.mxu0 %v1155
      %2661 = vmatmul.mubr.bf16.gmra.mrb[0].mxu0 %v1154
      %v2662 = vpop.f32.mrb[0].mxu0
      %v2663 = vadd.f32 %v770, %v2662
      %v2664 = vpop.f32.mrb[0].mxu0
      %v2665 = vpop.f32.mrb[0].mxu0
      %v2666 = vadd.f32 %v770, %v2665
      %v2667 = vpop.f32.mrb[0].mxu0
      %2668 = vmatprep.mubr.bf16.mxu0 %v1182
      %2669 = vmatmul.mubr.bf16.gmra.mrb[0].mxu0 %v1181
      %v2670 = vpop.f32.mrb[0].mxu0
      %v2671 = vadd.f32 %v770, %v2670
      %v2672 = vpop.f32.mrb[0].mxu0
      %v2673 = vpop.f32.mrb[0].mxu0
      %v2674 = vadd.f32 %v770, %v2673
      %v2675 = vpop.f32.mrb[0].mxu0
      %2676 = vdwg.mxu0
      %2677 = vmatprep.subr.bf16.mxu0 0
      %2678 = vmatpush1.bf16.msra.mxu0 %v2196
      %2679 = vmatprep.subr.bf16.mxu0 0
      %2680 = vmatpush1.bf16.msra.mxu0 %v2197
      %2681 = vmatprep.subr.bf16.mxu0 0
      %2682 = vmatpush1.bf16.msra.mxu0 %v2198
      %2683 = vmatprep.subr.bf16.mxu0 0
      %2684 = vmatpush1.bf16.msra.mxu0 %v2199
      %2685 = vmatprep.subr.bf16.mxu0 0
      %2686 = vmatpush1.bf16.msra.mxu0 %v2200
      %2687 = vmatprep.subr.bf16.mxu0 0
      %2688 = vmatpush1.bf16.msra.mxu0 %v2201
      %2689 = vmatprep.subr.bf16.mxu0 0
      %2690 = vmatpush1.bf16.msra.mxu0 %v2202
      %2691 = vmatprep.subr.bf16.mxu0 0
      %2692 = vmatpush1.bf16.msra.mxu0 %v2203
      %2693 = vmatprep.subr.bf16.mxu0 0
      %2694 = vmatpush1.bf16.msra.mxu0 %v2204
      %2695 = vmatprep.subr.bf16.mxu0 0
      %2696 = vmatpush1.bf16.msra.mxu0 %v2205
      %2697 = vmatprep.subr.bf16.mxu0 0
      %2698 = vmatpush1.bf16.msra.mxu0 %v2206
      %2699 = vmatprep.subr.bf16.mxu0 0
      %2700 = vmatpush1.bf16.msra.mxu0 %v2207
      %2701 = vmatprep.subr.bf16.mxu0 0
      %2702 = vmatpush1.bf16.msra.mxu0 %v2208
      %2703 = vmatprep.subr.bf16.mxu0 0
      %2704 = vmatpush1.bf16.msra.mxu0 %v2209
      %2705 = vmatprep.subr.bf16.mxu0 0
      %2706 = vmatpush1.bf16.msra.mxu0 %v2210
      %2707 = vmatprep.subr.bf16.mxu0 0
      %2708 = vmatpush1.bf16.msra.mxu0 %v2211
      %2709 = vmatprep.mubr.bf16.mxu0 %v1103
      %2710 = vmatmul.mubr.bf16.gmra.mrb[0].mxu0 %v1102
      %v2711 = vpop.f32.mrb[0].mxu0
      %v2712 = vadd.f32 %v2647, %v2711
      %v2713 = vpop.f32.mrb[0].mxu0
      %v2714 = vpop.f32.mrb[0].mxu0
      %v2715 = vadd.f32 %v2650, %v2714
      %v2716 = vpop.f32.mrb[0].mxu0
      %2717 = vmatprep.mubr.bf16.mxu0 %v1130
      %2718 = vmatmul.mubr.bf16.gmra.mrb[0].mxu0 %v1129
      %v2719 = vpop.f32.mrb[0].mxu0
      %v2720 = vadd.f32 %v2655, %v2719
      %v2721 = vpop.f32.mrb[0].mxu0
      %v2722 = vpop.f32.mrb[0].mxu0
      %v2723 = vadd.f32 %v2658, %v2722
      %v2724 = vpop.f32.mrb[0].mxu0
      %2725 = vmatprep.mubr.bf16.mxu0 %v1157
      %2726 = vmatmul.mubr.bf16.gmra.mrb[0].mxu0 %v1156
      %v2727 = vpop.f32.mrb[0].mxu0
      %v2728 = vadd.f32 %v2663, %v2727
      %v2729 = vpop.f32.mrb[0].mxu0
      %v2730 = vpop.f32.mrb[0].mxu0
      %v2731 = vadd.f32 %v2666, %v2730
      %v2732 = vpop.f32.mrb[0].mxu0
      %2733 = vmatprep.mubr.bf16.mxu0 %v1184
      %2734 = vmatmul.mubr.bf16.gmra.mrb[0].mxu0 %v1183
      %v2735 = vpop.f32.mrb[0].mxu0
      %v2736 = vadd.f32 %v2671, %v2735
      %v2737 = vpop.f32.mrb[0].mxu0
      %v2738 = vpop.f32.mrb[0].mxu0
      %v2739 = vadd.f32 %v2674, %v2738
      %v2740 = vpop.f32.mrb[0].mxu0
      %2741 = vdwg.mxu0
      %2742 = vmatprep.subr.bf16.mxu0 0
      %2743 = vmatpush1.bf16.msra.mxu0 %v2212
      %2744 = vmatprep.subr.bf16.mxu0 0
      %2745 = vmatpush1.bf16.msra.mxu0 %v2213
      %2746 = vmatprep.subr.bf16.mxu0 0
      %2747 = vmatpush1.bf16.msra.mxu0 %v2214
      %2748 = vmatprep.subr.bf16.mxu0 0
      %2749 = vmatpush1.bf16.msra.mxu0 %v2215
      %2750 = vmatprep.subr.bf16.mxu0 0
      %2751 = vmatpush1.bf16.msra.mxu0 %v2216
      %2752 = vmatprep.subr.bf16.mxu0 0
      %2753 = vmatpush1.bf16.msra.mxu0 %v2217
      %2754 = vmatprep.subr.bf16.mxu0 0
      %2755 = vmatpush1.bf16.msra.mxu0 %v2218
      %2756 = vmatprep.subr.bf16.mxu0 0
      %2757 = vmatpush1.bf16.msra.mxu0 %v2219
      %2758 = vmatprep.subr.bf16.mxu0 0
      %2759 = vmatpush1.bf16.msra.mxu0 %v2220
      %2760 = vmatprep.subr.bf16.mxu0 0
      %2761 = vmatpush1.bf16.msra.mxu0 %v2221
      %2762 = vmatprep.subr.bf16.mxu0 0
      %2763 = vmatpush1.bf16.msra.mxu0 %v2222
      %2764 = vmatprep.subr.bf16.mxu0 0
      %2765 = vmatpush1.bf16.msra.mxu0 %v2223
      %2766 = vmatprep.subr.bf16.mxu0 0
      %2767 = vmatpush1.bf16.msra.mxu0 %v2224
      %2768 = vmatprep.subr.bf16.mxu0 0
      %2769 = vmatpush1.bf16.msra.mxu0 %v2225
      %2770 = vmatprep.subr.bf16.mxu0 0
      %2771 = vmatpush1.bf16.msra.mxu0 %v2226
      %2772 = vmatprep.subr.bf16.mxu0 0
      %2773 = vmatpush1.bf16.msra.mxu0 %v2227
      %2774 = vmatprep.mubr.bf16.mxu0 %v1105
      %2775 = vmatmul.mubr.bf16.gmra.mrb[0].mxu0 %v1104
      %v2776 = vpop.f32.mrb[0].mxu0
      %v2777 = vadd.f32 %v2712, %v2776
      %v2778 = vpop.f32.mrb[0].mxu0
      %v2779 = vpop.f32.mrb[0].mxu0
      %v2780 = vadd.f32 %v2715, %v2779
      %v2781 = vpop.f32.mrb[0].mxu0
      %2782 = vmatprep.mubr.bf16.mxu0 %v1132
      %2783 = vmatmul.mubr.bf16.gmra.mrb[0].mxu0 %v1131
      %v2784 = vpop.f32.mrb[0].mxu0
      %v2785 = vadd.f32 %v2720, %v2784
      %v2786 = vpop.f32.mrb[0].mxu0
      %v2787 = vpop.f32.mrb[0].mxu0
      %v2788 = vadd.f32 %v2723, %v2787
      %v2789 = vpop.f32.mrb[0].mxu0
      %2790 = vmatprep.mubr.bf16.mxu0 %v1159
      %2791 = vmatmul.mubr.bf16.gmra.mrb[0].mxu0 %v1158
      %v2792 = vpop.f32.mrb[0].mxu0
      %v2793 = vadd.f32 %v2728, %v2792
      %v2794 = vpop.f32.mrb[0].mxu0
      %v2795 = vpop.f32.mrb[0].mxu0
      %v2796 = vadd.f32 %v2731, %v2795
      %v2797 = vpop.f32.mrb[0].mxu0
      %2798 = vmatprep.mubr.bf16.mxu0 %v1186
      %2799 = vmatmul.mubr.bf16.gmra.mrb[0].mxu0 %v1185
      %v2800 = vpop.f32.mrb[0].mxu0
      %v2801 = vadd.f32 %v2736, %v2800
      %v2802 = vpop.f32.mrb[0].mxu0
      %v2803 = vpop.f32.mrb[0].mxu0
      %v2804 = vadd.f32 %v2739, %v2803
      %v2805 = vpop.f32.mrb[0].mxu0
      %2806 = vdwg.mxu0
      %2807 = vmatprep.subr.bf16.mxu0 0
      %2808 = vmatpush1.bf16.msra.mxu0 %v2228
      %2809 = vmatprep.subr.bf16.mxu0 0
      %2810 = vmatpush1.bf16.msra.mxu0 %v2229
      %2811 = vmatprep.subr.bf16.mxu0 0
      %2812 = vmatpush1.bf16.msra.mxu0 %v2230
      %2813 = vmatprep.subr.bf16.mxu0 0
      %2814 = vmatpush1.bf16.msra.mxu0 %v2231
      %2815 = vmatprep.subr.bf16.mxu0 0
      %2816 = vmatpush1.bf16.msra.mxu0 %v2232
      %2817 = vmatprep.subr.bf16.mxu0 0
      %2818 = vmatpush1.bf16.msra.mxu0 %v2233
      %2819 = vmatprep.subr.bf16.mxu0 0
      %2820 = vmatpush1.bf16.msra.mxu0 %v2234
      %2821 = vmatprep.subr.bf16.mxu0 0
      %2822 = vmatpush1.bf16.msra.mxu0 %v2235
      %2823 = vmatprep.subr.bf16.mxu0 0
      %2824 = vmatpush1.bf16.msra.mxu0 %v2236
      %2825 = vmatprep.subr.bf16.mxu0 0
      %2826 = vmatpush1.bf16.msra.mxu0 %v2237
      %2827 = vmatprep.subr.bf16.mxu0 0
      %2828 = vmatpush1.bf16.msra.mxu0 %v2238
      %2829 = vmatprep.subr.bf16.mxu0 0
      %2830 = vmatpush1.bf16.msra.mxu0 %v2239
      %2831 = vmatprep.subr.bf16.mxu0 0
      %2832 = vmatpush1.bf16.msra.mxu0 %v2240
      %2833 = vmatprep.subr.bf16.mxu0 0
      %2834 = vmatpush1.bf16.msra.mxu0 %v2241
      %2835 = vmatprep.subr.bf16.mxu0 0
      %2836 = vmatpush1.bf16.msra.mxu0 %v2242
      %2837 = vmatprep.subr.bf16.mxu0 0
      %2838 = vmatpush1.bf16.msra.mxu0 %v2243
      %2839 = vmatprep.mubr.bf16.mxu0 %v1107
      %2840 = vmatmul.mubr.bf16.gmra.mrb[0].mxu0 %v1106
      %v2841 = vpop.f32.mrb[0].mxu0
      %v2842 = vadd.f32 %v2777, %v2841
      %v2843 = vpop.f32.mrb[0].mxu0
      %v2844 = vpop.f32.mrb[0].mxu0
      %v2845 = vadd.f32 %v2780, %v2844
      %v2846 = vpop.f32.mrb[0].mxu0
      %2847 = vmatprep.mubr.bf16.mxu0 %v1134
      %2848 = vmatmul.mubr.bf16.gmra.mrb[0].mxu0 %v1133
      %v2849 = vpop.f32.mrb[0].mxu0
      %v2850 = vadd.f32 %v2785, %v2849
      %v2851 = vpop.f32.mrb[0].mxu0
      %v2852 = vpop.f32.mrb[0].mxu0
      %v2853 = vadd.f32 %v2788, %v2852
      %v2854 = vpop.f32.mrb[0].mxu0
      %2855 = vmatprep.mubr.bf16.mxu0 %v1161
      %2856 = vmatmul.mubr.bf16.gmra.mrb[0].mxu0 %v1160
      %v2857 = vpop.f32.mrb[0].mxu0
      %v2858 = vadd.f32 %v2793, %v2857
      %v2859 = vpop.f32.mrb[0].mxu0
      %v2860 = vpop.f32.mrb[0].mxu0
      %v2861 = vadd.f32 %v2796, %v2860
      %v2862 = vpop.f32.mrb[0].mxu0
      %2863 = vmatprep.mubr.bf16.mxu0 %v1188
      %2864 = vmatmul.mubr.bf16.gmra.mrb[0].mxu0 %v1187
      %v2865 = vpop.f32.mrb[0].mxu0
      %v2866 = vadd.f32 %v2801, %v2865
      %v2867 = vpop.f32.mrb[0].mxu0
      %v2868 = vpop.f32.mrb[0].mxu0
      %v2869 = vadd.f32 %v2804, %v2868
      %v2870 = vpop.f32.mrb[0].mxu0
      %2871 = vdwg.mxu0
      %2872 = vmatprep.subr.bf16.mxu0 0
      %2873 = vmatpush1.bf16.msra.mxu0 %v2244
      %2874 = vmatprep.subr.bf16.mxu0 0
      %2875 = vmatpush1.bf16.msra.mxu0 %v2245
      %2876 = vmatprep.subr.bf16.mxu0 0
      %2877 = vmatpush1.bf16.msra.mxu0 %v2246
      %2878 = vmatprep.subr.bf16.mxu0 0
      %2879 = vmatpush1.bf16.msra.mxu0 %v2247
      %2880 = vmatprep.subr.bf16.mxu0 0
      %2881 = vmatpush1.bf16.msra.mxu0 %v2248
      %2882 = vmatprep.subr.bf16.mxu0 0
      %2883 = vmatpush1.bf16.msra.mxu0 %v2249
      %2884 = vmatprep.subr.bf16.mxu0 0
      %2885 = vmatpush1.bf16.msra.mxu0 %v2250
      %2886 = vmatprep.subr.bf16.mxu0 0
      %2887 = vmatpush1.bf16.msra.mxu0 %v2251
      %2888 = vmatprep.subr.bf16.mxu0 0
      %2889 = vmatpush1.bf16.msra.mxu0 %v2252
      %2890 = vmatprep.subr.bf16.mxu0 0
      %2891 = vmatpush1.bf16.msra.mxu0 %v2253
      %2892 = vmatprep.subr.bf16.mxu0 0
      %2893 = vmatpush1.bf16.msra.mxu0 %v2254
      %2894 = vmatprep.subr.bf16.mxu0 0
      %2895 = vmatpush1.bf16.msra.mxu0 %v2255
      %2896 = vmatprep.subr.bf16.mxu0 0
      %2897 = vmatpush1.bf16.msra.mxu0 %v2256
      %2898 = vmatprep.subr.bf16.mxu0 0
      %2899 = vmatpush1.bf16.msra.mxu0 %v2257
      %2900 = vmatprep.subr.bf16.mxu0 0
      %2901 = vmatpush1.bf16.msra.mxu0 %v2258
      %2902 = vmatprep.subr.bf16.mxu0 0
      %2903 = vmatpush1.bf16.msra.mxu0 %v2259
      %2904 = vmatprep.mubr.bf16.mxu0 %v1109
      %2905 = vmatmul.mubr.bf16.gmra.mrb[0].mxu0 %v1108
      %v2906 = vpop.f32.mrb[0].mxu0
      %v2907 = vadd.f32 %v2842, %v2906
      %v2908 = vpop.f32.mrb[0].mxu0
      %v2909 = vpop.f32.mrb[0].mxu0
      %v2910 = vadd.f32 %v2845, %v2909
      %v2911 = vpop.f32.mrb[0].mxu0
      %2912 = vmatprep.mubr.bf16.mxu0 %v1136
      %2913 = vmatmul.mubr.bf16.gmra.mrb[0].mxu0 %v1135
      %v2914 = vpop.f32.mrb[0].mxu0
      %v2915 = vadd.f32 %v2850, %v2914
      %v2916 = vpop.f32.mrb[0].mxu0
      %v2917 = vpop.f32.mrb[0].mxu0
      %v2918 = vadd.f32 %v2853, %v2917
      %v2919 = vpop.f32.mrb[0].mxu0
      %2920 = vmatprep.mubr.bf16.mxu0 %v1163
      %2921 = vmatmul.mubr.bf16.gmra.mrb[0].mxu0 %v1162
      %v2922 = vpop.f32.mrb[0].mxu0
      %v2923 = vadd.f32 %v2858, %v2922
      %v2924 = vpop.f32.mrb[0].mxu0
      %v2925 = vpop.f32.mrb[0].mxu0
      %v2926 = vadd.f32 %v2861, %v2925
      %v2927 = vpop.f32.mrb[0].mxu0
      %2928 = vmatprep.mubr.bf16.mxu0 %v1190
      %2929 = vmatmul.mubr.bf16.gmra.mrb[0].mxu0 %v1189
      %v2930 = vpop.f32.mrb[0].mxu0
      %v2931 = vadd.f32 %v2866, %v2930
      %v2932 = vpop.f32.mrb[0].mxu0
      %v2933 = vpop.f32.mrb[0].mxu0
      %v2934 = vadd.f32 %v2869, %v2933
      %v2935 = vpop.f32.mrb[0].mxu0
      %2936 = vdwg.mxu0
      %2937 = vmatprep.subr.bf16.mxu0 0
      %2938 = vmatpush1.bf16.msra.mxu0 %v2260
      %2939 = vmatprep.subr.bf16.mxu0 0
      %2940 = vmatpush1.bf16.msra.mxu0 %v2261
      %2941 = vmatprep.subr.bf16.mxu0 0
      %2942 = vmatpush1.bf16.msra.mxu0 %v2262
      %2943 = vmatprep.subr.bf16.mxu0 0
      %2944 = vmatpush1.bf16.msra.mxu0 %v2263
      %2945 = vmatprep.subr.bf16.mxu0 0
      %2946 = vmatpush1.bf16.msra.mxu0 %v2264
      %2947 = vmatprep.subr.bf16.mxu0 0
      %2948 = vmatpush1.bf16.msra.mxu0 %v2265
      %2949 = vmatprep.subr.bf16.mxu0 0
      %2950 = vmatpush1.bf16.msra.mxu0 %v2266
      %2951 = vmatprep.subr.bf16.mxu0 0
      %2952 = vmatpush1.bf16.msra.mxu0 %v2267
      %2953 = vmatprep.subr.bf16.mxu0 0
      %2954 = vmatpush1.bf16.msra.mxu0 %v2268
      %2955 = vmatprep.subr.bf16.mxu0 0
      %2956 = vmatpush1.bf16.msra.mxu0 %v2269
      %2957 = vmatprep.subr.bf16.mxu0 0
      %2958 = vmatpush1.bf16.msra.mxu0 %v2270
      %2959 = vmatprep.subr.bf16.mxu0 0
      %2960 = vmatpush1.bf16.msra.mxu0 %v2271
      %2961 = vmatprep.subr.bf16.mxu0 0
      %2962 = vmatpush1.bf16.msra.mxu0 %v2272
      %2963 = vmatprep.subr.bf16.mxu0 0
      %2964 = vmatpush1.bf16.msra.mxu0 %v2273
      %2965 = vmatprep.subr.bf16.mxu0 0
      %2966 = vmatpush1.bf16.msra.mxu0 %v2274
      %2967 = vmatprep.subr.bf16.mxu0 0
      %2968 = vmatpush1.bf16.msra.mxu0 %v2275
      %2969 = vmatprep.mubr.bf16.mxu0 %v1111
      %2970 = vmatmul.mubr.bf16.gmra.mrb[0].mxu0 %v1110
      %v2971 = vpop.f32.mrb[0].mxu0
      %v2972 = vadd.f32 %v2907, %v2971
      %v2973 = vpop.f32.mrb[0].mxu0
      %v2974 = vpop.f32.mrb[0].mxu0
      %v2975 = vadd.f32 %v2910, %v2974
      %v2976 = vpop.f32.mrb[0].mxu0
      %2977 = vmatprep.mubr.bf16.mxu0 %v1138
      %2978 = vmatmul.mubr.bf16.gmra.mrb[0].mxu0 %v1137
      %v2979 = vpop.f32.mrb[0].mxu0
      %v2980 = vadd.f32 %v2915, %v2979
      %v2981 = vpop.f32.mrb[0].mxu0
      %v2982 = vpop.f32.mrb[0].mxu0
      %v2983 = vadd.f32 %v2918, %v2982
      %v2984 = vpop.f32.mrb[0].mxu0
      %2985 = vmatprep.mubr.bf16.mxu0 %v1165
      %2986 = vmatmul.mubr.bf16.gmra.mrb[0].mxu0 %v1164
      %v2987 = vpop.f32.mrb[0].mxu0
      %v2988 = vadd.f32 %v2923, %v2987
      %v2989 = vpop.f32.mrb[0].mxu0
      %v2990 = vpop.f32.mrb[0].mxu0
      %v2991 = vadd.f32 %v2926, %v2990
      %v2992 = vpop.f32.mrb[0].mxu0
      %2993 = vmatprep.mubr.bf16.mxu0 %v1192
      %2994 = vmatmul.mubr.bf16.gmra.mrb[0].mxu0 %v1191
      %v2995 = vpop.f32.mrb[0].mxu0
      %v2996 = vadd.f32 %v2931, %v2995
      %v2997 = vpop.f32.mrb[0].mxu0
      %v2998 = vpop.f32.mrb[0].mxu0
      %v2999 = vadd.f32 %v2934, %v2998
      %v3000 = vpop.f32.mrb[0].mxu0
      %3001 = vdwg.mxu0
      %3002 = vmatprep.subr.bf16.mxu0 0
      %3003 = vmatpush1.bf16.msra.mxu0 %v2276
      %3004 = vmatprep.subr.bf16.mxu0 0
      %3005 = vmatpush1.bf16.msra.mxu0 %v2277
      %3006 = vmatprep.subr.bf16.mxu0 0
      %3007 = vmatpush1.bf16.msra.mxu0 %v2278
      %3008 = vmatprep.subr.bf16.mxu0 0
      %3009 = vmatpush1.bf16.msra.mxu0 %v2279
      %3010 = vmatprep.subr.bf16.mxu0 0
      %3011 = vmatpush1.bf16.msra.mxu0 %v2280
      %3012 = vmatprep.subr.bf16.mxu0 0
      %3013 = vmatpush1.bf16.msra.mxu0 %v2281
      %3014 = vmatprep.subr.bf16.mxu0 0
      %3015 = vmatpush1.bf16.msra.mxu0 %v2282
      %3016 = vmatprep.subr.bf16.mxu0 0
      %3017 = vmatpush1.bf16.msra.mxu0 %v2283
      %3018 = vmatprep.subr.bf16.mxu0 0
      %3019 = vmatpush1.bf16.msra.mxu0 %v2284
      %3020 = vmatprep.subr.bf16.mxu0 0
      %3021 = vmatpush1.bf16.msra.mxu0 %v2285
      %3022 = vmatprep.subr.bf16.mxu0 0
      %3023 = vmatpush1.bf16.msra.mxu0 %v2286
      %3024 = vmatprep.subr.bf16.mxu0 0
      %3025 = vmatpush1.bf16.msra.mxu0 %v2287
      %3026 = vmatprep.subr.bf16.mxu0 0
      %3027 = vmatpush1.bf16.msra.mxu0 %v2288
      %3028 = vmatprep.subr.bf16.mxu0 0
      %3029 = vmatpush1.bf16.msra.mxu0 %v2289
      %3030 = vmatprep.subr.bf16.mxu0 0
      %3031 = vmatpush1.bf16.msra.mxu0 %v2290
      %3032 = vmatprep.subr.bf16.mxu0 0
      %3033 = vmatpush1.bf16.msra.mxu0 %v2291
      %3034 = vmatprep.mubr.bf16.mxu0 %v1113
      %3035 = vmatmul.mubr.bf16.gmra.mrb[0].mxu0 %v1112
      %v3036 = vpop.f32.mrb[0].mxu0
      %v3037 = vadd.f32 %v2972, %v3036
      %v3038 = vpop.f32.mrb[0].mxu0
      %v3039 = vpop.f32.mrb[0].mxu0
      %v3040 = vadd.f32 %v2975, %v3039
      %v3041 = vpop.f32.mrb[0].mxu0
      %3042 = vmatprep.mubr.bf16.mxu0 %v1140
      %3043 = vmatmul.mubr.bf16.gmra.mrb[0].mxu0 %v1139
      %v3044 = vpop.f32.mrb[0].mxu0
      %v3045 = vadd.f32 %v2980, %v3044
      %v3046 = vpop.f32.mrb[0].mxu0
      %v3047 = vpop.f32.mrb[0].mxu0
      %v3048 = vadd.f32 %v2983, %v3047
      %v3049 = vpop.f32.mrb[0].mxu0
      %3050 = vmatprep.mubr.bf16.mxu0 %v1167
      %3051 = vmatmul.mubr.bf16.gmra.mrb[0].mxu0 %v1166
      %v3052 = vpop.f32.mrb[0].mxu0
      %v3053 = vadd.f32 %v2988, %v3052
      %v3054 = vpop.f32.mrb[0].mxu0
      %v3055 = vpop.f32.mrb[0].mxu0
      %v3056 = vadd.f32 %v2991, %v3055
      %v3057 = vpop.f32.mrb[0].mxu0
      %3058 = vmatprep.mubr.bf16.mxu0 %v1194
      %3059 = vmatmul.mubr.bf16.gmra.mrb[0].mxu0 %v1193
      %v3060 = vpop.f32.mrb[0].mxu0
      %v3061 = vadd.f32 %v2996, %v3060
      %v3062 = vpop.f32.mrb[0].mxu0
      %v3063 = vpop.f32.mrb[0].mxu0
      %v3064 = vadd.f32 %v2999, %v3063
      %v3065 = vpop.f32.mrb[0].mxu0
      %3066 = vdwg.mxu0
      %3067 = vmatprep.subr.bf16.mxu0 0
      %3068 = vmatpush1.bf16.msra.mxu0 %v2292
      %3069 = vmatprep.subr.bf16.mxu0 0
      %3070 = vmatpush1.bf16.msra.mxu0 %v2293
      %3071 = vmatprep.subr.bf16.mxu0 0
      %3072 = vmatpush1.bf16.msra.mxu0 %v2294
      %3073 = vmatprep.subr.bf16.mxu0 0
      %3074 = vmatpush1.bf16.msra.mxu0 %v2295
      %3075 = vmatprep.subr.bf16.mxu0 0
      %3076 = vmatpush1.bf16.msra.mxu0 %v2296
      %3077 = vmatprep.subr.bf16.mxu0 0
      %3078 = vmatpush1.bf16.msra.mxu0 %v2297
      %3079 = vmatprep.subr.bf16.mxu0 0
      %3080 = vmatpush1.bf16.msra.mxu0 %v2298
      %3081 = vmatprep.subr.bf16.mxu0 0
      %3082 = vmatpush1.bf16.msra.mxu0 %v2299
      %3083 = vmatprep.subr.bf16.mxu0 0
      %3084 = vmatpush1.bf16.msra.mxu0 %v2300
      %3085 = vmatprep.subr.bf16.mxu0 0
      %3086 = vmatpush1.bf16.msra.mxu0 %v2301
      %3087 = vmatprep.subr.bf16.mxu0 0
      %3088 = vmatpush1.bf16.msra.mxu0 %v2302
      %3089 = vmatprep.subr.bf16.mxu0 0
      %3090 = vmatpush1.bf16.msra.mxu0 %v2303
      %3091 = vmatprep.subr.bf16.mxu0 0
      %3092 = vmatpush1.bf16.msra.mxu0 %v2304
      %3093 = vmatprep.subr.bf16.mxu0 0
      %3094 = vmatpush1.bf16.msra.mxu0 %v2305
      %3095 = vmatprep.subr.bf16.mxu0 0
      %3096 = vmatpush1.bf16.msra.mxu0 %v2306
      %3097 = vmatprep.subr.bf16.mxu0 0
      %3098 = vmatpush1.bf16.msra.mxu0 %v2307
      %3099 = vmatprep.mubr.bf16.mxu0 %v1115
      %3100 = vmatmul.mubr.bf16.gmra.mrb[0].mxu0 %v1114
      %v3101 = vpop.f32.mrb[0].mxu0
      %v3102 = vadd.f32 %v3037, %v3101
      %v3103 = vpop.f32.mrb[0].mxu0
      %v3104 = vpop.f32.mrb[0].mxu0
      %v3105 = vadd.f32 %v3040, %v3104
      %v3106 = vpop.f32.mrb[0].mxu0
      %3107 = vmatprep.mubr.bf16.mxu0 %v1142
      %3108 = vmatmul.mubr.bf16.gmra.mrb[0].mxu0 %v1141
      %v3109 = vpop.f32.mrb[0].mxu0
      %v3110 = vadd.f32 %v3045, %v3109
      %v3111 = vpop.f32.mrb[0].mxu0
      %v3112 = vpop.f32.mrb[0].mxu0
      %v3113 = vadd.f32 %v3048, %v3112
      %v3114 = vpop.f32.mrb[0].mxu0
      %3115 = vmatprep.mubr.bf16.mxu0 %v1169
      %3116 = vmatmul.mubr.bf16.gmra.mrb[0].mxu0 %v1168
      %v3117 = vpop.f32.mrb[0].mxu0
      %v3118 = vadd.f32 %v3053, %v3117
      %v3119 = vpop.f32.mrb[0].mxu0
      %v3120 = vpop.f32.mrb[0].mxu0
      %v3121 = vadd.f32 %v3056, %v3120
      %v3122 = vpop.f32.mrb[0].mxu0
      %3123 = vmatprep.mubr.bf16.mxu0 %v1196
      %3124 = vmatmul.mubr.bf16.gmra.mrb[0].mxu0 %v1195
      %v3125 = vpop.f32.mrb[0].mxu0
      %v3126 = vadd.f32 %v3061, %v3125
      %v3127 = vpop.f32.mrb[0].mxu0
      %v3128 = vpop.f32.mrb[0].mxu0
      %v3129 = vadd.f32 %v3064, %v3128
      %v3130 = vpop.f32.mrb[0].mxu0
      %3131 = vdwg.mxu0
      %3132 = vmatprep.subr.bf16.mxu0 0
      %3133 = vmatpush1.bf16.msra.mxu0 %v2308
      %3134 = vmatprep.subr.bf16.mxu0 0
      %3135 = vmatpush1.bf16.msra.mxu0 %v2309
      %3136 = vmatprep.subr.bf16.mxu0 0
      %3137 = vmatpush1.bf16.msra.mxu0 %v2310
      %3138 = vmatprep.subr.bf16.mxu0 0
      %3139 = vmatpush1.bf16.msra.mxu0 %v2311
      %3140 = vmatprep.subr.bf16.mxu0 0
      %3141 = vmatpush1.bf16.msra.mxu0 %v2312
      %3142 = vmatprep.subr.bf16.mxu0 0
      %3143 = vmatpush1.bf16.msra.mxu0 %v2313
      %3144 = vmatprep.subr.bf16.mxu0 0
      %3145 = vmatpush1.bf16.msra.mxu0 %v2314
      %3146 = vmatprep.subr.bf16.mxu0 0
      %3147 = vmatpush1.bf16.msra.mxu0 %v2315
      %3148 = vmatprep.subr.bf16.mxu0 0
      %3149 = vmatpush1.bf16.msra.mxu0 %v2316
      %3150 = vmatprep.subr.bf16.mxu0 0
      %3151 = vmatpush1.bf16.msra.mxu0 %v2317
      %3152 = vmatprep.subr.bf16.mxu0 0
      %3153 = vmatpush1.bf16.msra.mxu0 %v2318
      %3154 = vmatprep.subr.bf16.mxu0 0
      %3155 = vmatpush1.bf16.msra.mxu0 %v2319
      %3156 = vmatprep.subr.bf16.mxu0 0
      %3157 = vmatpush1.bf16.msra.mxu0 %v2320
      %3158 = vmatprep.subr.bf16.mxu0 0
      %3159 = vmatpush1.bf16.msra.mxu0 %v2321
      %3160 = vmatprep.subr.bf16.mxu0 0
      %3161 = vmatpush1.bf16.msra.mxu0 %v2322
      %3162 = vmatprep.subr.bf16.mxu0 0
      %3163 = vmatpush1.bf16.msra.mxu0 %v2323
      %3164 = vmatprep.mubr.bf16.mxu0 %v1117
      %3165 = vmatmul.mubr.bf16.gmra.mrb[0].mxu0 %v1116
      %v3166 = vpop.f32.mrb[0].mxu0
      %v3167 = vadd.f32 %v3102, %v3166
      %v3168 = vpop.f32.mrb[0].mxu0
      %v3169 = vpop.f32.mrb[0].mxu0
      %v3170 = vadd.f32 %v3105, %v3169
      %v3171 = vpop.f32.mrb[0].mxu0
      %3172 = vmatprep.mubr.bf16.mxu0 %v1144
      %3173 = vmatmul.mubr.bf16.gmra.mrb[0].mxu0 %v1143
      %v3174 = vpop.f32.mrb[0].mxu0
      %v3175 = vadd.f32 %v3110, %v3174
      %v3176 = vpop.f32.mrb[0].mxu0
      %v3177 = vpop.f32.mrb[0].mxu0
      %v3178 = vadd.f32 %v3113, %v3177
      %v3179 = vpop.f32.mrb[0].mxu0
      %3180 = vmatprep.mubr.bf16.mxu0 %v1171
      %3181 = vmatmul.mubr.bf16.gmra.mrb[0].mxu0 %v1170
      %v3182 = vpop.f32.mrb[0].mxu0
      %v3183 = vadd.f32 %v3118, %v3182
      %v3184 = vpop.f32.mrb[0].mxu0
      %v3185 = vpop.f32.mrb[0].mxu0
      %v3186 = vadd.f32 %v3121, %v3185
      %v3187 = vpop.f32.mrb[0].mxu0
      %3188 = vmatprep.mubr.bf16.mxu0 %v1198
      %3189 = vmatmul.mubr.bf16.gmra.mrb[0].mxu0 %v1197
      %v3190 = vpop.f32.mrb[0].mxu0
      %v3191 = vadd.f32 %v3126, %v3190
      %v3192 = vpop.f32.mrb[0].mxu0
      %v3193 = vpop.f32.mrb[0].mxu0
      %v3194 = vadd.f32 %v3129, %v3193
      %v3195 = vpop.f32.mrb[0].mxu0
      %3196 = vdwg.mxu0
      %3197 = vmatprep.subr.bf16.mxu0 0
      %3198 = vmatpush1.bf16.msra.mxu0 %v2324
      %3199 = vmatprep.subr.bf16.mxu0 0
      %3200 = vmatpush1.bf16.msra.mxu0 %v2325
      %3201 = vmatprep.subr.bf16.mxu0 0
      %3202 = vmatpush1.bf16.msra.mxu0 %v2326
      %3203 = vmatprep.subr.bf16.mxu0 0
      %3204 = vmatpush1.bf16.msra.mxu0 %v2327
      %3205 = vmatprep.subr.bf16.mxu0 0
      %3206 = vmatpush1.bf16.msra.mxu0 %v2328
      %3207 = vmatprep.subr.bf16.mxu0 0
      %3208 = vmatpush1.bf16.msra.mxu0 %v2329
      %3209 = vmatprep.subr.bf16.mxu0 0
      %3210 = vmatpush1.bf16.msra.mxu0 %v2330
      %3211 = vmatprep.subr.bf16.mxu0 0
      %3212 = vmatpush1.bf16.msra.mxu0 %v2331
      %3213 = vmatprep.subr.bf16.mxu0 0
      %3214 = vmatpush1.bf16.msra.mxu0 %v2332
      %3215 = vmatprep.subr.bf16.mxu0 0
      %3216 = vmatpush1.bf16.msra.mxu0 %v2333
      %3217 = vmatprep.subr.bf16.mxu0 0
      %3218 = vmatpush1.bf16.msra.mxu0 %v2334
      %3219 = vmatprep.subr.bf16.mxu0 0
      %3220 = vmatpush1.bf16.msra.mxu0 %v2335
      %3221 = vmatprep.subr.bf16.mxu0 0
      %3222 = vmatpush1.bf16.msra.mxu0 %v2336
      %3223 = vmatprep.subr.bf16.mxu0 0
      %3224 = vmatpush1.bf16.msra.mxu0 %v2337
      %3225 = vmatprep.subr.bf16.mxu0 0
      %3226 = vmatpush1.bf16.msra.mxu0 %v2338
      %3227 = vmatprep.subr.bf16.mxu0 0
      %3228 = vmatpush1.bf16.msra.mxu0 %v2339
      %3229 = vmatprep.mubr.bf16.mxu0 %v1119
      %3230 = vmatmul.mubr.bf16.gmra.mrb[0].mxu0 %v1118
      %v3231 = vpop.f32.mrb[0].mxu0
      %v3232 = vadd.f32 %v3167, %v3231
      %v3233 = vpop.f32.mrb[0].mxu0
      %v3234 = vpop.f32.mrb[0].mxu0
      %v3235 = vadd.f32 %v3170, %v3234
      %v3236 = vpop.f32.mrb[0].mxu0
      %3237 = vmatprep.mubr.bf16.mxu0 %v1146
      %3238 = vmatmul.mubr.bf16.gmra.mrb[0].mxu0 %v1145
      %v3239 = vpop.f32.mrb[0].mxu0
      %v3240 = vadd.f32 %v3175, %v3239
      %v3241 = vpop.f32.mrb[0].mxu0
      %v3242 = vpop.f32.mrb[0].mxu0
      %v3243 = vadd.f32 %v3178, %v3242
      %v3244 = vpop.f32.mrb[0].mxu0
      %3245 = vmatprep.mubr.bf16.mxu0 %v1173
      %3246 = vmatmul.mubr.bf16.gmra.mrb[0].mxu0 %v1172
      %v3247 = vpop.f32.mrb[0].mxu0
      %v3248 = vadd.f32 %v3183, %v3247
      %v3249 = vpop.f32.mrb[0].mxu0
      %v3250 = vpop.f32.mrb[0].mxu0
      %v3251 = vadd.f32 %v3186, %v3250
      %v3252 = vpop.f32.mrb[0].mxu0
      %3253 = vmatprep.mubr.bf16.mxu0 %v1200
      %3254 = vmatmul.mubr.bf16.gmra.mrb[0].mxu0 %v1199
      %v3255 = vpop.f32.mrb[0].mxu0
      %v3256 = vadd.f32 %v3191, %v3255
      %v3257 = vpop.f32.mrb[0].mxu0
      %v3258 = vpop.f32.mrb[0].mxu0
      %v3259 = vadd.f32 %v3194, %v3258
      %v3260 = vpop.f32.mrb[0].mxu0
      %3261 = vdwg.mxu0
      %3262 = vmatprep.subr.bf16.mxu0 0
      %3263 = vmatpush1.bf16.msra.mxu0 %v2340
      %3264 = vmatprep.subr.bf16.mxu0 0
      %3265 = vmatpush1.bf16.msra.mxu0 %v2341
      %3266 = vmatprep.subr.bf16.mxu0 0
      %3267 = vmatpush1.bf16.msra.mxu0 %v2342
      %3268 = vmatprep.subr.bf16.mxu0 0
      %3269 = vmatpush1.bf16.msra.mxu0 %v2343
      %3270 = vmatprep.subr.bf16.mxu0 0
      %3271 = vmatpush1.bf16.msra.mxu0 %v2344
      %3272 = vmatprep.subr.bf16.mxu0 0
      %3273 = vmatpush1.bf16.msra.mxu0 %v2345
      %3274 = vmatprep.subr.bf16.mxu0 0
      %3275 = vmatpush1.bf16.msra.mxu0 %v2346
      %3276 = vmatprep.subr.bf16.mxu0 0
      %3277 = vmatpush1.bf16.msra.mxu0 %v2347
      %3278 = vmatprep.subr.bf16.mxu0 0
      %3279 = vmatpush1.bf16.msra.mxu0 %v2348
      %3280 = vmatprep.subr.bf16.mxu0 0
      %3281 = vmatpush1.bf16.msra.mxu0 %v2349
      %3282 = vmatprep.subr.bf16.mxu0 0
      %3283 = vmatpush1.bf16.msra.mxu0 %v2350
      %3284 = vmatprep.subr.bf16.mxu0 0
      %3285 = vmatpush1.bf16.msra.mxu0 %v2351
      %3286 = vmatprep.subr.bf16.mxu0 0
      %3287 = vmatpush1.bf16.msra.mxu0 %v2352
      %3288 = vmatprep.subr.bf16.mxu0 0
      %3289 = vmatpush1.bf16.msra.mxu0 %v2353
      %3290 = vmatprep.subr.bf16.mxu0 0
      %3291 = vmatpush1.bf16.msra.mxu0 %v2354
      %3292 = vmatprep.subr.bf16.mxu0 0
      %3293 = vmatpush1.bf16.msra.mxu0 %v2355
      %3294 = vmatprep.mubr.bf16.mxu0 %v1121
      %3295 = vmatmul.mubr.bf16.gmra.mrb[0].mxu0 %v1120
      %v3296 = vpop.f32.mrb[0].mxu0
      %v3297 = vadd.f32 %v3232, %v3296
      %v3298 = vpop.f32.mrb[0].mxu0
      %v3299 = vpop.f32.mrb[0].mxu0
      %v3300 = vadd.f32 %v3235, %v3299
      %v3301 = vpop.f32.mrb[0].mxu0
      %3302 = vmatprep.mubr.bf16.mxu0 %v1148
      %3303 = vmatmul.mubr.bf16.gmra.mrb[0].mxu0 %v1147
      %v3304 = vpop.f32.mrb[0].mxu0
      %v3305 = vadd.f32 %v3240, %v3304
      %v3306 = vpop.f32.mrb[0].mxu0
      %v3307 = vpop.f32.mrb[0].mxu0
      %v3308 = vadd.f32 %v3243, %v3307
      %v3309 = vpop.f32.mrb[0].mxu0
      %3310 = vmatprep.mubr.bf16.mxu0 %v1175
      %3311 = vmatmul.mubr.bf16.gmra.mrb[0].mxu0 %v1174
      %v3312 = vpop.f32.mrb[0].mxu0
      %v3313 = vadd.f32 %v3248, %v3312
      %v3314 = vpop.f32.mrb[0].mxu0
      %v3315 = vpop.f32.mrb[0].mxu0
      %v3316 = vadd.f32 %v3251, %v3315
      %v3317 = vpop.f32.mrb[0].mxu0
      %3318 = vmatprep.mubr.bf16.mxu0 %v1202
      %3319 = vmatmul.mubr.bf16.gmra.mrb[0].mxu0 %v1201
      %v3320 = vpop.f32.mrb[0].mxu0
      %v3321 = vadd.f32 %v3256, %v3320
      %v3322 = vpop.f32.mrb[0].mxu0
      %v3323 = vpop.f32.mrb[0].mxu0
      %v3324 = vadd.f32 %v3259, %v3323
      %v3325 = vpop.f32.mrb[0].mxu0
      %3326 = vdwg.mxu0
      %3327 = vmatprep.subr.bf16.mxu0 0
      %3328 = vmatpush1.bf16.msra.mxu0 %v2356
      %3329 = vmatprep.subr.bf16.mxu0 0
      %3330 = vmatpush1.bf16.msra.mxu0 %v2357
      %3331 = vmatprep.subr.bf16.mxu0 0
      %3332 = vmatpush1.bf16.msra.mxu0 %v2358
      %3333 = vmatprep.subr.bf16.mxu0 0
      %3334 = vmatpush1.bf16.msra.mxu0 %v2359
      %3335 = vmatprep.subr.bf16.mxu0 0
      %3336 = vmatpush1.bf16.msra.mxu0 %v2360
      %3337 = vmatprep.subr.bf16.mxu0 0
      %3338 = vmatpush1.bf16.msra.mxu0 %v2361
      %3339 = vmatprep.subr.bf16.mxu0 0
      %3340 = vmatpush1.bf16.msra.mxu0 %v2362
      %3341 = vmatprep.subr.bf16.mxu0 0
      %3342 = vmatpush1.bf16.msra.mxu0 %v2363
      %3343 = vmatprep.subr.bf16.mxu0 0
      %3344 = vmatpush1.bf16.msra.mxu0 %v2364
      %3345 = vmatprep.subr.bf16.mxu0 0
      %3346 = vmatpush1.bf16.msra.mxu0 %v2365
      %3347 = vmatprep.subr.bf16.mxu0 0
      %3348 = vmatpush1.bf16.msra.mxu0 %v2366
      %3349 = vmatprep.subr.bf16.mxu0 0
      %3350 = vmatpush1.bf16.msra.mxu0 %v2367
      %3351 = vmatprep.subr.bf16.mxu0 0
      %3352 = vmatpush1.bf16.msra.mxu0 %v2368
      %3353 = vmatprep.subr.bf16.mxu0 0
      %3354 = vmatpush1.bf16.msra.mxu0 %v2369
      %3355 = vmatprep.subr.bf16.mxu0 0
      %3356 = vmatpush1.bf16.msra.mxu0 %v2370
      %3357 = vmatprep.subr.bf16.mxu0 0
      %3358 = vmatpush1.bf16.msra.mxu0 %v2371
      %3359 = vmatprep.mubr.bf16.mxu0 %v1123
      %3360 = vmatmul.mubr.bf16.gmra.mrb[0].mxu0 %v1122
      %v3361 = vpop.f32.mrb[0].mxu0
      %v3362 = vadd.f32 %v3297, %v3361
      %v3363 = vpop.f32.mrb[0].mxu0
      %v3364 = vpop.f32.mrb[0].mxu0
      %v3365 = vadd.f32 %v3300, %v3364
      %v3366 = vpop.f32.mrb[0].mxu0
      %3367 = vmatprep.mubr.bf16.mxu0 %v1150
      %3368 = vmatmul.mubr.bf16.gmra.mrb[0].mxu0 %v1149
      %v3369 = vpop.f32.mrb[0].mxu0
      %v3370 = vadd.f32 %v3305, %v3369
      %v3371 = vpop.f32.mrb[0].mxu0
      %v3372 = vpop.f32.mrb[0].mxu0
      %v3373 = vadd.f32 %v3308, %v3372
      %v3374 = vpop.f32.mrb[0].mxu0
      %3375 = vmatprep.mubr.bf16.mxu0 %v1177
      %3376 = vmatmul.mubr.bf16.gmra.mrb[0].mxu0 %v1176
      %v3377 = vpop.f32.mrb[0].mxu0
      %v3378 = vadd.f32 %v3313, %v3377
      %v3379 = vpop.f32.mrb[0].mxu0
      %v3380 = vpop.f32.mrb[0].mxu0
      %v3381 = vadd.f32 %v3316, %v3380
      %v3382 = vpop.f32.mrb[0].mxu0
      %3383 = vmatprep.mubr.bf16.mxu0 %v1204
      %3384 = vmatmul.mubr.bf16.gmra.mrb[0].mxu0 %v1203
      %v3385 = vpop.f32.mrb[0].mxu0
      %v3386 = vadd.f32 %v3321, %v3385
      %v3387 = vpop.f32.mrb[0].mxu0
      %v3388 = vpop.f32.mrb[0].mxu0
      %v3389 = vadd.f32 %v3324, %v3388
      %v3390 = vpop.f32.mrb[0].mxu0
      %3391 = vdwg.mxu0
      %3392 = vmatprep.subr.bf16.mxu0 0
      %3393 = vmatpush1.bf16.msra.mxu0 %v2372
      %3394 = vmatprep.subr.bf16.mxu0 0
      %3395 = vmatpush1.bf16.msra.mxu0 %v2373
      %3396 = vmatprep.subr.bf16.mxu0 0
      %3397 = vmatpush1.bf16.msra.mxu0 %v2374
      %3398 = vmatprep.subr.bf16.mxu0 0
      %3399 = vmatpush1.bf16.msra.mxu0 %v2375
      %3400 = vmatprep.subr.bf16.mxu0 0
      %3401 = vmatpush1.bf16.msra.mxu0 %v2376
      %3402 = vmatprep.subr.bf16.mxu0 0
      %3403 = vmatpush1.bf16.msra.mxu0 %v2377
      %3404 = vmatprep.subr.bf16.mxu0 0
      %3405 = vmatpush1.bf16.msra.mxu0 %v2378
      %3406 = vmatprep.subr.bf16.mxu0 0
      %3407 = vmatpush1.bf16.msra.mxu0 %v2379
      %3408 = vmatprep.subr.bf16.mxu0 0
      %3409 = vmatpush1.bf16.msra.mxu0 %v2380
      %3410 = vmatprep.subr.bf16.mxu0 0
      %3411 = vmatpush1.bf16.msra.mxu0 %v2381
      %3412 = vmatprep.subr.bf16.mxu0 0
      %3413 = vmatpush1.bf16.msra.mxu0 %v2382
      %3414 = vmatprep.subr.bf16.mxu0 0
      %3415 = vmatpush1.bf16.msra.mxu0 %v2383
      %3416 = vmatprep.subr.bf16.mxu0 0
      %3417 = vmatpush1.bf16.msra.mxu0 %v2384
      %3418 = vmatprep.subr.bf16.mxu0 0
      %3419 = vmatpush1.bf16.msra.mxu0 %v2385
      %3420 = vmatprep.subr.bf16.mxu0 0
      %3421 = vmatpush1.bf16.msra.mxu0 %v2386
      %3422 = vmatprep.subr.bf16.mxu0 0
      %3423 = vmatpush1.bf16.msra.mxu0 %v2387
      %3424 = vmatprep.mubr.bf16.mxu0 %v1125
      %3425 = vmatmul.mubr.bf16.gmra.mrb[0].mxu0 %v1124
      %v3426 = vpop.f32.mrb[0].mxu0
      %v3427 = vadd.f32 %v3362, %v3426
      %v3428 = vpop.f32.mrb[0].mxu0
      %v3429 = vpop.f32.mrb[0].mxu0
      %v3430 = vadd.f32 %v3365, %v3429
      %v3431 = vpop.f32.mrb[0].mxu0
      %3432 = vmatprep.mubr.bf16.mxu0 %v1152
      %3433 = vmatmul.mubr.bf16.gmra.mrb[0].mxu0 %v1151
      %v3434 = vpop.f32.mrb[0].mxu0
      %v3435 = vadd.f32 %v3370, %v3434
      %v3436 = vpop.f32.mrb[0].mxu0
      %v3437 = vpop.f32.mrb[0].mxu0
      %v3438 = vadd.f32 %v3373, %v3437
      %v3439 = vpop.f32.mrb[0].mxu0
      %3440 = vmatprep.mubr.bf16.mxu0 %v1179
      %3441 = vmatmul.mubr.bf16.gmra.mrb[0].mxu0 %v1178
      %v3442 = vpop.f32.mrb[0].mxu0
      %v3443 = vadd.f32 %v3378, %v3442
      %v3444 = vpop.f32.mrb[0].mxu0
      %v3445 = vpop.f32.mrb[0].mxu0
      %v3446 = vadd.f32 %v3381, %v3445
      %v3447 = vpop.f32.mrb[0].mxu0
      %3448 = vmatprep.mubr.bf16.mxu0 %v1206
      %3449 = vmatmul.mubr.bf16.gmra.mrb[0].mxu0 %v1205
      %v3450 = vpop.f32.mrb[0].mxu0
      %v3451 = vadd.f32 %v3386, %v3450
      %v3452 = vpop.f32.mrb[0].mxu0
      %v3453 = vpop.f32.mrb[0].mxu0
      %v3454 = vadd.f32 %v3389, %v3453
      %v3455 = vpop.f32.mrb[0].mxu0
      %3456 = vdwg.mxu0
      %3457 = vmatprep.subr.bf16.mxu0 0
      %3458 = vmatpush1.bf16.msra.mxu0 %v2388
      %3459 = vmatprep.subr.bf16.mxu0 0
      %3460 = vmatpush1.bf16.msra.mxu0 %v2389
      %3461 = vmatprep.subr.bf16.mxu0 0
      %3462 = vmatpush1.bf16.msra.mxu0 %v2390
      %3463 = vmatprep.subr.bf16.mxu0 0
      %3464 = vmatpush1.bf16.msra.mxu0 %v2391
      %3465 = vmatprep.subr.bf16.mxu0 0
      %3466 = vmatpush1.bf16.msra.mxu0 %v2392
      %3467 = vmatprep.subr.bf16.mxu0 0
      %3468 = vmatpush1.bf16.msra.mxu0 %v2393
      %3469 = vmatprep.subr.bf16.mxu0 0
      %3470 = vmatpush1.bf16.msra.mxu0 %v2394
      %3471 = vmatprep.subr.bf16.mxu0 0
      %3472 = vmatpush1.bf16.msra.mxu0 %v2395
      %3473 = vmatprep.subr.bf16.mxu0 0
      %3474 = vmatpush1.bf16.msra.mxu0 0
      %3475 = vmatprep.subr.bf16.mxu0 0
      %3476 = vmatpush1.bf16.msra.mxu0 0
      %3477 = vmatprep.subr.bf16.mxu0 0
      %3478 = vmatpush1.bf16.msra.mxu0 0
      %3479 = vmatprep.subr.bf16.mxu0 0
      %3480 = vmatpush1.bf16.msra.mxu0 0
      %3481 = vmatprep.subr.bf16.mxu0 0
      %3482 = vmatpush1.bf16.msra.mxu0 0
      %3483 = vmatprep.subr.bf16.mxu0 0
      %3484 = vmatpush1.bf16.msra.mxu0 0
      %3485 = vmatprep.subr.bf16.mxu0 0
      %3486 = vmatpush1.bf16.msra.mxu0 0
      %3487 = vmatprep.subr.bf16.mxu0 0
      %3488 = vmatpush1.bf16.msra.mxu0 0
      %3489 = vmatprep.mubr.bf16.mxu0 0
      %3490 = vmatmul.mubr.bf16.gmra.mrb[0].mxu0 %v1126
      %v3491 = vpop.f32.mrb[0].mxu0
      %v3492 = vadd.f32 %v3427, %v3491
      %v3493 = vpop.f32.mrb[0].mxu0
      %v3494 = vpop.f32.mrb[0].mxu0
      %v3495 = vadd.f32 %v3430, %v3494
      %v3496 = vpop.f32.mrb[0].mxu0
      %3497 = vmatprep.mubr.bf16.mxu0 0
      %3498 = vmatmul.mubr.bf16.gmra.mrb[0].mxu0 %v1153
      %v3499 = vpop.f32.mrb[0].mxu0
      %v3500 = vadd.f32 %v3435, %v3499
      %v3501 = vpop.f32.mrb[0].mxu0
      %v3502 = vpop.f32.mrb[0].mxu0
      %v3503 = vadd.f32 %v3438, %v3502
      %v3504 = vpop.f32.mrb[0].mxu0
      %3505 = vmatprep.mubr.bf16.mxu0 0
      %3506 = vmatmul.mubr.bf16.gmra.mrb[0].mxu0 %v1180
      %v3507 = vpop.f32.mrb[0].mxu0
      %v3508 = vadd.f32 %v3443, %v3507
      %v3509 = vpop.f32.mrb[0].mxu0
      %v3510 = vpop.f32.mrb[0].mxu0
      %v3511 = vadd.f32 %v3446, %v3510
      %v3512 = vpop.f32.mrb[0].mxu0
      %3513 = vmatprep.mubr.bf16.mxu0 0
      %3514 = vmatmul.mubr.bf16.gmra.mrb[0].mxu0 %v1207
      %v3515 = vpop.f32.mrb[0].mxu0
      %v3516 = vadd.f32 %v3451, %v3515
      %v3517 = vpop.f32.mrb[0].mxu0
      %v3518 = vpop.f32.mrb[0].mxu0
      %v3519 = vadd.f32 %v3454, %v3518
      %v3520 = vpop.f32.mrb[0].mxu0
      %3521 = vdwg.mxu0
      %v3522 = vmax.f32 %v3492, 0.0
      %v3523 = vmax.f32 %v3495, 0.0
      %v3524 = vmax.f32 %v3500, 0.0
      %v3525 = vmax.f32 %v3503, 0.0
      %v3526 = vmax.f32 %v3508, 0.0
      %v3527 = vmax.f32 %v3511, 0.0
      %v3528 = vmax.f32 %v3516, 0.0
      %v3529 = vmax.f32 %v3519, 0.0
      %3530 = vst [vmem:[%s211] sm:$0xff] %v3522
      %3531 = vst [vmem:[%s211 + $0x8] sm:$0xff] %v3523
      %3532 = vst [vmem:[%s211 + $0x10] sm:$0xff] %v3524
      %3533 = vst [vmem:[%s211 + $0x18] sm:$0xff] %v3525
      %3534 = vst [vmem:[%s211 + $0x20] sm:$0xff] %v3526
      %3535 = vst [vmem:[%s211 + $0x28] sm:$0xff] %v3527
      %3536 = vst [vmem:[%s211 + $0x30] sm:$0xff] %v3528
      %3537 = vst [vmem:[%s211 + $0x38] sm:$0xff] %v3529
      %v3538 = vrot.slane %v222, 4
      %v3539 = vrot.slane %v223, 4
      %v3540 = vrot.slane %v236, 4
      %v3541 = vrot.slane %v237, 4
      %v3542 = vrot.slane %v250, 4
      %v3543 = vrot.slane %v251, 4
      %v3544 = vrot.slane %v264, 4
      %v3545 = vrot.slane %v265, 4
      %v3546 = vrot.slane %v278, 4
      %v3547 = vrot.slane %v279, 4
      %v3548 = vrot.slane %v292, 4
      %v3549 = vrot.slane %v293, 4
      %v3550 = vrot.slane %v306, 4
      %v3551 = vrot.slane %v307, 4
      %v3552 = vrot.slane %v320, 4
      %v3553 = vrot.slane %v321, 4
      %vm3554 = vcmask 1043456
      %v3555 = vsel %vm3554, %v3538, %v3539
      %v3556 = vsel %vm3554, %v3540, %v3541
      %v3557 = vsel %vm3554, %v3542, %v3543
      %v3558 = vsel %vm3554, %v3544, %v3545
      %v3559 = vsel %vm3554, %v3546, %v3547
      %v3560 = vsel %vm3554, %v3548, %v3549
      %v3561 = vsel %vm3554, %v3550, %v3551
      %v3562 = vsel %vm3554, %v3552, %v3553
      %v3579 = vmax.bf16 %v221, %v3555
      %v3580 = vmax.bf16 %v222, %v3539
      %v3581 = vmax.bf16 %v235, %v3556
      %v3582 = vmax.bf16 %v236, %v3541
      %v3583 = vmax.bf16 %v249, %v3557
      %v3584 = vmax.bf16 %v250, %v3543
      %v3585 = vmax.bf16 %v263, %v3558
      %v3586 = vmax.bf16 %v264, %v3545
      %v3587 = vmax.bf16 %v277, %v3559
      %v3588 = vmax.bf16 %v278, %v3547
      %v3589 = vmax.bf16 %v291, %v3560
      %v3590 = vmax.bf16 %v292, %v3549
      %v3591 = vmax.bf16 %v305, %v3561
      %v3592 = vmax.bf16 %v306, %v3551
      %v3593 = vmax.bf16 %v319, %v3562
      %v3594 = vmax.bf16 %v320, %v3553
      %v3595 = vmax.bf16 %v3579, %v224
      %v3596 = vmax.bf16 %v3580, %v225
      %v3597 = vmax.bf16 %v3581, %v238
      %v3598 = vmax.bf16 %v3582, %v239
      %v3599 = vmax.bf16 %v3583, %v252
      %v3600 = vmax.bf16 %v3584, %v253
      %v3601 = vmax.bf16 %v3585, %v266
      %v3602 = vmax.bf16 %v3586, %v267
      %v3603 = vmax.bf16 %v3587, %v280
      %v3604 = vmax.bf16 %v3588, %v281
      %v3605 = vmax.bf16 %v3589, %v294
      %v3606 = vmax.bf16 %v3590, %v295
      %v3607 = vmax.bf16 %v3591, %v308
      %v3608 = vmax.bf16 %v3592, %v309
      %v3609 = vmax.bf16 %v3593, %v322
      %v3610 = vmax.bf16 %v3594, %v323
      %v3611 = vrot.slane %v225, 4
      %v3612 = vrot.slane %v226, 4
      %v3613 = vrot.slane %v239, 4
      %v3614 = vrot.slane %v240, 4
      %v3615 = vrot.slane %v253, 4
      %v3616 = vrot.slane %v254, 4
      %v3617 = vrot.slane %v267, 4
      %v3618 = vrot.slane %v268, 4
      %v3619 = vrot.slane %v281, 4
      %v3620 = vrot.slane %v282, 4
      %v3621 = vrot.slane %v295, 4
      %v3622 = vrot.slane %v296, 4
      %v3623 = vrot.slane %v309, 4
      %v3624 = vrot.slane %v310, 4
      %v3625 = vrot.slane %v323, 4
      %v3626 = vrot.slane %v324, 4
      %v3627 = vsel %vm3554, %v3611, %v3612
      %v3628 = vsel %vm3554, %v3613, %v3614
      %v3629 = vsel %vm3554, %v3615, %v3616
      %v3630 = vsel %vm3554, %v3617, %v3618
      %v3631 = vsel %vm3554, %v3619, %v3620
      %v3632 = vsel %vm3554, %v3621, %v3622
      %v3633 = vsel %vm3554, %v3623, %v3624
      %v3634 = vsel %vm3554, %v3625, %v3626
      %v3651 = vmax.bf16 %v3595, %v3627
      %v3652 = vmax.bf16 %v3596, %v3612
      %v3653 = vmax.bf16 %v3597, %v3628
      %v3654 = vmax.bf16 %v3598, %v3614
      %v3655 = vmax.bf16 %v3599, %v3629
      %v3656 = vmax.bf16 %v3600, %v3616
      %v3657 = vmax.bf16 %v3601, %v3630
      %v3658 = vmax.bf16 %v3602, %v3618
      %v3659 = vmax.bf16 %v3603, %v3631
      %v3660 = vmax.bf16 %v3604, %v3620
      %v3661 = vmax.bf16 %v3605, %v3632
      %v3662 = vmax.bf16 %v3606, %v3622
      %v3663 = vmax.bf16 %v3607, %v3633
      %v3664 = vmax.bf16 %v3608, %v3624
      %v3665 = vmax.bf16 %v3609, %v3634
      %v3666 = vmax.bf16 %v3610, %v3626
      %v3667 = vmax.bf16 %v3651, %v227
      %v3668 = vmax.bf16 %v3652, %v228
      %v3669 = vmax.bf16 %v3653, %v241
      %v3670 = vmax.bf16 %v3654, %v242
      %v3671 = vmax.bf16 %v3655, %v255
      %v3672 = vmax.bf16 %v3656, %v256
      %v3673 = vmax.bf16 %v3657, %v269
      %v3674 = vmax.bf16 %v3658, %v270
      %v3675 = vmax.bf16 %v3659, %v283
      %v3676 = vmax.bf16 %v3660, %v284
      %v3677 = vmax.bf16 %v3661, %v297
      %v3678 = vmax.bf16 %v3662, %v298
      %v3679 = vmax.bf16 %v3663, %v311
      %v3680 = vmax.bf16 %v3664, %v312
      %v3681 = vmax.bf16 %v3665, %v325
      %v3682 = vmax.bf16 %v3666, %v326
      %v3683 = vrot.slane %v228, 4
      %v3684 = vrot.slane %v229, 4
      %v3685 = vrot.slane %v242, 4
      %v3686 = vrot.slane %v243, 4
      %v3687 = vrot.slane %v256, 4
      %v3688 = vrot.slane %v257, 4
      %v3689 = vrot.slane %v270, 4
      %v3690 = vrot.slane %v271, 4
      %v3691 = vrot.slane %v284, 4
      %v3692 = vrot.slane %v285, 4
      %v3693 = vrot.slane %v298, 4
      %v3694 = vrot.slane %v299, 4
      %v3695 = vrot.slane %v312, 4
      %v3696 = vrot.slane %v313, 4
      %v3697 = vrot.slane %v326, 4
      %v3698 = vrot.slane %v327, 4
      %v3699 = vsel %vm3554, %v3683, %v3684
      %v3700 = vsel %vm3554, %v3685, %v3686
      %v3701 = vsel %vm3554, %v3687, %v3688
      %v3702 = vsel %vm3554, %v3689, %v3690
      %v3703 = vsel %vm3554, %v3691, %v3692
      %v3704 = vsel %vm3554, %v3693, %v3694
      %v3705 = vsel %vm3554, %v3695, %v3696
      %v3706 = vsel %vm3554, %v3697, %v3698
      %v3723 = vmax.bf16 %v3667, %v3699
      %v3724 = vmax.bf16 %v3668, %v3684
      %v3725 = vmax.bf16 %v3669, %v3700
      %v3726 = vmax.bf16 %v3670, %v3686
      %v3727 = vmax.bf16 %v3671, %v3701
      %v3728 = vmax.bf16 %v3672, %v3688
      %v3729 = vmax.bf16 %v3673, %v3702
      %v3730 = vmax.bf16 %v3674, %v3690
      %v3731 = vmax.bf16 %v3675, %v3703
      %v3732 = vmax.bf16 %v3676, %v3692
      %v3733 = vmax.bf16 %v3677, %v3704
      %v3734 = vmax.bf16 %v3678, %v3694
      %v3735 = vmax.bf16 %v3679, %v3705
      %v3736 = vmax.bf16 %v3680, %v3696
      %v3737 = vmax.bf16 %v3681, %v3706
      %v3738 = vmax.bf16 %v3682, %v3698
      %v3739 = vmax.bf16 %v3723, %v230
      %v3740 = vmax.bf16 %v3724, %v231
      %v3741 = vmax.bf16 %v3725, %v244
      %v3742 = vmax.bf16 %v3726, %v245
      %v3743 = vmax.bf16 %v3727, %v258
      %v3744 = vmax.bf16 %v3728, %v259
      %v3745 = vmax.bf16 %v3729, %v272
      %v3746 = vmax.bf16 %v3730, %v273
      %v3747 = vmax.bf16 %v3731, %v286
      %v3748 = vmax.bf16 %v3732, %v287
      %v3749 = vmax.bf16 %v3733, %v300
      %v3750 = vmax.bf16 %v3734, %v301
      %v3751 = vmax.bf16 %v3735, %v314
      %v3752 = vmax.bf16 %v3736, %v315
      %v3753 = vmax.bf16 %v3737, %v328
      %v3754 = vmax.bf16 %v3738, %v329
      %v3755 = vrot.slane %v231, 4
      %v3756 = vrot.slane %v232, 4
      %v3757 = vrot.slane %v245, 4
      %v3758 = vrot.slane %v246, 4
      %v3759 = vrot.slane %v259, 4
      %v3760 = vrot.slane %v260, 4
      %v3761 = vrot.slane %v273, 4
      %v3762 = vrot.slane %v274, 4
      %v3763 = vrot.slane %v287, 4
      %v3764 = vrot.slane %v288, 4
      %v3765 = vrot.slane %v301, 4
      %v3766 = vrot.slane %v302, 4
      %v3767 = vrot.slane %v315, 4
      %v3768 = vrot.slane %v316, 4
      %v3769 = vrot.slane %v329, 4
      %v3770 = vrot.slane %v330, 4
      %v3771 = vsel %vm3554, %v3755, %v3756
      %v3772 = vsel %vm3554, %v3757, %v3758
      %v3773 = vsel %vm3554, %v3759, %v3760
      %v3774 = vsel %vm3554, %v3761, %v3762
      %v3775 = vsel %vm3554, %v3763, %v3764
      %v3776 = vsel %vm3554, %v3765, %v3766
      %v3777 = vsel %vm3554, %v3767, %v3768
      %v3778 = vsel %vm3554, %v3769, %v3770
      %v3795 = vmax.bf16 %v3739, %v3771
      %v3796 = vmax.bf16 %v3740, %v3756
      %v3797 = vmax.bf16 %v3741, %v3772
      %v3798 = vmax.bf16 %v3742, %v3758
      %v3799 = vmax.bf16 %v3743, %v3773
      %v3800 = vmax.bf16 %v3744, %v3760
      %v3801 = vmax.bf16 %v3745, %v3774
      %v3802 = vmax.bf16 %v3746, %v3762
      %v3803 = vmax.bf16 %v3747, %v3775
      %v3804 = vmax.bf16 %v3748, %v3764
      %v3805 = vmax.bf16 %v3749, %v3776
      %v3806 = vmax.bf16 %v3750, %v3766
      %v3807 = vmax.bf16 %v3751, %v3777
      %v3808 = vmax.bf16 %v3752, %v3768
      %v3809 = vmax.bf16 %v3753, %v3778
      %v3810 = vmax.bf16 %v3754, %v3770
      %v3811 = vmax.bf16 %v3795, %v233
      %v3812 = vmax.bf16 %v3796, %v234
      %v3813 = vmax.bf16 %v3797, %v247
      %v3814 = vmax.bf16 %v3798, %v248
      %v3815 = vmax.bf16 %v3799, %v261
      %v3816 = vmax.bf16 %v3800, %v262
      %v3817 = vmax.bf16 %v3801, %v275
      %v3818 = vmax.bf16 %v3802, %v276
      %v3819 = vmax.bf16 %v3803, %v289
      %v3820 = vmax.bf16 %v3804, %v290
      %v3821 = vmax.bf16 %v3805, %v303
      %v3822 = vmax.bf16 %v3806, %v304
      %v3823 = vmax.bf16 %v3807, %v317
      %v3824 = vmax.bf16 %v3808, %v318
      %v3825 = vmax.bf16 %v3809, %v331
      %v3826 = vmax.bf16 %v3810, %v332
      %v3827 = vunpack.c.l.bf16 %v3811
      %v3828 = vunpack.c.h.bf16 %v3811
      %v3829 = vunpack.c.l.bf16 %v3812
      %v3830 = vunpack.c.l.bf16 %v3813
      %v3831 = vunpack.c.h.bf16 %v3813
      %v3832 = vunpack.c.l.bf16 %v3814
      %v3833 = vunpack.c.l.bf16 %v3815
      %v3834 = vunpack.c.h.bf16 %v3815
      %v3835 = vunpack.c.l.bf16 %v3816
      %v3836 = vunpack.c.l.bf16 %v3817
      %v3837 = vunpack.c.h.bf16 %v3817
      %v3838 = vunpack.c.l.bf16 %v3818
      %v3839 = vunpack.c.l.bf16 %v3819
      %v3840 = vunpack.c.h.bf16 %v3819
      %v3841 = vunpack.c.l.bf16 %v3820
      %v3842 = vunpack.c.l.bf16 %v3821
      %v3843 = vunpack.c.h.bf16 %v3821
      %v3844 = vunpack.c.l.bf16 %v3822
      %v3845 = vunpack.c.l.bf16 %v3823
      %v3846 = vunpack.c.h.bf16 %v3823
      %v3847 = vunpack.c.l.bf16 %v3824
      %v3848 = vunpack.c.l.bf16 %v3825
      %v3849 = vunpack.c.h.bf16 %v3825
      %v3850 = vunpack.c.l.bf16 %v3826
      %v3851 = vmax.f32 %v3827, 0.0
      %v3852 = vmax.f32 %v3828, 0.0
      %v3853 = vmax.f32 %v3829, 0.0
      %v3854 = vmax.f32 %v3830, 0.0
      %v3855 = vmax.f32 %v3831, 0.0
      %v3856 = vmax.f32 %v3832, 0.0
      %v3857 = vmax.f32 %v3833, 0.0
      %v3858 = vmax.f32 %v3834, 0.0
      %v3859 = vmax.f32 %v3835, 0.0
      %v3860 = vmax.f32 %v3836, 0.0
      %v3861 = vmax.f32 %v3837, 0.0
      %v3862 = vmax.f32 %v3838, 0.0
      %v3863 = vmax.f32 %v3839, 0.0
      %v3864 = vmax.f32 %v3840, 0.0
      %v3865 = vmax.f32 %v3841, 0.0
      %v3866 = vmax.f32 %v3842, 0.0
      %v3867 = vmax.f32 %v3843, 0.0
      %v3868 = vmax.f32 %v3844, 0.0
      %v3869 = vmax.f32 %v3845, 0.0
      %v3870 = vmax.f32 %v3846, 0.0
      %v3871 = vmax.f32 %v3847, 0.0
      %v3872 = vmax.f32 %v3848, 0.0
      %v3873 = vmax.f32 %v3849, 0.0
      %v3874 = vmax.f32 %v3850, 0.0
      %3875 = vst [vmem:[%s218] sm:$0xff] %v3851
      %3876 = vst [vmem:[%s218 + $0x8] sm:$0xff] %v3852
      %3877 = vst [vmem:[%s218 + $0x10] sm:$0xff] %v3853
      %3878 = vst [vmem:[%s218 + $0x18] sm:$0xff] %v3854
      %3879 = vst [vmem:[%s218 + $0x20] sm:$0xff] %v3855
      %3880 = vst [vmem:[%s218 + $0x28] sm:$0xff] %v3856
      %3881 = vst [vmem:[%s218 + $0x30] sm:$0xff] %v3857
      %3882 = vst [vmem:[%s218 + $0x38] sm:$0xff] %v3858
      %3883 = vst [vmem:[%s218 + $0x40] sm:$0xff] %v3859
      %3884 = vst [vmem:[%s218 + $0x48] sm:$0xff] %v3860
      %3885 = vst [vmem:[%s218 + $0x50] sm:$0xff] %v3861
      %3886 = vst [vmem:[%s218 + $0x58] sm:$0xff] %v3862
      %3887 = vst [vmem:[%s218 + $0x60] sm:$0xff] %v3863
      %3888 = vst [vmem:[%s218 + $0x68] sm:$0xff] %v3864
      %3889 = vst [vmem:[%s218 + $0x70] sm:$0xff] %v3865
      %3890 = vst [vmem:[%s218 + $0x78] sm:$0xff] %v3866
      %3891 = vst [vmem:[%s218 + $0x80] sm:$0xff] %v3867
      %3892 = vst [vmem:[%s218 + $0x88] sm:$0xff] %v3868
      %3893 = vst [vmem:[%s218 + $0x90] sm:$0xff] %v3869
      %3894 = vst [vmem:[%s218 + $0x98] sm:$0xff] %v3870
      %3895 = vst [vmem:[%s218 + $0xa0] sm:$0xff] %v3871
      %3896 = vst [vmem:[%s218 + $0xa8] sm:$0xff] %v3872
      %3897 = vst [vmem:[%s218 + $0xb0] sm:$0xff] %v3873
      %3898 = vst [vmem:[%s218 + $0xb8] sm:$0xff] %v3874
      %s3899 = smul.u32 8, %s16
      %p3900 = scmp.lt.s32.totalorder %s3899, 15
      %s3901 = scalar_select %p3900, %s3899, 15
      %s3902 = smul.addr %s3901, 8
      %s3903 = scalar_lea.vmem %s3, %s3902
      %s3904 = smul.u32 8, %s16
      %p3905 = scmp.lt.s32.totalorder %s3904, 15
      %s3906 = scalar_select %p3905, %s3904, 15
      %s3907 = smul.addr %s3906, 3
      %s3908 = smul.addr %s3907, 8
      %s3909 = scalar_lea.vmem %s4, %s3908
      // Predicated region
      $region33: #{reduction_a_forward.7} parent=31 // pred_check
        %p3910 = pneg %p102
      $region34: #{reduction_a_forward.7} parent=31 // pred_check_branch
        %3912 = sbr.rel (%p3910) target = $region36
      $region35: #{reduction_a_forward.7} parent=31 // pred_region
        %s3913 = smul.u32 8, %s16
      $region36: #{reduction_a_forward.7} parent=31 // pred_fallthru
        _
      // Predicated region
      $region37: #{reduction_a_forward.7} parent=31 // pred_check
        %p3914 = pneg %p128
      $region38: #{reduction_a_forward.7} parent=31 // pred_check_branch
        %3916 = sbr.rel (%p3914) target = $region40
      $region39: #{reduction_a_forward.7} parent=31 // pred_region
        %s3917 = smul.u32 8, %s16
      $region40: #{reduction_a_forward.7} parent=31 // pred_fallthru
        _
    $region32: #{reduction_a_forward.7} parent=5 // pred_fallthru
      _
    %p3918 = scmp.le.s32.totalorder 2, %s11
    // Predicated region
    $region41: #{reduction_a_forward.7} parent=5 // pred_check
      %p3919 = pneg %p3918
    $region42: #{reduction_a_forward.7} parent=5 // pred_check_branch
      %3921 = sbr.rel (%p3919) target = $region44
    $region43: #{reduction_a_forward.7} parent=5 // pred_region
      %s3922 = ssub.s32 %s11, 2
      // Predicated region
      $region45: #{reduction_a_forward.7} parent=43 // pred_check
        %p3923 = pneg %p108
      $region46: #{reduction_a_forward.7} parent=43 // pred_check_branch
        %3925 = sbr.rel (%p3923) target = $region48
      $region47: #{reduction_a_forward.7} parent=43 // pred_region
        %s3926 = smul.u32 8, %s17
        %p3927 = scmp.lt.s32.totalorder %s3926, 15
        %s3928 = scalar_select %p3927, %s3926, 15
        %s3929 = smul.addr %s3928, 8
        %s3930 = scalar_lea.vmem %s3, %s3929
      $region48: #{reduction_a_forward.7} parent=43 // pred_fallthru
        _
      // Predicated region
      $region49: #{reduction_a_forward.7} parent=43 // pred_check
        %p3931 = pneg %p134
      $region50: #{reduction_a_forward.7} parent=43 // pred_check_branch
        %3933 = sbr.rel (%p3931) target = $region52
      $region51: #{reduction_a_forward.7} parent=43 // pred_region
        %s3934 = smul.u32 8, %s17
        %p3935 = scmp.lt.s32.totalorder %s3934, 15
        %s3936 = scalar_select %p3935, %s3934, 15
        %s3937 = smul.addr %s3936, 3
        %s3938 = smul.addr %s3937, 8
        %s3939 = scalar_lea.vmem %s4, %s3938
      $region52: #{reduction_a_forward.7} parent=43 // pred_fallthru
        _
    $region44: #{reduction_a_forward.7} parent=5 // pred_fallthru
      _
  $region6: #{reduction_a_forward.7} parent=0 // loop_footer
    %s15 = sadd.s32 1, %s11
  $region7: #{reduction_a_forward.7} parent=0 // loop_footer_branch
    %10 = sbr.rel target = $region3
  $region8: #{reduction_a_forward.7} parent=0 // loop_exit
    _

// kernel: reduction_a_forward.5
$region0: #{reduction_a_forward.5}
  #allocation0 [shape = 'u32[]', space=smem, size = 0x4, offset = 0x4, fixed_abs, tag = 'smem constant byte address 0x4 - core index']
  #allocation1 [shape = 'u32[144,128]{1,0:T(1,128)}', space=vmem, size = 0x12000, scoped, tag = 'internal scratch']
  %s0 = inlined_call_operand.vmem [shape: bf16[512,1152], index: 0, kind: input, shape index: {}]
  %s1 = inlined_call_operand.vmem [shape: bf16[1152,128], index: 1, kind: input, shape index: {}]
  %s2 = inlined_call_operand.vmem [shape: f32[1,128], index: 2, kind: input, shape index: {}]
  %s3 = inlined_call_operand.vmem [shape: bf16[512,128], index: 3, kind: output, shape index: {}]
  %s4 = sld [smem:[#allocation0]]
  $region45: #{reduction_a_forward.5} parent=0
    _
  %s6 = ssub.s32 1, %s4
  %s7 = scalar_select 0, %s6, %s4
  loop: start=0, step=1, limit=4
  $region2: #{reduction_a_forward.5} parent=0 // loop_pre_header
    _
  $region3: #{reduction_a_forward.5} parent=0 // loop_header
    %s9 = sphi 0, %s13
    %p10 = scmp.ge.s32.totalorder %s9, 4
    %s16 = sphi 0, %s28
    %s17 = sphi 0, %s24
    %s18 = sphi 0, %s16
    %s19 = sphi 0, %s17
    %s20 = sphi 0, %s18
    %s21 = sphi 0, %s19
    %s31 = sphi 0, %s33
    %s34 = sphi 0, %s31
    %s35 = sphi 0, %s34
    %s51 = sphi 0, %s35
    %s57 = sphi 0, %s59
    %s60 = sphi 0, %s57
    %s61 = sphi 0, %s60
    %s77 = sphi 0, %s61
    %s83 = sphi 0, %s85
    %s86 = sphi 0, %s83
    %s87 = sphi 0, %s86
    %s103 = sphi 0, %s87
    %s111 = sphi 0, %s113
    %s114 = sphi 0, %s111
    %s115 = sphi 0, %s114
    %s131 = sphi 0, %s115
  $region4: #{reduction_a_forward.5} parent=0 // loop_header_branch
    %12 = sbr.rel (%p10) target = $region8
  $region5: #{reduction_a_forward.5} parent=0 // loop_body
    %s14 = ssub.s32 %s9, 1
    %s15 = ssub.s32 %s9, 2
    %s22 = sadd.s32 1, %s17
    %p23 = scmp.ge.s32.totalorder %s22, 1
    %s24 = scalar_select %p23, 0, %s22
    %s25 = sadd.s32 1, %s16
    %s26 = scalar_select %p23, %s25, %s16
    %p27 = scmp.ge.s32.totalorder %s26, 2
    %s28 = scalar_select %p27, 0, %s26
    %s29 = ssub.s32 %s16, %s28
    %p30 = scmp.eq.s32.totalorder %s29, 0
    %s32 = sadd.s32 %s31, 1
    %s33 = scalar_select %p30, %s31, %s32
    %p36 = pneg %p30
    %p37 = scmp.eq.s32.totalorder %s9, 1
    %p38 = por %p36, %p37
    %p39 = scmp.ne.s32.totalorder %s31, %s34
    %p40 = scmp.eq.s32.totalorder %s9, 0
    %p41 = por %p39, %p40
    %p42 = scmp.ne.s32.totalorder %s31, %s34
    %p43 = scmp.eq.s32.totalorder %s14, 1
    %p44 = por %p42, %p43
    %p45 = scmp.ne.s32.totalorder %s34, %s35
    %p46 = scmp.eq.s32.totalorder %s14, 0
    %p47 = por %p45, %p46
    %p48 = scmp.ne.s32.totalorder %s34, %s35
    %p49 = scmp.eq.s32.totalorder %s15, 1
    %p50 = por %p48, %p49
    %p52 = scmp.ne.s32.totalorder %s35, %s51
    %p53 = scmp.eq.s32.totalorder %s15, 0
    %p54 = por %p52, %p53
    %s55 = ssub.s32 %s17, %s24
    %p56 = scmp.eq.s32.totalorder %s55, 0
    %s58 = sadd.s32 %s57, 1
    %s59 = scalar_select %p56, %s57, %s58
    %p62 = pneg %p56
    %p63 = scmp.eq.s32.totalorder %s9, 1
    %p64 = por %p62, %p63
    %p65 = scmp.ne.s32.totalorder %s57, %s60
    %p66 = scmp.eq.s32.totalorder %s9, 0
    %p67 = por %p65, %p66
    %p68 = scmp.ne.s32.totalorder %s57, %s60
    %p69 = scmp.eq.s32.totalorder %s14, 1
    %p70 = por %p68, %p69
    %p71 = scmp.ne.s32.totalorder %s60, %s61
    %p72 = scmp.eq.s32.totalorder %s14, 0
    %p73 = por %p71, %p72
    %p74 = scmp.ne.s32.totalorder %s60, %s61
    %p75 = scmp.eq.s32.totalorder %s15, 1
    %p76 = por %p74, %p75
    %p78 = scmp.ne.s32.totalorder %s61, %s77
    %p79 = scmp.eq.s32.totalorder %s15, 0
    %p80 = por %p78, %p79
    %s81 = ssub.s32 %s17, %s24
    %p82 = scmp.eq.s32.totalorder %s81, 0
    %s84 = sadd.s32 %s83, 1
    %s85 = scalar_select %p82, %s83, %s84
    %p88 = pneg %p82
    %p89 = scmp.eq.s32.totalorder %s9, 1
    %p90 = por %p88, %p89
    %p91 = scmp.ne.s32.totalorder %s83, %s86
    %p92 = scmp.eq.s32.totalorder %s9, 0
    %p93 = por %p91, %p92
    %p94 = scmp.ne.s32.totalorder %s83, %s86
    %p95 = scmp.eq.s32.totalorder %s14, 1
    %p96 = por %p94, %p95
    %p97 = scmp.ne.s32.totalorder %s86, %s87
    %p98 = scmp.eq.s32.totalorder %s14, 0
    %p99 = por %p97, %p98
    %p100 = scmp.ne.s32.totalorder %s86, %s87
    %p101 = scmp.eq.s32.totalorder %s15, 1
    %p102 = por %p100, %p101
    %p104 = scmp.ne.s32.totalorder %s87, %s103
    %p105 = scmp.eq.s32.totalorder %s15, 0
    %p106 = por %p104, %p105
    %s107 = ssub.s32 %s16, %s28
    %s108 = ssub.s32 %s17, %s24
    %s109 = sor.u32 %s107, %s108
    %p110 = scmp.eq.s32.totalorder %s109, 0
    %s112 = sadd.s32 %s111, 1
    %s113 = scalar_select %p110, %s111, %s112
    %p116 = pneg %p110
    %p117 = scmp.eq.s32.totalorder %s9, 1
    %p118 = por %p116, %p117
    %p119 = scmp.ne.s32.totalorder %s111, %s114
    %p120 = scmp.eq.s32.totalorder %s9, 0
    %p121 = por %p119, %p120
    %p122 = scmp.ne.s32.totalorder %s111, %s114
    %p123 = scmp.eq.s32.totalorder %s14, 1
    %p124 = por %p122, %p123
    %p125 = scmp.ne.s32.totalorder %s114, %s115
    %p126 = scmp.eq.s32.totalorder %s14, 0
    %p127 = por %p125, %p126
    %p128 = scmp.ne.s32.totalorder %s114, %s115
    %p129 = scmp.eq.s32.totalorder %s15, 1
    %p130 = por %p128, %p129
    %p132 = scmp.ne.s32.totalorder %s115, %s131
    %p133 = scmp.eq.s32.totalorder %s15, 0
    %p134 = por %p132, %p133
    %p135 = scmp.le.s32.totalorder 1, %s9
    %p136 = scmp.lt.s32.totalorder %s9, 3
    %p137 = pnand %p135, %p136
    %p138 = pneg %p137
    // Predicated region
    $region9: #{reduction_a_forward.5} parent=5 // pred_check
      _
    $region10: #{reduction_a_forward.5} parent=5 // pred_check_branch
      %140 = sbr.rel (%p137) target = $region12
    $region11: #{reduction_a_forward.5} parent=5 // pred_region
      %s141 = ssub.s32 %s9, 1
      // Predicated region
      $region13: #{reduction_a_forward.5} parent=11 // pred_check
        %p142 = pneg %p73
      $region14: #{reduction_a_forward.5} parent=11 // pred_check_branch
        %144 = sbr.rel (%p142) target = $region16
      $region15: #{reduction_a_forward.5} parent=11 // pred_region
        %p145 = scmp.lt.s32.totalorder %s19, 0
        %s146 = scalar_select %p145, %s19, 0
        %s147 = smul.addr %s146, 4
        %s148 = scalar_lea.vmem %s1, %s147
      $region16: #{reduction_a_forward.5} parent=11 // pred_fallthru
        _
      // Predicated region
      $region17: #{reduction_a_forward.5} parent=11 // pred_check
        %p149 = pneg %p99
      $region18: #{reduction_a_forward.5} parent=11 // pred_check_branch
        %151 = sbr.rel (%p149) target = $region20
      $region19: #{reduction_a_forward.5} parent=11 // pred_region
        %p152 = scmp.lt.s32.totalorder %s19, 0
        %s153 = scalar_select %p152, %s19, 0
        %s154 = scalar_lea.vmem %s2, %s153
      $region20: #{reduction_a_forward.5} parent=11 // pred_fallthru
        _
    $region12: #{reduction_a_forward.5} parent=5 // pred_fallthru
      _
    %p155 = scmp.lt.s32.totalorder %s9, 2
    // Predicated region
    $region21: #{reduction_a_forward.5} parent=5 // pred_check
      %p156 = pneg %p155
    $region22: #{reduction_a_forward.5} parent=5 // pred_check_branch
      %158 = sbr.rel (%p156) target = $region24
    $region23: #{reduction_a_forward.5} parent=5 // pred_region
      // Predicated region
      $region25: #{reduction_a_forward.5} parent=23 // pred_check
        %p159 = pneg %p41
      $region26: #{reduction_a_forward.5} parent=23 // pred_check_branch
        %161 = sbr.rel (%p159) target = $region28
      $region27: #{reduction_a_forward.5} parent=23 // pred_region
        %s162 = smul.u32 32, %s16
        %p163 = scmp.lt.s32.totalorder %s162, 63
        %s164 = scalar_select %p163, %s162, 63
        %s165 = smul.addr %s164, 9
        %s166 = smul.addr %s165, 4
        %s167 = scalar_lea.vmem %s0, %s166
        %s168 = smul.u32 32, %s16
      $region28: #{reduction_a_forward.5} parent=23 // pred_fallthru
        _
    $region24: #{reduction_a_forward.5} parent=5 // pred_fallthru
      _
    %p169 = scmp.le.s32.totalorder 1, %s9
    %p170 = scmp.lt.s32.totalorder %s9, 3
    %p171 = pnand %p169, %p170
    %p172 = pneg %p171
    // Predicated region
    $region29: #{reduction_a_forward.5} parent=5 // pred_check
      _
    $region30: #{reduction_a_forward.5} parent=5 // pred_check_branch
      %174 = sbr.rel (%p171) target = $region32
    $region31: #{reduction_a_forward.5} parent=5 // pred_region
      %s175 = ssub.s32 %s9, 1
      %s176 = smul.u32 32, %s18
      %p177 = scmp.lt.s32.totalorder %s176, 63
      %s178 = scalar_select %p177, %s176, 63
      %s179 = smul.addr %s178, 9
      %s180 = smul.addr %s179, 4
      %s181 = scalar_lea.vmem %s0, %s180
      %p182 = pneg %p47
      %p183 = pneg %p44
      %p184 = scmp.lt.s32.totalorder %s19, 0
      %s185 = scalar_select %p184, %s19, 0
      %s186 = smul.addr %s185, 4
      %s187 = scalar_lea.vmem %s1, %s186
      %p188 = pneg %p73
      %p189 = pneg %p70
      %p190 = scmp.lt.s32.totalorder %s19, 0
      %s191 = scalar_select %p190, %s19, 0
      %s192 = scalar_lea.vmem %s2, %s191
      %p193 = pneg %p99
      %p194 = pneg %p96
      %p195 = pneg %p127
      %p196 = pneg %p124
      %s197 = smul.u32 32, %s18
      %p198 = scmp.lt.s32.totalorder %s197, 63
      %s199 = scalar_select %p198, %s197, 63
      %p200 = scmp.lt.s32.totalorder %s19, 0
      %s201 = scalar_select %p200, %s19, 0
      %s202 = sadd.s32 %s201, %s199
      %s203 = smul.addr %s202, 4
      %s204 = scalar_lea.vmem %s3, %s203
      %s205 = smul.u32 32, %s18
      %p206 = scmp.lt.s32.totalorder %s205, 63
      %s207 = scalar_select %p206, %s205, 63
      %s208 = smul.addr %s207, 9
      %s209 = smul.addr %s208, 4
      %s210 = scalar_lea.vmem %s0, %s209
      %s211 = smul.u32 32, %s18
      %p212 = scmp.lt.s32.totalorder %s19, 0
      %s213 = scalar_select %p212, %s19, 0
      %s214 = smul.addr %s213, 4
      %s215 = scalar_lea.vmem %s1, %s214
      %p216 = scmp.lt.s32.totalorder %s19, 0
      %s217 = scalar_select %p216, %s19, 0
      %s218 = scalar_lea.vmem %s2, %s217
      %s219 = smul.u32 32, %s18
      %p220 = scmp.lt.s32.totalorder %s219, 63
      %s221 = scalar_select %p220, %s219, 63
      %p222 = scmp.lt.s32.totalorder %s19, 0
      %s223 = scalar_select %p222, %s19, 0
      %s224 = sadd.s32 %s223, %s221
      %s225 = smul.addr %s224, 4
      %s226 = scalar_lea.vmem %s3, %s225
      %s227 = smul.u32 32, %s18
      %v229 = vld [vmem:[%s210] sm:$0xff]
      %v230 = vld [vmem:[%s210 + $0x8] sm:$0xff]
      %v231 = vld [vmem:[%s210 + $0x10] sm:$0xff]
      %v232 = vld [vmem:[%s210 + $0x18] sm:$0xff]
      %v233 = vld [vmem:[%s210 + $0x20] sm:$0xf]
      %v234 = vld [vmem:[%s210 + $0x24] sm:$0xff]
      %v235 = vld [vmem:[%s210 + $0x2c] sm:$0xff]
      %v236 = vld [vmem:[%s210 + $0x34] sm:$0xff]
      %v237 = vld [vmem:[%s210 + $0x3c] sm:$0xff]
      %v238 = vld [vmem:[%s210 + $0x44] sm:$0xf]
      %v239 = vld [vmem:[%s210 + $0x48] sm:$0xff]
      %v240 = vld [vmem:[%s210 + $0x50] sm:$0xff]
      %v241 = vld [vmem:[%s210 + $0x58] sm:$0xff]
      %v242 = vld [vmem:[%s210 + $0x60] sm:$0xff]
      %v243 = vld [vmem:[%s210 + $0x68] sm:$0xf]
      %v244 = vld [vmem:[%s210 + $0x6c] sm:$0xff]
      %v245 = vld [vmem:[%s210 + $0x74] sm:$0xff]
      %v246 = vld [vmem:[%s210 + $0x7c] sm:$0xff]
      %v247 = vld [vmem:[%s210 + $0x84] sm:$0xff]
      %v248 = vld [vmem:[%s210 + $0x8c] sm:$0xf]
      %v249 = vld [vmem:[%s210 + $0x90] sm:$0xff]
      %v250 = vld [vmem:[%s210 + $0x98] sm:$0xff]
      %v251 = vld [vmem:[%s210 + $0xa0] sm:$0xff]
      %v252 = vld [vmem:[%s210 + $0xa8] sm:$0xff]
      %v253 = vld [vmem:[%s210 + $0xb0] sm:$0xf]
      %v254 = vld [vmem:[%s210 + $0xb4] sm:$0xff]
      %v255 = vld [vmem:[%s210 + $0xbc] sm:$0xff]
      %v256 = vld [vmem:[%s210 + $0xc4] sm:$0xff]
      %v257 = vld [vmem:[%s210 + $0xcc] sm:$0xff]
      %v258 = vld [vmem:[%s210 + $0xd4] sm:$0xf]
      %v259 = vld [vmem:[%s210 + $0xd8] sm:$0xff]
      %v260 = vld [vmem:[%s210 + $0xe0] sm:$0xff]
      %v261 = vld [vmem:[%s210 + $0xe8] sm:$0xff]
      %v262 = vld [vmem:[%s210 + $0xf0] sm:$0xff]
      %v263 = vld [vmem:[%s210 + $0xf8] sm:$0xf]
      %v264 = vld [vmem:[%s210 + $0xfc] sm:$0xff]
      %v265 = vld [vmem:[%s210 + $0x104] sm:$0xff]
      %v266 = vld [vmem:[%s210 + $0x10c] sm:$0xff]
      %v267 = vld [vmem:[%s210 + $0x114] sm:$0xff]
      %v268 = vld [vmem:[%s210 + $0x11c] sm:$0xf]
      %v269 = vld [vmem:[%s210 + $0x120] sm:$0xff]
      %v270 = vld [vmem:[%s210 + $0x128] sm:$0xff]
      %v271 = vld [vmem:[%s210 + $0x130] sm:$0xff]
      %v272 = vld [vmem:[%s210 + $0x138] sm:$0xff]
      %v273 = vld [vmem:[%s210 + $0x140] sm:$0xf]
      %v274 = vld [vmem:[%s210 + $0x144] sm:$0xff]
      %v275 = vld [vmem:[%s210 + $0x14c] sm:$0xff]
      %v276 = vld [vmem:[%s210 + $0x154] sm:$0xff]
      %v277 = vld [vmem:[%s210 + $0x15c] sm:$0xff]
      %v278 = vld [vmem:[%s210 + $0x164] sm:$0xf]
      %v279 = vld [vmem:[%s210 + $0x168] sm:$0xff]
      %v280 = vld [vmem:[%s210 + $0x170] sm:$0xff]
      %v281 = vld [vmem:[%s210 + $0x178] sm:$0xff]
      %v282 = vld [vmem:[%s210 + $0x180] sm:$0xff]
      %v283 = vld [vmem:[%s210 + $0x188] sm:$0xf]
      %v284 = vld [vmem:[%s210 + $0x18c] sm:$0xff]
      %v285 = vld [vmem:[%s210 + $0x194] sm:$0xff]
      %v286 = vld [vmem:[%s210 + $0x19c] sm:$0xff]
      %v287 = vld [vmem:[%s210 + $0x1a4] sm:$0xff]
      %v288 = vld [vmem:[%s210 + $0x1ac] sm:$0xf]
      %v289 = vld [vmem:[%s210 + $0x1b0] sm:$0xff]
      %v290 = vld [vmem:[%s210 + $0x1b8] sm:$0xff]
      %v291 = vld [vmem:[%s210 + $0x1c0] sm:$0xff]
      %v292 = vld [vmem:[%s210 + $0x1c8] sm:$0xff]
      %v293 = vld [vmem:[%s210 + $0x1d0] sm:$0xf]
      %v294 = vld [vmem:[%s210 + $0x1d4] sm:$0xff]
      %v295 = vld [vmem:[%s210 + $0x1dc] sm:$0xff]
      %v296 = vld [vmem:[%s210 + $0x1e4] sm:$0xff]
      %v297 = vld [vmem:[%s210 + $0x1ec] sm:$0xff]
      %v298 = vld [vmem:[%s210 + $0x1f4] sm:$0xf]
      %v299 = vld [vmem:[%s210 + $0x1f8] sm:$0xff]
      %v300 = vld [vmem:[%s210 + $0x200] sm:$0xff]
      %v301 = vld [vmem:[%s210 + $0x208] sm:$0xff]
      %v302 = vld [vmem:[%s210 + $0x210] sm:$0xff]
      %v303 = vld [vmem:[%s210 + $0x218] sm:$0xf]
      %v304 = vld [vmem:[%s210 + $0x21c] sm:$0xff]
      %v305 = vld [vmem:[%s210 + $0x224] sm:$0xff]
      %v306 = vld [vmem:[%s210 + $0x22c] sm:$0xff]
      %v307 = vld [vmem:[%s210 + $0x234] sm:$0xff]
      %v308 = vld [vmem:[%s210 + $0x23c] sm:$0xf]
      %v309 = vld [vmem:[%s210 + $0x240] sm:$0xff]
      %v310 = vld [vmem:[%s210 + $0x248] sm:$0xff]
      %v311 = vld [vmem:[%s210 + $0x250] sm:$0xff]
      %v312 = vld [vmem:[%s210 + $0x258] sm:$0xff]
      %v313 = vld [vmem:[%s210 + $0x260] sm:$0xf]
      %v314 = vld [vmem:[%s210 + $0x264] sm:$0xff]
      %v315 = vld [vmem:[%s210 + $0x26c] sm:$0xff]
      %v316 = vld [vmem:[%s210 + $0x274] sm:$0xff]
      %v317 = vld [vmem:[%s210 + $0x27c] sm:$0xff]
      %v318 = vld [vmem:[%s210 + $0x284] sm:$0xf]
      %v319 = vld [vmem:[%s210 + $0x288] sm:$0xff]
      %v320 = vld [vmem:[%s210 + $0x290] sm:$0xff]
      %v321 = vld [vmem:[%s210 + $0x298] sm:$0xff]
      %v322 = vld [vmem:[%s210 + $0x2a0] sm:$0xff]
      %v323 = vld [vmem:[%s210 + $0x2a8] sm:$0xf]
      %v324 = vld [vmem:[%s210 + $0x2ac] sm:$0xff]
      %v325 = vld [vmem:[%s210 + $0x2b4] sm:$0xff]
      %v326 = vld [vmem:[%s210 + $0x2bc] sm:$0xff]
      %v327 = vld [vmem:[%s210 + $0x2c4] sm:$0xff]
      %v328 = vld [vmem:[%s210 + $0x2cc] sm:$0xf]
      %v329 = vld [vmem:[%s210 + $0x2d0] sm:$0xff]
      %v330 = vld [vmem:[%s210 + $0x2d8] sm:$0xff]
      %v331 = vld [vmem:[%s210 + $0x2e0] sm:$0xff]
      %v332 = vld [vmem:[%s210 + $0x2e8] sm:$0xff]
      %v333 = vld [vmem:[%s210 + $0x2f0] sm:$0xf]
      %v334 = vld [vmem:[%s210 + $0x2f4] sm:$0xff]
      %v335 = vld [vmem:[%s210 + $0x2fc] sm:$0xff]
      %v336 = vld [vmem:[%s210 + $0x304] sm:$0xff]
      %v337 = vld [vmem:[%s210 + $0x30c] sm:$0xff]
      %v338 = vld [vmem:[%s210 + $0x314] sm:$0xf]
      %v339 = vld [vmem:[%s210 + $0x318] sm:$0xff]
      %v340 = vld [vmem:[%s210 + $0x320] sm:$0xff]
      %v341 = vld [vmem:[%s210 + $0x328] sm:$0xff]
      %v342 = vld [vmem:[%s210 + $0x330] sm:$0xff]
      %v343 = vld [vmem:[%s210 + $0x338] sm:$0xf]
      %v344 = vld [vmem:[%s210 + $0x33c] sm:$0xff]
      %v345 = vld [vmem:[%s210 + $0x344] sm:$0xff]
      %v346 = vld [vmem:[%s210 + $0x34c] sm:$0xff]
      %v347 = vld [vmem:[%s210 + $0x354] sm:$0xff]
      %v348 = vld [vmem:[%s210 + $0x35c] sm:$0xf]
      %v349 = vld [vmem:[%s210 + $0x360] sm:$0xff]
      %v350 = vld [vmem:[%s210 + $0x368] sm:$0xff]
      %v351 = vld [vmem:[%s210 + $0x370] sm:$0xff]
      %v352 = vld [vmem:[%s210 + $0x378] sm:$0xff]
      %v353 = vld [vmem:[%s210 + $0x380] sm:$0xf]
      %v354 = vld [vmem:[%s210 + $0x384] sm:$0xff]
      %v355 = vld [vmem:[%s210 + $0x38c] sm:$0xff]
      %v356 = vld [vmem:[%s210 + $0x394] sm:$0xff]
      %v357 = vld [vmem:[%s210 + $0x39c] sm:$0xff]
      %v358 = vld [vmem:[%s210 + $0x3a4] sm:$0xf]
      %v359 = vld [vmem:[%s210 + $0x3a8] sm:$0xff]
      %v360 = vld [vmem:[%s210 + $0x3b0] sm:$0xff]
      %v361 = vld [vmem:[%s210 + $0x3b8] sm:$0xff]
      %v362 = vld [vmem:[%s210 + $0x3c0] sm:$0xff]
      %v363 = vld [vmem:[%s210 + $0x3c8] sm:$0xf]
      %v364 = vld [vmem:[%s210 + $0x3cc] sm:$0xff]
      %v365 = vld [vmem:[%s210 + $0x3d4] sm:$0xff]
      %v366 = vld [vmem:[%s210 + $0x3dc] sm:$0xff]
      %v367 = vld [vmem:[%s210 + $0x3e4] sm:$0xff]
      %v368 = vld [vmem:[%s210 + $0x3ec] sm:$0xf]
      %v369 = vld [vmem:[%s210 + $0x3f0] sm:$0xff]
      %v370 = vld [vmem:[%s210 + $0x3f8] sm:$0xff]
      %v371 = vld [vmem:[%s210 + $0x400] sm:$0xff]
      %v372 = vld [vmem:[%s210 + $0x408] sm:$0xff]
      %v373 = vld [vmem:[%s210 + $0x410] sm:$0xf]
      %v374 = vld [vmem:[%s210 + $0x414] sm:$0xff]
      %v375 = vld [vmem:[%s210 + $0x41c] sm:$0xff]
      %v376 = vld [vmem:[%s210 + $0x424] sm:$0xff]
      %v377 = vld [vmem:[%s210 + $0x42c] sm:$0xff]
      %v378 = vld [vmem:[%s210 + $0x434] sm:$0xf]
      %v379 = vld [vmem:[%s210 + $0x438] sm:$0xff]
      %v380 = vld [vmem:[%s210 + $0x440] sm:$0xff]
      %v381 = vld [vmem:[%s210 + $0x448] sm:$0xff]
      %v382 = vld [vmem:[%s210 + $0x450] sm:$0xff]
      %v383 = vld [vmem:[%s210 + $0x458] sm:$0xf]
      %v384 = vld [vmem:[%s210 + $0x45c] sm:$0xff]
      %v385 = vld [vmem:[%s210 + $0x464] sm:$0xff]
      %v386 = vld [vmem:[%s210 + $0x46c] sm:$0xff]
      %v387 = vld [vmem:[%s210 + $0x474] sm:$0xff]
      %v388 = vld [vmem:[%s210 + $0x47c] sm:$0xf]
      %v389 = vld [vmem:[%s215] sm:$0xf]
      %v390 = vld [vmem:[%s215 + $0x4] sm:$0xf]
      %v391 = vld [vmem:[%s215 + $0x8] sm:$0xf]
      %v392 = vld [vmem:[%s215 + $0xc] sm:$0xf]
      %v393 = vld [vmem:[%s215 + $0x10] sm:$0xf]
      %v394 = vld [vmem:[%s215 + $0x14] sm:$0xf]
      %v395 = vld [vmem:[%s215 + $0x18] sm:$0xf]
      %v396 = vld [vmem:[%s215 + $0x1c] sm:$0xf]
      %v397 = vld [vmem:[%s215 + $0x20] sm:$0xf]
      %v398 = vld [vmem:[%s215 + $0x24] sm:$0xf]
      %v399 = vld [vmem:[%s215 + $0x28] sm:$0xf]
      %v400 = vld [vmem:[%s215 + $0x2c] sm:$0xf]
      %v401 = vld [vmem:[%s215 + $0x30] sm:$0xf]
      %v402 = vld [vmem:[%s215 + $0x34] sm:$0xf]
      %v403 = vld [vmem:[%s215 + $0x38] sm:$0xf]
      %v404 = vld [vmem:[%s215 + $0x3c] sm:$0xf]
      %v405 = vld [vmem:[%s215 + $0x40] sm:$0xf]
      %v406 = vld [vmem:[%s215 + $0x44] sm:$0xf]
      %v407 = vld [vmem:[%s215 + $0x48] sm:$0xf]
      %v408 = vld [vmem:[%s215 + $0x4c] sm:$0xf]
      %v409 = vld [vmem:[%s215 + $0x50] sm:$0xf]
      %v410 = vld [vmem:[%s215 + $0x54] sm:$0xf]
      %v411 = vld [vmem:[%s215 + $0x58] sm:$0xf]
      %v412 = vld [vmem:[%s215 + $0x5c] sm:$0xf]
      %v413 = vld [vmem:[%s215 + $0x60] sm:$0xf]
      %v414 = vld [vmem:[%s215 + $0x64] sm:$0xf]
      %v415 = vld [vmem:[%s215 + $0x68] sm:$0xf]
      %v416 = vld [vmem:[%s215 + $0x6c] sm:$0xf]
      %v417 = vld [vmem:[%s215 + $0x70] sm:$0xf]
      %v418 = vld [vmem:[%s215 + $0x74] sm:$0xf]
      %v419 = vld [vmem:[%s215 + $0x78] sm:$0xf]
      %v420 = vld [vmem:[%s215 + $0x7c] sm:$0xf]
      %v421 = vld [vmem:[%s215 + $0x80] sm:$0xf]
      %v422 = vld [vmem:[%s215 + $0x84] sm:$0xf]
      %v423 = vld [vmem:[%s215 + $0x88] sm:$0xf]
      %v424 = vld [vmem:[%s215 + $0x8c] sm:$0xf]
      %v425 = vld [vmem:[%s215 + $0x90] sm:$0xf]
      %v426 = vld [vmem:[%s215 + $0x94] sm:$0xf]
      %v427 = vld [vmem:[%s215 + $0x98] sm:$0xf]
      %v428 = vld [vmem:[%s215 + $0x9c] sm:$0xf]
      %v429 = vld [vmem:[%s215 + $0xa0] sm:$0xf]
      %v430 = vld [vmem:[%s215 + $0xa4] sm:$0xf]
      %v431 = vld [vmem:[%s215 + $0xa8] sm:$0xf]
      %v432 = vld [vmem:[%s215 + $0xac] sm:$0xf]
      %v433 = vld [vmem:[%s215 + $0xb0] sm:$0xf]
      %v434 = vld [vmem:[%s215 + $0xb4] sm:$0xf]
      %v435 = vld [vmem:[%s215 + $0xb8] sm:$0xf]
      %v436 = vld [vmem:[%s215 + $0xbc] sm:$0xf]
      %v437 = vld [vmem:[%s215 + $0xc0] sm:$0xf]
      %v438 = vld [vmem:[%s215 + $0xc4] sm:$0xf]
      %v439 = vld [vmem:[%s215 + $0xc8] sm:$0xf]
      %v440 = vld [vmem:[%s215 + $0xcc] sm:$0xf]
      %v441 = vld [vmem:[%s215 + $0xd0] sm:$0xf]
      %v442 = vld [vmem:[%s215 + $0xd4] sm:$0xf]
      %v443 = vld [vmem:[%s215 + $0xd8] sm:$0xf]
      %v444 = vld [vmem:[%s215 + $0xdc] sm:$0xf]
      %v445 = vld [vmem:[%s215 + $0xe0] sm:$0xf]
      %v446 = vld [vmem:[%s215 + $0xe4] sm:$0xf]
      %v447 = vld [vmem:[%s215 + $0xe8] sm:$0xf]
      %v448 = vld [vmem:[%s215 + $0xec] sm:$0xf]
      %v449 = vld [vmem:[%s215 + $0xf0] sm:$0xf]
      %v450 = vld [vmem:[%s215 + $0xf4] sm:$0xf]
      %v451 = vld [vmem:[%s215 + $0xf8] sm:$0xf]
      %v452 = vld [vmem:[%s215 + $0xfc] sm:$0xf]
      %v453 = vld [vmem:[%s215 + $0x100] sm:$0xf]
      %v454 = vld [vmem:[%s215 + $0x104] sm:$0xf]
      %v455 = vld [vmem:[%s215 + $0x108] sm:$0xf]
      %v456 = vld [vmem:[%s215 + $0x10c] sm:$0xf]
      %v457 = vld [vmem:[%s215 + $0x110] sm:$0xf]
      %v458 = vld [vmem:[%s215 + $0x114] sm:$0xf]
      %v459 = vld [vmem:[%s215 + $0x118] sm:$0xf]
      %v460 = vld [vmem:[%s215 + $0x11c] sm:$0xf]
      %v461 = vld [vmem:[%s215 + $0x120] sm:$0xf]
      %v462 = vld [vmem:[%s215 + $0x124] sm:$0xf]
      %v463 = vld [vmem:[%s215 + $0x128] sm:$0xf]
      %v464 = vld [vmem:[%s215 + $0x12c] sm:$0xf]
      %v465 = vld [vmem:[%s215 + $0x130] sm:$0xf]
      %v466 = vld [vmem:[%s215 + $0x134] sm:$0xf]
      %v467 = vld [vmem:[%s215 + $0x138] sm:$0xf]
      %v468 = vld [vmem:[%s215 + $0x13c] sm:$0xf]
      %v469 = vld [vmem:[%s215 + $0x140] sm:$0xf]
      %v470 = vld [vmem:[%s215 + $0x144] sm:$0xf]
      %v471 = vld [vmem:[%s215 + $0x148] sm:$0xf]
      %v472 = vld [vmem:[%s215 + $0x14c] sm:$0xf]
      %v473 = vld [vmem:[%s215 + $0x150] sm:$0xf]
      %v474 = vld [vmem:[%s215 + $0x154] sm:$0xf]
      %v475 = vld [vmem:[%s215 + $0x158] sm:$0xf]
      %v476 = vld [vmem:[%s215 + $0x15c] sm:$0xf]
      %v477 = vld [vmem:[%s215 + $0x160] sm:$0xf]
      %v478 = vld [vmem:[%s215 + $0x164] sm:$0xf]
      %v479 = vld [vmem:[%s215 + $0x168] sm:$0xf]
      %v480 = vld [vmem:[%s215 + $0x16c] sm:$0xf]
      %v481 = vld [vmem:[%s215 + $0x170] sm:$0xf]
      %v482 = vld [vmem:[%s215 + $0x174] sm:$0xf]
      %v483 = vld [vmem:[%s215 + $0x178] sm:$0xf]
      %v484 = vld [vmem:[%s215 + $0x17c] sm:$0xf]
      %v485 = vld [vmem:[%s215 + $0x180] sm:$0xf]
      %v486 = vld [vmem:[%s215 + $0x184] sm:$0xf]
      %v487 = vld [vmem:[%s215 + $0x188] sm:$0xf]
      %v488 = vld [vmem:[%s215 + $0x18c] sm:$0xf]
      %v489 = vld [vmem:[%s215 + $0x190] sm:$0xf]
      %v490 = vld [vmem:[%s215 + $0x194] sm:$0xf]
      %v491 = vld [vmem:[%s215 + $0x198] sm:$0xf]
      %v492 = vld [vmem:[%s215 + $0x19c] sm:$0xf]
      %v493 = vld [vmem:[%s215 + $0x1a0] sm:$0xf]
      %v494 = vld [vmem:[%s215 + $0x1a4] sm:$0xf]
      %v495 = vld [vmem:[%s215 + $0x1a8] sm:$0xf]
      %v496 = vld [vmem:[%s215 + $0x1ac] sm:$0xf]
      %v497 = vld [vmem:[%s215 + $0x1b0] sm:$0xf]
      %v498 = vld [vmem:[%s215 + $0x1b4] sm:$0xf]
      %v499 = vld [vmem:[%s215 + $0x1b8] sm:$0xf]
      %v500 = vld [vmem:[%s215 + $0x1bc] sm:$0xf]
      %v501 = vld [vmem:[%s215 + $0x1c0] sm:$0xf]
      %v502 = vld [vmem:[%s215 + $0x1c4] sm:$0xf]
      %v503 = vld [vmem:[%s215 + $0x1c8] sm:$0xf]
      %v504 = vld [vmem:[%s215 + $0x1cc] sm:$0xf]
      %v505 = vld [vmem:[%s215 + $0x1d0] sm:$0xf]
      %v506 = vld [vmem:[%s215 + $0x1d4] sm:$0xf]
      %v507 = vld [vmem:[%s215 + $0x1d8] sm:$0xf]
      %v508 = vld [vmem:[%s215 + $0x1dc] sm:$0xf]
      %v509 = vld [vmem:[%s215 + $0x1e0] sm:$0xf]
      %v510 = vld [vmem:[%s215 + $0x1e4] sm:$0xf]
      %v511 = vld [vmem:[%s215 + $0x1e8] sm:$0xf]
      %v512 = vld [vmem:[%s215 + $0x1ec] sm:$0xf]
      %v513 = vld [vmem:[%s215 + $0x1f0] sm:$0xf]
      %v514 = vld [vmem:[%s215 + $0x1f4] sm:$0xf]
      %v515 = vld [vmem:[%s215 + $0x1f8] sm:$0xf]
      %v516 = vld [vmem:[%s215 + $0x1fc] sm:$0xf]
      %v517 = vld [vmem:[%s215 + $0x200] sm:$0xf]
      %v518 = vld [vmem:[%s215 + $0x204] sm:$0xf]
      %v519 = vld [vmem:[%s215 + $0x208] sm:$0xf]
      %v520 = vld [vmem:[%s215 + $0x20c] sm:$0xf]
      %v521 = vld [vmem:[%s215 + $0x210] sm:$0xf]
      %v522 = vld [vmem:[%s215 + $0x214] sm:$0xf]
      %v523 = vld [vmem:[%s215 + $0x218] sm:$0xf]
      %v524 = vld [vmem:[%s215 + $0x21c] sm:$0xf]
      %v525 = vld [vmem:[%s215 + $0x220] sm:$0xf]
      %v526 = vld [vmem:[%s215 + $0x224] sm:$0xf]
      %v527 = vld [vmem:[%s215 + $0x228] sm:$0xf]
      %v528 = vld [vmem:[%s215 + $0x22c] sm:$0xf]
      %v529 = vld [vmem:[%s215 + $0x230] sm:$0xf]
      %v530 = vld [vmem:[%s215 + $0x234] sm:$0xf]
      %v531 = vld [vmem:[%s215 + $0x238] sm:$0xf]
      %v532 = vld [vmem:[%s215 + $0x23c] sm:$0xf]
      %v533 = vld [vmem:[%s218] sm:$0x1]
      %v535 = vlaneseq
      %v536 = vshrl.u32 %v535, 7
      %v537 = vsub.s32 0, %v536
      %v538 = vrot.slane %v533, %v537
      %v700 = vunpack.c.l.b16 %v229
      %v701 = vunpack.c.h.b16 %v229
      %v702 = vunpack.c.l.b16 %v230
      %v703 = vunpack.c.h.b16 %v230
      %v704 = vunpack.c.l.b16 %v231
      %v705 = vunpack.c.h.b16 %v231
      %v706 = vunpack.c.l.b16 %v232
      %v707 = vunpack.c.h.b16 %v232
      %v708 = vunpack.c.l.b16 %v233
      %v709 = vunpack.c.l.b16 %v234
      %v710 = vunpack.c.h.b16 %v234
      %v711 = vunpack.c.l.b16 %v235
      %v712 = vunpack.c.h.b16 %v235
      %v713 = vunpack.c.l.b16 %v236
      %v714 = vunpack.c.h.b16 %v236
      %v715 = vunpack.c.l.b16 %v237
      %v716 = vunpack.c.h.b16 %v237
      %v717 = vunpack.c.l.b16 %v238
      %v718 = vunpack.c.l.b16 %v239
      %v719 = vunpack.c.h.b16 %v239
      %v720 = vunpack.c.l.b16 %v240
      %v721 = vunpack.c.h.b16 %v240
      %v722 = vunpack.c.l.b16 %v241
      %v723 = vunpack.c.h.b16 %v241
      %v724 = vunpack.c.l.b16 %v242
      %v725 = vunpack.c.h.b16 %v242
      %v726 = vunpack.c.l.b16 %v243
      %v727 = vunpack.c.l.b16 %v244
      %v728 = vunpack.c.h.b16 %v244
      %v729 = vunpack.c.l.b16 %v245
      %v730 = vunpack.c.h.b16 %v245
      %v731 = vunpack.c.l.b16 %v246
      %v732 = vunpack.c.h.b16 %v246
      %v733 = vunpack.c.l.b16 %v247
      %v734 = vunpack.c.h.b16 %v247
      %v735 = vunpack.c.l.b16 %v248
      %v736 = vunpack.c.l.b16 %v249
      %v737 = vunpack.c.h.b16 %v249
      %v738 = vunpack.c.l.b16 %v250
      %v739 = vunpack.c.h.b16 %v250
      %v740 = vunpack.c.l.b16 %v251
      %v741 = vunpack.c.h.b16 %v251
      %v742 = vunpack.c.l.b16 %v252
      %v743 = vunpack.c.h.b16 %v252
      %v744 = vunpack.c.l.b16 %v253
      %v745 = vunpack.c.l.b16 %v254
      %v746 = vunpack.c.h.b16 %v254
      %v747 = vunpack.c.l.b16 %v255
      %v748 = vunpack.c.h.b16 %v255
      %v749 = vunpack.c.l.b16 %v256
      %v750 = vunpack.c.h.b16 %v256
      %v751 = vunpack.c.l.b16 %v257
      %v752 = vunpack.c.h.b16 %v257
      %v753 = vunpack.c.l.b16 %v258
      %v754 = vunpack.c.l.b16 %v259
      %v755 = vunpack.c.h.b16 %v259
      %v756 = vunpack.c.l.b16 %v260
      %v757 = vunpack.c.h.b16 %v260
      %v758 = vunpack.c.l.b16 %v261
      %v759 = vunpack.c.h.b16 %v261
      %v760 = vunpack.c.l.b16 %v262
      %v761 = vunpack.c.h.b16 %v262
      %v762 = vunpack.c.l.b16 %v263
      %v763 = vunpack.c.l.b16 %v264
      %v764 = vunpack.c.h.b16 %v264
      %v765 = vunpack.c.l.b16 %v265
      %v766 = vunpack.c.h.b16 %v265
      %v767 = vunpack.c.l.b16 %v266
      %v768 = vunpack.c.h.b16 %v266
      %v769 = vunpack.c.l.b16 %v267
      %v770 = vunpack.c.h.b16 %v267
      %v771 = vunpack.c.l.b16 %v268
      %v772 = vunpack.c.l.b16 %v269
      %v773 = vunpack.c.h.b16 %v269
      %v774 = vunpack.c.l.b16 %v270
      %v775 = vunpack.c.h.b16 %v270
      %v776 = vunpack.c.l.b16 %v271
      %v777 = vunpack.c.h.b16 %v271
      %v778 = vunpack.c.l.b16 %v272
      %v779 = vunpack.c.h.b16 %v272
      %v780 = vunpack.c.l.b16 %v273
      %v781 = vunpack.c.l.b16 %v274
      %v782 = vunpack.c.h.b16 %v274
      %v783 = vunpack.c.l.b16 %v275
      %v784 = vunpack.c.h.b16 %v275
      %v785 = vunpack.c.l.b16 %v276
      %v786 = vunpack.c.h.b16 %v276
      %v787 = vunpack.c.l.b16 %v277
      %v788 = vunpack.c.h.b16 %v277
      %v789 = vunpack.c.l.b16 %v278
      %v790 = vunpack.c.l.b16 %v279
      %v791 = vunpack.c.h.b16 %v279
      %v792 = vunpack.c.l.b16 %v280
      %v793 = vunpack.c.h.b16 %v280
      %v794 = vunpack.c.l.b16 %v281
      %v795 = vunpack.c.h.b16 %v281
      %v796 = vunpack.c.l.b16 %v282
      %v797 = vunpack.c.h.b16 %v282
      %v798 = vunpack.c.l.b16 %v283
      %v799 = vunpack.c.l.b16 %v284
      %v800 = vunpack.c.h.b16 %v284
      %v801 = vunpack.c.l.b16 %v285
      %v802 = vunpack.c.h.b16 %v285
      %v803 = vunpack.c.l.b16 %v286
      %v804 = vunpack.c.h.b16 %v286
      %v805 = vunpack.c.l.b16 %v287
      %v806 = vunpack.c.h.b16 %v287
      %v807 = vunpack.c.l.b16 %v288
      %v808 = vunpack.c.l.b16 %v289
      %v809 = vunpack.c.h.b16 %v289
      %v810 = vunpack.c.l.b16 %v290
      %v811 = vunpack.c.h.b16 %v290
      %v812 = vunpack.c.l.b16 %v291
      %v813 = vunpack.c.h.b16 %v291
      %v814 = vunpack.c.l.b16 %v292
      %v815 = vunpack.c.h.b16 %v292
      %v816 = vunpack.c.l.b16 %v293
      %v817 = vunpack.c.l.b16 %v294
      %v818 = vunpack.c.h.b16 %v294
      %v819 = vunpack.c.l.b16 %v295
      %v820 = vunpack.c.h.b16 %v295
      %v821 = vunpack.c.l.b16 %v296
      %v822 = vunpack.c.h.b16 %v296
      %v823 = vunpack.c.l.b16 %v297
      %v824 = vunpack.c.h.b16 %v297
      %v825 = vunpack.c.l.b16 %v298
      %v826 = vunpack.c.l.b16 %v299
      %v827 = vunpack.c.h.b16 %v299
      %v828 = vunpack.c.l.b16 %v300
      %v829 = vunpack.c.h.b16 %v300
      %v830 = vunpack.c.l.b16 %v301
      %v831 = vunpack.c.h.b16 %v301
      %v832 = vunpack.c.l.b16 %v302
      %v833 = vunpack.c.h.b16 %v302
      %v834 = vunpack.c.l.b16 %v303
      %v835 = vunpack.c.l.b16 %v304
      %v836 = vunpack.c.h.b16 %v304
      %v837 = vunpack.c.l.b16 %v305
      %v838 = vunpack.c.h.b16 %v305
      %v839 = vunpack.c.l.b16 %v306
      %v840 = vunpack.c.h.b16 %v306
      %v841 = vunpack.c.l.b16 %v307
      %v842 = vunpack.c.h.b16 %v307
      %v843 = vunpack.c.l.b16 %v308
      %v844 = vunpack.c.l.b16 %v309
      %v845 = vunpack.c.h.b16 %v309
      %v846 = vunpack.c.l.b16 %v310
      %v847 = vunpack.c.h.b16 %v310
      %v848 = vunpack.c.l.b16 %v311
      %v849 = vunpack.c.h.b16 %v311
      %v850 = vunpack.c.l.b16 %v312
      %v851 = vunpack.c.h.b16 %v312
      %v852 = vunpack.c.l.b16 %v313
      %v853 = vunpack.c.l.b16 %v314
      %v854 = vunpack.c.h.b16 %v314
      %v855 = vunpack.c.l.b16 %v315
      %v856 = vunpack.c.h.b16 %v315
      %v857 = vunpack.c.l.b16 %v316
      %v858 = vunpack.c.h.b16 %v316
      %v859 = vunpack.c.l.b16 %v317
      %v860 = vunpack.c.h.b16 %v317
      %v861 = vunpack.c.l.b16 %v318
      %v862 = vunpack.c.l.b16 %v319
      %v863 = vunpack.c.h.b16 %v319
      %v864 = vunpack.c.l.b16 %v320
      %v865 = vunpack.c.h.b16 %v320
      %v866 = vunpack.c.l.b16 %v321
      %v867 = vunpack.c.h.b16 %v321
      %v868 = vunpack.c.l.b16 %v322
      %v869 = vunpack.c.h.b16 %v322
      %v870 = vunpack.c.l.b16 %v323
      %v871 = vunpack.c.l.b16 %v324
      %v872 = vunpack.c.h.b16 %v324
      %v873 = vunpack.c.l.b16 %v325
      %v874 = vunpack.c.h.b16 %v325
      %v875 = vunpack.c.l.b16 %v326
      %v876 = vunpack.c.h.b16 %v326
      %v877 = vunpack.c.l.b16 %v327
      %v878 = vunpack.c.h.b16 %v327
      %v879 = vunpack.c.l.b16 %v328
      %v880 = vunpack.c.l.b16 %v329
      %v881 = vunpack.c.h.b16 %v329
      %v882 = vunpack.c.l.b16 %v330
      %v883 = vunpack.c.h.b16 %v330
      %v884 = vunpack.c.l.b16 %v331
      %v885 = vunpack.c.h.b16 %v331
      %v886 = vunpack.c.l.b16 %v332
      %v887 = vunpack.c.h.b16 %v332
      %v888 = vunpack.c.l.b16 %v333
      %v889 = vunpack.c.l.b16 %v334
      %v890 = vunpack.c.h.b16 %v334
      %v891 = vunpack.c.l.b16 %v335
      %v892 = vunpack.c.h.b16 %v335
      %v893 = vunpack.c.l.b16 %v336
      %v894 = vunpack.c.h.b16 %v336
      %v895 = vunpack.c.l.b16 %v337
      %v896 = vunpack.c.h.b16 %v337
      %v897 = vunpack.c.l.b16 %v338
      %v898 = vunpack.c.l.b16 %v339
      %v899 = vunpack.c.h.b16 %v339
      %v900 = vunpack.c.l.b16 %v340
      %v901 = vunpack.c.h.b16 %v340
      %v902 = vunpack.c.l.b16 %v341
      %v903 = vunpack.c.h.b16 %v341
      %v904 = vunpack.c.l.b16 %v342
      %v905 = vunpack.c.h.b16 %v342
      %v906 = vunpack.c.l.b16 %v343
      %v907 = vunpack.c.l.b16 %v344
      %v908 = vunpack.c.h.b16 %v344
      %v909 = vunpack.c.l.b16 %v345
      %v910 = vunpack.c.h.b16 %v345
      %v911 = vunpack.c.l.b16 %v346
      %v912 = vunpack.c.h.b16 %v346
      %v913 = vunpack.c.l.b16 %v347
      %v914 = vunpack.c.h.b16 %v347
      %v915 = vunpack.c.l.b16 %v348
      %v916 = vunpack.c.l.b16 %v349
      %v917 = vunpack.c.h.b16 %v349
      %v918 = vunpack.c.l.b16 %v350
      %v919 = vunpack.c.h.b16 %v350
      %v920 = vunpack.c.l.b16 %v351
      %v921 = vunpack.c.h.b16 %v351
      %v922 = vunpack.c.l.b16 %v352
      %v923 = vunpack.c.h.b16 %v352
      %v924 = vunpack.c.l.b16 %v353
      %v925 = vunpack.c.l.b16 %v354
      %v926 = vunpack.c.h.b16 %v354
      %v927 = vunpack.c.l.b16 %v355
      %v928 = vunpack.c.h.b16 %v355
      %v929 = vunpack.c.l.b16 %v356
      %v930 = vunpack.c.h.b16 %v356
      %v931 = vunpack.c.l.b16 %v357
      %v932 = vunpack.c.h.b16 %v357
      %v933 = vunpack.c.l.b16 %v358
      %v934 = vunpack.c.l.b16 %v359
      %v935 = vunpack.c.h.b16 %v359
      %v936 = vunpack.c.l.b16 %v360
      %v937 = vunpack.c.h.b16 %v360
      %v938 = vunpack.c.l.b16 %v361
      %v939 = vunpack.c.h.b16 %v361
      %v940 = vunpack.c.l.b16 %v362
      %v941 = vunpack.c.h.b16 %v362
      %v942 = vunpack.c.l.b16 %v363
      %v943 = vunpack.c.l.b16 %v364
      %v944 = vunpack.c.h.b16 %v364
      %v945 = vunpack.c.l.b16 %v365
      %v946 = vunpack.c.h.b16 %v365
      %v947 = vunpack.c.l.b16 %v366
      %v948 = vunpack.c.h.b16 %v366
      %v949 = vunpack.c.l.b16 %v367
      %v950 = vunpack.c.h.b16 %v367
      %v951 = vunpack.c.l.b16 %v368
      %v952 = vunpack.c.l.b16 %v369
      %v953 = vunpack.c.h.b16 %v369
      %v954 = vunpack.c.l.b16 %v370
      %v955 = vunpack.c.h.b16 %v370
      %v956 = vunpack.c.l.b16 %v371
      %v957 = vunpack.c.h.b16 %v371
      %v958 = vunpack.c.l.b16 %v372
      %v959 = vunpack.c.h.b16 %v372
      %v960 = vunpack.c.l.b16 %v373
      %v961 = vunpack.c.l.b16 %v374
      %v962 = vunpack.c.h.b16 %v374
      %v963 = vunpack.c.l.b16 %v375
      %v964 = vunpack.c.h.b16 %v375
      %v965 = vunpack.c.l.b16 %v376
      %v966 = vunpack.c.h.b16 %v376
      %v967 = vunpack.c.l.b16 %v377
      %v968 = vunpack.c.h.b16 %v377
      %v969 = vunpack.c.l.b16 %v378
      %v970 = vunpack.c.l.b16 %v379
      %v971 = vunpack.c.h.b16 %v379
      %v972 = vunpack.c.l.b16 %v380
      %v973 = vunpack.c.h.b16 %v380
      %v974 = vunpack.c.l.b16 %v381
      %v975 = vunpack.c.h.b16 %v381
      %v976 = vunpack.c.l.b16 %v382
      %v977 = vunpack.c.h.b16 %v382
      %v978 = vunpack.c.l.b16 %v383
      %v979 = vunpack.c.l.b16 %v384
      %v980 = vunpack.c.h.b16 %v384
      %v981 = vunpack.c.l.b16 %v385
      %v982 = vunpack.c.h.b16 %v385
      %v983 = vunpack.c.l.b16 %v386
      %v984 = vunpack.c.h.b16 %v386
      %v985 = vunpack.c.l.b16 %v387
      %v986 = vunpack.c.h.b16 %v387
      %v987 = vunpack.c.l.b16 %v388
      %v988 = vpack.c.b16 %v709, %v700
      %v989 = vpack.c.b16 %v710, %v701
      %v990 = vpack.c.b16 %v711, %v702
      %v991 = vpack.c.b16 %v712, %v703
      %v992 = vpack.c.b16 %v713, %v704
      %v993 = vpack.c.b16 %v714, %v705
      %v994 = vpack.c.b16 %v715, %v706
      %v995 = vpack.c.b16 %v716, %v707
      %v996 = vpack.c.b16 %v717, %v708
      %v997 = vpack.c.b16 %v727, %v718
      %v998 = vpack.c.b16 %v728, %v719
      %v999 = vpack.c.b16 %v729, %v720
      %v1000 = vpack.c.b16 %v730, %v721
      %v1001 = vpack.c.b16 %v731, %v722
      %v1002 = vpack.c.b16 %v732, %v723
      %v1003 = vpack.c.b16 %v733, %v724
      %v1004 = vpack.c.b16 %v734, %v725
      %v1005 = vpack.c.b16 %v735, %v726
      %v1006 = vpack.c.b16 %v745, %v736
      %v1007 = vpack.c.b16 %v746, %v737
      %v1008 = vpack.c.b16 %v747, %v738
      %v1009 = vpack.c.b16 %v748, %v739
      %v1010 = vpack.c.b16 %v749, %v740
      %v1011 = vpack.c.b16 %v750, %v741
      %v1012 = vpack.c.b16 %v751, %v742
      %v1013 = vpack.c.b16 %v752, %v743
      %v1014 = vpack.c.b16 %v753, %v744
      %v1015 = vpack.c.b16 %v763, %v754
      %v1016 = vpack.c.b16 %v764, %v755
      %v1017 = vpack.c.b16 %v765, %v756
      %v1018 = vpack.c.b16 %v766, %v757
      %v1019 = vpack.c.b16 %v767, %v758
      %v1020 = vpack.c.b16 %v768, %v759
      %v1021 = vpack.c.b16 %v769, %v760
      %v1022 = vpack.c.b16 %v770, %v761
      %v1023 = vpack.c.b16 %v771, %v762
      %v1024 = vpack.c.b16 %v781, %v772
      %v1025 = vpack.c.b16 %v782, %v773
      %v1026 = vpack.c.b16 %v783, %v774
      %v1027 = vpack.c.b16 %v784, %v775
      %v1028 = vpack.c.b16 %v785, %v776
      %v1029 = vpack.c.b16 %v786, %v777
      %v1030 = vpack.c.b16 %v787, %v778
      %v1031 = vpack.c.b16 %v788, %v779
      %v1032 = vpack.c.b16 %v789, %v780
      %v1033 = vpack.c.b16 %v799, %v790
      %v1034 = vpack.c.b16 %v800, %v791
      %v1035 = vpack.c.b16 %v801, %v792
      %v1036 = vpack.c.b16 %v802, %v793
      %v1037 = vpack.c.b16 %v803, %v794
      %v1038 = vpack.c.b16 %v804, %v795
      %v1039 = vpack.c.b16 %v805, %v796
      %v1040 = vpack.c.b16 %v806, %v797
      %v1041 = vpack.c.b16 %v807, %v798
      %v1042 = vpack.c.b16 %v817, %v808
      %v1043 = vpack.c.b16 %v818, %v809
      %v1044 = vpack.c.b16 %v819, %v810
      %v1045 = vpack.c.b16 %v820, %v811
      %v1046 = vpack.c.b16 %v821, %v812
      %v1047 = vpack.c.b16 %v822, %v813
      %v1048 = vpack.c.b16 %v823, %v814
      %v1049 = vpack.c.b16 %v824, %v815
      %v1050 = vpack.c.b16 %v825, %v816
      %v1051 = vpack.c.b16 %v835, %v826
      %v1052 = vpack.c.b16 %v836, %v827
      %v1053 = vpack.c.b16 %v837, %v828
      %v1054 = vpack.c.b16 %v838, %v829
      %v1055 = vpack.c.b16 %v839, %v830
      %v1056 = vpack.c.b16 %v840, %v831
      %v1057 = vpack.c.b16 %v841, %v832
      %v1058 = vpack.c.b16 %v842, %v833
      %v1059 = vpack.c.b16 %v843, %v834
      %v1060 = vpack.c.b16 %v853, %v844
      %v1061 = vpack.c.b16 %v854, %v845
      %v1062 = vpack.c.b16 %v855, %v846
      %v1063 = vpack.c.b16 %v856, %v847
      %v1064 = vpack.c.b16 %v857, %v848
      %v1065 = vpack.c.b16 %v858, %v849
      %v1066 = vpack.c.b16 %v859, %v850
      %v1067 = vpack.c.b16 %v860, %v851
      %v1068 = vpack.c.b16 %v861, %v852
      %v1069 = vpack.c.b16 %v871, %v862
      %v1070 = vpack.c.b16 %v872, %v863
      %v1071 = vpack.c.b16 %v873, %v864
      %v1072 = vpack.c.b16 %v874, %v865
      %v1073 = vpack.c.b16 %v875, %v866
      %v1074 = vpack.c.b16 %v876, %v867
      %v1075 = vpack.c.b16 %v877, %v868
      %v1076 = vpack.c.b16 %v878, %v869
      %v1077 = vpack.c.b16 %v879, %v870
      %v1078 = vpack.c.b16 %v889, %v880
      %v1079 = vpack.c.b16 %v890, %v881
      %v1080 = vpack.c.b16 %v891, %v882
      %v1081 = vpack.c.b16 %v892, %v883
      %v1082 = vpack.c.b16 %v893, %v884
      %v1083 = vpack.c.b16 %v894, %v885
      %v1084 = vpack.c.b16 %v895, %v886
      %v1085 = vpack.c.b16 %v896, %v887
      %v1086 = vpack.c.b16 %v897, %v888
      %v1087 = vpack.c.b16 %v907, %v898
      %v1088 = vpack.c.b16 %v908, %v899
      %v1089 = vpack.c.b16 %v909, %v900
      %v1090 = vpack.c.b16 %v910, %v901
      %v1091 = vpack.c.b16 %v911, %v902
      %v1092 = vpack.c.b16 %v912, %v903
      %v1093 = vpack.c.b16 %v913, %v904
      %v1094 = vpack.c.b16 %v914, %v905
      %v1095 = vpack.c.b16 %v915, %v906
      %v1096 = vpack.c.b16 %v925, %v916
      %v1097 = vpack.c.b16 %v926, %v917
      %v1098 = vpack.c.b16 %v927, %v918
      %v1099 = vpack.c.b16 %v928, %v919
      %v1100 = vpack.c.b16 %v929, %v920
      %v1101 = vpack.c.b16 %v930, %v921
      %v1102 = vpack.c.b16 %v931, %v922
      %v1103 = vpack.c.b16 %v932, %v923
      %v1104 = vpack.c.b16 %v933, %v924
      %v1105 = vpack.c.b16 %v943, %v934
      %v1106 = vpack.c.b16 %v944, %v935
      %v1107 = vpack.c.b16 %v945, %v936
      %v1108 = vpack.c.b16 %v946, %v937
      %v1109 = vpack.c.b16 %v947, %v938
      %v1110 = vpack.c.b16 %v948, %v939
      %v1111 = vpack.c.b16 %v949, %v940
      %v1112 = vpack.c.b16 %v950, %v941
      %v1113 = vpack.c.b16 %v951, %v942
      %v1114 = vpack.c.b16 %v961, %v952
      %v1115 = vpack.c.b16 %v962, %v953
      %v1116 = vpack.c.b16 %v963, %v954
      %v1117 = vpack.c.b16 %v964, %v955
      %v1118 = vpack.c.b16 %v965, %v956
      %v1119 = vpack.c.b16 %v966, %v957
      %v1120 = vpack.c.b16 %v967, %v958
      %v1121 = vpack.c.b16 %v968, %v959
      %v1122 = vpack.c.b16 %v969, %v960
      %v1123 = vpack.c.b16 %v979, %v970
      %v1124 = vpack.c.b16 %v980, %v971
      %v1125 = vpack.c.b16 %v981, %v972
      %v1126 = vpack.c.b16 %v982, %v973
      %v1127 = vpack.c.b16 %v983, %v974
      %v1128 = vpack.c.b16 %v984, %v975
      %v1129 = vpack.c.b16 %v985, %v976
      %v1130 = vpack.c.b16 %v986, %v977
      %v1131 = vpack.c.b16 %v987, %v978
      %v1420 = vunpack.c.l.b16 %v389
      %v1421 = vunpack.c.l.b16 %v390
      %v1422 = vunpack.c.l.b16 %v391
      %v1423 = vunpack.c.l.b16 %v392
      %v1424 = vunpack.c.l.b16 %v393
      %v1425 = vunpack.c.l.b16 %v394
      %v1426 = vunpack.c.l.b16 %v395
      %v1427 = vunpack.c.l.b16 %v396
      %v1428 = vunpack.c.l.b16 %v397
      %v1429 = vunpack.c.l.b16 %v398
      %v1430 = vunpack.c.l.b16 %v399
      %v1431 = vunpack.c.l.b16 %v400
      %v1432 = vunpack.c.l.b16 %v401
      %v1433 = vunpack.c.l.b16 %v402
      %v1434 = vunpack.c.l.b16 %v403
      %v1435 = vunpack.c.l.b16 %v404
      %v1436 = vunpack.c.l.b16 %v405
      %v1437 = vunpack.c.l.b16 %v406
      %v1438 = vunpack.c.l.b16 %v407
      %v1439 = vunpack.c.l.b16 %v408
      %v1440 = vunpack.c.l.b16 %v409
      %v1441 = vunpack.c.l.b16 %v410
      %v1442 = vunpack.c.l.b16 %v411
      %v1443 = vunpack.c.l.b16 %v412
      %v1444 = vunpack.c.l.b16 %v413
      %v1445 = vunpack.c.l.b16 %v414
      %v1446 = vunpack.c.l.b16 %v415
      %v1447 = vunpack.c.l.b16 %v416
      %v1448 = vunpack.c.l.b16 %v417
      %v1449 = vunpack.c.l.b16 %v418
      %v1450 = vunpack.c.l.b16 %v419
      %v1451 = vunpack.c.l.b16 %v420
      %v1452 = vunpack.c.l.b16 %v421
      %v1453 = vunpack.c.l.b16 %v422
      %v1454 = vunpack.c.l.b16 %v423
      %v1455 = vunpack.c.l.b16 %v424
      %v1456 = vunpack.c.l.b16 %v425
      %v1457 = vunpack.c.l.b16 %v426
      %v1458 = vunpack.c.l.b16 %v427
      %v1459 = vunpack.c.l.b16 %v428
      %v1460 = vunpack.c.l.b16 %v429
      %v1461 = vunpack.c.l.b16 %v430
      %v1462 = vunpack.c.l.b16 %v431
      %v1463 = vunpack.c.l.b16 %v432
      %v1464 = vunpack.c.l.b16 %v433
      %v1465 = vunpack.c.l.b16 %v434
      %v1466 = vunpack.c.l.b16 %v435
      %v1467 = vunpack.c.l.b16 %v436
      %v1468 = vunpack.c.l.b16 %v437
      %v1469 = vunpack.c.l.b16 %v438
      %v1470 = vunpack.c.l.b16 %v439
      %v1471 = vunpack.c.l.b16 %v440
      %v1472 = vunpack.c.l.b16 %v441
      %v1473 = vunpack.c.l.b16 %v442
      %v1474 = vunpack.c.l.b16 %v443
      %v1475 = vunpack.c.l.b16 %v444
      %v1476 = vunpack.c.l.b16 %v445
      %v1477 = vunpack.c.l.b16 %v446
      %v1478 = vunpack.c.l.b16 %v447
      %v1479 = vunpack.c.l.b16 %v448
      %v1480 = vunpack.c.l.b16 %v449
      %v1481 = vunpack.c.l.b16 %v450
      %v1482 = vunpack.c.l.b16 %v451
      %v1483 = vunpack.c.l.b16 %v452
      %v1484 = vunpack.c.l.b16 %v453
      %v1485 = vunpack.c.l.b16 %v454
      %v1486 = vunpack.c.l.b16 %v455
      %v1487 = vunpack.c.l.b16 %v456
      %v1488 = vunpack.c.l.b16 %v457
      %v1489 = vunpack.c.l.b16 %v458
      %v1490 = vunpack.c.l.b16 %v459
      %v1491 = vunpack.c.l.b16 %v460
      %v1492 = vunpack.c.l.b16 %v461
      %v1493 = vunpack.c.l.b16 %v462
      %v1494 = vunpack.c.l.b16 %v463
      %v1495 = vunpack.c.l.b16 %v464
      %v1496 = vunpack.c.l.b16 %v465
      %v1497 = vunpack.c.l.b16 %v466
      %v1498 = vunpack.c.l.b16 %v467
      %v1499 = vunpack.c.l.b16 %v468
      %v1500 = vunpack.c.l.b16 %v469
      %v1501 = vunpack.c.l.b16 %v470
      %v1502 = vunpack.c.l.b16 %v471
      %v1503 = vunpack.c.l.b16 %v472
      %v1504 = vunpack.c.l.b16 %v473
      %v1505 = vunpack.c.l.b16 %v474
      %v1506 = vunpack.c.l.b16 %v475
      %v1507 = vunpack.c.l.b16 %v476
      %v1508 = vunpack.c.l.b16 %v477
      %v1509 = vunpack.c.l.b16 %v478
      %v1510 = vunpack.c.l.b16 %v479
      %v1511 = vunpack.c.l.b16 %v480
      %v1512 = vunpack.c.l.b16 %v481
      %v1513 = vunpack.c.l.b16 %v482
      %v1514 = vunpack.c.l.b16 %v483
      %v1515 = vunpack.c.l.b16 %v484
      %v1516 = vunpack.c.l.b16 %v485
      %v1517 = vunpack.c.l.b16 %v486
      %v1518 = vunpack.c.l.b16 %v487
      %v1519 = vunpack.c.l.b16 %v488
      %v1520 = vunpack.c.l.b16 %v489
      %v1521 = vunpack.c.l.b16 %v490
      %v1522 = vunpack.c.l.b16 %v491
      %v1523 = vunpack.c.l.b16 %v492
      %v1524 = vunpack.c.l.b16 %v493
      %v1525 = vunpack.c.l.b16 %v494
      %v1526 = vunpack.c.l.b16 %v495
      %v1527 = vunpack.c.l.b16 %v496
      %v1528 = vunpack.c.l.b16 %v497
      %v1529 = vunpack.c.l.b16 %v498
      %v1530 = vunpack.c.l.b16 %v499
      %v1531 = vunpack.c.l.b16 %v500
      %v1532 = vunpack.c.l.b16 %v501
      %v1533 = vunpack.c.l.b16 %v502
      %v1534 = vunpack.c.l.b16 %v503
      %v1535 = vunpack.c.l.b16 %v504
      %v1536 = vunpack.c.l.b16 %v505
      %v1537 = vunpack.c.l.b16 %v506
      %v1538 = vunpack.c.l.b16 %v507
      %v1539 = vunpack.c.l.b16 %v508
      %v1540 = vunpack.c.l.b16 %v509
      %v1541 = vunpack.c.l.b16 %v510
      %v1542 = vunpack.c.l.b16 %v511
      %v1543 = vunpack.c.l.b16 %v512
      %v1544 = vunpack.c.l.b16 %v513
      %v1545 = vunpack.c.l.b16 %v514
      %v1546 = vunpack.c.l.b16 %v515
      %v1547 = vunpack.c.l.b16 %v516
      %v1548 = vunpack.c.l.b16 %v517
      %v1549 = vunpack.c.l.b16 %v518
      %v1550 = vunpack.c.l.b16 %v519
      %v1551 = vunpack.c.l.b16 %v520
      %v1552 = vunpack.c.l.b16 %v521
      %v1553 = vunpack.c.l.b16 %v522
      %v1554 = vunpack.c.l.b16 %v523
      %v1555 = vunpack.c.l.b16 %v524
      %v1556 = vunpack.c.l.b16 %v525
      %v1557 = vunpack.c.l.b16 %v526
      %v1558 = vunpack.c.l.b16 %v527
      %v1559 = vunpack.c.l.b16 %v528
      %v1560 = vunpack.c.l.b16 %v529
      %v1561 = vunpack.c.l.b16 %v530
      %v1562 = vunpack.c.l.b16 %v531
      %v1563 = vunpack.c.l.b16 %v532
      %v1564 = vpack.c.b16 %v1421, %v1420
      %v1565 = vpack.c.b16 %v1423, %v1422
      %v1566 = vpack.c.b16 %v1425, %v1424
      %v1567 = vpack.c.b16 %v1427, %v1426
      %v1568 = vpack.c.b16 %v1429, %v1428
      %v1569 = vpack.c.b16 %v1431, %v1430
      %v1570 = vpack.c.b16 %v1433, %v1432
      %v1571 = vpack.c.b16 %v1435, %v1434
      %v1572 = vpack.c.b16 %v1437, %v1436
      %v1573 = vpack.c.b16 %v1439, %v1438
      %v1574 = vpack.c.b16 %v1441, %v1440
      %v1575 = vpack.c.b16 %v1443, %v1442
      %v1576 = vpack.c.b16 %v1445, %v1444
      %v1577 = vpack.c.b16 %v1447, %v1446
      %v1578 = vpack.c.b16 %v1449, %v1448
      %v1579 = vpack.c.b16 %v1451, %v1450
      %v1580 = vpack.c.b16 %v1453, %v1452
      %v1581 = vpack.c.b16 %v1455, %v1454
      %v1582 = vpack.c.b16 %v1457, %v1456
      %v1583 = vpack.c.b16 %v1459, %v1458
      %v1584 = vpack.c.b16 %v1461, %v1460
      %v1585 = vpack.c.b16 %v1463, %v1462
      %v1586 = vpack.c.b16 %v1465, %v1464
      %v1587 = vpack.c.b16 %v1467, %v1466
      %v1588 = vpack.c.b16 %v1469, %v1468
      %v1589 = vpack.c.b16 %v1471, %v1470
      %v1590 = vpack.c.b16 %v1473, %v1472
      %v1591 = vpack.c.b16 %v1475, %v1474
      %v1592 = vpack.c.b16 %v1477, %v1476
      %v1593 = vpack.c.b16 %v1479, %v1478
      %v1594 = vpack.c.b16 %v1481, %v1480
      %v1595 = vpack.c.b16 %v1483, %v1482
      %v1596 = vpack.c.b16 %v1485, %v1484
      %v1597 = vpack.c.b16 %v1487, %v1486
      %v1598 = vpack.c.b16 %v1489, %v1488
      %v1599 = vpack.c.b16 %v1491, %v1490
      %v1600 = vpack.c.b16 %v1493, %v1492
      %v1601 = vpack.c.b16 %v1495, %v1494
      %v1602 = vpack.c.b16 %v1497, %v1496
      %v1603 = vpack.c.b16 %v1499, %v1498
      %v1604 = vpack.c.b16 %v1501, %v1500
      %v1605 = vpack.c.b16 %v1503, %v1502
      %v1606 = vpack.c.b16 %v1505, %v1504
      %v1607 = vpack.c.b16 %v1507, %v1506
      %v1608 = vpack.c.b16 %v1509, %v1508
      %v1609 = vpack.c.b16 %v1511, %v1510
      %v1610 = vpack.c.b16 %v1513, %v1512
      %v1611 = vpack.c.b16 %v1515, %v1514
      %v1612 = vpack.c.b16 %v1517, %v1516
      %v1613 = vpack.c.b16 %v1519, %v1518
      %v1614 = vpack.c.b16 %v1521, %v1520
      %v1615 = vpack.c.b16 %v1523, %v1522
      %v1616 = vpack.c.b16 %v1525, %v1524
      %v1617 = vpack.c.b16 %v1527, %v1526
      %v1618 = vpack.c.b16 %v1529, %v1528
      %v1619 = vpack.c.b16 %v1531, %v1530
      %v1620 = vpack.c.b16 %v1533, %v1532
      %v1621 = vpack.c.b16 %v1535, %v1534
      %v1622 = vpack.c.b16 %v1537, %v1536
      %v1623 = vpack.c.b16 %v1539, %v1538
      %v1624 = vpack.c.b16 %v1541, %v1540
      %v1625 = vpack.c.b16 %v1543, %v1542
      %v1626 = vpack.c.b16 %v1545, %v1544
      %v1627 = vpack.c.b16 %v1547, %v1546
      %v1628 = vpack.c.b16 %v1549, %v1548
      %v1629 = vpack.c.b16 %v1551, %v1550
      %v1630 = vpack.c.b16 %v1553, %v1552
      %v1631 = vpack.c.b16 %v1555, %v1554
      %v1632 = vpack.c.b16 %v1557, %v1556
      %v1633 = vpack.c.b16 %v1559, %v1558
      %v1634 = vpack.c.b16 %v1561, %v1560
      %v1635 = vpack.c.b16 %v1563, %v1562
      %1708 = vmatprep.subr.bf16.mxu0 0
      %1709 = vmatpush1.bf16.msra.mxu0 %v1564
      %1710 = vmatprep.subr.bf16.mxu0 0
      %1711 = vmatpush1.bf16.msra.mxu0 %v1565
      %1712 = vmatprep.subr.bf16.mxu0 0
      %1713 = vmatpush1.bf16.msra.mxu0 %v1566
      %1714 = vmatprep.subr.bf16.mxu0 0
      %1715 = vmatpush1.bf16.msra.mxu0 %v1567
      %1716 = vmatprep.subr.bf16.mxu0 0
      %1717 = vmatpush1.bf16.msra.mxu0 %v1568
      %1718 = vmatprep.subr.bf16.mxu0 0
      %1719 = vmatpush1.bf16.msra.mxu0 %v1569
      %1720 = vmatprep.subr.bf16.mxu0 0
      %1721 = vmatpush1.bf16.msra.mxu0 %v1570
      %1722 = vmatprep.subr.bf16.mxu0 0
      %1723 = vmatpush1.bf16.msra.mxu0 %v1571
      %1724 = vmatprep.subr.bf16.mxu0 0
      %1725 = vmatpush1.bf16.msra.mxu0 %v1572
      %1726 = vmatprep.subr.bf16.mxu0 0
      %1727 = vmatpush1.bf16.msra.mxu0 %v1573
      %1728 = vmatprep.subr.bf16.mxu0 0
      %1729 = vmatpush1.bf16.msra.mxu0 %v1574
      %1730 = vmatprep.subr.bf16.mxu0 0
      %1731 = vmatpush1.bf16.msra.mxu0 %v1575
      %1732 = vmatprep.subr.bf16.mxu0 0
      %1733 = vmatpush1.bf16.msra.mxu0 %v1576
      %1734 = vmatprep.subr.bf16.mxu0 0
      %1735 = vmatpush1.bf16.msra.mxu0 %v1577
      %1736 = vmatprep.subr.bf16.mxu0 0
      %1737 = vmatpush1.bf16.msra.mxu0 %v1578
      %1738 = vmatprep.subr.bf16.mxu0 0
      %1739 = vmatpush1.bf16.msra.mxu0 %v1579
      %1740 = vmatprep.mubr.bf16.mxu0 %v989
      %1741 = vmatmul.mubr.bf16.gmra.mrb[0].mxu0 %v988
      %v1742 = vpop.f32.mrb[0].mxu0
      %v1743 = vadd.f32 %v538, %v1742
      %v1744 = vpop.f32.mrb[0].mxu0
      %v1745 = vpop.f32.mrb[0].mxu0
      %v1746 = vadd.f32 %v538, %v1745
      %v1747 = vpop.f32.mrb[0].mxu0
      %1748 = vmatprep.mubr.bf16.mxu0 %v998
      %1749 = vmatmul.mubr.bf16.gmra.mrb[0].mxu0 %v997
      %v1750 = vpop.f32.mrb[0].mxu0
      %v1751 = vadd.f32 %v538, %v1750
      %v1752 = vpop.f32.mrb[0].mxu0
      %v1753 = vpop.f32.mrb[0].mxu0
      %v1754 = vadd.f32 %v538, %v1753
      %v1755 = vpop.f32.mrb[0].mxu0
      %1756 = vmatprep.mubr.bf16.mxu0 %v1007
      %1757 = vmatmul.mubr.bf16.gmra.mrb[0].mxu0 %v1006
      %v1758 = vpop.f32.mrb[0].mxu0
      %v1759 = vadd.f32 %v538, %v1758
      %v1760 = vpop.f32.mrb[0].mxu0
      %v1761 = vpop.f32.mrb[0].mxu0
      %v1762 = vadd.f32 %v538, %v1761
      %v1763 = vpop.f32.mrb[0].mxu0
      %1764 = vmatprep.mubr.bf16.mxu0 %v1016
      %1765 = vmatmul.mubr.bf16.gmra.mrb[0].mxu0 %v1015
      %v1766 = vpop.f32.mrb[0].mxu0
      %v1767 = vadd.f32 %v538, %v1766
      %v1768 = vpop.f32.mrb[0].mxu0
      %v1769 = vpop.f32.mrb[0].mxu0
      %v1770 = vadd.f32 %v538, %v1769
      %v1771 = vpop.f32.mrb[0].mxu0
      %1772 = vmatprep.mubr.bf16.mxu0 %v1025
      %1773 = vmatmul.mubr.bf16.gmra.mrb[0].mxu0 %v1024
      %v1774 = vpop.f32.mrb[0].mxu0
      %v1775 = vadd.f32 %v538, %v1774
      %v1776 = vpop.f32.mrb[0].mxu0
      %v1777 = vpop.f32.mrb[0].mxu0
      %v1778 = vadd.f32 %v538, %v1777
      %v1779 = vpop.f32.mrb[0].mxu0
      %1780 = vmatprep.mubr.bf16.mxu0 %v1034
      %1781 = vmatmul.mubr.bf16.gmra.mrb[0].mxu0 %v1033
      %v1782 = vpop.f32.mrb[0].mxu0
      %v1783 = vadd.f32 %v538, %v1782
      %v1784 = vpop.f32.mrb[0].mxu0
      %v1785 = vpop.f32.mrb[0].mxu0
      %v1786 = vadd.f32 %v538, %v1785
      %v1787 = vpop.f32.mrb[0].mxu0
      %1788 = vmatprep.mubr.bf16.mxu0 %v1043
      %1789 = vmatmul.mubr.bf16.gmra.mrb[0].mxu0 %v1042
      %v1790 = vpop.f32.mrb[0].mxu0
      %v1791 = vadd.f32 %v538, %v1790
      %v1792 = vpop.f32.mrb[0].mxu0
      %v1793 = vpop.f32.mrb[0].mxu0
      %v1794 = vadd.f32 %v538, %v1793
      %v1795 = vpop.f32.mrb[0].mxu0
      %1796 = vmatprep.mubr.bf16.mxu0 %v1052
      %1797 = vmatmul.mubr.bf16.gmra.mrb[0].mxu0 %v1051
      %v1798 = vpop.f32.mrb[0].mxu0
      %v1799 = vadd.f32 %v538, %v1798
      %v1800 = vpop.f32.mrb[0].mxu0
      %v1801 = vpop.f32.mrb[0].mxu0
      %v1802 = vadd.f32 %v538, %v1801
      %v1803 = vpop.f32.mrb[0].mxu0
      %1804 = vmatprep.mubr.bf16.mxu0 %v1061
      %1805 = vmatmul.mubr.bf16.gmra.mrb[0].mxu0 %v1060
      %v1806 = vpop.f32.mrb[0].mxu0
      %v1807 = vadd.f32 %v538, %v1806
      %v1808 = vpop.f32.mrb[0].mxu0
      %v1809 = vpop.f32.mrb[0].mxu0
      %v1810 = vadd.f32 %v538, %v1809
      %v1811 = vpop.f32.mrb[0].mxu0
      %1812 = vmatprep.mubr.bf16.mxu0 %v1070
      %1813 = vmatmul.mubr.bf16.gmra.mrb[0].mxu0 %v1069
      %v1814 = vpop.f32.mrb[0].mxu0
      %v1815 = vadd.f32 %v538, %v1814
      %v1816 = vpop.f32.mrb[0].mxu0
      %v1817 = vpop.f32.mrb[0].mxu0
      %v1818 = vadd.f32 %v538, %v1817
      %v1819 = vpop.f32.mrb[0].mxu0
      %1820 = vmatprep.mubr.bf16.mxu0 %v1079
      %1821 = vmatmul.mubr.bf16.gmra.mrb[0].mxu0 %v1078
      %v1822 = vpop.f32.mrb[0].mxu0
      %v1823 = vadd.f32 %v538, %v1822
      %v1824 = vpop.f32.mrb[0].mxu0
      %v1825 = vpop.f32.mrb[0].mxu0
      %v1826 = vadd.f32 %v538, %v1825
      %v1827 = vpop.f32.mrb[0].mxu0
      %1828 = vmatprep.mubr.bf16.mxu0 %v1088
      %1829 = vmatmul.mubr.bf16.gmra.mrb[0].mxu0 %v1087
      %v1830 = vpop.f32.mrb[0].mxu0
      %v1831 = vadd.f32 %v538, %v1830
      %v1832 = vpop.f32.mrb[0].mxu0
      %v1833 = vpop.f32.mrb[0].mxu0
      %v1834 = vadd.f32 %v538, %v1833
      %v1835 = vpop.f32.mrb[0].mxu0
      %1836 = vmatprep.mubr.bf16.mxu0 %v1097
      %1837 = vmatmul.mubr.bf16.gmra.mrb[0].mxu0 %v1096
      %v1838 = vpop.f32.mrb[0].mxu0
      %v1839 = vadd.f32 %v538, %v1838
      %v1840 = vpop.f32.mrb[0].mxu0
      %v1841 = vpop.f32.mrb[0].mxu0
      %v1842 = vadd.f32 %v538, %v1841
      %v1843 = vpop.f32.mrb[0].mxu0
      %1844 = vmatprep.mubr.bf16.mxu0 %v1106
      %1845 = vmatmul.mubr.bf16.gmra.mrb[0].mxu0 %v1105
      %v1846 = vpop.f32.mrb[0].mxu0
      %v1847 = vadd.f32 %v538, %v1846
      %v1848 = vpop.f32.mrb[0].mxu0
      %v1849 = vpop.f32.mrb[0].mxu0
      %v1850 = vadd.f32 %v538, %v1849
      %v1851 = vpop.f32.mrb[0].mxu0
      %1852 = vmatprep.mubr.bf16.mxu0 %v1115
      %1853 = vmatmul.mubr.bf16.gmra.mrb[0].mxu0 %v1114
      %v1854 = vpop.f32.mrb[0].mxu0
      %v1855 = vadd.f32 %v538, %v1854
      %v1856 = vpop.f32.mrb[0].mxu0
      %v1857 = vpop.f32.mrb[0].mxu0
      %v1858 = vadd.f32 %v538, %v1857
      %v1859 = vpop.f32.mrb[0].mxu0
      %1860 = vmatprep.mubr.bf16.mxu0 %v1124
      %1861 = vmatmul.mubr.bf16.gmra.mrb[0].mxu0 %v1123
      %v1862 = vpop.f32.mrb[0].mxu0
      %v1863 = vadd.f32 %v538, %v1862
      %v1864 = vpop.f32.mrb[0].mxu0
      %v1865 = vpop.f32.mrb[0].mxu0
      %v1866 = vadd.f32 %v538, %v1865
      %v1867 = vpop.f32.mrb[0].mxu0
      %1868 = vdwg.mxu0
      %1869 = vmatprep.subr.bf16.mxu0 0
      %1870 = vmatpush1.bf16.msra.mxu0 %v1580
      %1871 = vmatprep.subr.bf16.mxu0 0
      %1872 = vmatpush1.bf16.msra.mxu0 %v1581
      %1873 = vmatprep.subr.bf16.mxu0 0
      %1874 = vmatpush1.bf16.msra.mxu0 %v1582
      %1875 = vmatprep.subr.bf16.mxu0 0
      %1876 = vmatpush1.bf16.msra.mxu0 %v1583
      %1877 = vmatprep.subr.bf16.mxu0 0
      %1878 = vmatpush1.bf16.msra.mxu0 %v1584
      %1879 = vmatprep.subr.bf16.mxu0 0
      %1880 = vmatpush1.bf16.msra.mxu0 %v1585
      %1881 = vmatprep.subr.bf16.mxu0 0
      %1882 = vmatpush1.bf16.msra.mxu0 %v1586
      %1883 = vmatprep.subr.bf16.mxu0 0
      %1884 = vmatpush1.bf16.msra.mxu0 %v1587
      %1885 = vmatprep.subr.bf16.mxu0 0
      %1886 = vmatpush1.bf16.msra.mxu0 %v1588
      %1887 = vmatprep.subr.bf16.mxu0 0
      %1888 = vmatpush1.bf16.msra.mxu0 %v1589
      %1889 = vmatprep.subr.bf16.mxu0 0
      %1890 = vmatpush1.bf16.msra.mxu0 %v1590
      %1891 = vmatprep.subr.bf16.mxu0 0
      %1892 = vmatpush1.bf16.msra.mxu0 %v1591
      %1893 = vmatprep.subr.bf16.mxu0 0
      %1894 = vmatpush1.bf16.msra.mxu0 %v1592
      %1895 = vmatprep.subr.bf16.mxu0 0
      %1896 = vmatpush1.bf16.msra.mxu0 %v1593
      %1897 = vmatprep.subr.bf16.mxu0 0
      %1898 = vmatpush1.bf16.msra.mxu0 %v1594
      %1899 = vmatprep.subr.bf16.mxu0 0
      %1900 = vmatpush1.bf16.msra.mxu0 %v1595
      %1901 = vmatprep.mubr.bf16.mxu0 %v991
      %1902 = vmatmul.mubr.bf16.gmra.mrb[0].mxu0 %v990
      %v1903 = vpop.f32.mrb[0].mxu0
      %v1904 = vadd.f32 %v1743, %v1903
      %v1905 = vpop.f32.mrb[0].mxu0
      %v1906 = vpop.f32.mrb[0].mxu0
      %v1907 = vadd.f32 %v1746, %v1906
      %v1908 = vpop.f32.mrb[0].mxu0
      %1909 = vmatprep.mubr.bf16.mxu0 %v1000
      %1910 = vmatmul.mubr.bf16.gmra.mrb[0].mxu0 %v999
      %v1911 = vpop.f32.mrb[0].mxu0
      %v1912 = vadd.f32 %v1751, %v1911
      %v1913 = vpop.f32.mrb[0].mxu0
      %v1914 = vpop.f32.mrb[0].mxu0
      %v1915 = vadd.f32 %v1754, %v1914
      %v1916 = vpop.f32.mrb[0].mxu0
      %1917 = vmatprep.mubr.bf16.mxu0 %v1009
      %1918 = vmatmul.mubr.bf16.gmra.mrb[0].mxu0 %v1008
      %v1919 = vpop.f32.mrb[0].mxu0
      %v1920 = vadd.f32 %v1759, %v1919
      %v1921 = vpop.f32.mrb[0].mxu0
      %v1922 = vpop.f32.mrb[0].mxu0
      %v1923 = vadd.f32 %v1762, %v1922
      %v1924 = vpop.f32.mrb[0].mxu0
      %1925 = vmatprep.mubr.bf16.mxu0 %v1018
      %1926 = vmatmul.mubr.bf16.gmra.mrb[0].mxu0 %v1017
      %v1927 = vpop.f32.mrb[0].mxu0
      %v1928 = vadd.f32 %v1767, %v1927
      %v1929 = vpop.f32.mrb[0].mxu0
      %v1930 = vpop.f32.mrb[0].mxu0
      %v1931 = vadd.f32 %v1770, %v1930
      %v1932 = vpop.f32.mrb[0].mxu0
      %1933 = vmatprep.mubr.bf16.mxu0 %v1027
      %1934 = vmatmul.mubr.bf16.gmra.mrb[0].mxu0 %v1026
      %v1935 = vpop.f32.mrb[0].mxu0
      %v1936 = vadd.f32 %v1775, %v1935
      %v1937 = vpop.f32.mrb[0].mxu0
      %v1938 = vpop.f32.mrb[0].mxu0
      %v1939 = vadd.f32 %v1778, %v1938
      %v1940 = vpop.f32.mrb[0].mxu0
      %1941 = vmatprep.mubr.bf16.mxu0 %v1036
      %1942 = vmatmul.mubr.bf16.gmra.mrb[0].mxu0 %v1035
      %v1943 = vpop.f32.mrb[0].mxu0
      %v1944 = vadd.f32 %v1783, %v1943
      %v1945 = vpop.f32.mrb[0].mxu0
      %v1946 = vpop.f32.mrb[0].mxu0
      %v1947 = vadd.f32 %v1786, %v1946
      %v1948 = vpop.f32.mrb[0].mxu0
      %1949 = vmatprep.mubr.bf16.mxu0 %v1045
      %1950 = vmatmul.mubr.bf16.gmra.mrb[0].mxu0 %v1044
      %v1951 = vpop.f32.mrb[0].mxu0
      %v1952 = vadd.f32 %v1791, %v1951
      %v1953 = vpop.f32.mrb[0].mxu0
      %v1954 = vpop.f32.mrb[0].mxu0
      %v1955 = vadd.f32 %v1794, %v1954
      %v1956 = vpop.f32.mrb[0].mxu0
      %1957 = vmatprep.mubr.bf16.mxu0 %v1054
      %1958 = vmatmul.mubr.bf16.gmra.mrb[0].mxu0 %v1053
      %v1959 = vpop.f32.mrb[0].mxu0
      %v1960 = vadd.f32 %v1799, %v1959
      %v1961 = vpop.f32.mrb[0].mxu0
      %v1962 = vpop.f32.mrb[0].mxu0
      %v1963 = vadd.f32 %v1802, %v1962
      %v1964 = vpop.f32.mrb[0].mxu0
      %1965 = vmatprep.mubr.bf16.mxu0 %v1063
      %1966 = vmatmul.mubr.bf16.gmra.mrb[0].mxu0 %v1062
      %v1967 = vpop.f32.mrb[0].mxu0
      %v1968 = vadd.f32 %v1807, %v1967
      %v1969 = vpop.f32.mrb[0].mxu0
      %v1970 = vpop.f32.mrb[0].mxu0
      %v1971 = vadd.f32 %v1810, %v1970
      %v1972 = vpop.f32.mrb[0].mxu0
      %1973 = vmatprep.mubr.bf16.mxu0 %v1072
      %1974 = vmatmul.mubr.bf16.gmra.mrb[0].mxu0 %v1071
      %v1975 = vpop.f32.mrb[0].mxu0
      %v1976 = vadd.f32 %v1815, %v1975
      %v1977 = vpop.f32.mrb[0].mxu0
      %v1978 = vpop.f32.mrb[0].mxu0
      %v1979 = vadd.f32 %v1818, %v1978
      %v1980 = vpop.f32.mrb[0].mxu0
      %1981 = vmatprep.mubr.bf16.mxu0 %v1081
      %1982 = vmatmul.mubr.bf16.gmra.mrb[0].mxu0 %v1080
      %v1983 = vpop.f32.mrb[0].mxu0
      %v1984 = vadd.f32 %v1823, %v1983
      %v1985 = vpop.f32.mrb[0].mxu0
      %v1986 = vpop.f32.mrb[0].mxu0
      %v1987 = vadd.f32 %v1826, %v1986
      %v1988 = vpop.f32.mrb[0].mxu0
      %1989 = vmatprep.mubr.bf16.mxu0 %v1090
      %1990 = vmatmul.mubr.bf16.gmra.mrb[0].mxu0 %v1089
      %v1991 = vpop.f32.mrb[0].mxu0
      %v1992 = vadd.f32 %v1831, %v1991
      %v1993 = vpop.f32.mrb[0].mxu0
      %v1994 = vpop.f32.mrb[0].mxu0
      %v1995 = vadd.f32 %v1834, %v1994
      %v1996 = vpop.f32.mrb[0].mxu0
      %1997 = vmatprep.mubr.bf16.mxu0 %v1099
      %1998 = vmatmul.mubr.bf16.gmra.mrb[0].mxu0 %v1098
      %v1999 = vpop.f32.mrb[0].mxu0
      %v2000 = vadd.f32 %v1839, %v1999
      %v2001 = vpop.f32.mrb[0].mxu0
      %v2002 = vpop.f32.mrb[0].mxu0
      %v2003 = vadd.f32 %v1842, %v2002
      %v2004 = vpop.f32.mrb[0].mxu0
      %2005 = vmatprep.mubr.bf16.mxu0 %v1108
      %2006 = vmatmul.mubr.bf16.gmra.mrb[0].mxu0 %v1107
      %v2007 = vpop.f32.mrb[0].mxu0
      %v2008 = vadd.f32 %v1847, %v2007
      %v2009 = vpop.f32.mrb[0].mxu0
      %v2010 = vpop.f32.mrb[0].mxu0
      %v2011 = vadd.f32 %v1850, %v2010
      %v2012 = vpop.f32.mrb[0].mxu0
      %2013 = vmatprep.mubr.bf16.mxu0 %v1117
      %2014 = vmatmul.mubr.bf16.gmra.mrb[0].mxu0 %v1116
      %v2015 = vpop.f32.mrb[0].mxu0
      %v2016 = vadd.f32 %v1855, %v2015
      %v2017 = vpop.f32.mrb[0].mxu0
      %v2018 = vpop.f32.mrb[0].mxu0
      %v2019 = vadd.f32 %v1858, %v2018
      %v2020 = vpop.f32.mrb[0].mxu0
      %2021 = vmatprep.mubr.bf16.mxu0 %v1126
      %2022 = vmatmul.mubr.bf16.gmra.mrb[0].mxu0 %v1125
      %v2023 = vpop.f32.mrb[0].mxu0
      %v2024 = vadd.f32 %v1863, %v2023
      %v2025 = vpop.f32.mrb[0].mxu0
      %v2026 = vpop.f32.mrb[0].mxu0
      %v2027 = vadd.f32 %v1866, %v2026
      %v2028 = vpop.f32.mrb[0].mxu0
      %2029 = vdwg.mxu0
      %2030 = vmatprep.subr.bf16.mxu0 0
      %2031 = vmatpush1.bf16.msra.mxu0 %v1596
      %2032 = vmatprep.subr.bf16.mxu0 0
      %2033 = vmatpush1.bf16.msra.mxu0 %v1597
      %2034 = vmatprep.subr.bf16.mxu0 0
      %2035 = vmatpush1.bf16.msra.mxu0 %v1598
      %2036 = vmatprep.subr.bf16.mxu0 0
      %2037 = vmatpush1.bf16.msra.mxu0 %v1599
      %2038 = vmatprep.subr.bf16.mxu0 0
      %2039 = vmatpush1.bf16.msra.mxu0 %v1600
      %2040 = vmatprep.subr.bf16.mxu0 0
      %2041 = vmatpush1.bf16.msra.mxu0 %v1601
      %2042 = vmatprep.subr.bf16.mxu0 0
      %2043 = vmatpush1.bf16.msra.mxu0 %v1602
      %2044 = vmatprep.subr.bf16.mxu0 0
      %2045 = vmatpush1.bf16.msra.mxu0 %v1603
      %2046 = vmatprep.subr.bf16.mxu0 0
      %2047 = vmatpush1.bf16.msra.mxu0 %v1604
      %2048 = vmatprep.subr.bf16.mxu0 0
      %2049 = vmatpush1.bf16.msra.mxu0 %v1605
      %2050 = vmatprep.subr.bf16.mxu0 0
      %2051 = vmatpush1.bf16.msra.mxu0 %v1606
      %2052 = vmatprep.subr.bf16.mxu0 0
      %2053 = vmatpush1.bf16.msra.mxu0 %v1607
      %2054 = vmatprep.subr.bf16.mxu0 0
      %2055 = vmatpush1.bf16.msra.mxu0 %v1608
      %2056 = vmatprep.subr.bf16.mxu0 0
      %2057 = vmatpush1.bf16.msra.mxu0 %v1609
      %2058 = vmatprep.subr.bf16.mxu0 0
      %2059 = vmatpush1.bf16.msra.mxu0 %v1610
      %2060 = vmatprep.subr.bf16.mxu0 0
      %2061 = vmatpush1.bf16.msra.mxu0 %v1611
      %2062 = vmatprep.mubr.bf16.mxu0 %v993
      %2063 = vmatmul.mubr.bf16.gmra.mrb[0].mxu0 %v992
      %v2064 = vpop.f32.mrb[0].mxu0
      %v2065 = vadd.f32 %v1904, %v2064
      %v2066 = vpop.f32.mrb[0].mxu0
      %v2067 = vpop.f32.mrb[0].mxu0
      %v2068 = vadd.f32 %v1907, %v2067
      %v2069 = vpop.f32.mrb[0].mxu0
      %2070 = vmatprep.mubr.bf16.mxu0 %v1002
      %2071 = vmatmul.mubr.bf16.gmra.mrb[0].mxu0 %v1001
      %v2072 = vpop.f32.mrb[0].mxu0
      %v2073 = vadd.f32 %v1912, %v2072
      %v2074 = vpop.f32.mrb[0].mxu0
      %v2075 = vpop.f32.mrb[0].mxu0
      %v2076 = vadd.f32 %v1915, %v2075
      %v2077 = vpop.f32.mrb[0].mxu0
      %2078 = vmatprep.mubr.bf16.mxu0 %v1011
      %2079 = vmatmul.mubr.bf16.gmra.mrb[0].mxu0 %v1010
      %v2080 = vpop.f32.mrb[0].mxu0
      %v2081 = vadd.f32 %v1920, %v2080
      %v2082 = vpop.f32.mrb[0].mxu0
      %v2083 = vpop.f32.mrb[0].mxu0
      %v2084 = vadd.f32 %v1923, %v2083
      %v2085 = vpop.f32.mrb[0].mxu0
      %2086 = vmatprep.mubr.bf16.mxu0 %v1020
      %2087 = vmatmul.mubr.bf16.gmra.mrb[0].mxu0 %v1019
      %v2088 = vpop.f32.mrb[0].mxu0
      %v2089 = vadd.f32 %v1928, %v2088
      %v2090 = vpop.f32.mrb[0].mxu0
      %v2091 = vpop.f32.mrb[0].mxu0
      %v2092 = vadd.f32 %v1931, %v2091
      %v2093 = vpop.f32.mrb[0].mxu0
      %2094 = vmatprep.mubr.bf16.mxu0 %v1029
      %2095 = vmatmul.mubr.bf16.gmra.mrb[0].mxu0 %v1028
      %v2096 = vpop.f32.mrb[0].mxu0
      %v2097 = vadd.f32 %v1936, %v2096
      %v2098 = vpop.f32.mrb[0].mxu0
      %v2099 = vpop.f32.mrb[0].mxu0
      %v2100 = vadd.f32 %v1939, %v2099
      %v2101 = vpop.f32.mrb[0].mxu0
      %2102 = vmatprep.mubr.bf16.mxu0 %v1038
      %2103 = vmatmul.mubr.bf16.gmra.mrb[0].mxu0 %v1037
      %v2104 = vpop.f32.mrb[0].mxu0
      %v2105 = vadd.f32 %v1944, %v2104
      %v2106 = vpop.f32.mrb[0].mxu0
      %v2107 = vpop.f32.mrb[0].mxu0
      %v2108 = vadd.f32 %v1947, %v2107
      %v2109 = vpop.f32.mrb[0].mxu0
      %2110 = vmatprep.mubr.bf16.mxu0 %v1047
      %2111 = vmatmul.mubr.bf16.gmra.mrb[0].mxu0 %v1046
      %v2112 = vpop.f32.mrb[0].mxu0
      %v2113 = vadd.f32 %v1952, %v2112
      %v2114 = vpop.f32.mrb[0].mxu0
      %v2115 = vpop.f32.mrb[0].mxu0
      %v2116 = vadd.f32 %v1955, %v2115
      %v2117 = vpop.f32.mrb[0].mxu0
      %2118 = vmatprep.mubr.bf16.mxu0 %v1056
      %2119 = vmatmul.mubr.bf16.gmra.mrb[0].mxu0 %v1055
      %v2120 = vpop.f32.mrb[0].mxu0
      %v2121 = vadd.f32 %v1960, %v2120
      %v2122 = vpop.f32.mrb[0].mxu0
      %v2123 = vpop.f32.mrb[0].mxu0
      %v2124 = vadd.f32 %v1963, %v2123
      %v2125 = vpop.f32.mrb[0].mxu0
      %2126 = vmatprep.mubr.bf16.mxu0 %v1065
      %2127 = vmatmul.mubr.bf16.gmra.mrb[0].mxu0 %v1064
      %v2128 = vpop.f32.mrb[0].mxu0
      %v2129 = vadd.f32 %v1968, %v2128
      %v2130 = vpop.f32.mrb[0].mxu0
      %v2131 = vpop.f32.mrb[0].mxu0
      %v2132 = vadd.f32 %v1971, %v2131
      %v2133 = vpop.f32.mrb[0].mxu0
      %2134 = vmatprep.mubr.bf16.mxu0 %v1074
      %2135 = vmatmul.mubr.bf16.gmra.mrb[0].mxu0 %v1073
      %v2136 = vpop.f32.mrb[0].mxu0
      %v2137 = vadd.f32 %v1976, %v2136
      %v2138 = vpop.f32.mrb[0].mxu0
      %v2139 = vpop.f32.mrb[0].mxu0
      %v2140 = vadd.f32 %v1979, %v2139
      %v2141 = vpop.f32.mrb[0].mxu0
      %2142 = vmatprep.mubr.bf16.mxu0 %v1083
      %2143 = vmatmul.mubr.bf16.gmra.mrb[0].mxu0 %v1082
      %v2144 = vpop.f32.mrb[0].mxu0
      %v2145 = vadd.f32 %v1984, %v2144
      %v2146 = vpop.f32.mrb[0].mxu0
      %v2147 = vpop.f32.mrb[0].mxu0
      %v2148 = vadd.f32 %v1987, %v2147
      %v2149 = vpop.f32.mrb[0].mxu0
      %2150 = vmatprep.mubr.bf16.mxu0 %v1092
      %2151 = vmatmul.mubr.bf16.gmra.mrb[0].mxu0 %v1091
      %v2152 = vpop.f32.mrb[0].mxu0
      %v2153 = vadd.f32 %v1992, %v2152
      %v2154 = vpop.f32.mrb[0].mxu0
      %v2155 = vpop.f32.mrb[0].mxu0
      %v2156 = vadd.f32 %v1995, %v2155
      %v2157 = vpop.f32.mrb[0].mxu0
      %2158 = vmatprep.mubr.bf16.mxu0 %v1101
      %2159 = vmatmul.mubr.bf16.gmra.mrb[0].mxu0 %v1100
      %v2160 = vpop.f32.mrb[0].mxu0
      %v2161 = vadd.f32 %v2000, %v2160
      %v2162 = vpop.f32.mrb[0].mxu0
      %v2163 = vpop.f32.mrb[0].mxu0
      %v2164 = vadd.f32 %v2003, %v2163
      %v2165 = vpop.f32.mrb[0].mxu0
      %2166 = vmatprep.mubr.bf16.mxu0 %v1110
      %2167 = vmatmul.mubr.bf16.gmra.mrb[0].mxu0 %v1109
      %v2168 = vpop.f32.mrb[0].mxu0
      %v2169 = vadd.f32 %v2008, %v2168
      %v2170 = vpop.f32.mrb[0].mxu0
      %v2171 = vpop.f32.mrb[0].mxu0
      %v2172 = vadd.f32 %v2011, %v2171
      %v2173 = vpop.f32.mrb[0].mxu0
      %2174 = vmatprep.mubr.bf16.mxu0 %v1119
      %2175 = vmatmul.mubr.bf16.gmra.mrb[0].mxu0 %v1118
      %v2176 = vpop.f32.mrb[0].mxu0
      %v2177 = vadd.f32 %v2016, %v2176
      %v2178 = vpop.f32.mrb[0].mxu0
      %v2179 = vpop.f32.mrb[0].mxu0
      %v2180 = vadd.f32 %v2019, %v2179
      %v2181 = vpop.f32.mrb[0].mxu0
      %2182 = vmatprep.mubr.bf16.mxu0 %v1128
      %2183 = vmatmul.mubr.bf16.gmra.mrb[0].mxu0 %v1127
      %v2184 = vpop.f32.mrb[0].mxu0
      %v2185 = vadd.f32 %v2024, %v2184
      %v2186 = vpop.f32.mrb[0].mxu0
      %v2187 = vpop.f32.mrb[0].mxu0
      %v2188 = vadd.f32 %v2027, %v2187
      %v2189 = vpop.f32.mrb[0].mxu0
      %2190 = vdwg.mxu0
      %2191 = vmatprep.subr.bf16.mxu0 0
      %2192 = vmatpush1.bf16.msra.mxu0 %v1612
      %2193 = vmatprep.subr.bf16.mxu0 0
      %2194 = vmatpush1.bf16.msra.mxu0 %v1613
      %2195 = vmatprep.subr.bf16.mxu0 0
      %2196 = vmatpush1.bf16.msra.mxu0 %v1614
      %2197 = vmatprep.subr.bf16.mxu0 0
      %2198 = vmatpush1.bf16.msra.mxu0 %v1615
      %2199 = vmatprep.subr.bf16.mxu0 0
      %2200 = vmatpush1.bf16.msra.mxu0 %v1616
      %2201 = vmatprep.subr.bf16.mxu0 0
      %2202 = vmatpush1.bf16.msra.mxu0 %v1617
      %2203 = vmatprep.subr.bf16.mxu0 0
      %2204 = vmatpush1.bf16.msra.mxu0 %v1618
      %2205 = vmatprep.subr.bf16.mxu0 0
      %2206 = vmatpush1.bf16.msra.mxu0 %v1619
      %2207 = vmatprep.subr.bf16.mxu0 0
      %2208 = vmatpush1.bf16.msra.mxu0 %v1620
      %2209 = vmatprep.subr.bf16.mxu0 0
      %2210 = vmatpush1.bf16.msra.mxu0 %v1621
      %2211 = vmatprep.subr.bf16.mxu0 0
      %2212 = vmatpush1.bf16.msra.mxu0 %v1622
      %2213 = vmatprep.subr.bf16.mxu0 0
      %2214 = vmatpush1.bf16.msra.mxu0 %v1623
      %2215 = vmatprep.subr.bf16.mxu0 0
      %2216 = vmatpush1.bf16.msra.mxu0 %v1624
      %2217 = vmatprep.subr.bf16.mxu0 0
      %2218 = vmatpush1.bf16.msra.mxu0 %v1625
      %2219 = vmatprep.subr.bf16.mxu0 0
      %2220 = vmatpush1.bf16.msra.mxu0 %v1626
      %2221 = vmatprep.subr.bf16.mxu0 0
      %2222 = vmatpush1.bf16.msra.mxu0 %v1627
      %2223 = vmatprep.mubr.bf16.mxu0 %v995
      %2224 = vmatmul.mubr.bf16.gmra.mrb[0].mxu0 %v994
      %v2225 = vpop.f32.mrb[0].mxu0
      %v2226 = vadd.f32 %v2065, %v2225
      %v2227 = vpop.f32.mrb[0].mxu0
      %v2228 = vpop.f32.mrb[0].mxu0
      %v2229 = vadd.f32 %v2068, %v2228
      %v2230 = vpop.f32.mrb[0].mxu0
      %2231 = vmatprep.mubr.bf16.mxu0 %v1004
      %2232 = vmatmul.mubr.bf16.gmra.mrb[0].mxu0 %v1003
      %v2233 = vpop.f32.mrb[0].mxu0
      %v2234 = vadd.f32 %v2073, %v2233
      %v2235 = vpop.f32.mrb[0].mxu0
      %v2236 = vpop.f32.mrb[0].mxu0
      %v2237 = vadd.f32 %v2076, %v2236
      %v2238 = vpop.f32.mrb[0].mxu0
      %2239 = vmatprep.mubr.bf16.mxu0 %v1013
      %2240 = vmatmul.mubr.bf16.gmra.mrb[0].mxu0 %v1012
      %v2241 = vpop.f32.mrb[0].mxu0
      %v2242 = vadd.f32 %v2081, %v2241
      %v2243 = vpop.f32.mrb[0].mxu0
      %v2244 = vpop.f32.mrb[0].mxu0
      %v2245 = vadd.f32 %v2084, %v2244
      %v2246 = vpop.f32.mrb[0].mxu0
      %2247 = vmatprep.mubr.bf16.mxu0 %v1022
      %2248 = vmatmul.mubr.bf16.gmra.mrb[0].mxu0 %v1021
      %v2249 = vpop.f32.mrb[0].mxu0
      %v2250 = vadd.f32 %v2089, %v2249
      %v2251 = vpop.f32.mrb[0].mxu0
      %v2252 = vpop.f32.mrb[0].mxu0
      %v2253 = vadd.f32 %v2092, %v2252
      %v2254 = vpop.f32.mrb[0].mxu0
      %2255 = vmatprep.mubr.bf16.mxu0 %v1031
      %2256 = vmatmul.mubr.bf16.gmra.mrb[0].mxu0 %v1030
      %v2257 = vpop.f32.mrb[0].mxu0
      %v2258 = vadd.f32 %v2097, %v2257
      %v2259 = vpop.f32.mrb[0].mxu0
      %v2260 = vpop.f32.mrb[0].mxu0
      %v2261 = vadd.f32 %v2100, %v2260
      %v2262 = vpop.f32.mrb[0].mxu0
      %2263 = vmatprep.mubr.bf16.mxu0 %v1040
      %2264 = vmatmul.mubr.bf16.gmra.mrb[0].mxu0 %v1039
      %v2265 = vpop.f32.mrb[0].mxu0
      %v2266 = vadd.f32 %v2105, %v2265
      %v2267 = vpop.f32.mrb[0].mxu0
      %v2268 = vpop.f32.mrb[0].mxu0
      %v2269 = vadd.f32 %v2108, %v2268
      %v2270 = vpop.f32.mrb[0].mxu0
      %2271 = vmatprep.mubr.bf16.mxu0 %v1049
      %2272 = vmatmul.mubr.bf16.gmra.mrb[0].mxu0 %v1048
      %v2273 = vpop.f32.mrb[0].mxu0
      %v2274 = vadd.f32 %v2113, %v2273
      %v2275 = vpop.f32.mrb[0].mxu0
      %v2276 = vpop.f32.mrb[0].mxu0
      %v2277 = vadd.f32 %v2116, %v2276
      %v2278 = vpop.f32.mrb[0].mxu0
      %2279 = vmatprep.mubr.bf16.mxu0 %v1058
      %2280 = vmatmul.mubr.bf16.gmra.mrb[0].mxu0 %v1057
      %v2281 = vpop.f32.mrb[0].mxu0
      %v2282 = vadd.f32 %v2121, %v2281
      %v2283 = vpop.f32.mrb[0].mxu0
      %v2284 = vpop.f32.mrb[0].mxu0
      %v2285 = vadd.f32 %v2124, %v2284
      %v2286 = vpop.f32.mrb[0].mxu0
      %2287 = vmatprep.mubr.bf16.mxu0 %v1067
      %2288 = vmatmul.mubr.bf16.gmra.mrb[0].mxu0 %v1066
      %v2289 = vpop.f32.mrb[0].mxu0
      %v2290 = vadd.f32 %v2129, %v2289
      %v2291 = vpop.f32.mrb[0].mxu0
      %v2292 = vpop.f32.mrb[0].mxu0
      %v2293 = vadd.f32 %v2132, %v2292
      %v2294 = vpop.f32.mrb[0].mxu0
      %2295 = vmatprep.mubr.bf16.mxu0 %v1076
      %2296 = vmatmul.mubr.bf16.gmra.mrb[0].mxu0 %v1075
      %v2297 = vpop.f32.mrb[0].mxu0
      %v2298 = vadd.f32 %v2137, %v2297
      %v2299 = vpop.f32.mrb[0].mxu0
      %v2300 = vpop.f32.mrb[0].mxu0
      %v2301 = vadd.f32 %v2140, %v2300
      %v2302 = vpop.f32.mrb[0].mxu0
      %2303 = vmatprep.mubr.bf16.mxu0 %v1085
      %2304 = vmatmul.mubr.bf16.gmra.mrb[0].mxu0 %v1084
      %v2305 = vpop.f32.mrb[0].mxu0
      %v2306 = vadd.f32 %v2145, %v2305
      %v2307 = vpop.f32.mrb[0].mxu0
      %v2308 = vpop.f32.mrb[0].mxu0
      %v2309 = vadd.f32 %v2148, %v2308
      %v2310 = vpop.f32.mrb[0].mxu0
      %2311 = vmatprep.mubr.bf16.mxu0 %v1094
      %2312 = vmatmul.mubr.bf16.gmra.mrb[0].mxu0 %v1093
      %v2313 = vpop.f32.mrb[0].mxu0
      %v2314 = vadd.f32 %v2153, %v2313
      %v2315 = vpop.f32.mrb[0].mxu0
      %v2316 = vpop.f32.mrb[0].mxu0
      %v2317 = vadd.f32 %v2156, %v2316
      %v2318 = vpop.f32.mrb[0].mxu0
      %2319 = vmatprep.mubr.bf16.mxu0 %v1103
      %2320 = vmatmul.mubr.bf16.gmra.mrb[0].mxu0 %v1102
      %v2321 = vpop.f32.mrb[0].mxu0
      %v2322 = vadd.f32 %v2161, %v2321
      %v2323 = vpop.f32.mrb[0].mxu0
      %v2324 = vpop.f32.mrb[0].mxu0
      %v2325 = vadd.f32 %v2164, %v2324
      %v2326 = vpop.f32.mrb[0].mxu0
      %2327 = vmatprep.mubr.bf16.mxu0 %v1112
      %2328 = vmatmul.mubr.bf16.gmra.mrb[0].mxu0 %v1111
      %v2329 = vpop.f32.mrb[0].mxu0
      %v2330 = vadd.f32 %v2169, %v2329
      %v2331 = vpop.f32.mrb[0].mxu0
      %v2332 = vpop.f32.mrb[0].mxu0
      %v2333 = vadd.f32 %v2172, %v2332
      %v2334 = vpop.f32.mrb[0].mxu0
      %2335 = vmatprep.mubr.bf16.mxu0 %v1121
      %2336 = vmatmul.mubr.bf16.gmra.mrb[0].mxu0 %v1120
      %v2337 = vpop.f32.mrb[0].mxu0
      %v2338 = vadd.f32 %v2177, %v2337
      %v2339 = vpop.f32.mrb[0].mxu0
      %v2340 = vpop.f32.mrb[0].mxu0
      %v2341 = vadd.f32 %v2180, %v2340
      %v2342 = vpop.f32.mrb[0].mxu0
      %2343 = vmatprep.mubr.bf16.mxu0 %v1130
      %2344 = vmatmul.mubr.bf16.gmra.mrb[0].mxu0 %v1129
      %v2345 = vpop.f32.mrb[0].mxu0
      %v2346 = vadd.f32 %v2185, %v2345
      %v2347 = vpop.f32.mrb[0].mxu0
      %v2348 = vpop.f32.mrb[0].mxu0
      %v2349 = vadd.f32 %v2188, %v2348
      %v2350 = vpop.f32.mrb[0].mxu0
      %2351 = vdwg.mxu0
      %2352 = vmatprep.subr.bf16.mxu0 0
      %2353 = vmatpush1.bf16.msra.mxu0 %v1628
      %2354 = vmatprep.subr.bf16.mxu0 0
      %2355 = vmatpush1.bf16.msra.mxu0 %v1629
      %2356 = vmatprep.subr.bf16.mxu0 0
      %2357 = vmatpush1.bf16.msra.mxu0 %v1630
      %2358 = vmatprep.subr.bf16.mxu0 0
      %2359 = vmatpush1.bf16.msra.mxu0 %v1631
      %2360 = vmatprep.subr.bf16.mxu0 0
      %2361 = vmatpush1.bf16.msra.mxu0 %v1632
      %2362 = vmatprep.subr.bf16.mxu0 0
      %2363 = vmatpush1.bf16.msra.mxu0 %v1633
      %2364 = vmatprep.subr.bf16.mxu0 0
      %2365 = vmatpush1.bf16.msra.mxu0 %v1634
      %2366 = vmatprep.subr.bf16.mxu0 0
      %2367 = vmatpush1.bf16.msra.mxu0 %v1635
      %2368 = vmatprep.subr.bf16.mxu0 0
      %2369 = vmatpush1.bf16.msra.mxu0 0
      %2370 = vmatprep.subr.bf16.mxu0 0
      %2371 = vmatpush1.bf16.msra.mxu0 0
      %2372 = vmatprep.subr.bf16.mxu0 0
      %2373 = vmatpush1.bf16.msra.mxu0 0
      %2374 = vmatprep.subr.bf16.mxu0 0
      %2375 = vmatpush1.bf16.msra.mxu0 0
      %2376 = vmatprep.subr.bf16.mxu0 0
      %2377 = vmatpush1.bf16.msra.mxu0 0
      %2378 = vmatprep.subr.bf16.mxu0 0
      %2379 = vmatpush1.bf16.msra.mxu0 0
      %2380 = vmatprep.subr.bf16.mxu0 0
      %2381 = vmatpush1.bf16.msra.mxu0 0
      %2382 = vmatprep.subr.bf16.mxu0 0
      %2383 = vmatpush1.bf16.msra.mxu0 0
      %2384 = vmatprep.mubr.bf16.mxu0 0
      %2385 = vmatmul.mubr.bf16.gmra.mrb[0].mxu0 %v996
      %v2386 = vpop.f32.mrb[0].mxu0
      %v2387 = vadd.f32 %v2226, %v2386
      %v2388 = vpop.f32.mrb[0].mxu0
      %v2389 = vpop.f32.mrb[0].mxu0
      %v2390 = vadd.f32 %v2229, %v2389
      %v2391 = vpop.f32.mrb[0].mxu0
      %2392 = vmatprep.mubr.bf16.mxu0 0
      %2393 = vmatmul.mubr.bf16.gmra.mrb[0].mxu0 %v1005
      %v2394 = vpop.f32.mrb[0].mxu0
      %v2395 = vadd.f32 %v2234, %v2394
      %v2396 = vpop.f32.mrb[0].mxu0
      %v2397 = vpop.f32.mrb[0].mxu0
      %v2398 = vadd.f32 %v2237, %v2397
      %v2399 = vpop.f32.mrb[0].mxu0
      %2400 = vmatprep.mubr.bf16.mxu0 0
      %2401 = vmatmul.mubr.bf16.gmra.mrb[0].mxu0 %v1014
      %v2402 = vpop.f32.mrb[0].mxu0
      %v2403 = vadd.f32 %v2242, %v2402
      %v2404 = vpop.f32.mrb[0].mxu0
      %v2405 = vpop.f32.mrb[0].mxu0
      %v2406 = vadd.f32 %v2245, %v2405
      %v2407 = vpop.f32.mrb[0].mxu0
      %2408 = vmatprep.mubr.bf16.mxu0 0
      %2409 = vmatmul.mubr.bf16.gmra.mrb[0].mxu0 %v1023
      %v2410 = vpop.f32.mrb[0].mxu0
      %v2411 = vadd.f32 %v2250, %v2410
      %v2412 = vpop.f32.mrb[0].mxu0
      %v2413 = vpop.f32.mrb[0].mxu0
      %v2414 = vadd.f32 %v2253, %v2413
      %v2415 = vpop.f32.mrb[0].mxu0
      %2416 = vmatprep.mubr.bf16.mxu0 0
      %2417 = vmatmul.mubr.bf16.gmra.mrb[0].mxu0 %v1032
      %v2418 = vpop.f32.mrb[0].mxu0
      %v2419 = vadd.f32 %v2258, %v2418
      %v2420 = vpop.f32.mrb[0].mxu0
      %v2421 = vpop.f32.mrb[0].mxu0
      %v2422 = vadd.f32 %v2261, %v2421
      %v2423 = vpop.f32.mrb[0].mxu0
      %2424 = vmatprep.mubr.bf16.mxu0 0
      %2425 = vmatmul.mubr.bf16.gmra.mrb[0].mxu0 %v1041
      %v2426 = vpop.f32.mrb[0].mxu0
      %v2427 = vadd.f32 %v2266, %v2426
      %v2428 = vpop.f32.mrb[0].mxu0
      %v2429 = vpop.f32.mrb[0].mxu0
      %v2430 = vadd.f32 %v2269, %v2429
      %v2431 = vpop.f32.mrb[0].mxu0
      %2432 = vmatprep.mubr.bf16.mxu0 0
      %2433 = vmatmul.mubr.bf16.gmra.mrb[0].mxu0 %v1050
      %v2434 = vpop.f32.mrb[0].mxu0
      %v2435 = vadd.f32 %v2274, %v2434
      %v2436 = vpop.f32.mrb[0].mxu0
      %v2437 = vpop.f32.mrb[0].mxu0
      %v2438 = vadd.f32 %v2277, %v2437
      %v2439 = vpop.f32.mrb[0].mxu0
      %2440 = vmatprep.mubr.bf16.mxu0 0
      %2441 = vmatmul.mubr.bf16.gmra.mrb[0].mxu0 %v1059
      %v2442 = vpop.f32.mrb[0].mxu0
      %v2443 = vadd.f32 %v2282, %v2442
      %v2444 = vpop.f32.mrb[0].mxu0
      %v2445 = vpop.f32.mrb[0].mxu0
      %v2446 = vadd.f32 %v2285, %v2445
      %v2447 = vpop.f32.mrb[0].mxu0
      %2448 = vmatprep.mubr.bf16.mxu0 0
      %2449 = vmatmul.mubr.bf16.gmra.mrb[0].mxu0 %v1068
      %v2450 = vpop.f32.mrb[0].mxu0
      %v2451 = vadd.f32 %v2290, %v2450
      %v2452 = vpop.f32.mrb[0].mxu0
      %v2453 = vpop.f32.mrb[0].mxu0
      %v2454 = vadd.f32 %v2293, %v2453
      %v2455 = vpop.f32.mrb[0].mxu0
      %2456 = vmatprep.mubr.bf16.mxu0 0
      %2457 = vmatmul.mubr.bf16.gmra.mrb[0].mxu0 %v1077
      %v2458 = vpop.f32.mrb[0].mxu0
      %v2459 = vadd.f32 %v2298, %v2458
      %v2460 = vpop.f32.mrb[0].mxu0
      %v2461 = vpop.f32.mrb[0].mxu0
      %v2462 = vadd.f32 %v2301, %v2461
      %v2463 = vpop.f32.mrb[0].mxu0
      %2464 = vmatprep.mubr.bf16.mxu0 0
      %2465 = vmatmul.mubr.bf16.gmra.mrb[0].mxu0 %v1086
      %v2466 = vpop.f32.mrb[0].mxu0
      %v2467 = vadd.f32 %v2306, %v2466
      %v2468 = vpop.f32.mrb[0].mxu0
      %v2469 = vpop.f32.mrb[0].mxu0
      %v2470 = vadd.f32 %v2309, %v2469
      %v2471 = vpop.f32.mrb[0].mxu0
      %2472 = vmatprep.mubr.bf16.mxu0 0
      %2473 = vmatmul.mubr.bf16.gmra.mrb[0].mxu0 %v1095
      %v2474 = vpop.f32.mrb[0].mxu0
      %v2475 = vadd.f32 %v2314, %v2474
      %v2476 = vpop.f32.mrb[0].mxu0
      %v2477 = vpop.f32.mrb[0].mxu0
      %v2478 = vadd.f32 %v2317, %v2477
      %v2479 = vpop.f32.mrb[0].mxu0
      %2480 = vmatprep.mubr.bf16.mxu0 0
      %2481 = vmatmul.mubr.bf16.gmra.mrb[0].mxu0 %v1104
      %v2482 = vpop.f32.mrb[0].mxu0
      %v2483 = vadd.f32 %v2322, %v2482
      %v2484 = vpop.f32.mrb[0].mxu0
      %v2485 = vpop.f32.mrb[0].mxu0
      %v2486 = vadd.f32 %v2325, %v2485
      %v2487 = vpop.f32.mrb[0].mxu0
      %2488 = vmatprep.mubr.bf16.mxu0 0
      %2489 = vmatmul.mubr.bf16.gmra.mrb[0].mxu0 %v1113
      %v2490 = vpop.f32.mrb[0].mxu0
      %v2491 = vadd.f32 %v2330, %v2490
      %v2492 = vpop.f32.mrb[0].mxu0
      %v2493 = vpop.f32.mrb[0].mxu0
      %v2494 = vadd.f32 %v2333, %v2493
      %v2495 = vpop.f32.mrb[0].mxu0
      %2496 = vmatprep.mubr.bf16.mxu0 0
      %2497 = vmatmul.mubr.bf16.gmra.mrb[0].mxu0 %v1122
      %v2498 = vpop.f32.mrb[0].mxu0
      %v2499 = vadd.f32 %v2338, %v2498
      %v2500 = vpop.f32.mrb[0].mxu0
      %v2501 = vpop.f32.mrb[0].mxu0
      %v2502 = vadd.f32 %v2341, %v2501
      %v2503 = vpop.f32.mrb[0].mxu0
      %2504 = vmatprep.mubr.bf16.mxu0 0
      %2505 = vmatmul.mubr.bf16.gmra.mrb[0].mxu0 %v1131
      %v2506 = vpop.f32.mrb[0].mxu0
      %v2507 = vadd.f32 %v2346, %v2506
      %v2508 = vpop.f32.mrb[0].mxu0
      %v2509 = vpop.f32.mrb[0].mxu0
      %v2510 = vadd.f32 %v2349, %v2509
      %v2511 = vpop.f32.mrb[0].mxu0
      %2512 = vdwg.mxu0
      %v2513 = vpack.c.bf16 %v2390, %v2387
      %v2514 = vpack.c.bf16 %v2398, %v2395
      %v2515 = vpack.c.bf16 %v2406, %v2403
      %v2516 = vpack.c.bf16 %v2414, %v2411
      %v2517 = vpack.c.bf16 %v2422, %v2419
      %v2518 = vpack.c.bf16 %v2430, %v2427
      %v2519 = vpack.c.bf16 %v2438, %v2435
      %v2520 = vpack.c.bf16 %v2446, %v2443
      %v2521 = vpack.c.bf16 %v2454, %v2451
      %v2522 = vpack.c.bf16 %v2462, %v2459
      %v2523 = vpack.c.bf16 %v2470, %v2467
      %v2524 = vpack.c.bf16 %v2478, %v2475
      %v2525 = vpack.c.bf16 %v2486, %v2483
      %v2526 = vpack.c.bf16 %v2494, %v2491
      %v2527 = vpack.c.bf16 %v2502, %v2499
      %v2528 = vpack.c.bf16 %v2510, %v2507
      %v2545 = vunpack.c.l.b16 %v2513
      %v2546 = vunpack.c.h.b16 %v2513
      %v2547 = vunpack.c.l.b16 %v2514
      %v2548 = vunpack.c.h.b16 %v2514
      %v2549 = vunpack.c.l.b16 %v2515
      %v2550 = vunpack.c.h.b16 %v2515
      %v2551 = vunpack.c.l.b16 %v2516
      %v2552 = vunpack.c.h.b16 %v2516
      %v2553 = vunpack.c.l.b16 %v2517
      %v2554 = vunpack.c.h.b16 %v2517
      %v2555 = vunpack.c.l.b16 %v2518
      %v2556 = vunpack.c.h.b16 %v2518
      %v2557 = vunpack.c.l.b16 %v2519
      %v2558 = vunpack.c.h.b16 %v2519
      %v2559 = vunpack.c.l.b16 %v2520
      %v2560 = vunpack.c.h.b16 %v2520
      %v2561 = vunpack.c.l.b16 %v2521
      %v2562 = vunpack.c.h.b16 %v2521
      %v2563 = vunpack.c.l.b16 %v2522
      %v2564 = vunpack.c.h.b16 %v2522
      %v2565 = vunpack.c.l.b16 %v2523
      %v2566 = vunpack.c.h.b16 %v2523
      %v2567 = vunpack.c.l.b16 %v2524
      %v2568 = vunpack.c.h.b16 %v2524
      %v2569 = vunpack.c.l.b16 %v2525
      %v2570 = vunpack.c.h.b16 %v2525
      %v2571 = vunpack.c.l.b16 %v2526
      %v2572 = vunpack.c.h.b16 %v2526
      %v2573 = vunpack.c.l.b16 %v2527
      %v2574 = vunpack.c.h.b16 %v2527
      %v2575 = vunpack.c.l.b16 %v2528
      %v2576 = vunpack.c.h.b16 %v2528
      %v2577 = vpack.c.b16 %v2545, %v2545
      %v2578 = vpack.c.b16 %v2546, %v2546
      %v2579 = vpack.c.b16 %v2547, %v2547
      %v2580 = vpack.c.b16 %v2548, %v2548
      %v2581 = vpack.c.b16 %v2549, %v2549
      %v2582 = vpack.c.b16 %v2550, %v2550
      %v2583 = vpack.c.b16 %v2551, %v2551
      %v2584 = vpack.c.b16 %v2552, %v2552
      %v2585 = vpack.c.b16 %v2553, %v2553
      %v2586 = vpack.c.b16 %v2554, %v2554
      %v2587 = vpack.c.b16 %v2555, %v2555
      %v2588 = vpack.c.b16 %v2556, %v2556
      %v2589 = vpack.c.b16 %v2557, %v2557
      %v2590 = vpack.c.b16 %v2558, %v2558
      %v2591 = vpack.c.b16 %v2559, %v2559
      %v2592 = vpack.c.b16 %v2560, %v2560
      %v2593 = vpack.c.b16 %v2561, %v2561
      %v2594 = vpack.c.b16 %v2562, %v2562
      %v2595 = vpack.c.b16 %v2563, %v2563
      %v2596 = vpack.c.b16 %v2564, %v2564
      %v2597 = vpack.c.b16 %v2565, %v2565
      %v2598 = vpack.c.b16 %v2566, %v2566
      %v2599 = vpack.c.b16 %v2567, %v2567
      %v2600 = vpack.c.b16 %v2568, %v2568
      %v2601 = vpack.c.b16 %v2569, %v2569
      %v2602 = vpack.c.b16 %v2570, %v2570
      %v2603 = vpack.c.b16 %v2571, %v2571
      %v2604 = vpack.c.b16 %v2572, %v2572
      %v2605 = vpack.c.b16 %v2573, %v2573
      %v2606 = vpack.c.b16 %v2574, %v2574
      %v2607 = vpack.c.b16 %v2575, %v2575
      %v2608 = vpack.c.b16 %v2576, %v2576
      %2641 = vst [vmem:[%s226] sm:$0xf] %v2577
      %2642 = vst [vmem:[%s226 + $0x4] sm:$0xf] %v2578
      %2643 = vst [vmem:[%s226 + $0x8] sm:$0xf] %v2579
      %2644 = vst [vmem:[%s226 + $0xc] sm:$0xf] %v2580
      %2645 = vst [vmem:[%s226 + $0x10] sm:$0xf] %v2581
      %2646 = vst [vmem:[%s226 + $0x14] sm:$0xf] %v2582
      %2647 = vst [vmem:[%s226 + $0x18] sm:$0xf] %v2583
      %2648 = vst [vmem:[%s226 + $0x1c] sm:$0xf] %v2584
      %2649 = vst [vmem:[%s226 + $0x20] sm:$0xf] %v2585
      %2650 = vst [vmem:[%s226 + $0x24] sm:$0xf] %v2586
      %2651 = vst [vmem:[%s226 + $0x28] sm:$0xf] %v2587
      %2652 = vst [vmem:[%s226 + $0x2c] sm:$0xf] %v2588
      %2653 = vst [vmem:[%s226 + $0x30] sm:$0xf] %v2589
      %2654 = vst [vmem:[%s226 + $0x34] sm:$0xf] %v2590
      %2655 = vst [vmem:[%s226 + $0x38] sm:$0xf] %v2591
      %2656 = vst [vmem:[%s226 + $0x3c] sm:$0xf] %v2592
      %2657 = vst [vmem:[%s226 + $0x40] sm:$0xf] %v2593
      %2658 = vst [vmem:[%s226 + $0x44] sm:$0xf] %v2594
      %2659 = vst [vmem:[%s226 + $0x48] sm:$0xf] %v2595
      %2660 = vst [vmem:[%s226 + $0x4c] sm:$0xf] %v2596
      %2661 = vst [vmem:[%s226 + $0x50] sm:$0xf] %v2597
      %2662 = vst [vmem:[%s226 + $0x54] sm:$0xf] %v2598
      %2663 = vst [vmem:[%s226 + $0x58] sm:$0xf] %v2599
      %2664 = vst [vmem:[%s226 + $0x5c] sm:$0xf] %v2600
      %2665 = vst [vmem:[%s226 + $0x60] sm:$0xf] %v2601
      %2666 = vst [vmem:[%s226 + $0x64] sm:$0xf] %v2602
      %2667 = vst [vmem:[%s226 + $0x68] sm:$0xf] %v2603
      %2668 = vst [vmem:[%s226 + $0x6c] sm:$0xf] %v2604
      %2669 = vst [vmem:[%s226 + $0x70] sm:$0xf] %v2605
      %2670 = vst [vmem:[%s226 + $0x74] sm:$0xf] %v2606
      %2671 = vst [vmem:[%s226 + $0x78] sm:$0xf] %v2607
      %2672 = vst [vmem:[%s226 + $0x7c] sm:$0xf] %v2608
      %s2673 = smul.u32 32, %s18
      %p2674 = scmp.lt.s32.totalorder %s2673, 63
      %s2675 = scalar_select %p2674, %s2673, 63
      %p2676 = scmp.lt.s32.totalorder %s19, 0
      %s2677 = scalar_select %p2676, %s19, 0
      %s2678 = sadd.s32 %s2677, %s2675
      %s2679 = smul.addr %s2678, 4
      %s2680 = scalar_lea.vmem %s3, %s2679
      // Predicated region
      $region33: #{reduction_a_forward.5} parent=31 // pred_check
        %p2681 = pneg %p124
      $region34: #{reduction_a_forward.5} parent=31 // pred_check_branch
        %2683 = sbr.rel (%p2681) target = $region36
      $region35: #{reduction_a_forward.5} parent=31 // pred_region
        %s2684 = smul.u32 32, %s18
      $region36: #{reduction_a_forward.5} parent=31 // pred_fallthru
        _
    $region32: #{reduction_a_forward.5} parent=5 // pred_fallthru
      _
    %p2685 = scmp.le.s32.totalorder 2, %s9
    // Predicated region
    $region37: #{reduction_a_forward.5} parent=5 // pred_check
      %p2686 = pneg %p2685
    $region38: #{reduction_a_forward.5} parent=5 // pred_check_branch
      %2688 = sbr.rel (%p2686) target = $region40
    $region39: #{reduction_a_forward.5} parent=5 // pred_region
      %s2689 = ssub.s32 %s9, 2
      // Predicated region
      $region41: #{reduction_a_forward.5} parent=39 // pred_check
        %p2690 = pneg %p130
      $region42: #{reduction_a_forward.5} parent=39 // pred_check_branch
        %2692 = sbr.rel (%p2690) target = $region44
      $region43: #{reduction_a_forward.5} parent=39 // pred_region
        %s2693 = smul.u32 32, %s20
        %p2694 = scmp.lt.s32.totalorder %s2693, 63
        %s2695 = scalar_select %p2694, %s2693, 63
        %p2696 = scmp.lt.s32.totalorder %s21, 0
        %s2697 = scalar_select %p2696, %s21, 0
        %s2698 = sadd.s32 %s2697, %s2695
        %s2699 = smul.addr %s2698, 4
        %s2700 = scalar_lea.vmem %s3, %s2699
      $region44: #{reduction_a_forward.5} parent=39 // pred_fallthru
        _
    $region40: #{reduction_a_forward.5} parent=5 // pred_fallthru
      _
  $region6: #{reduction_a_forward.5} parent=0 // loop_footer
    %s13 = sadd.s32 1, %s9
  $region7: #{reduction_a_forward.5} parent=0 // loop_footer_branch
    %8 = sbr.rel target = $region3
  $region8: #{reduction_a_forward.5} parent=0 // loop_exit
    _

// kernel: reduction_a_forward.6
$region0: #{reduction_a_forward.6}
  #allocation0 [shape = 'u32[]', space=smem, size = 0x4, offset = 0x4, fixed_abs, tag = 'smem constant byte address 0x4 - core index']
  #allocation1 [shape = 'u32[144,128]{1,0:T(1,128)}', space=vmem, size = 0x12000, scoped, tag = 'internal scratch']
  %s0 = inlined_call_operand.vmem [shape: bf16[128,1152], index: 0, kind: input, shape index: {}]
  %s1 = inlined_call_operand.vmem [shape: bf16[1152,128], index: 1, kind: input, shape index: {}]
  %s2 = inlined_call_operand.vmem [shape: f32[1,128], index: 2, kind: input, shape index: {}]
  %s3 = inlined_call_operand.vmem [shape: f32[128,128], index: 3, kind: output, shape index: {}]
  %s4 = sld [smem:[#allocation0]]
  $region45: #{reduction_a_forward.6} parent=0
    _
  %s6 = ssub.s32 1, %s4
  %s7 = scalar_select 0, %s6, %s4
  loop: start=0, step=1, limit=4
  $region2: #{reduction_a_forward.6} parent=0 // loop_pre_header
    _
  $region3: #{reduction_a_forward.6} parent=0 // loop_header
    %s9 = sphi 0, %s13
    %p10 = scmp.ge.s32.totalorder %s9, 4
    %s16 = sphi 0, %s28
    %s17 = sphi 0, %s24
    %s18 = sphi 0, %s16
    %s19 = sphi 0, %s17
    %s20 = sphi 0, %s18
    %s21 = sphi 0, %s19
    %s31 = sphi 0, %s33
    %s34 = sphi 0, %s31
    %s35 = sphi 0, %s34
    %s51 = sphi 0, %s35
    %s57 = sphi 0, %s59
    %s60 = sphi 0, %s57
    %s61 = sphi 0, %s60
    %s77 = sphi 0, %s61
    %s83 = sphi 0, %s85
    %s86 = sphi 0, %s83
    %s87 = sphi 0, %s86
    %s103 = sphi 0, %s87
    %s111 = sphi 0, %s113
    %s114 = sphi 0, %s111
    %s115 = sphi 0, %s114
    %s131 = sphi 0, %s115
  $region4: #{reduction_a_forward.6} parent=0 // loop_header_branch
    %12 = sbr.rel (%p10) target = $region8
  $region5: #{reduction_a_forward.6} parent=0 // loop_body
    %s14 = ssub.s32 %s9, 1
    %s15 = ssub.s32 %s9, 2
    %s22 = sadd.s32 1, %s17
    %p23 = scmp.ge.s32.totalorder %s22, 1
    %s24 = scalar_select %p23, 0, %s22
    %s25 = sadd.s32 1, %s16
    %s26 = scalar_select %p23, %s25, %s16
    %p27 = scmp.ge.s32.totalorder %s26, 2
    %s28 = scalar_select %p27, 0, %s26
    %s29 = ssub.s32 %s16, %s28
    %p30 = scmp.eq.s32.totalorder %s29, 0
    %s32 = sadd.s32 %s31, 1
    %s33 = scalar_select %p30, %s31, %s32
    %p36 = pneg %p30
    %p37 = scmp.eq.s32.totalorder %s9, 1
    %p38 = por %p36, %p37
    %p39 = scmp.ne.s32.totalorder %s31, %s34
    %p40 = scmp.eq.s32.totalorder %s9, 0
    %p41 = por %p39, %p40
    %p42 = scmp.ne.s32.totalorder %s31, %s34
    %p43 = scmp.eq.s32.totalorder %s14, 1
    %p44 = por %p42, %p43
    %p45 = scmp.ne.s32.totalorder %s34, %s35
    %p46 = scmp.eq.s32.totalorder %s14, 0
    %p47 = por %p45, %p46
    %p48 = scmp.ne.s32.totalorder %s34, %s35
    %p49 = scmp.eq.s32.totalorder %s15, 1
    %p50 = por %p48, %p49
    %p52 = scmp.ne.s32.totalorder %s35, %s51
    %p53 = scmp.eq.s32.totalorder %s15, 0
    %p54 = por %p52, %p53
    %s55 = ssub.s32 %s17, %s24
    %p56 = scmp.eq.s32.totalorder %s55, 0
    %s58 = sadd.s32 %s57, 1
    %s59 = scalar_select %p56, %s57, %s58
    %p62 = pneg %p56
    %p63 = scmp.eq.s32.totalorder %s9, 1
    %p64 = por %p62, %p63
    %p65 = scmp.ne.s32.totalorder %s57, %s60
    %p66 = scmp.eq.s32.totalorder %s9, 0
    %p67 = por %p65, %p66
    %p68 = scmp.ne.s32.totalorder %s57, %s60
    %p69 = scmp.eq.s32.totalorder %s14, 1
    %p70 = por %p68, %p69
    %p71 = scmp.ne.s32.totalorder %s60, %s61
    %p72 = scmp.eq.s32.totalorder %s14, 0
    %p73 = por %p71, %p72
    %p74 = scmp.ne.s32.totalorder %s60, %s61
    %p75 = scmp.eq.s32.totalorder %s15, 1
    %p76 = por %p74, %p75
    %p78 = scmp.ne.s32.totalorder %s61, %s77
    %p79 = scmp.eq.s32.totalorder %s15, 0
    %p80 = por %p78, %p79
    %s81 = ssub.s32 %s17, %s24
    %p82 = scmp.eq.s32.totalorder %s81, 0
    %s84 = sadd.s32 %s83, 1
    %s85 = scalar_select %p82, %s83, %s84
    %p88 = pneg %p82
    %p89 = scmp.eq.s32.totalorder %s9, 1
    %p90 = por %p88, %p89
    %p91 = scmp.ne.s32.totalorder %s83, %s86
    %p92 = scmp.eq.s32.totalorder %s9, 0
    %p93 = por %p91, %p92
    %p94 = scmp.ne.s32.totalorder %s83, %s86
    %p95 = scmp.eq.s32.totalorder %s14, 1
    %p96 = por %p94, %p95
    %p97 = scmp.ne.s32.totalorder %s86, %s87
    %p98 = scmp.eq.s32.totalorder %s14, 0
    %p99 = por %p97, %p98
    %p100 = scmp.ne.s32.totalorder %s86, %s87
    %p101 = scmp.eq.s32.totalorder %s15, 1
    %p102 = por %p100, %p101
    %p104 = scmp.ne.s32.totalorder %s87, %s103
    %p105 = scmp.eq.s32.totalorder %s15, 0
    %p106 = por %p104, %p105
    %s107 = ssub.s32 %s16, %s28
    %s108 = ssub.s32 %s17, %s24
    %s109 = sor.u32 %s107, %s108
    %p110 = scmp.eq.s32.totalorder %s109, 0
    %s112 = sadd.s32 %s111, 1
    %s113 = scalar_select %p110, %s111, %s112
    %p116 = pneg %p110
    %p117 = scmp.eq.s32.totalorder %s9, 1
    %p118 = por %p116, %p117
    %p119 = scmp.ne.s32.totalorder %s111, %s114
    %p120 = scmp.eq.s32.totalorder %s9, 0
    %p121 = por %p119, %p120
    %p122 = scmp.ne.s32.totalorder %s111, %s114
    %p123 = scmp.eq.s32.totalorder %s14, 1
    %p124 = por %p122, %p123
    %p125 = scmp.ne.s32.totalorder %s114, %s115
    %p126 = scmp.eq.s32.totalorder %s14, 0
    %p127 = por %p125, %p126
    %p128 = scmp.ne.s32.totalorder %s114, %s115
    %p129 = scmp.eq.s32.totalorder %s15, 1
    %p130 = por %p128, %p129
    %p132 = scmp.ne.s32.totalorder %s115, %s131
    %p133 = scmp.eq.s32.totalorder %s15, 0
    %p134 = por %p132, %p133
    %p135 = scmp.le.s32.totalorder 1, %s9
    %p136 = scmp.lt.s32.totalorder %s9, 3
    %p137 = pnand %p135, %p136
    %p138 = pneg %p137
    // Predicated region
    $region9: #{reduction_a_forward.6} parent=5 // pred_check
      _
    $region10: #{reduction_a_forward.6} parent=5 // pred_check_branch
      %140 = sbr.rel (%p137) target = $region12
    $region11: #{reduction_a_forward.6} parent=5 // pred_region
      %s141 = ssub.s32 %s9, 1
      // Predicated region
      $region13: #{reduction_a_forward.6} parent=11 // pred_check
        %p142 = pneg %p73
      $region14: #{reduction_a_forward.6} parent=11 // pred_check_branch
        %144 = sbr.rel (%p142) target = $region16
      $region15: #{reduction_a_forward.6} parent=11 // pred_region
        %p145 = scmp.lt.s32.totalorder %s19, 0
        %s146 = scalar_select %p145, %s19, 0
        %s147 = smul.addr %s146, 4
        %s148 = scalar_lea.vmem %s1, %s147
      $region16: #{reduction_a_forward.6} parent=11 // pred_fallthru
        _
      // Predicated region
      $region17: #{reduction_a_forward.6} parent=11 // pred_check
        %p149 = pneg %p99
      $region18: #{reduction_a_forward.6} parent=11 // pred_check_branch
        %151 = sbr.rel (%p149) target = $region20
      $region19: #{reduction_a_forward.6} parent=11 // pred_region
        %p152 = scmp.lt.s32.totalorder %s19, 0
        %s153 = scalar_select %p152, %s19, 0
        %s154 = scalar_lea.vmem %s2, %s153
      $region20: #{reduction_a_forward.6} parent=11 // pred_fallthru
        _
    $region12: #{reduction_a_forward.6} parent=5 // pred_fallthru
      _
    %p155 = scmp.lt.s32.totalorder %s9, 2
    // Predicated region
    $region21: #{reduction_a_forward.6} parent=5 // pred_check
      %p156 = pneg %p155
    $region22: #{reduction_a_forward.6} parent=5 // pred_check_branch
      %158 = sbr.rel (%p156) target = $region24
    $region23: #{reduction_a_forward.6} parent=5 // pred_region
      // Predicated region
      $region25: #{reduction_a_forward.6} parent=23 // pred_check
        %p159 = pneg %p41
      $region26: #{reduction_a_forward.6} parent=23 // pred_check_branch
        %161 = sbr.rel (%p159) target = $region28
      $region27: #{reduction_a_forward.6} parent=23 // pred_region
        %s162 = smul.u32 8, %s16
        %p163 = scmp.lt.s32.totalorder %s162, 15
        %s164 = scalar_select %p163, %s162, 15
        %s165 = smul.addr %s164, 9
        %s166 = smul.addr %s165, 4
        %s167 = scalar_lea.vmem %s0, %s166
        %s168 = smul.u32 8, %s16
      $region28: #{reduction_a_forward.6} parent=23 // pred_fallthru
        _
    $region24: #{reduction_a_forward.6} parent=5 // pred_fallthru
      _
    %p169 = scmp.le.s32.totalorder 1, %s9
    %p170 = scmp.lt.s32.totalorder %s9, 3
    %p171 = pnand %p169, %p170
    %p172 = pneg %p171
    // Predicated region
    $region29: #{reduction_a_forward.6} parent=5 // pred_check
      _
    $region30: #{reduction_a_forward.6} parent=5 // pred_check_branch
      %174 = sbr.rel (%p171) target = $region32
    $region31: #{reduction_a_forward.6} parent=5 // pred_region
      %s175 = ssub.s32 %s9, 1
      %s176 = smul.u32 8, %s18
      %p177 = scmp.lt.s32.totalorder %s176, 15
      %s178 = scalar_select %p177, %s176, 15
      %s179 = smul.addr %s178, 9
      %s180 = smul.addr %s179, 4
      %s181 = scalar_lea.vmem %s0, %s180
      %p182 = pneg %p47
      %p183 = pneg %p44
      %p184 = scmp.lt.s32.totalorder %s19, 0
      %s185 = scalar_select %p184, %s19, 0
      %s186 = smul.addr %s185, 4
      %s187 = scalar_lea.vmem %s1, %s186
      %p188 = pneg %p73
      %p189 = pneg %p70
      %p190 = scmp.lt.s32.totalorder %s19, 0
      %s191 = scalar_select %p190, %s19, 0
      %s192 = scalar_lea.vmem %s2, %s191
      %p193 = pneg %p99
      %p194 = pneg %p96
      %p195 = pneg %p127
      %p196 = pneg %p124
      %s197 = smul.u32 8, %s18
      %p198 = scmp.lt.s32.totalorder %s197, 15
      %s199 = scalar_select %p198, %s197, 15
      %p200 = scmp.lt.s32.totalorder %s19, 0
      %s201 = scalar_select %p200, %s19, 0
      %s202 = sadd.s32 %s201, %s199
      %s203 = smul.addr %s202, 8
      %s204 = scalar_lea.vmem %s3, %s203
      %s205 = smul.u32 8, %s18
      %p206 = scmp.lt.s32.totalorder %s205, 15
      %s207 = scalar_select %p206, %s205, 15
      %s208 = smul.addr %s207, 9
      %s209 = smul.addr %s208, 4
      %s210 = scalar_lea.vmem %s0, %s209
      %s211 = smul.u32 8, %s18
      %p212 = scmp.lt.s32.totalorder %s19, 0
      %s213 = scalar_select %p212, %s19, 0
      %s214 = smul.addr %s213, 4
      %s215 = scalar_lea.vmem %s1, %s214
      %p216 = scmp.lt.s32.totalorder %s19, 0
      %s217 = scalar_select %p216, %s19, 0
      %s218 = scalar_lea.vmem %s2, %s217
      %s219 = smul.u32 8, %s18
      %p220 = scmp.lt.s32.totalorder %s219, 15
      %s221 = scalar_select %p220, %s219, 15
      %p222 = scmp.lt.s32.totalorder %s19, 0
      %s223 = scalar_select %p222, %s19, 0
      %s224 = sadd.s32 %s223, %s221
      %s225 = smul.addr %s224, 8
      %s226 = scalar_lea.vmem %s3, %s225
      %s227 = smul.u32 8, %s18
      %v229 = vld [vmem:[%s210] sm:$0xff]
      %v230 = vld [vmem:[%s210 + $0x8] sm:$0xff]
      %v231 = vld [vmem:[%s210 + $0x10] sm:$0xff]
      %v232 = vld [vmem:[%s210 + $0x18] sm:$0xff]
      %v233 = vld [vmem:[%s210 + $0x20] sm:$0xf]
      %v234 = vld [vmem:[%s210 + $0x24] sm:$0xff]
      %v235 = vld [vmem:[%s210 + $0x2c] sm:$0xff]
      %v236 = vld [vmem:[%s210 + $0x34] sm:$0xff]
      %v237 = vld [vmem:[%s210 + $0x3c] sm:$0xff]
      %v238 = vld [vmem:[%s210 + $0x44] sm:$0xf]
      %v239 = vld [vmem:[%s210 + $0x48] sm:$0xff]
      %v240 = vld [vmem:[%s210 + $0x50] sm:$0xff]
      %v241 = vld [vmem:[%s210 + $0x58] sm:$0xff]
      %v242 = vld [vmem:[%s210 + $0x60] sm:$0xff]
      %v243 = vld [vmem:[%s210 + $0x68] sm:$0xf]
      %v244 = vld [vmem:[%s210 + $0x6c] sm:$0xff]
      %v245 = vld [vmem:[%s210 + $0x74] sm:$0xff]
      %v246 = vld [vmem:[%s210 + $0x7c] sm:$0xff]
      %v247 = vld [vmem:[%s210 + $0x84] sm:$0xff]
      %v248 = vld [vmem:[%s210 + $0x8c] sm:$0xf]
      %v249 = vld [vmem:[%s210 + $0x90] sm:$0xff]
      %v250 = vld [vmem:[%s210 + $0x98] sm:$0xff]
      %v251 = vld [vmem:[%s210 + $0xa0] sm:$0xff]
      %v252 = vld [vmem:[%s210 + $0xa8] sm:$0xff]
      %v253 = vld [vmem:[%s210 + $0xb0] sm:$0xf]
      %v254 = vld [vmem:[%s210 + $0xb4] sm:$0xff]
      %v255 = vld [vmem:[%s210 + $0xbc] sm:$0xff]
      %v256 = vld [vmem:[%s210 + $0xc4] sm:$0xff]
      %v257 = vld [vmem:[%s210 + $0xcc] sm:$0xff]
      %v258 = vld [vmem:[%s210 + $0xd4] sm:$0xf]
      %v259 = vld [vmem:[%s210 + $0xd8] sm:$0xff]
      %v260 = vld [vmem:[%s210 + $0xe0] sm:$0xff]
      %v261 = vld [vmem:[%s210 + $0xe8] sm:$0xff]
      %v262 = vld [vmem:[%s210 + $0xf0] sm:$0xff]
      %v263 = vld [vmem:[%s210 + $0xf8] sm:$0xf]
      %v264 = vld [vmem:[%s210 + $0xfc] sm:$0xff]
      %v265 = vld [vmem:[%s210 + $0x104] sm:$0xff]
      %v266 = vld [vmem:[%s210 + $0x10c] sm:$0xff]
      %v267 = vld [vmem:[%s210 + $0x114] sm:$0xff]
      %v268 = vld [vmem:[%s210 + $0x11c] sm:$0xf]
      %v269 = vld [vmem:[%s215] sm:$0xf]
      %v270 = vld [vmem:[%s215 + $0x4] sm:$0xf]
      %v271 = vld [vmem:[%s215 + $0x8] sm:$0xf]
      %v272 = vld [vmem:[%s215 + $0xc] sm:$0xf]
      %v273 = vld [vmem:[%s215 + $0x10] sm:$0xf]
      %v274 = vld [vmem:[%s215 + $0x14] sm:$0xf]
      %v275 = vld [vmem:[%s215 + $0x18] sm:$0xf]
      %v276 = vld [vmem:[%s215 + $0x1c] sm:$0xf]
      %v277 = vld [vmem:[%s215 + $0x20] sm:$0xf]
      %v278 = vld [vmem:[%s215 + $0x24] sm:$0xf]
      %v279 = vld [vmem:[%s215 + $0x28] sm:$0xf]
      %v280 = vld [vmem:[%s215 + $0x2c] sm:$0xf]
      %v281 = vld [vmem:[%s215 + $0x30] sm:$0xf]
      %v282 = vld [vmem:[%s215 + $0x34] sm:$0xf]
      %v283 = vld [vmem:[%s215 + $0x38] sm:$0xf]
      %v284 = vld [vmem:[%s215 + $0x3c] sm:$0xf]
      %v285 = vld [vmem:[%s215 + $0x40] sm:$0xf]
      %v286 = vld [vmem:[%s215 + $0x44] sm:$0xf]
      %v287 = vld [vmem:[%s215 + $0x48] sm:$0xf]
      %v288 = vld [vmem:[%s215 + $0x4c] sm:$0xf]
      %v289 = vld [vmem:[%s215 + $0x50] sm:$0xf]
      %v290 = vld [vmem:[%s215 + $0x54] sm:$0xf]
      %v291 = vld [vmem:[%s215 + $0x58] sm:$0xf]
      %v292 = vld [vmem:[%s215 + $0x5c] sm:$0xf]
      %v293 = vld [vmem:[%s215 + $0x60] sm:$0xf]
      %v294 = vld [vmem:[%s215 + $0x64] sm:$0xf]
      %v295 = vld [vmem:[%s215 + $0x68] sm:$0xf]
      %v296 = vld [vmem:[%s215 + $0x6c] sm:$0xf]
      %v297 = vld [vmem:[%s215 + $0x70] sm:$0xf]
      %v298 = vld [vmem:[%s215 + $0x74] sm:$0xf]
      %v299 = vld [vmem:[%s215 + $0x78] sm:$0xf]
      %v300 = vld [vmem:[%s215 + $0x7c] sm:$0xf]
      %v301 = vld [vmem:[%s215 + $0x80] sm:$0xf]
      %v302 = vld [vmem:[%s215 + $0x84] sm:$0xf]
      %v303 = vld [vmem:[%s215 + $0x88] sm:$0xf]
      %v304 = vld [vmem:[%s215 + $0x8c] sm:$0xf]
      %v305 = vld [vmem:[%s215 + $0x90] sm:$0xf]
      %v306 = vld [vmem:[%s215 + $0x94] sm:$0xf]
      %v307 = vld [vmem:[%s215 + $0x98] sm:$0xf]
      %v308 = vld [vmem:[%s215 + $0x9c] sm:$0xf]
      %v309 = vld [vmem:[%s215 + $0xa0] sm:$0xf]
      %v310 = vld [vmem:[%s215 + $0xa4] sm:$0xf]
      %v311 = vld [vmem:[%s215 + $0xa8] sm:$0xf]
      %v312 = vld [vmem:[%s215 + $0xac] sm:$0xf]
      %v313 = vld [vmem:[%s215 + $0xb0] sm:$0xf]
      %v314 = vld [vmem:[%s215 + $0xb4] sm:$0xf]
      %v315 = vld [vmem:[%s215 + $0xb8] sm:$0xf]
      %v316 = vld [vmem:[%s215 + $0xbc] sm:$0xf]
      %v317 = vld [vmem:[%s215 + $0xc0] sm:$0xf]
      %v318 = vld [vmem:[%s215 + $0xc4] sm:$0xf]
      %v319 = vld [vmem:[%s215 + $0xc8] sm:$0xf]
      %v320 = vld [vmem:[%s215 + $0xcc] sm:$0xf]
      %v321 = vld [vmem:[%s215 + $0xd0] sm:$0xf]
      %v322 = vld [vmem:[%s215 + $0xd4] sm:$0xf]
      %v323 = vld [vmem:[%s215 + $0xd8] sm:$0xf]
      %v324 = vld [vmem:[%s215 + $0xdc] sm:$0xf]
      %v325 = vld [vmem:[%s215 + $0xe0] sm:$0xf]
      %v326 = vld [vmem:[%s215 + $0xe4] sm:$0xf]
      %v327 = vld [vmem:[%s215 + $0xe8] sm:$0xf]
      %v328 = vld [vmem:[%s215 + $0xec] sm:$0xf]
      %v329 = vld [vmem:[%s215 + $0xf0] sm:$0xf]
      %v330 = vld [vmem:[%s215 + $0xf4] sm:$0xf]
      %v331 = vld [vmem:[%s215 + $0xf8] sm:$0xf]
      %v332 = vld [vmem:[%s215 + $0xfc] sm:$0xf]
      %v333 = vld [vmem:[%s215 + $0x100] sm:$0xf]
      %v334 = vld [vmem:[%s215 + $0x104] sm:$0xf]
      %v335 = vld [vmem:[%s215 + $0x108] sm:$0xf]
      %v336 = vld [vmem:[%s215 + $0x10c] sm:$0xf]
      %v337 = vld [vmem:[%s215 + $0x110] sm:$0xf]
      %v338 = vld [vmem:[%s215 + $0x114] sm:$0xf]
      %v339 = vld [vmem:[%s215 + $0x118] sm:$0xf]
      %v340 = vld [vmem:[%s215 + $0x11c] sm:$0xf]
      %v341 = vld [vmem:[%s215 + $0x120] sm:$0xf]
      %v342 = vld [vmem:[%s215 + $0x124] sm:$0xf]
      %v343 = vld [vmem:[%s215 + $0x128] sm:$0xf]
      %v344 = vld [vmem:[%s215 + $0x12c] sm:$0xf]
      %v345 = vld [vmem:[%s215 + $0x130] sm:$0xf]
      %v346 = vld [vmem:[%s215 + $0x134] sm:$0xf]
      %v347 = vld [vmem:[%s215 + $0x138] sm:$0xf]
      %v348 = vld [vmem:[%s215 + $0x13c] sm:$0xf]
      %v349 = vld [vmem:[%s215 + $0x140] sm:$0xf]
      %v350 = vld [vmem:[%s215 + $0x144] sm:$0xf]
      %v351 = vld [vmem:[%s215 + $0x148] sm:$0xf]
      %v352 = vld [vmem:[%s215 + $0x14c] sm:$0xf]
      %v353 = vld [vmem:[%s215 + $0x150] sm:$0xf]
      %v354 = vld [vmem:[%s215 + $0x154] sm:$0xf]
      %v355 = vld [vmem:[%s215 + $0x158] sm:$0xf]
      %v356 = vld [vmem:[%s215 + $0x15c] sm:$0xf]
      %v357 = vld [vmem:[%s215 + $0x160] sm:$0xf]
      %v358 = vld [vmem:[%s215 + $0x164] sm:$0xf]
      %v359 = vld [vmem:[%s215 + $0x168] sm:$0xf]
      %v360 = vld [vmem:[%s215 + $0x16c] sm:$0xf]
      %v361 = vld [vmem:[%s215 + $0x170] sm:$0xf]
      %v362 = vld [vmem:[%s215 + $0x174] sm:$0xf]
      %v363 = vld [vmem:[%s215 + $0x178] sm:$0xf]
      %v364 = vld [vmem:[%s215 + $0x17c] sm:$0xf]
      %v365 = vld [vmem:[%s215 + $0x180] sm:$0xf]
      %v366 = vld [vmem:[%s215 + $0x184] sm:$0xf]
      %v367 = vld [vmem:[%s215 + $0x188] sm:$0xf]
      %v368 = vld [vmem:[%s215 + $0x18c] sm:$0xf]
      %v369 = vld [vmem:[%s215 + $0x190] sm:$0xf]
      %v370 = vld [vmem:[%s215 + $0x194] sm:$0xf]
      %v371 = vld [vmem:[%s215 + $0x198] sm:$0xf]
      %v372 = vld [vmem:[%s215 + $0x19c] sm:$0xf]
      %v373 = vld [vmem:[%s215 + $0x1a0] sm:$0xf]
      %v374 = vld [vmem:[%s215 + $0x1a4] sm:$0xf]
      %v375 = vld [vmem:[%s215 + $0x1a8] sm:$0xf]
      %v376 = vld [vmem:[%s215 + $0x1ac] sm:$0xf]
      %v377 = vld [vmem:[%s215 + $0x1b0] sm:$0xf]
      %v378 = vld [vmem:[%s215 + $0x1b4] sm:$0xf]
      %v379 = vld [vmem:[%s215 + $0x1b8] sm:$0xf]
      %v380 = vld [vmem:[%s215 + $0x1bc] sm:$0xf]
      %v381 = vld [vmem:[%s215 + $0x1c0] sm:$0xf]
      %v382 = vld [vmem:[%s215 + $0x1c4] sm:$0xf]
      %v383 = vld [vmem:[%s215 + $0x1c8] sm:$0xf]
      %v384 = vld [vmem:[%s215 + $0x1cc] sm:$0xf]
      %v385 = vld [vmem:[%s215 + $0x1d0] sm:$0xf]
      %v386 = vld [vmem:[%s215 + $0x1d4] sm:$0xf]
      %v387 = vld [vmem:[%s215 + $0x1d8] sm:$0xf]
      %v388 = vld [vmem:[%s215 + $0x1dc] sm:$0xf]
      %v389 = vld [vmem:[%s215 + $0x1e0] sm:$0xf]
      %v390 = vld [vmem:[%s215 + $0x1e4] sm:$0xf]
      %v391 = vld [vmem:[%s215 + $0x1e8] sm:$0xf]
      %v392 = vld [vmem:[%s215 + $0x1ec] sm:$0xf]
      %v393 = vld [vmem:[%s215 + $0x1f0] sm:$0xf]
      %v394 = vld [vmem:[%s215 + $0x1f4] sm:$0xf]
      %v395 = vld [vmem:[%s215 + $0x1f8] sm:$0xf]
      %v396 = vld [vmem:[%s215 + $0x1fc] sm:$0xf]
      %v397 = vld [vmem:[%s215 + $0x200] sm:$0xf]
      %v398 = vld [vmem:[%s215 + $0x204] sm:$0xf]
      %v399 = vld [vmem:[%s215 + $0x208] sm:$0xf]
      %v400 = vld [vmem:[%s215 + $0x20c] sm:$0xf]
      %v401 = vld [vmem:[%s215 + $0x210] sm:$0xf]
      %v402 = vld [vmem:[%s215 + $0x214] sm:$0xf]
      %v403 = vld [vmem:[%s215 + $0x218] sm:$0xf]
      %v404 = vld [vmem:[%s215 + $0x21c] sm:$0xf]
      %v405 = vld [vmem:[%s215 + $0x220] sm:$0xf]
      %v406 = vld [vmem:[%s215 + $0x224] sm:$0xf]
      %v407 = vld [vmem:[%s215 + $0x228] sm:$0xf]
      %v408 = vld [vmem:[%s215 + $0x22c] sm:$0xf]
      %v409 = vld [vmem:[%s215 + $0x230] sm:$0xf]
      %v410 = vld [vmem:[%s215 + $0x234] sm:$0xf]
      %v411 = vld [vmem:[%s215 + $0x238] sm:$0xf]
      %v412 = vld [vmem:[%s215 + $0x23c] sm:$0xf]
      %v413 = vld [vmem:[%s218] sm:$0x1]
      %v415 = vlaneseq
      %v416 = vshrl.u32 %v415, 7
      %v417 = vsub.s32 0, %v416
      %v418 = vrot.slane %v413, %v417
      %v460 = vunpack.c.l.b16 %v229
      %v461 = vunpack.c.h.b16 %v229
      %v462 = vunpack.c.l.b16 %v230
      %v463 = vunpack.c.h.b16 %v230
      %v464 = vunpack.c.l.b16 %v231
      %v465 = vunpack.c.h.b16 %v231
      %v466 = vunpack.c.l.b16 %v232
      %v467 = vunpack.c.h.b16 %v232
      %v468 = vunpack.c.l.b16 %v233
      %v469 = vunpack.c.l.b16 %v234
      %v470 = vunpack.c.h.b16 %v234
      %v471 = vunpack.c.l.b16 %v235
      %v472 = vunpack.c.h.b16 %v235
      %v473 = vunpack.c.l.b16 %v236
      %v474 = vunpack.c.h.b16 %v236
      %v475 = vunpack.c.l.b16 %v237
      %v476 = vunpack.c.h.b16 %v237
      %v477 = vunpack.c.l.b16 %v238
      %v478 = vunpack.c.l.b16 %v239
      %v479 = vunpack.c.h.b16 %v239
      %v480 = vunpack.c.l.b16 %v240
      %v481 = vunpack.c.h.b16 %v240
      %v482 = vunpack.c.l.b16 %v241
      %v483 = vunpack.c.h.b16 %v241
      %v484 = vunpack.c.l.b16 %v242
      %v485 = vunpack.c.h.b16 %v242
      %v486 = vunpack.c.l.b16 %v243
      %v487 = vunpack.c.l.b16 %v244
      %v488 = vunpack.c.h.b16 %v244
      %v489 = vunpack.c.l.b16 %v245
      %v490 = vunpack.c.h.b16 %v245
      %v491 = vunpack.c.l.b16 %v246
      %v492 = vunpack.c.h.b16 %v246
      %v493 = vunpack.c.l.b16 %v247
      %v494 = vunpack.c.h.b16 %v247
      %v495 = vunpack.c.l.b16 %v248
      %v496 = vunpack.c.l.b16 %v249
      %v497 = vunpack.c.h.b16 %v249
      %v498 = vunpack.c.l.b16 %v250
      %v499 = vunpack.c.h.b16 %v250
      %v500 = vunpack.c.l.b16 %v251
      %v501 = vunpack.c.h.b16 %v251
      %v502 = vunpack.c.l.b16 %v252
      %v503 = vunpack.c.h.b16 %v252
      %v504 = vunpack.c.l.b16 %v253
      %v505 = vunpack.c.l.b16 %v254
      %v506 = vunpack.c.h.b16 %v254
      %v507 = vunpack.c.l.b16 %v255
      %v508 = vunpack.c.h.b16 %v255
      %v509 = vunpack.c.l.b16 %v256
      %v510 = vunpack.c.h.b16 %v256
      %v511 = vunpack.c.l.b16 %v257
      %v512 = vunpack.c.h.b16 %v257
      %v513 = vunpack.c.l.b16 %v258
      %v514 = vunpack.c.l.b16 %v259
      %v515 = vunpack.c.h.b16 %v259
      %v516 = vunpack.c.l.b16 %v260
      %v517 = vunpack.c.h.b16 %v260
      %v518 = vunpack.c.l.b16 %v261
      %v519 = vunpack.c.h.b16 %v261
      %v520 = vunpack.c.l.b16 %v262
      %v521 = vunpack.c.h.b16 %v262
      %v522 = vunpack.c.l.b16 %v263
      %v523 = vunpack.c.l.b16 %v264
      %v524 = vunpack.c.h.b16 %v264
      %v525 = vunpack.c.l.b16 %v265
      %v526 = vunpack.c.h.b16 %v265
      %v527 = vunpack.c.l.b16 %v266
      %v528 = vunpack.c.h.b16 %v266
      %v529 = vunpack.c.l.b16 %v267
      %v530 = vunpack.c.h.b16 %v267
      %v531 = vunpack.c.l.b16 %v268
      %v532 = vpack.c.b16 %v469, %v460
      %v533 = vpack.c.b16 %v470, %v461
      %v534 = vpack.c.b16 %v471, %v462
      %v535 = vpack.c.b16 %v472, %v463
      %v536 = vpack.c.b16 %v473, %v464
      %v537 = vpack.c.b16 %v474, %v465
      %v538 = vpack.c.b16 %v475, %v466
      %v539 = vpack.c.b16 %v476, %v467
      %v540 = vpack.c.b16 %v477, %v468
      %v541 = vpack.c.b16 %v487, %v478
      %v542 = vpack.c.b16 %v488, %v479
      %v543 = vpack.c.b16 %v489, %v480
      %v544 = vpack.c.b16 %v490, %v481
      %v545 = vpack.c.b16 %v491, %v482
      %v546 = vpack.c.b16 %v492, %v483
      %v547 = vpack.c.b16 %v493, %v484
      %v548 = vpack.c.b16 %v494, %v485
      %v549 = vpack.c.b16 %v495, %v486
      %v550 = vpack.c.b16 %v505, %v496
      %v551 = vpack.c.b16 %v506, %v497
      %v552 = vpack.c.b16 %v507, %v498
      %v553 = vpack.c.b16 %v508, %v499
      %v554 = vpack.c.b16 %v509, %v500
      %v555 = vpack.c.b16 %v510, %v501
      %v556 = vpack.c.b16 %v511, %v502
      %v557 = vpack.c.b16 %v512, %v503
      %v558 = vpack.c.b16 %v513, %v504
      %v559 = vpack.c.b16 %v523, %v514
      %v560 = vpack.c.b16 %v524, %v515
      %v561 = vpack.c.b16 %v525, %v516
      %v562 = vpack.c.b16 %v526, %v517
      %v563 = vpack.c.b16 %v527, %v518
      %v564 = vpack.c.b16 %v528, %v519
      %v565 = vpack.c.b16 %v529, %v520
      %v566 = vpack.c.b16 %v530, %v521
      %v567 = vpack.c.b16 %v531, %v522
      %v748 = vunpack.c.l.b16 %v269
      %v749 = vunpack.c.l.b16 %v270
      %v750 = vunpack.c.l.b16 %v271
      %v751 = vunpack.c.l.b16 %v272
      %v752 = vunpack.c.l.b16 %v273
      %v753 = vunpack.c.l.b16 %v274
      %v754 = vunpack.c.l.b16 %v275
      %v755 = vunpack.c.l.b16 %v276
      %v756 = vunpack.c.l.b16 %v277
      %v757 = vunpack.c.l.b16 %v278
      %v758 = vunpack.c.l.b16 %v279
      %v759 = vunpack.c.l.b16 %v280
      %v760 = vunpack.c.l.b16 %v281
      %v761 = vunpack.c.l.b16 %v282
      %v762 = vunpack.c.l.b16 %v283
      %v763 = vunpack.c.l.b16 %v284
      %v764 = vunpack.c.l.b16 %v285
      %v765 = vunpack.c.l.b16 %v286
      %v766 = vunpack.c.l.b16 %v287
      %v767 = vunpack.c.l.b16 %v288
      %v768 = vunpack.c.l.b16 %v289
      %v769 = vunpack.c.l.b16 %v290
      %v770 = vunpack.c.l.b16 %v291
      %v771 = vunpack.c.l.b16 %v292
      %v772 = vunpack.c.l.b16 %v293
      %v773 = vunpack.c.l.b16 %v294
      %v774 = vunpack.c.l.b16 %v295
      %v775 = vunpack.c.l.b16 %v296
      %v776 = vunpack.c.l.b16 %v297
      %v777 = vunpack.c.l.b16 %v298
      %v778 = vunpack.c.l.b16 %v299
      %v779 = vunpack.c.l.b16 %v300
      %v780 = vunpack.c.l.b16 %v301
      %v781 = vunpack.c.l.b16 %v302
      %v782 = vunpack.c.l.b16 %v303
      %v783 = vunpack.c.l.b16 %v304
      %v784 = vunpack.c.l.b16 %v305
      %v785 = vunpack.c.l.b16 %v306
      %v786 = vunpack.c.l.b16 %v307
      %v787 = vunpack.c.l.b16 %v308
      %v788 = vunpack.c.l.b16 %v309
      %v789 = vunpack.c.l.b16 %v310
      %v790 = vunpack.c.l.b16 %v311
      %v791 = vunpack.c.l.b16 %v312
      %v792 = vunpack.c.l.b16 %v313
      %v793 = vunpack.c.l.b16 %v314
      %v794 = vunpack.c.l.b16 %v315
      %v795 = vunpack.c.l.b16 %v316
      %v796 = vunpack.c.l.b16 %v317
      %v797 = vunpack.c.l.b16 %v318
      %v798 = vunpack.c.l.b16 %v319
      %v799 = vunpack.c.l.b16 %v320
      %v800 = vunpack.c.l.b16 %v321
      %v801 = vunpack.c.l.b16 %v322
      %v802 = vunpack.c.l.b16 %v323
      %v803 = vunpack.c.l.b16 %v324
      %v804 = vunpack.c.l.b16 %v325
      %v805 = vunpack.c.l.b16 %v326
      %v806 = vunpack.c.l.b16 %v327
      %v807 = vunpack.c.l.b16 %v328
      %v808 = vunpack.c.l.b16 %v329
      %v809 = vunpack.c.l.b16 %v330
      %v810 = vunpack.c.l.b16 %v331
      %v811 = vunpack.c.l.b16 %v332
      %v812 = vunpack.c.l.b16 %v333
      %v813 = vunpack.c.l.b16 %v334
      %v814 = vunpack.c.l.b16 %v335
      %v815 = vunpack.c.l.b16 %v336
      %v816 = vunpack.c.l.b16 %v337
      %v817 = vunpack.c.l.b16 %v338
      %v818 = vunpack.c.l.b16 %v339
      %v819 = vunpack.c.l.b16 %v340
      %v820 = vunpack.c.l.b16 %v341
      %v821 = vunpack.c.l.b16 %v342
      %v822 = vunpack.c.l.b16 %v343
      %v823 = vunpack.c.l.b16 %v344
      %v824 = vunpack.c.l.b16 %v345
      %v825 = vunpack.c.l.b16 %v346
      %v826 = vunpack.c.l.b16 %v347
      %v827 = vunpack.c.l.b16 %v348
      %v828 = vunpack.c.l.b16 %v349
      %v829 = vunpack.c.l.b16 %v350
      %v830 = vunpack.c.l.b16 %v351
      %v831 = vunpack.c.l.b16 %v352
      %v832 = vunpack.c.l.b16 %v353
      %v833 = vunpack.c.l.b16 %v354
      %v834 = vunpack.c.l.b16 %v355
      %v835 = vunpack.c.l.b16 %v356
      %v836 = vunpack.c.l.b16 %v357
      %v837 = vunpack.c.l.b16 %v358
      %v838 = vunpack.c.l.b16 %v359
      %v839 = vunpack.c.l.b16 %v360
      %v840 = vunpack.c.l.b16 %v361
      %v841 = vunpack.c.l.b16 %v362
      %v842 = vunpack.c.l.b16 %v363
      %v843 = vunpack.c.l.b16 %v364
      %v844 = vunpack.c.l.b16 %v365
      %v845 = vunpack.c.l.b16 %v366
      %v846 = vunpack.c.l.b16 %v367
      %v847 = vunpack.c.l.b16 %v368
      %v848 = vunpack.c.l.b16 %v369
      %v849 = vunpack.c.l.b16 %v370
      %v850 = vunpack.c.l.b16 %v371
      %v851 = vunpack.c.l.b16 %v372
      %v852 = vunpack.c.l.b16 %v373
      %v853 = vunpack.c.l.b16 %v374
      %v854 = vunpack.c.l.b16 %v375
      %v855 = vunpack.c.l.b16 %v376
      %v856 = vunpack.c.l.b16 %v377
      %v857 = vunpack.c.l.b16 %v378
      %v858 = vunpack.c.l.b16 %v379
      %v859 = vunpack.c.l.b16 %v380
      %v860 = vunpack.c.l.b16 %v381
      %v861 = vunpack.c.l.b16 %v382
      %v862 = vunpack.c.l.b16 %v383
      %v863 = vunpack.c.l.b16 %v384
      %v864 = vunpack.c.l.b16 %v385
      %v865 = vunpack.c.l.b16 %v386
      %v866 = vunpack.c.l.b16 %v387
      %v867 = vunpack.c.l.b16 %v388
      %v868 = vunpack.c.l.b16 %v389
      %v869 = vunpack.c.l.b16 %v390
      %v870 = vunpack.c.l.b16 %v391
      %v871 = vunpack.c.l.b16 %v392
      %v872 = vunpack.c.l.b16 %v393
      %v873 = vunpack.c.l.b16 %v394
      %v874 = vunpack.c.l.b16 %v395
      %v875 = vunpack.c.l.b16 %v396
      %v876 = vunpack.c.l.b16 %v397
      %v877 = vunpack.c.l.b16 %v398
      %v878 = vunpack.c.l.b16 %v399
      %v879 = vunpack.c.l.b16 %v400
      %v880 = vunpack.c.l.b16 %v401
      %v881 = vunpack.c.l.b16 %v402
      %v882 = vunpack.c.l.b16 %v403
      %v883 = vunpack.c.l.b16 %v404
      %v884 = vunpack.c.l.b16 %v405
      %v885 = vunpack.c.l.b16 %v406
      %v886 = vunpack.c.l.b16 %v407
      %v887 = vunpack.c.l.b16 %v408
      %v888 = vunpack.c.l.b16 %v409
      %v889 = vunpack.c.l.b16 %v410
      %v890 = vunpack.c.l.b16 %v411
      %v891 = vunpack.c.l.b16 %v412
      %v892 = vpack.c.b16 %v749, %v748
      %v893 = vpack.c.b16 %v751, %v750
      %v894 = vpack.c.b16 %v753, %v752
      %v895 = vpack.c.b16 %v755, %v754
      %v896 = vpack.c.b16 %v757, %v756
      %v897 = vpack.c.b16 %v759, %v758
      %v898 = vpack.c.b16 %v761, %v760
      %v899 = vpack.c.b16 %v763, %v762
      %v900 = vpack.c.b16 %v765, %v764
      %v901 = vpack.c.b16 %v767, %v766
      %v902 = vpack.c.b16 %v769, %v768
      %v903 = vpack.c.b16 %v771, %v770
      %v904 = vpack.c.b16 %v773, %v772
      %v905 = vpack.c.b16 %v775, %v774
      %v906 = vpack.c.b16 %v777, %v776
      %v907 = vpack.c.b16 %v779, %v778
      %v908 = vpack.c.b16 %v781, %v780
      %v909 = vpack.c.b16 %v783, %v782
      %v910 = vpack.c.b16 %v785, %v784
      %v911 = vpack.c.b16 %v787, %v786
      %v912 = vpack.c.b16 %v789, %v788
      %v913 = vpack.c.b16 %v791, %v790
      %v914 = vpack.c.b16 %v793, %v792
      %v915 = vpack.c.b16 %v795, %v794
      %v916 = vpack.c.b16 %v797, %v796
      %v917 = vpack.c.b16 %v799, %v798
      %v918 = vpack.c.b16 %v801, %v800
      %v919 = vpack.c.b16 %v803, %v802
      %v920 = vpack.c.b16 %v805, %v804
      %v921 = vpack.c.b16 %v807, %v806
      %v922 = vpack.c.b16 %v809, %v808
      %v923 = vpack.c.b16 %v811, %v810
      %v924 = vpack.c.b16 %v813, %v812
      %v925 = vpack.c.b16 %v815, %v814
      %v926 = vpack.c.b16 %v817, %v816
      %v927 = vpack.c.b16 %v819, %v818
      %v928 = vpack.c.b16 %v821, %v820
      %v929 = vpack.c.b16 %v823, %v822
      %v930 = vpack.c.b16 %v825, %v824
      %v931 = vpack.c.b16 %v827, %v826
      %v932 = vpack.c.b16 %v829, %v828
      %v933 = vpack.c.b16 %v831, %v830
      %v934 = vpack.c.b16 %v833, %v832
      %v935 = vpack.c.b16 %v835, %v834
      %v936 = vpack.c.b16 %v837, %v836
      %v937 = vpack.c.b16 %v839, %v838
      %v938 = vpack.c.b16 %v841, %v840
      %v939 = vpack.c.b16 %v843, %v842
      %v940 = vpack.c.b16 %v845, %v844
      %v941 = vpack.c.b16 %v847, %v846
      %v942 = vpack.c.b16 %v849, %v848
      %v943 = vpack.c.b16 %v851, %v850
      %v944 = vpack.c.b16 %v853, %v852
      %v945 = vpack.c.b16 %v855, %v854
      %v946 = vpack.c.b16 %v857, %v856
      %v947 = vpack.c.b16 %v859, %v858
      %v948 = vpack.c.b16 %v861, %v860
      %v949 = vpack.c.b16 %v863, %v862
      %v950 = vpack.c.b16 %v865, %v864
      %v951 = vpack.c.b16 %v867, %v866
      %v952 = vpack.c.b16 %v869, %v868
      %v953 = vpack.c.b16 %v871, %v870
      %v954 = vpack.c.b16 %v873, %v872
      %v955 = vpack.c.b16 %v875, %v874
      %v956 = vpack.c.b16 %v877, %v876
      %v957 = vpack.c.b16 %v879, %v878
      %v958 = vpack.c.b16 %v881, %v880
      %v959 = vpack.c.b16 %v883, %v882
      %v960 = vpack.c.b16 %v885, %v884
      %v961 = vpack.c.b16 %v887, %v886
      %v962 = vpack.c.b16 %v889, %v888
      %v963 = vpack.c.b16 %v891, %v890
      %1036 = vmatprep.subr.bf16.mxu0 0
      %1037 = vmatpush1.bf16.msra.mxu0 %v892
      %1038 = vmatprep.subr.bf16.mxu0 0
      %1039 = vmatpush1.bf16.msra.mxu0 %v893
      %1040 = vmatprep.subr.bf16.mxu0 0
      %1041 = vmatpush1.bf16.msra.mxu0 %v894
      %1042 = vmatprep.subr.bf16.mxu0 0
      %1043 = vmatpush1.bf16.msra.mxu0 %v895
      %1044 = vmatprep.subr.bf16.mxu0 0
      %1045 = vmatpush1.bf16.msra.mxu0 %v896
      %1046 = vmatprep.subr.bf16.mxu0 0
      %1047 = vmatpush1.bf16.msra.mxu0 %v897
      %1048 = vmatprep.subr.bf16.mxu0 0
      %1049 = vmatpush1.bf16.msra.mxu0 %v898
      %1050 = vmatprep.subr.bf16.mxu0 0
      %1051 = vmatpush1.bf16.msra.mxu0 %v899
      %1052 = vmatprep.subr.bf16.mxu0 0
      %1053 = vmatpush1.bf16.msra.mxu0 %v900
      %1054 = vmatprep.subr.bf16.mxu0 0
      %1055 = vmatpush1.bf16.msra.mxu0 %v901
      %1056 = vmatprep.subr.bf16.mxu0 0
      %1057 = vmatpush1.bf16.msra.mxu0 %v902
      %1058 = vmatprep.subr.bf16.mxu0 0
      %1059 = vmatpush1.bf16.msra.mxu0 %v903
      %1060 = vmatprep.subr.bf16.mxu0 0
      %1061 = vmatpush1.bf16.msra.mxu0 %v904
      %1062 = vmatprep.subr.bf16.mxu0 0
      %1063 = vmatpush1.bf16.msra.mxu0 %v905
      %1064 = vmatprep.subr.bf16.mxu0 0
      %1065 = vmatpush1.bf16.msra.mxu0 %v906
      %1066 = vmatprep.subr.bf16.mxu0 0
      %1067 = vmatpush1.bf16.msra.mxu0 %v907
      %1068 = vmatprep.mubr.bf16.mxu0 %v533
      %1069 = vmatmul.mubr.bf16.gmra.mrb[0].mxu0 %v532
      %v1070 = vpop.f32.mrb[0].mxu0
      %v1071 = vadd.f32 %v418, %v1070
      %v1072 = vpop.f32.mrb[0].mxu0
      %v1073 = vpop.f32.mrb[0].mxu0
      %v1074 = vadd.f32 %v418, %v1073
      %v1075 = vpop.f32.mrb[0].mxu0
      %1076 = vmatprep.mubr.bf16.mxu0 %v542
      %1077 = vmatmul.mubr.bf16.gmra.mrb[0].mxu0 %v541
      %v1078 = vpop.f32.mrb[0].mxu0
      %v1079 = vadd.f32 %v418, %v1078
      %v1080 = vpop.f32.mrb[0].mxu0
      %v1081 = vpop.f32.mrb[0].mxu0
      %v1082 = vadd.f32 %v418, %v1081
      %v1083 = vpop.f32.mrb[0].mxu0
      %1084 = vmatprep.mubr.bf16.mxu0 %v551
      %1085 = vmatmul.mubr.bf16.gmra.mrb[0].mxu0 %v550
      %v1086 = vpop.f32.mrb[0].mxu0
      %v1087 = vadd.f32 %v418, %v1086
      %v1088 = vpop.f32.mrb[0].mxu0
      %v1089 = vpop.f32.mrb[0].mxu0
      %v1090 = vadd.f32 %v418, %v1089
      %v1091 = vpop.f32.mrb[0].mxu0
      %1092 = vmatprep.mubr.bf16.mxu0 %v560
      %1093 = vmatmul.mubr.bf16.gmra.mrb[0].mxu0 %v559
      %v1094 = vpop.f32.mrb[0].mxu0
      %v1095 = vadd.f32 %v418, %v1094
      %v1096 = vpop.f32.mrb[0].mxu0
      %v1097 = vpop.f32.mrb[0].mxu0
      %v1098 = vadd.f32 %v418, %v1097
      %v1099 = vpop.f32.mrb[0].mxu0
      %1100 = vdwg.mxu0
      %1101 = vmatprep.subr.bf16.mxu0 0
      %1102 = vmatpush1.bf16.msra.mxu0 %v908
      %1103 = vmatprep.subr.bf16.mxu0 0
      %1104 = vmatpush1.bf16.msra.mxu0 %v909
      %1105 = vmatprep.subr.bf16.mxu0 0
      %1106 = vmatpush1.bf16.msra.mxu0 %v910
      %1107 = vmatprep.subr.bf16.mxu0 0
      %1108 = vmatpush1.bf16.msra.mxu0 %v911
      %1109 = vmatprep.subr.bf16.mxu0 0
      %1110 = vmatpush1.bf16.msra.mxu0 %v912
      %1111 = vmatprep.subr.bf16.mxu0 0
      %1112 = vmatpush1.bf16.msra.mxu0 %v913
      %1113 = vmatprep.subr.bf16.mxu0 0
      %1114 = vmatpush1.bf16.msra.mxu0 %v914
      %1115 = vmatprep.subr.bf16.mxu0 0
      %1116 = vmatpush1.bf16.msra.mxu0 %v915
      %1117 = vmatprep.subr.bf16.mxu0 0
      %1118 = vmatpush1.bf16.msra.mxu0 %v916
      %1119 = vmatprep.subr.bf16.mxu0 0
      %1120 = vmatpush1.bf16.msra.mxu0 %v917
      %1121 = vmatprep.subr.bf16.mxu0 0
      %1122 = vmatpush1.bf16.msra.mxu0 %v918
      %1123 = vmatprep.subr.bf16.mxu0 0
      %1124 = vmatpush1.bf16.msra.mxu0 %v919
      %1125 = vmatprep.subr.bf16.mxu0 0
      %1126 = vmatpush1.bf16.msra.mxu0 %v920
      %1127 = vmatprep.subr.bf16.mxu0 0
      %1128 = vmatpush1.bf16.msra.mxu0 %v921
      %1129 = vmatprep.subr.bf16.mxu0 0
      %1130 = vmatpush1.bf16.msra.mxu0 %v922
      %1131 = vmatprep.subr.bf16.mxu0 0
      %1132 = vmatpush1.bf16.msra.mxu0 %v923
      %1133 = vmatprep.mubr.bf16.mxu0 %v535
      %1134 = vmatmul.mubr.bf16.gmra.mrb[0].mxu0 %v534
      %v1135 = vpop.f32.mrb[0].mxu0
      %v1136 = vadd.f32 %v1071, %v1135
      %v1137 = vpop.f32.mrb[0].mxu0
      %v1138 = vpop.f32.mrb[0].mxu0
      %v1139 = vadd.f32 %v1074, %v1138
      %v1140 = vpop.f32.mrb[0].mxu0
      %1141 = vmatprep.mubr.bf16.mxu0 %v544
      %1142 = vmatmul.mubr.bf16.gmra.mrb[0].mxu0 %v543
      %v1143 = vpop.f32.mrb[0].mxu0
      %v1144 = vadd.f32 %v1079, %v1143
      %v1145 = vpop.f32.mrb[0].mxu0
      %v1146 = vpop.f32.mrb[0].mxu0
      %v1147 = vadd.f32 %v1082, %v1146
      %v1148 = vpop.f32.mrb[0].mxu0
      %1149 = vmatprep.mubr.bf16.mxu0 %v553
      %1150 = vmatmul.mubr.bf16.gmra.mrb[0].mxu0 %v552
      %v1151 = vpop.f32.mrb[0].mxu0
      %v1152 = vadd.f32 %v1087, %v1151
      %v1153 = vpop.f32.mrb[0].mxu0
      %v1154 = vpop.f32.mrb[0].mxu0
      %v1155 = vadd.f32 %v1090, %v1154
      %v1156 = vpop.f32.mrb[0].mxu0
      %1157 = vmatprep.mubr.bf16.mxu0 %v562
      %1158 = vmatmul.mubr.bf16.gmra.mrb[0].mxu0 %v561
      %v1159 = vpop.f32.mrb[0].mxu0
      %v1160 = vadd.f32 %v1095, %v1159
      %v1161 = vpop.f32.mrb[0].mxu0
      %v1162 = vpop.f32.mrb[0].mxu0
      %v1163 = vadd.f32 %v1098, %v1162
      %v1164 = vpop.f32.mrb[0].mxu0
      %1165 = vdwg.mxu0
      %1166 = vmatprep.subr.bf16.mxu0 0
      %1167 = vmatpush1.bf16.msra.mxu0 %v924
      %1168 = vmatprep.subr.bf16.mxu0 0
      %1169 = vmatpush1.bf16.msra.mxu0 %v925
      %1170 = vmatprep.subr.bf16.mxu0 0
      %1171 = vmatpush1.bf16.msra.mxu0 %v926
      %1172 = vmatprep.subr.bf16.mxu0 0
      %1173 = vmatpush1.bf16.msra.mxu0 %v927
      %1174 = vmatprep.subr.bf16.mxu0 0
      %1175 = vmatpush1.bf16.msra.mxu0 %v928
      %1176 = vmatprep.subr.bf16.mxu0 0
      %1177 = vmatpush1.bf16.msra.mxu0 %v929
      %1178 = vmatprep.subr.bf16.mxu0 0
      %1179 = vmatpush1.bf16.msra.mxu0 %v930
      %1180 = vmatprep.subr.bf16.mxu0 0
      %1181 = vmatpush1.bf16.msra.mxu0 %v931
      %1182 = vmatprep.subr.bf16.mxu0 0
      %1183 = vmatpush1.bf16.msra.mxu0 %v932
      %1184 = vmatprep.subr.bf16.mxu0 0
      %1185 = vmatpush1.bf16.msra.mxu0 %v933
      %1186 = vmatprep.subr.bf16.mxu0 0
      %1187 = vmatpush1.bf16.msra.mxu0 %v934
      %1188 = vmatprep.subr.bf16.mxu0 0
      %1189 = vmatpush1.bf16.msra.mxu0 %v935
      %1190 = vmatprep.subr.bf16.mxu0 0
      %1191 = vmatpush1.bf16.msra.mxu0 %v936
      %1192 = vmatprep.subr.bf16.mxu0 0
      %1193 = vmatpush1.bf16.msra.mxu0 %v937
      %1194 = vmatprep.subr.bf16.mxu0 0
      %1195 = vmatpush1.bf16.msra.mxu0 %v938
      %1196 = vmatprep.subr.bf16.mxu0 0
      %1197 = vmatpush1.bf16.msra.mxu0 %v939
      %1198 = vmatprep.mubr.bf16.mxu0 %v537
      %1199 = vmatmul.mubr.bf16.gmra.mrb[0].mxu0 %v536
      %v1200 = vpop.f32.mrb[0].mxu0
      %v1201 = vadd.f32 %v1136, %v1200
      %v1202 = vpop.f32.mrb[0].mxu0
      %v1203 = vpop.f32.mrb[0].mxu0
      %v1204 = vadd.f32 %v1139, %v1203
      %v1205 = vpop.f32.mrb[0].mxu0
      %1206 = vmatprep.mubr.bf16.mxu0 %v546
      %1207 = vmatmul.mubr.bf16.gmra.mrb[0].mxu0 %v545
      %v1208 = vpop.f32.mrb[0].mxu0
      %v1209 = vadd.f32 %v1144, %v1208
      %v1210 = vpop.f32.mrb[0].mxu0
      %v1211 = vpop.f32.mrb[0].mxu0
      %v1212 = vadd.f32 %v1147, %v1211
      %v1213 = vpop.f32.mrb[0].mxu0
      %1214 = vmatprep.mubr.bf16.mxu0 %v555
      %1215 = vmatmul.mubr.bf16.gmra.mrb[0].mxu0 %v554
      %v1216 = vpop.f32.mrb[0].mxu0
      %v1217 = vadd.f32 %v1152, %v1216
      %v1218 = vpop.f32.mrb[0].mxu0
      %v1219 = vpop.f32.mrb[0].mxu0
      %v1220 = vadd.f32 %v1155, %v1219
      %v1221 = vpop.f32.mrb[0].mxu0
      %1222 = vmatprep.mubr.bf16.mxu0 %v564
      %1223 = vmatmul.mubr.bf16.gmra.mrb[0].mxu0 %v563
      %v1224 = vpop.f32.mrb[0].mxu0
      %v1225 = vadd.f32 %v1160, %v1224
      %v1226 = vpop.f32.mrb[0].mxu0
      %v1227 = vpop.f32.mrb[0].mxu0
      %v1228 = vadd.f32 %v1163, %v1227
      %v1229 = vpop.f32.mrb[0].mxu0
      %1230 = vdwg.mxu0
      %1231 = vmatprep.subr.bf16.mxu0 0
      %1232 = vmatpush1.bf16.msra.mxu0 %v940
      %1233 = vmatprep.subr.bf16.mxu0 0
      %1234 = vmatpush1.bf16.msra.mxu0 %v941
      %1235 = vmatprep.subr.bf16.mxu0 0
      %1236 = vmatpush1.bf16.msra.mxu0 %v942
      %1237 = vmatprep.subr.bf16.mxu0 0
      %1238 = vmatpush1.bf16.msra.mxu0 %v943
      %1239 = vmatprep.subr.bf16.mxu0 0
      %1240 = vmatpush1.bf16.msra.mxu0 %v944
      %1241 = vmatprep.subr.bf16.mxu0 0
      %1242 = vmatpush1.bf16.msra.mxu0 %v945
      %1243 = vmatprep.subr.bf16.mxu0 0
      %1244 = vmatpush1.bf16.msra.mxu0 %v946
      %1245 = vmatprep.subr.bf16.mxu0 0
      %1246 = vmatpush1.bf16.msra.mxu0 %v947
      %1247 = vmatprep.subr.bf16.mxu0 0
      %1248 = vmatpush1.bf16.msra.mxu0 %v948
      %1249 = vmatprep.subr.bf16.mxu0 0
      %1250 = vmatpush1.bf16.msra.mxu0 %v949
      %1251 = vmatprep.subr.bf16.mxu0 0
      %1252 = vmatpush1.bf16.msra.mxu0 %v950
      %1253 = vmatprep.subr.bf16.mxu0 0
      %1254 = vmatpush1.bf16.msra.mxu0 %v951
      %1255 = vmatprep.subr.bf16.mxu0 0
      %1256 = vmatpush1.bf16.msra.mxu0 %v952
      %1257 = vmatprep.subr.bf16.mxu0 0
      %1258 = vmatpush1.bf16.msra.mxu0 %v953
      %1259 = vmatprep.subr.bf16.mxu0 0
      %1260 = vmatpush1.bf16.msra.mxu0 %v954
      %1261 = vmatprep.subr.bf16.mxu0 0
      %1262 = vmatpush1.bf16.msra.mxu0 %v955
      %1263 = vmatprep.mubr.bf16.mxu0 %v539
      %1264 = vmatmul.mubr.bf16.gmra.mrb[0].mxu0 %v538
      %v1265 = vpop.f32.mrb[0].mxu0
      %v1266 = vadd.f32 %v1201, %v1265
      %v1267 = vpop.f32.mrb[0].mxu0
      %v1268 = vpop.f32.mrb[0].mxu0
      %v1269 = vadd.f32 %v1204, %v1268
      %v1270 = vpop.f32.mrb[0].mxu0
      %1271 = vmatprep.mubr.bf16.mxu0 %v548
      %1272 = vmatmul.mubr.bf16.gmra.mrb[0].mxu0 %v547
      %v1273 = vpop.f32.mrb[0].mxu0
      %v1274 = vadd.f32 %v1209, %v1273
      %v1275 = vpop.f32.mrb[0].mxu0
      %v1276 = vpop.f32.mrb[0].mxu0
      %v1277 = vadd.f32 %v1212, %v1276
      %v1278 = vpop.f32.mrb[0].mxu0
      %1279 = vmatprep.mubr.bf16.mxu0 %v557
      %1280 = vmatmul.mubr.bf16.gmra.mrb[0].mxu0 %v556
      %v1281 = vpop.f32.mrb[0].mxu0
      %v1282 = vadd.f32 %v1217, %v1281
      %v1283 = vpop.f32.mrb[0].mxu0
      %v1284 = vpop.f32.mrb[0].mxu0
      %v1285 = vadd.f32 %v1220, %v1284
      %v1286 = vpop.f32.mrb[0].mxu0
      %1287 = vmatprep.mubr.bf16.mxu0 %v566
      %1288 = vmatmul.mubr.bf16.gmra.mrb[0].mxu0 %v565
      %v1289 = vpop.f32.mrb[0].mxu0
      %v1290 = vadd.f32 %v1225, %v1289
      %v1291 = vpop.f32.mrb[0].mxu0
      %v1292 = vpop.f32.mrb[0].mxu0
      %v1293 = vadd.f32 %v1228, %v1292
      %v1294 = vpop.f32.mrb[0].mxu0
      %1295 = vdwg.mxu0
      %1296 = vmatprep.subr.bf16.mxu0 0
      %1297 = vmatpush1.bf16.msra.mxu0 %v956
      %1298 = vmatprep.subr.bf16.mxu0 0
      %1299 = vmatpush1.bf16.msra.mxu0 %v957
      %1300 = vmatprep.subr.bf16.mxu0 0
      %1301 = vmatpush1.bf16.msra.mxu0 %v958
      %1302 = vmatprep.subr.bf16.mxu0 0
      %1303 = vmatpush1.bf16.msra.mxu0 %v959
      %1304 = vmatprep.subr.bf16.mxu0 0
      %1305 = vmatpush1.bf16.msra.mxu0 %v960
      %1306 = vmatprep.subr.bf16.mxu0 0
      %1307 = vmatpush1.bf16.msra.mxu0 %v961
      %1308 = vmatprep.subr.bf16.mxu0 0
      %1309 = vmatpush1.bf16.msra.mxu0 %v962
      %1310 = vmatprep.subr.bf16.mxu0 0
      %1311 = vmatpush1.bf16.msra.mxu0 %v963
      %1312 = vmatprep.subr.bf16.mxu0 0
      %1313 = vmatpush1.bf16.msra.mxu0 0
      %1314 = vmatprep.subr.bf16.mxu0 0
      %1315 = vmatpush1.bf16.msra.mxu0 0
      %1316 = vmatprep.subr.bf16.mxu0 0
      %1317 = vmatpush1.bf16.msra.mxu0 0
      %1318 = vmatprep.subr.bf16.mxu0 0
      %1319 = vmatpush1.bf16.msra.mxu0 0
      %1320 = vmatprep.subr.bf16.mxu0 0
      %1321 = vmatpush1.bf16.msra.mxu0 0
      %1322 = vmatprep.subr.bf16.mxu0 0
      %1323 = vmatpush1.bf16.msra.mxu0 0
      %1324 = vmatprep.subr.bf16.mxu0 0
      %1325 = vmatpush1.bf16.msra.mxu0 0
      %1326 = vmatprep.subr.bf16.mxu0 0
      %1327 = vmatpush1.bf16.msra.mxu0 0
      %1328 = vmatprep.mubr.bf16.mxu0 0
      %1329 = vmatmul.mubr.bf16.gmra.mrb[0].mxu0 %v540
      %v1330 = vpop.f32.mrb[0].mxu0
      %v1331 = vadd.f32 %v1266, %v1330
      %v1332 = vpop.f32.mrb[0].mxu0
      %v1333 = vpop.f32.mrb[0].mxu0
      %v1334 = vadd.f32 %v1269, %v1333
      %v1335 = vpop.f32.mrb[0].mxu0
      %1336 = vmatprep.mubr.bf16.mxu0 0
      %1337 = vmatmul.mubr.bf16.gmra.mrb[0].mxu0 %v549
      %v1338 = vpop.f32.mrb[0].mxu0
      %v1339 = vadd.f32 %v1274, %v1338
      %v1340 = vpop.f32.mrb[0].mxu0
      %v1341 = vpop.f32.mrb[0].mxu0
      %v1342 = vadd.f32 %v1277, %v1341
      %v1343 = vpop.f32.mrb[0].mxu0
      %1344 = vmatprep.mubr.bf16.mxu0 0
      %1345 = vmatmul.mubr.bf16.gmra.mrb[0].mxu0 %v558
      %v1346 = vpop.f32.mrb[0].mxu0
      %v1347 = vadd.f32 %v1282, %v1346
      %v1348 = vpop.f32.mrb[0].mxu0
      %v1349 = vpop.f32.mrb[0].mxu0
      %v1350 = vadd.f32 %v1285, %v1349
      %v1351 = vpop.f32.mrb[0].mxu0
      %1352 = vmatprep.mubr.bf16.mxu0 0
      %1353 = vmatmul.mubr.bf16.gmra.mrb[0].mxu0 %v567
      %v1354 = vpop.f32.mrb[0].mxu0
      %v1355 = vadd.f32 %v1290, %v1354
      %v1356 = vpop.f32.mrb[0].mxu0
      %v1357 = vpop.f32.mrb[0].mxu0
      %v1358 = vadd.f32 %v1293, %v1357
      %v1359 = vpop.f32.mrb[0].mxu0
      %1360 = vdwg.mxu0
      %v1361 = vmax.f32 %v1331, 0.0
      %v1362 = vmax.f32 %v1334, 0.0
      %v1363 = vmax.f32 %v1339, 0.0
      %v1364 = vmax.f32 %v1342, 0.0
      %v1365 = vmax.f32 %v1347, 0.0
      %v1366 = vmax.f32 %v1350, 0.0
      %v1367 = vmax.f32 %v1355, 0.0
      %v1368 = vmax.f32 %v1358, 0.0
      %1369 = vst [vmem:[%s226] sm:$0xff] %v1361
      %1370 = vst [vmem:[%s226 + $0x8] sm:$0xff] %v1362
      %1371 = vst [vmem:[%s226 + $0x10] sm:$0xff] %v1363
      %1372 = vst [vmem:[%s226 + $0x18] sm:$0xff] %v1364
      %1373 = vst [vmem:[%s226 + $0x20] sm:$0xff] %v1365
      %1374 = vst [vmem:[%s226 + $0x28] sm:$0xff] %v1366
      %1375 = vst [vmem:[%s226 + $0x30] sm:$0xff] %v1367
      %1376 = vst [vmem:[%s226 + $0x38] sm:$0xff] %v1368
      %s1377 = smul.u32 8, %s18
      %p1378 = scmp.lt.s32.totalorder %s1377, 15
      %s1379 = scalar_select %p1378, %s1377, 15
      %p1380 = scmp.lt.s32.totalorder %s19, 0
      %s1381 = scalar_select %p1380, %s19, 0
      %s1382 = sadd.s32 %s1381, %s1379
      %s1383 = smul.addr %s1382, 8
      %s1384 = scalar_lea.vmem %s3, %s1383
      // Predicated region
      $region33: #{reduction_a_forward.6} parent=31 // pred_check
        %p1385 = pneg %p124
      $region34: #{reduction_a_forward.6} parent=31 // pred_check_branch
        %1387 = sbr.rel (%p1385) target = $region36
      $region35: #{reduction_a_forward.6} parent=31 // pred_region
        %s1388 = smul.u32 8, %s18
      $region36: #{reduction_a_forward.6} parent=31 // pred_fallthru
        _
    $region32: #{reduction_a_forward.6} parent=5 // pred_fallthru
      _
    %p1389 = scmp.le.s32.totalorder 2, %s9
    // Predicated region
    $region37: #{reduction_a_forward.6} parent=5 // pred_check
      %p1390 = pneg %p1389
    $region38: #{reduction_a_forward.6} parent=5 // pred_check_branch
      %1392 = sbr.rel (%p1390) target = $region40
    $region39: #{reduction_a_forward.6} parent=5 // pred_region
      %s1393 = ssub.s32 %s9, 2
      // Predicated region
      $region41: #{reduction_a_forward.6} parent=39 // pred_check
        %p1394 = pneg %p130
      $region42: #{reduction_a_forward.6} parent=39 // pred_check_branch
        %1396 = sbr.rel (%p1394) target = $region44
      $region43: #{reduction_a_forward.6} parent=39 // pred_region
        %s1397 = smul.u32 8, %s20
        %p1398 = scmp.lt.s32.totalorder %s1397, 15
        %s1399 = scalar_select %p1398, %s1397, 15
        %p1400 = scmp.lt.s32.totalorder %s21, 0
        %s1401 = scalar_select %p1400, %s21, 0
        %s1402 = sadd.s32 %s1401, %s1399
        %s1403 = smul.addr %s1402, 8
        %s1404 = scalar_lea.vmem %s3, %s1403
      $region44: #{reduction_a_forward.6} parent=39 // pred_fallthru
        _
    $region40: #{reduction_a_forward.6} parent=5 // pred_fallthru
      _
  $region6: #{reduction_a_forward.6} parent=0 // loop_footer
    %s13 = sadd.s32 1, %s9
  $region7: #{reduction_a_forward.6} parent=0 // loop_footer_branch
    %8 = sbr.rel target = $region3
  $region8: #{reduction_a_forward.6} parent=0 // loop_exit
    _

</llo_original>
